<compile_context>
chip_gen: v7x
topology: tpu7x:2x2x1
jax: 0.10.0
libtpu: 0.0.40
codegen_flags: <defaults>
</compile_context>

<pallas_src>
import functools
from typing import NamedTuple

import jax
import jax.numpy as jnp
import numpy as np
from jax import lax
from jax.experimental import pallas as pl
from jax.experimental.pallas import tpu as pltpu

LEAKY_SLOPE = 0.01
BN_EPS = 1e-5
LANES = 128


class EncoderOutput(NamedTuple):
    representation: jax.Array
    feature: jax.Array


class EncoderStatics(NamedTuple):
    kernel_size: int
    in_channels: int
    c1: int
    c2: int
    c3: int
    repr_dim: int
    img_feature_size: int


def _round8(x: int) -> int:
    return (x + 7) // 8 * 8


def _full_spec(shape):
    nd = len(shape)
    return pl.BlockSpec(shape, lambda i: (0,) * nd)


def _leaky(v):
    return jnp.maximum(v, LEAKY_SLOPE * v)


# -----------------------------------------------------------------------------
# The single fused Pallas kernel
# -----------------------------------------------------------------------------
def _encoder_kernel(xp_ref, w1_ref, b1_ref, w2_ref, g2_ref, be2_ref,
                    w3_ref, g3_ref, be3_ref, wd_ref, bd_ref,
                    feat_ref, rep_ref,
                    a1_ref, p2_ref, a2c_ref, a3_ref, sel2_ref, stage_ref,
                    *, n, k, c1, c2, pitch1, ow2, ow3,
                    m2, m3, a2rows, v2, v3, pack_tile):
    f32 = jnp.float32
    kk = k * k

    # ---- one-hot stride-2 row-gather matrices (built once, VPU/iota only) ----
    def build_sel(nrow, ncol, ow_out, src_pitch, n_valid):
        ri = lax.broadcasted_iota(jnp.int32, (nrow, ncol), 0).astype(f32)
        ci = lax.broadcasted_iota(jnp.int32, (nrow, ncol), 1).astype(f32)
        ho = jnp.floor((ri + 0.5) * (1.0 / ow_out))      # exact r // ow_out
        wo = ri - ho * ow_out
        tgt = 2.0 * ho * src_pitch + 2.0 * wo            # flat index of kept row
        return ((ci == tgt) & (ri < n_valid)).astype(f32)

    sel2_ref[...] = build_sel(a2rows, m2, ow2, pitch1, v2)

    # ---- lane-packed im2col: out[r, tap*ci + c] = src[r + kh*pitch + kw, c] ----
    # Requires src lanes >= ci to be zero (true for every activation here), so
    # the roll+add is exact.
    def pack_block(load, base, rows, src_pitch, ci_in):
        acc = load(base, rows)
        for tap in range(1, kk):
            kh, kw = divmod(tap, k)
            acc = acc + pltpu.roll(load(base + kh * src_pitch + kw, rows),
                                   tap * ci_in, axis=1)
        return acc

    # =================== pass 1: conv1 + leaky, conv2 (stride 2) ===============
    sum2 = jnp.zeros((1, LANES), f32)
    ssq2 = jnp.zeros((1, LANES), f32)
    for s in range(n):
        # conv1: input already tap-packed by the wrapper -> ONE matmul + bias.
        a1_ref[...] = _leaky(
            jnp.dot(xp_ref[s, :, :], w1_ref[...], preferred_element_type=f32)
            + b1_ref[...])

        # conv2 (b2 dropped: cancels exactly against the BN batch mean).
        for base in range(0, m2, pack_tile):
            rows = min(pack_tile, m2 - base)
            p2_ref[pl.ds(base, rows), :] = pack_block(
                lambda off, rr: a1_ref[pl.ds(off, rr), :],
                base, rows, pitch1, c1)
        sel_lhs = jnp.dot(sel2_ref[...], p2_ref[...],
                          preferred_element_type=f32)         # (a2rows, 128)
        a2c = jnp.dot(sel_lhs, w2_ref[...], preferred_element_type=f32)
        a2c_ref[s, :, :] = a2c
        # rows >= v2 of a2c are exactly zero, so full-row sums are the valid sums
        sum2 = sum2 + jnp.sum(a2c, axis=0, keepdims=True)
        ssq2 = ssq2 + jnp.sum(a2c * a2c, axis=0, keepdims=True)

    # ============ bn2 (train mode, single-pass stats) folded into conv3 ========
    inv2 = 1.0 / float(n * v2)
    mean2 = sum2 * inv2
    var2 = ssq2 * inv2 - mean2 * mean2
    scale2 = g2_ref[...] * lax.rsqrt(var2 + BN_EPS)
    shift2 = be2_ref[...] - mean2 * scale2
    scale2_rep = scale2                       # replicate per packed-tap lane group
    shift2_rep = shift2
    for tap in range(1, kk):
        scale2_rep = scale2_rep + pltpu.roll(scale2, tap * c2, axis=1)
        shift2_rep = shift2_rep + pltpu.roll(shift2, tap * c2, axis=1)
    bias3 = jnp.dot(shift2_rep, w3_ref[...], preferred_element_type=f32)  # (1,128)

    # =================== pass 2: conv3 (stride 2, bn2 folded in) ===============
    sel3 = build_sel(v3, m3, ow3, ow2, v3)                    # (v3, m3)
    sum3 = jnp.zeros((1, LANES), f32)
    ssq3 = jnp.zeros((1, LANES), f32)
    for s in range(n):
        p3 = pack_block(lambda off, rr: a2c_ref[s, pl.ds(off, rr), :],
                        0, m3, ow2, c2)                       # (m3, 128)
        sel_lhs3 = jnp.dot(sel3, p3, preferred_element_type=f32)   # (v3, 128)
        a3 = jnp.dot(sel_lhs3 * scale2_rep, w3_ref[...],
                     preferred_element_type=f32) + bias3
        a3_ref[s, :, :] = a3
        sum3 = sum3 + jnp.sum(a3, axis=0, keepdims=True)
        ssq3 = ssq3 + jnp.sum(a3 * a3, axis=0, keepdims=True)

    # =========== bn3 + leaky -> feature; stage rows for the dense ==============
    inv3 = 1.0 / float(n * v3)
    mean3 = sum3 * inv3
    var3 = ssq3 * inv3 - mean3 * mean3
    scale3 = g3_ref[...] * lax.rsqrt(var3 + BN_EPS)
    shift3 = be3_ref[...] - mean3 * scale3

    stage_ref[...] = jnp.zeros_like(stage_ref)
    for s in range(n):
        f = _leaky(a3_ref[s, :, :] * scale3 + shift3)         # (v3, 128) NHWC-flat
        feat_ref[s, :, :] = f
        for p in range(v3):                                   # lane-aligned writes
            stage_ref[pl.ds(s, 1), pl.ds(p * LANES, LANES)] = f[p:p + 1, :]

    # =================== dense: ONE (n8, v3*128) x (v3*128, 128) ===============
    rep_ref[...] = (jnp.dot(stage_ref[...], wd_ref[...],
                            preferred_element_type=f32) + bd_ref[...])


# -----------------------------------------------------------------------------
# Parameter preparation (done ONCE, outside the forward pass)
# -----------------------------------------------------------------------------
def prepare_params(params, img_feature_size):
    w1, w2, w3 = params["w1"], params["w2"], params["w3"]
    k = w1.shape[2]
    cin = w1.shape[1]
    c1, c2, c3 = w1.shape[0], w2.shape[0], w3.shape[0]
    repr_dim = params["wd"].shape[1]
    p_spatial = img_feature_size * img_feature_size
    assert params["wd"].shape[0] == p_spatial * c3
    assert k * k * max(cin, c1, c2) <= LANES   # tap-packed contraction fits lanes

    def conv_w(wt):
        # (Co,Ci,kh,kw) -> tap-packed (128,128): row = (kh*k+kw)*Ci + ci, col = co
        co, ci, kh, kw = wt.shape
        g = jnp.transpose(wt, (2, 3, 1, 0)).reshape(kh * kw * ci, co)
        return jnp.pad(g, ((0, LANES - kh * kw * ci), (0, LANES - co)))

    def vec(v):      # (C,) -> (1, 128), zero padded
        return jnp.pad(v.reshape(1, -1), ((0, 0), (0, LANES - v.shape[0])))

    # dense weight rows are c*P + p (NCHW flatten); repack to row = p*128 + c so
    # the staged lane-dense feature slab contracts in ONE matmul.
    wd = params["wd"].reshape(c3, p_spatial, repr_dim)
    wd = jnp.transpose(wd, (1, 0, 2))                            # (P, c3, r)
    wd = jnp.pad(wd, ((0, 0), (0, LANES - c3), (0, LANES - repr_dim)))
    wd = wd.reshape(p_spatial * LANES, LANES)

    arrays = {
        "w1": conv_w(w1), "b1": vec(params["b1"]),
        "w2": conv_w(w2), "g2": vec(params["g2"]), "be2": vec(params["be2"]),
        "w3": conv_w(w3), "g3": vec(params["g3"]), "be3": vec(params["be3"]),
        "wd": wd, "bd": vec(params["bd"]),
    }
    statics = EncoderStatics(kernel_size=k, in_channels=cin, c1=c1, c2=c2, c3=c3,
                             repr_dim=repr_dim, img_feature_size=img_feature_size)
    return arrays, statics


# -----------------------------------------------------------------------------
# Forward pass (single fused pallas_call + minimal boundary glue)
# -----------------------------------------------------------------------------
@functools.partial(jax.jit, static_argnums=(2,))
def base_encoder_forward(x_nchw, prep, statics: EncoderStatics):
    n, cin, h, w = x_nchw.shape
    k = statics.kernel_size
    c1, c2, c3 = statics.c1, statics.c2, statics.c3
    assert cin == statics.in_channels

    oh1, ow1 = h - k + 1, w - k + 1
    oh2, ow2 = (oh1 - k) // 2 + 1, (ow1 - k) // 2 + 1
    oh3, ow3 = (oh2 - k) // 2 + 1, (ow2 - k) // 2 + 1
    assert oh3 == statics.img_feature_size and ow3 == statics.img_feature_size
    v2, v3 = oh2 * ow2, oh3 * ow3

    # Row extents of the flat (pitch-preserving) slabs, rounded to sublane mults.
    m3 = _round8(2 * (oh3 - 1) * ow2 + 2 * (ow3 - 1) + 1)     # conv3 slab rows
    a2rows = _round8(max(v2, m3 + (k - 1) * ow2 + (k - 1)))   # kept conv2 rows
    m2 = _round8(2 * (oh2 - 1) * w + 2 * (ow2 - 1) + 1)       # conv2 slab rows
    r1 = _round8(m2 + (k - 1) * w + (k - 1))                  # conv1 output rows
    r0 = r1 + (k - 1) * w + (k - 1)                           # flat input rows
    n8 = _round8(n)

    # input: NCHW -> flat NHWC rows, zero pad, tap-pack conv1's im2col into lanes
    xf = jnp.transpose(x_nchw, (0, 2, 3, 1)).astype(jnp.float32)
    xf = xf.reshape(n, h * w, cin)
    xf = jnp.pad(xf, ((0, 0), (0, r0 - h * w), (0, 0)))
    taps = [xf[:, kh * w + kw: kh * w + kw + r1, :]
            for kh in range(k) for kw in range(k)]
    xp = jnp.concatenate(taps, axis=-1)                       # (n, r1, k*k*cin)
    xp = jnp.pad(xp, ((0, 0), (0, 0), (0, LANES - k * k * cin)))

    kernel = functools.partial(
        _encoder_kernel, n=n, k=k, c1=c1, c2=c2, pitch1=w, ow2=ow2, ow3=ow3,
        m2=m2, m3=m3, a2rows=a2rows, v2=v2, v3=v3, pack_tile=128)

    args = (xp, prep["w1"], prep["b1"], prep["w2"], prep["g2"], prep["be2"],
            prep["w3"], prep["g3"], prep["be3"], prep["wd"], prep["bd"])

    feat_flat, rep = pl.pallas_call(
        kernel,
        out_shape=(jax.ShapeDtypeStruct((n, v3, LANES), jnp.float32),
                   jax.ShapeDtypeStruct((n8, LANES), jnp.float32)),
        grid=(1,),
        in_specs=[_full_spec(a.shape) for a in args],
        out_specs=(_full_spec((n, v3, LANES)), _full_spec((n8, LANES))),
        scratch_shapes=[
            pltpu.VMEM((r1, LANES), jnp.float32),         # conv1 output slab (reused per sample)
            pltpu.VMEM((m2, LANES), jnp.float32),         # conv2 lane-packed im2col slab
            pltpu.VMEM((n, a2rows, LANES), jnp.float32),  # conv2 compact output (all samples)
            pltpu.VMEM((n, v3, LANES), jnp.float32),      # conv3 compact output (all samples)
            pltpu.VMEM((a2rows, m2), jnp.float32),        # stride-2 one-hot selection
            pltpu.VMEM((n8, v3 * LANES), jnp.float32),    # dense LHS staging slab
        ],
        compiler_params=pltpu.CompilerParams(
            dimension_semantics=("arbitrary",)),
    )(*args)

    feature = jnp.transpose(
        feat_flat.reshape(n, oh3, ow3, LANES)[..., :c3], (0, 3, 1, 2))
    representation = rep[:n, :statics.repr_dim]
    return EncoderOutput(representation=representation, feature=feature)


# -----------------------------------------------------------------------------
# Pure-JAX reference for the correctness check
# -----------------------------------------------------------------------------
def ref_forward(x_nchw, params, kernel_size):
    x = jnp.transpose(x_nchw, (0, 2, 3, 1))

    def conv(x, w, b, stride):
        wh = jnp.transpose(w, (2, 3, 1, 0))   # OIHW -> HWIO
        y = jax.lax.conv_general_dilated(
            x, wh, (stride, stride), "VALID",
            dimension_numbers=("NHWC", "HWIO", "NHWC"))
        return y + b

    def bn(x, g, be):
        mean = jnp.mean(x, axis=(0, 1, 2), keepdims=True)
        var = jnp.mean((x - mean) ** 2, axis=(0, 1, 2), keepdims=True)
        return (x - mean) * jax.lax.rsqrt(var + BN_EPS) * g + be

    def leaky(x):
        return jnp.where(x >= 0, x, LEAKY_SLOPE * x)

    x = leaky(conv(x, params["w1"], params["b1"], 1))
    x = bn(conv(x, params["w2"], params["b2"], 2), params["g2"], params["be2"])
    x = leaky(bn(conv(x, params["w3"], params["b3"], 2),
                 params["g3"], params["be3"]))
    feature = jnp.transpose(x, (0, 3, 1, 2))
    n = feature.shape[0]
    flat = feature.reshape(n, -1)
    rep = flat @ params["wd"] + params["bd"]
    return EncoderOutput(representation=rep, feature=feature)


# -----------------------------------------------------------------------------
if __name__ == "__main__":
    # Module hyper-parameters (small, self-consistent):
    in_channels, num_filters, kernel_size = 3, 4, 3
    img_feature_size, repr_dim = 4, 32
    # Input spatial 21 -> conv1: 19 -> conv2: 9 -> conv3: 4 == img_feature_size
    batch, spatial = 2, 21

    c1 = num_filters * 2 ** 0   # 4
    c2 = num_filters * 2 ** 1   # 8
    c3 = num_filters * 2 ** 2   # 16
    in_feat = img_feature_size ** 2 * c3  # 256

    key = jax.random.PRNGKey(0)
    ks = jax.random.split(key, 10)
    params = {
        "w1": jax.random.normal(ks[0], (c1, in_channels, kernel_size, kernel_size), jnp.float32) * 0.05,
        "b1": jax.random.normal(ks[1], (c1,), jnp.float32) * 0.05,
        "w2": jax.random.normal(ks[2], (c2, c1, kernel_size, kernel_size), jnp.float32) * 0.05,
        "b2": jax.random.normal(ks[3], (c2,), jnp.float32) * 0.05,
        "g2": jnp.ones((c2,), jnp.float32),
        "be2": jnp.zeros((c2,), jnp.float32),
        "w3": jax.random.normal(ks[4], (c3, c2, kernel_size, kernel_size), jnp.float32) * 0.05,
        "b3": jax.random.normal(ks[5], (c3,), jnp.float32) * 0.05,
        "g3": jnp.ones((c3,), jnp.float32),
        "be3": jnp.zeros((c3,), jnp.float32),
        "wd": jax.random.normal(ks[6], (in_feat, repr_dim), jnp.float32) * 0.05,
        "bd": jax.random.normal(ks[7], (repr_dim,), jnp.float32) * 0.05,
    }

    x = jax.random.normal(ks[8], (batch, in_channels, spatial, spatial), jnp.float32)

    prep_arrays, statics = prepare_params(params, img_feature_size)
    out = jax.block_until_ready(base_encoder_forward(x, prep_arrays, statics))
    ref = jax.block_until_ready(ref_forward(x, params, kernel_size))

    assert out.representation.shape == (batch, repr_dim)
    assert out.feature.shape == (batch, c3, img_feature_size, img_feature_size)
    np.testing.assert_allclose(np.asarray(out.representation),
                               np.asarray(ref.representation),
                               rtol=1e-4, atol=1e-4)
    np.testing.assert_allclose(np.asarray(out.feature),
                               np.asarray(ref.feature),
                               rtol=1e-4, atol=1e-4)
    print("KERNEL_OK")
</pallas_src>

<mosaic_0001>
module attributes {stable_mosaic.version = 11 : i64} {
  func.func @_encoder_kernel(%arg0: i32, %arg1: memref<2x408x128xf32, #tpu.memory_space<vmem>>, %arg2: memref<128x128xf32, #tpu.memory_space<vmem>>, %arg3: memref<1x128xf32, #tpu.memory_space<vmem>>, %arg4: memref<128x128xf32, #tpu.memory_space<vmem>>, %arg5: memref<1x128xf32, #tpu.memory_space<vmem>>, %arg6: memref<1x128xf32, #tpu.memory_space<vmem>>, %arg7: memref<128x128xf32, #tpu.memory_space<vmem>>, %arg8: memref<1x128xf32, #tpu.memory_space<vmem>>, %arg9: memref<1x128xf32, #tpu.memory_space<vmem>>, %arg10: memref<2048x128xf32, #tpu.memory_space<vmem>>, %arg11: memref<1x128xf32, #tpu.memory_space<vmem>>, %arg12: memref<2x16x128xf32, #tpu.memory_space<vmem>>, %arg13: memref<8x128xf32, #tpu.memory_space<vmem>>, %arg14: memref<408x128xf32, #tpu.memory_space<vmem>>, %arg15: memref<360x128xf32, #tpu.memory_space<vmem>>, %arg16: memref<2x88x128xf32, #tpu.memory_space<vmem>>, %arg17: memref<2x16x128xf32, #tpu.memory_space<vmem>>, %arg18: memref<88x360xf32, #tpu.memory_space<vmem>>, %arg19: memref<8x2048xf32, #tpu.memory_space<vmem>>) attributes {dimension_semantics = [#tpu.dimension_semantics<arbitrary>], iteration_bounds = array<i64: 1>, scalar_prefetch = 0 : i64, scratch_operands = 6 : i64, tpu.core_type = #tpu.core_type<tc>, window_params = [{pipeline_mode = #tpu.pipeline_mode<synchronous>, transform_indices = @transform_0, window_bounds = array<i64: 2, 408, 128>}, {pipeline_mode = #tpu.pipeline_mode<synchronous>, transform_indices = @transform_1, window_bounds = array<i64: 128, 128>}, {pipeline_mode = #tpu.pipeline_mode<synchronous>, transform_indices = @transform_2, window_bounds = array<i64: 1, 128>}, {pipeline_mode = #tpu.pipeline_mode<synchronous>, transform_indices = @transform_3, window_bounds = array<i64: 128, 128>}, {pipeline_mode = #tpu.pipeline_mode<synchronous>, transform_indices = @transform_4, window_bounds = array<i64: 1, 128>}, {pipeline_mode = #tpu.pipeline_mode<synchronous>, transform_indices = @transform_5, window_bounds = array<i64: 1, 128>}, {pipeline_mode = #tpu.pipeline_mode<synchronous>, transform_indices = @transform_6, window_bounds = array<i64: 128, 128>}, {pipeline_mode = #tpu.pipeline_mode<synchronous>, transform_indices = @transform_7, window_bounds = array<i64: 1, 128>}, {pipeline_mode = #tpu.pipeline_mode<synchronous>, transform_indices = @transform_8, window_bounds = array<i64: 1, 128>}, {pipeline_mode = #tpu.pipeline_mode<synchronous>, transform_indices = @transform_9, window_bounds = array<i64: 2048, 128>}, {pipeline_mode = #tpu.pipeline_mode<synchronous>, transform_indices = @transform_10, window_bounds = array<i64: 1, 128>}, {pipeline_mode = #tpu.pipeline_mode<synchronous>, transform_indices = @transform_11, window_bounds = array<i64: 2, 16, 128>}, {pipeline_mode = #tpu.pipeline_mode<synchronous>, transform_indices = @transform_12, window_bounds = array<i64: 8, 128>}]} {
    %0 = tpu.iota {dimensions = array<i32: 0>} : vector<88x360xi32>
    %1 = arith.sitofp %0 : vector<88x360xi32> to vector<88x360xf32>
    %2 = tpu.iota {dimensions = array<i32: 1>} : vector<88x360xi32>
    %3 = arith.sitofp %2 : vector<88x360xi32> to vector<88x360xf32>
    %cst = arith.constant 5.000000e-01 : f32
    %4 = vector.broadcast %cst : f32 to vector<88x360xf32>
    %5 = arith.addf %1, %4 : vector<88x360xf32>
    %cst_0 = arith.constant 0.111111112 : f32
    %6 = vector.broadcast %cst_0 : f32 to vector<88x360xf32>
    %7 = arith.mulf %5, %6 : vector<88x360xf32>
    %8 = math.floor %7 : vector<88x360xf32>
    %cst_1 = arith.constant 9.000000e+00 : f32
    %9 = vector.broadcast %cst_1 : f32 to vector<88x360xf32>
    %10 = arith.mulf %8, %9 : vector<88x360xf32>
    %11 = arith.subf %1, %10 : vector<88x360xf32>
    %cst_2 = arith.constant 2.000000e+00 : f32
    %12 = vector.broadcast %cst_2 : f32 to vector<88x360xf32>
    %13 = arith.mulf %12, %8 : vector<88x360xf32>
    %cst_3 = arith.constant 2.100000e+01 : f32
    %14 = vector.broadcast %cst_3 : f32 to vector<88x360xf32>
    %15 = arith.mulf %13, %14 : vector<88x360xf32>
    %cst_4 = arith.constant 2.000000e+00 : f32
    %16 = vector.broadcast %cst_4 : f32 to vector<88x360xf32>
    %17 = arith.mulf %16, %11 : vector<88x360xf32>
    %18 = arith.addf %15, %17 : vector<88x360xf32>
    %19 = arith.cmpf oeq, %3, %18 : vector<88x360xf32>
    %cst_5 = arith.constant 8.100000e+01 : f32
    %20 = vector.broadcast %cst_5 : f32 to vector<88x360xf32>
    %21 = arith.cmpf olt, %1, %20 : vector<88x360xf32>
    %22 = arith.andi %19, %21 : vector<88x360xi1>
    %23 = arith.extui %22 : vector<88x360xi1> to vector<88x360xi32>
    %24 = arith.sitofp %23 : vector<88x360xi32> to vector<88x360xf32>
    %c0 = arith.constant 0 : index
    %c0_6 = arith.constant 0 : index
    %25 = vector.load %arg18[%c0, %c0_6] : memref<88x360xf32, #tpu.memory_space<vmem>>, vector<88x360xf32>
    tpu.vector_store %arg18[%c0, %c0_6], %24 {strides = array<i32>} : memref<88x360xf32, #tpu.memory_space<vmem>>, vector<88x360xf32>,
    %cst_7 = arith.constant 0.000000e+00 : f32
    %26 = vector.broadcast %cst_7 : f32 to vector<1x128xf32>
    %cst_8 = arith.constant 0.000000e+00 : f32
    %27 = vector.broadcast %cst_8 : f32 to vector<1x128xf32>
    %c0_9 = arith.constant 0 : index
    %c0_10 = arith.constant 0 : index
    %c0_11 = arith.constant 0 : index
    %28 = vector.load %arg1[%c0_9, %c0_10, %c0_11] : memref<2x408x128xf32, #tpu.memory_space<vmem>>, vector<1x408x128xf32>
    %29 = vector.shape_cast %28 : vector<1x408x128xf32> to vector<408x128xf32>
    %c0_12 = arith.constant 0 : index
    %c0_13 = arith.constant 0 : index
    %30 = vector.load %arg2[%c0_12, %c0_13] : memref<128x128xf32, #tpu.memory_space<vmem>>, vector<128x128xf32>
    %cst_14 = arith.constant dense<0.000000e+00> : vector<408x128xf32>
    %31 = tpu.matmul %29, %30, %cst_14 {dimension_numbers = #tpu.dot_dimension_numbers<[1], [0], [0], [1], [0, 0, 1, 1], [], []>} : vector<408x128xf32>, vector<128x128xf32>, vector<408x128xf32> -> vector<408x128xf32>
    %c0_15 = arith.constant 0 : index
    %c0_16 = arith.constant 0 : index
    %32 = vector.load %arg3[%c0_15, %c0_16] : memref<1x128xf32, #tpu.memory_space<vmem>>, vector<1x128xf32>
    %33 = vector.broadcast %32 : vector<1x128xf32> to vector<408x128xf32>
    %34 = arith.addf %31, %33 : vector<408x128xf32>
    %cst_17 = arith.constant 0.00999999977 : f32
    %35 = vector.broadcast %cst_17 : f32 to vector<408x128xf32>
    %36 = arith.mulf %35, %34 : vector<408x128xf32>
    %37 = arith.maximumf %34, %36 : vector<408x128xf32>
    %c0_18 = arith.constant 0 : index
    %c0_19 = arith.constant 0 : index
    %38 = vector.load %arg14[%c0_18, %c0_19] : memref<408x128xf32, #tpu.memory_space<vmem>>, vector<408x128xf32>
    tpu.vector_store %arg14[%c0_18, %c0_19], %37 {strides = array<i32>} : memref<408x128xf32, #tpu.memory_space<vmem>>, vector<408x128xf32>,
    %c0_20 = arith.constant 0 : index
    %c0_21 = arith.constant 0 : index
    %39 = vector.load %arg14[%c0_20, %c0_21] : memref<408x128xf32, #tpu.memory_space<vmem>>, vector<128x128xf32>
    %c1 = arith.constant 1 : index
    %c0_22 = arith.constant 0 : index
    %40 = vector.load %arg14[%c1, %c0_22] : memref<408x128xf32, #tpu.memory_space<vmem>>, vector<128x128xf32>
    %c4_i32 = arith.constant 4 : i32
    %41 = tpu.dynamic_rotate %40 by %c4_i32 dim 1 : vector<128x128xf32>, i32 -> vector<128x128xf32>
    %42 = arith.addf %39, %41 : vector<128x128xf32>
    %c2 = arith.constant 2 : index
    %c0_23 = arith.constant 0 : index
    %43 = vector.load %arg14[%c2, %c0_23] : memref<408x128xf32, #tpu.memory_space<vmem>>, vector<128x128xf32>
    %c8_i32 = arith.constant 8 : i32
    %44 = tpu.dynamic_rotate %43 by %c8_i32 dim 1 : vector<128x128xf32>, i32 -> vector<128x128xf32>
    %45 = arith.addf %42, %44 : vector<128x128xf32>
    %c21 = arith.constant 21 : index
    %c0_24 = arith.constant 0 : index
    %46 = vector.load %arg14[%c21, %c0_24] : memref<408x128xf32, #tpu.memory_space<vmem>>, vector<128x128xf32>
    %c12_i32 = arith.constant 12 : i32
    %47 = tpu.dynamic_rotate %46 by %c12_i32 dim 1 : vector<128x128xf32>, i32 -> vector<128x128xf32>
    %48 = arith.addf %45, %47 : vector<128x128xf32>
    %c22 = arith.constant 22 : index
    %c0_25 = arith.constant 0 : index
    %49 = vector.load %arg14[%c22, %c0_25] : memref<408x128xf32, #tpu.memory_space<vmem>>, vector<128x128xf32>
    %c16_i32 = arith.constant 16 : i32
    %50 = tpu.dynamic_rotate %49 by %c16_i32 dim 1 : vector<128x128xf32>, i32 -> vector<128x128xf32>
    %51 = arith.addf %48, %50 : vector<128x128xf32>
    %c23 = arith.constant 23 : index
    %c0_26 = arith.constant 0 : index
    %52 = vector.load %arg14[%c23, %c0_26] : memref<408x128xf32, #tpu.memory_space<vmem>>, vector<128x128xf32>
    %c20_i32 = arith.constant 20 : i32
    %53 = tpu.dynamic_rotate %52 by %c20_i32 dim 1 : vector<128x128xf32>, i32 -> vector<128x128xf32>
    %54 = arith.addf %51, %53 : vector<128x128xf32>
    %c42 = arith.constant 42 : index
    %c0_27 = arith.constant 0 : index
    %55 = vector.load %arg14[%c42, %c0_27] : memref<408x128xf32, #tpu.memory_space<vmem>>, vector<128x128xf32>
    %c24_i32 = arith.constant 24 : i32
    %56 = tpu.dynamic_rotate %55 by %c24_i32 dim 1 : vector<128x128xf32>, i32 -> vector<128x128xf32>
    %57 = arith.addf %54, %56 : vector<128x128xf32>
    %c43 = arith.constant 43 : index
    %c0_28 = arith.constant 0 : index
    %58 = vector.load %arg14[%c43, %c0_28] : memref<408x128xf32, #tpu.memory_space<vmem>>, vector<128x128xf32>
    %c28_i32 = arith.constant 28 : i32
    %59 = tpu.dynamic_rotate %58 by %c28_i32 dim 1 : vector<128x128xf32>, i32 -> vector<128x128xf32>
    %60 = arith.addf %57, %59 : vector<128x128xf32>
    %c44 = arith.constant 44 : index
    %c0_29 = arith.constant 0 : index
    %61 = vector.load %arg14[%c44, %c0_29] : memref<408x128xf32, #tpu.memory_space<vmem>>, vector<128x128xf32>
    %c32_i32 = arith.constant 32 : i32
    %62 = tpu.dynamic_rotate %61 by %c32_i32 dim 1 : vector<128x128xf32>, i32 -> vector<128x128xf32>
    %63 = arith.addf %60, %62 : vector<128x128xf32>
    %c0_30 = arith.constant 0 : index
    %c0_31 = arith.constant 0 : index
    %64 = vector.load %arg15[%c0_30, %c0_31] : memref<360x128xf32, #tpu.memory_space<vmem>>, vector<128x128xf32>
    tpu.vector_store %arg15[%c0_30, %c0_31], %63 {strides = array<i32>} : memref<360x128xf32, #tpu.memory_space<vmem>>, vector<128x128xf32>,
    %c128 = arith.constant 128 : index
    %c0_32 = arith.constant 0 : index
    %65 = vector.load %arg14[%c128, %c0_32] : memref<408x128xf32, #tpu.memory_space<vmem>>, vector<128x128xf32>
    %c129 = arith.constant 129 : index
    %c0_33 = arith.constant 0 : index
    %66 = vector.load %arg14[%c129, %c0_33] : memref<408x128xf32, #tpu.memory_space<vmem>>, vector<128x128xf32>
    %c4_i32_34 = arith.constant 4 : i32
    %67 = tpu.dynamic_rotate %66 by %c4_i32_34 dim 1 : vector<128x128xf32>, i32 -> vector<128x128xf32>
    %68 = arith.addf %65, %67 : vector<128x128xf32>
    %c130 = arith.constant 130 : index
    %c0_35 = arith.constant 0 : index
    %69 = vector.load %arg14[%c130, %c0_35] : memref<408x128xf32, #tpu.memory_space<vmem>>, vector<128x128xf32>
    %c8_i32_36 = arith.constant 8 : i32
    %70 = tpu.dynamic_rotate %69 by %c8_i32_36 dim 1 : vector<128x128xf32>, i32 -> vector<128x128xf32>
    %71 = arith.addf %68, %70 : vector<128x128xf32>
    %c149 = arith.constant 149 : index
    %c0_37 = arith.constant 0 : index
    %72 = vector.load %arg14[%c149, %c0_37] : memref<408x128xf32, #tpu.memory_space<vmem>>, vector<128x128xf32>
    %c12_i32_38 = arith.constant 12 : i32
    %73 = tpu.dynamic_rotate %72 by %c12_i32_38 dim 1 : vector<128x128xf32>, i32 -> vector<128x128xf32>
    %74 = arith.addf %71, %73 : vector<128x128xf32>
    %c150 = arith.constant 150 : index
    %c0_39 = arith.constant 0 : index
    %75 = vector.load %arg14[%c150, %c0_39] : memref<408x128xf32, #tpu.memory_space<vmem>>, vector<128x128xf32>
    %c16_i32_40 = arith.constant 16 : i32
    %76 = tpu.dynamic_rotate %75 by %c16_i32_40 dim 1 : vector<128x128xf32>, i32 -> vector<128x128xf32>
    %77 = arith.addf %74, %76 : vector<128x128xf32>
    %c151 = arith.constant 151 : index
    %c0_41 = arith.constant 0 : index
    %78 = vector.load %arg14[%c151, %c0_41] : memref<408x128xf32, #tpu.memory_space<vmem>>, vector<128x128xf32>
    %c20_i32_42 = arith.constant 20 : i32
    %79 = tpu.dynamic_rotate %78 by %c20_i32_42 dim 1 : vector<128x128xf32>, i32 -> vector<128x128xf32>
    %80 = arith.addf %77, %79 : vector<128x128xf32>
    %c170 = arith.constant 170 : index
    %c0_43 = arith.constant 0 : index
    %81 = vector.load %arg14[%c170, %c0_43] : memref<408x128xf32, #tpu.memory_space<vmem>>, vector<128x128xf32>
    %c24_i32_44 = arith.constant 24 : i32
    %82 = tpu.dynamic_rotate %81 by %c24_i32_44 dim 1 : vector<128x128xf32>, i32 -> vector<128x128xf32>
    %83 = arith.addf %80, %82 : vector<128x128xf32>
    %c171 = arith.constant 171 : index
    %c0_45 = arith.constant 0 : index
    %84 = vector.load %arg14[%c171, %c0_45] : memref<408x128xf32, #tpu.memory_space<vmem>>, vector<128x128xf32>
    %c28_i32_46 = arith.constant 28 : i32
    %85 = tpu.dynamic_rotate %84 by %c28_i32_46 dim 1 : vector<128x128xf32>, i32 -> vector<128x128xf32>
    %86 = arith.addf %83, %85 : vector<128x128xf32>
    %c172 = arith.constant 172 : index
    %c0_47 = arith.constant 0 : index
    %87 = vector.load %arg14[%c172, %c0_47] : memref<408x128xf32, #tpu.memory_space<vmem>>, vector<128x128xf32>
    %c32_i32_48 = arith.constant 32 : i32
    %88 = tpu.dynamic_rotate %87 by %c32_i32_48 dim 1 : vector<128x128xf32>, i32 -> vector<128x128xf32>
    %89 = arith.addf %86, %88 : vector<128x128xf32>
    %c128_49 = arith.constant 128 : index
    %c0_50 = arith.constant 0 : index
    %90 = vector.load %arg15[%c128_49, %c0_50] : memref<360x128xf32, #tpu.memory_space<vmem>>, vector<128x128xf32>
    tpu.vector_store %arg15[%c128_49, %c0_50], %89 {strides = array<i32>} : memref<360x128xf32, #tpu.memory_space<vmem>>, vector<128x128xf32>,
    %c256 = arith.constant 256 : index
    %c0_51 = arith.constant 0 : index
    %91 = vector.load %arg14[%c256, %c0_51] : memref<408x128xf32, #tpu.memory_space<vmem>>, vector<104x128xf32>
    %c257 = arith.constant 257 : index
    %c0_52 = arith.constant 0 : index
    %92 = vector.load %arg14[%c257, %c0_52] : memref<408x128xf32, #tpu.memory_space<vmem>>, vector<104x128xf32>
    %c4_i32_53 = arith.constant 4 : i32
    %93 = tpu.dynamic_rotate %92 by %c4_i32_53 dim 1 : vector<104x128xf32>, i32 -> vector<104x128xf32>
    %94 = arith.addf %91, %93 : vector<104x128xf32>
    %c258 = arith.constant 258 : index
    %c0_54 = arith.constant 0 : index
    %95 = vector.load %arg14[%c258, %c0_54] : memref<408x128xf32, #tpu.memory_space<vmem>>, vector<104x128xf32>
    %c8_i32_55 = arith.constant 8 : i32
    %96 = tpu.dynamic_rotate %95 by %c8_i32_55 dim 1 : vector<104x128xf32>, i32 -> vector<104x128xf32>
    %97 = arith.addf %94, %96 : vector<104x128xf32>
    %c277 = arith.constant 277 : index
    %c0_56 = arith.constant 0 : index
    %98 = vector.load %arg14[%c277, %c0_56] : memref<408x128xf32, #tpu.memory_space<vmem>>, vector<104x128xf32>
    %c12_i32_57 = arith.constant 12 : i32
    %99 = tpu.dynamic_rotate %98 by %c12_i32_57 dim 1 : vector<104x128xf32>, i32 -> vector<104x128xf32>
    %100 = arith.addf %97, %99 : vector<104x128xf32>
    %c278 = arith.constant 278 : index
    %c0_58 = arith.constant 0 : index
    %101 = vector.load %arg14[%c278, %c0_58] : memref<408x128xf32, #tpu.memory_space<vmem>>, vector<104x128xf32>
    %c16_i32_59 = arith.constant 16 : i32
    %102 = tpu.dynamic_rotate %101 by %c16_i32_59 dim 1 : vector<104x128xf32>, i32 -> vector<104x128xf32>
    %103 = arith.addf %100, %102 : vector<104x128xf32>
    %c279 = arith.constant 279 : index
    %c0_60 = arith.constant 0 : index
    %104 = vector.load %arg14[%c279, %c0_60] : memref<408x128xf32, #tpu.memory_space<vmem>>, vector<104x128xf32>
    %c20_i32_61 = arith.constant 20 : i32
    %105 = tpu.dynamic_rotate %104 by %c20_i32_61 dim 1 : vector<104x128xf32>, i32 -> vector<104x128xf32>
    %106 = arith.addf %103, %105 : vector<104x128xf32>
    %c298 = arith.constant 298 : index
    %c0_62 = arith.constant 0 : index
    %107 = vector.load %arg14[%c298, %c0_62] : memref<408x128xf32, #tpu.memory_space<vmem>>, vector<104x128xf32>
    %c24_i32_63 = arith.constant 24 : i32
    %108 = tpu.dynamic_rotate %107 by %c24_i32_63 dim 1 : vector<104x128xf32>, i32 -> vector<104x128xf32>
    %109 = arith.addf %106, %108 : vector<104x128xf32>
    %c299 = arith.constant 299 : index
    %c0_64 = arith.constant 0 : index
    %110 = vector.load %arg14[%c299, %c0_64] : memref<408x128xf32, #tpu.memory_space<vmem>>, vector<104x128xf32>
    %c28_i32_65 = arith.constant 28 : i32
    %111 = tpu.dynamic_rotate %110 by %c28_i32_65 dim 1 : vector<104x128xf32>, i32 -> vector<104x128xf32>
    %112 = arith.addf %109, %111 : vector<104x128xf32>
    %c300 = arith.constant 300 : index
    %c0_66 = arith.constant 0 : index
    %113 = vector.load %arg14[%c300, %c0_66] : memref<408x128xf32, #tpu.memory_space<vmem>>, vector<104x128xf32>
    %c32_i32_67 = arith.constant 32 : i32
    %114 = tpu.dynamic_rotate %113 by %c32_i32_67 dim 1 : vector<104x128xf32>, i32 -> vector<104x128xf32>
    %115 = arith.addf %112, %114 : vector<104x128xf32>
    %c256_68 = arith.constant 256 : index
    %c0_69 = arith.constant 0 : index
    %116 = vector.load %arg15[%c256_68, %c0_69] : memref<360x128xf32, #tpu.memory_space<vmem>>, vector<104x128xf32>
    tpu.vector_store %arg15[%c256_68, %c0_69], %115 {strides = array<i32>} : memref<360x128xf32, #tpu.memory_space<vmem>>, vector<104x128xf32>,
    %c0_70 = arith.constant 0 : index
    %c0_71 = arith.constant 0 : index
    %117 = vector.load %arg18[%c0_70, %c0_71] : memref<88x360xf32, #tpu.memory_space<vmem>>, vector<88x360xf32>
    %c0_72 = arith.constant 0 : index
    %c0_73 = arith.constant 0 : index
    %118 = vector.load %arg15[%c0_72, %c0_73] : memref<360x128xf32, #tpu.memory_space<vmem>>, vector<360x128xf32>
    %cst_74 = arith.constant dense<0.000000e+00> : vector<88x128xf32>
    %119 = tpu.matmul %117, %118, %cst_74 {dimension_numbers = #tpu.dot_dimension_numbers<[1], [0], [0], [1], [0, 0, 1, 1], [], []>} : vector<88x360xf32>, vector<360x128xf32>, vector<88x128xf32> -> vector<88x128xf32>
    %c0_75 = arith.constant 0 : index
    %c0_76 = arith.constant 0 : index
    %120 = vector.load %arg4[%c0_75, %c0_76] : memref<128x128xf32, #tpu.memory_space<vmem>>, vector<128x128xf32>
    %cst_77 = arith.constant dense<0.000000e+00> : vector<88x128xf32>
    %121 = tpu.matmul %119, %120, %cst_77 {dimension_numbers = #tpu.dot_dimension_numbers<[1], [0], [0], [1], [0, 0, 1, 1], [], []>} : vector<88x128xf32>, vector<128x128xf32>, vector<88x128xf32> -> vector<88x128xf32>
    %c0_78 = arith.constant 0 : index
    %c0_79 = arith.constant 0 : index
    %c0_80 = arith.constant 0 : index
    %122 = vector.load %arg16[%c0_78, %c0_79, %c0_80] : memref<2x88x128xf32, #tpu.memory_space<vmem>>, vector<1x88x128xf32>
    %123 = vector.shape_cast %122 : vector<1x88x128xf32> to vector<88x128xf32>
    %124 = vector.shape_cast %121 : vector<88x128xf32> to vector<1x88x128xf32>
    tpu.vector_store %arg16[%c0_78, %c0_79, %c0_80], %124 {strides = array<i32>} : memref<2x88x128xf32, #tpu.memory_space<vmem>>, vector<1x88x128xf32>,
    %cst_81 = arith.constant dense<0.000000e+00> : vector<128xf32>
    %125 = vector.multi_reduction <add>, %121, %cst_81 [0] : vector<88x128xf32> to vector<128xf32>
    %126 = vector.shape_cast %125 : vector<128xf32> to vector<1x128xf32>
    %127 = arith.addf %26, %126 : vector<1x128xf32>
    %128 = arith.mulf %121, %121 : vector<88x128xf32>
    %cst_82 = arith.constant dense<0.000000e+00> : vector<128xf32>
    %129 = vector.multi_reduction <add>, %128, %cst_82 [0] : vector<88x128xf32> to vector<128xf32>
    %130 = vector.shape_cast %129 : vector<128xf32> to vector<1x128xf32>
    %131 = arith.addf %27, %130 : vector<1x128xf32>
    %c1_83 = arith.constant 1 : index
    %c0_84 = arith.constant 0 : index
    %c0_85 = arith.constant 0 : index
    %132 = vector.load %arg1[%c1_83, %c0_84, %c0_85] : memref<2x408x128xf32, #tpu.memory_space<vmem>>, vector<1x408x128xf32>
    %133 = vector.shape_cast %132 : vector<1x408x128xf32> to vector<408x128xf32>
    %c0_86 = arith.constant 0 : index
    %c0_87 = arith.constant 0 : index
    %134 = vector.load %arg2[%c0_86, %c0_87] : memref<128x128xf32, #tpu.memory_space<vmem>>, vector<128x128xf32>
    %cst_88 = arith.constant dense<0.000000e+00> : vector<408x128xf32>
    %135 = tpu.matmul %133, %134, %cst_88 {dimension_numbers = #tpu.dot_dimension_numbers<[1], [0], [0], [1], [0, 0, 1, 1], [], []>} : vector<408x128xf32>, vector<128x128xf32>, vector<408x128xf32> -> vector<408x128xf32>
    %c0_89 = arith.constant 0 : index
    %c0_90 = arith.constant 0 : index
    %136 = vector.load %arg3[%c0_89, %c0_90] : memref<1x128xf32, #tpu.memory_space<vmem>>, vector<1x128xf32>
    %137 = vector.broadcast %136 : vector<1x128xf32> to vector<408x128xf32>
    %138 = arith.addf %135, %137 : vector<408x128xf32>
    %cst_91 = arith.constant 0.00999999977 : f32
    %139 = vector.broadcast %cst_91 : f32 to vector<408x128xf32>
    %140 = arith.mulf %139, %138 : vector<408x128xf32>
    %141 = arith.maximumf %138, %140 : vector<408x128xf32>
    %c0_92 = arith.constant 0 : index
    %c0_93 = arith.constant 0 : index
    %142 = vector.load %arg14[%c0_92, %c0_93] : memref<408x128xf32, #tpu.memory_space<vmem>>, vector<408x128xf32>
    tpu.vector_store %arg14[%c0_92, %c0_93], %141 {strides = array<i32>} : memref<408x128xf32, #tpu.memory_space<vmem>>, vector<408x128xf32>,
    %c0_94 = arith.constant 0 : index
    %c0_95 = arith.constant 0 : index
    %143 = vector.load %arg14[%c0_94, %c0_95] : memref<408x128xf32, #tpu.memory_space<vmem>>, vector<128x128xf32>
    %c1_96 = arith.constant 1 : index
    %c0_97 = arith.constant 0 : index
    %144 = vector.load %arg14[%c1_96, %c0_97] : memref<408x128xf32, #tpu.memory_space<vmem>>, vector<128x128xf32>
    %c4_i32_98 = arith.constant 4 : i32
    %145 = tpu.dynamic_rotate %144 by %c4_i32_98 dim 1 : vector<128x128xf32>, i32 -> vector<128x128xf32>
    %146 = arith.addf %143, %145 : vector<128x128xf32>
    %c2_99 = arith.constant 2 : index
    %c0_100 = arith.constant 0 : index
    %147 = vector.load %arg14[%c2_99, %c0_100] : memref<408x128xf32, #tpu.memory_space<vmem>>, vector<128x128xf32>
    %c8_i32_101 = arith.constant 8 : i32
    %148 = tpu.dynamic_rotate %147 by %c8_i32_101 dim 1 : vector<128x128xf32>, i32 -> vector<128x128xf32>
    %149 = arith.addf %146, %148 : vector<128x128xf32>
    %c21_102 = arith.constant 21 : index
    %c0_103 = arith.constant 0 : index
    %150 = vector.load %arg14[%c21_102, %c0_103] : memref<408x128xf32, #tpu.memory_space<vmem>>, vector<128x128xf32>
    %c12_i32_104 = arith.constant 12 : i32
    %151 = tpu.dynamic_rotate %150 by %c12_i32_104 dim 1 : vector<128x128xf32>, i32 -> vector<128x128xf32>
    %152 = arith.addf %149, %151 : vector<128x128xf32>
    %c22_105 = arith.constant 22 : index
    %c0_106 = arith.constant 0 : index
    %153 = vector.load %arg14[%c22_105, %c0_106] : memref<408x128xf32, #tpu.memory_space<vmem>>, vector<128x128xf32>
    %c16_i32_107 = arith.constant 16 : i32
    %154 = tpu.dynamic_rotate %153 by %c16_i32_107 dim 1 : vector<128x128xf32>, i32 -> vector<128x128xf32>
    %155 = arith.addf %152, %154 : vector<128x128xf32>
    %c23_108 = arith.constant 23 : index
    %c0_109 = arith.constant 0 : index
    %156 = vector.load %arg14[%c23_108, %c0_109] : memref<408x128xf32, #tpu.memory_space<vmem>>, vector<128x128xf32>
    %c20_i32_110 = arith.constant 20 : i32
    %157 = tpu.dynamic_rotate %156 by %c20_i32_110 dim 1 : vector<128x128xf32>, i32 -> vector<128x128xf32>
    %158 = arith.addf %155, %157 : vector<128x128xf32>
    %c42_111 = arith.constant 42 : index
    %c0_112 = arith.constant 0 : index
    %159 = vector.load %arg14[%c42_111, %c0_112] : memref<408x128xf32, #tpu.memory_space<vmem>>, vector<128x128xf32>
    %c24_i32_113 = arith.constant 24 : i32
    %160 = tpu.dynamic_rotate %159 by %c24_i32_113 dim 1 : vector<128x128xf32>, i32 -> vector<128x128xf32>
    %161 = arith.addf %158, %160 : vector<128x128xf32>
    %c43_114 = arith.constant 43 : index
    %c0_115 = arith.constant 0 : index
    %162 = vector.load %arg14[%c43_114, %c0_115] : memref<408x128xf32, #tpu.memory_space<vmem>>, vector<128x128xf32>
    %c28_i32_116 = arith.constant 28 : i32
    %163 = tpu.dynamic_rotate %162 by %c28_i32_116 dim 1 : vector<128x128xf32>, i32 -> vector<128x128xf32>
    %164 = arith.addf %161, %163 : vector<128x128xf32>
    %c44_117 = arith.constant 44 : index
    %c0_118 = arith.constant 0 : index
    %165 = vector.load %arg14[%c44_117, %c0_118] : memref<408x128xf32, #tpu.memory_space<vmem>>, vector<128x128xf32>
    %c32_i32_119 = arith.constant 32 : i32
    %166 = tpu.dynamic_rotate %165 by %c32_i32_119 dim 1 : vector<128x128xf32>, i32 -> vector<128x128xf32>
    %167 = arith.addf %164, %166 : vector<128x128xf32>
    %c0_120 = arith.constant 0 : index
    %c0_121 = arith.constant 0 : index
    %168 = vector.load %arg15[%c0_120, %c0_121] : memref<360x128xf32, #tpu.memory_space<vmem>>, vector<128x128xf32>
    tpu.vector_store %arg15[%c0_120, %c0_121], %167 {strides = array<i32>} : memref<360x128xf32, #tpu.memory_space<vmem>>, vector<128x128xf32>,
    %c128_122 = arith.constant 128 : index
    %c0_123 = arith.constant 0 : index
    %169 = vector.load %arg14[%c128_122, %c0_123] : memref<408x128xf32, #tpu.memory_space<vmem>>, vector<128x128xf32>
    %c129_124 = arith.constant 129 : index
    %c0_125 = arith.constant 0 : index
    %170 = vector.load %arg14[%c129_124, %c0_125] : memref<408x128xf32, #tpu.memory_space<vmem>>, vector<128x128xf32>
    %c4_i32_126 = arith.constant 4 : i32
    %171 = tpu.dynamic_rotate %170 by %c4_i32_126 dim 1 : vector<128x128xf32>, i32 -> vector<128x128xf32>
    %172 = arith.addf %169, %171 : vector<128x128xf32>
    %c130_127 = arith.constant 130 : index
    %c0_128 = arith.constant 0 : index
    %173 = vector.load %arg14[%c130_127, %c0_128] : memref<408x128xf32, #tpu.memory_space<vmem>>, vector<128x128xf32>
    %c8_i32_129 = arith.constant 8 : i32
    %174 = tpu.dynamic_rotate %173 by %c8_i32_129 dim 1 : vector<128x128xf32>, i32 -> vector<128x128xf32>
    %175 = arith.addf %172, %174 : vector<128x128xf32>
    %c149_130 = arith.constant 149 : index
    %c0_131 = arith.constant 0 : index
    %176 = vector.load %arg14[%c149_130, %c0_131] : memref<408x128xf32, #tpu.memory_space<vmem>>, vector<128x128xf32>
    %c12_i32_132 = arith.constant 12 : i32
    %177 = tpu.dynamic_rotate %176 by %c12_i32_132 dim 1 : vector<128x128xf32>, i32 -> vector<128x128xf32>
    %178 = arith.addf %175, %177 : vector<128x128xf32>
    %c150_133 = arith.constant 150 : index
    %c0_134 = arith.constant 0 : index
    %179 = vector.load %arg14[%c150_133, %c0_134] : memref<408x128xf32, #tpu.memory_space<vmem>>, vector<128x128xf32>
    %c16_i32_135 = arith.constant 16 : i32
    %180 = tpu.dynamic_rotate %179 by %c16_i32_135 dim 1 : vector<128x128xf32>, i32 -> vector<128x128xf32>
    %181 = arith.addf %178, %180 : vector<128x128xf32>
    %c151_136 = arith.constant 151 : index
    %c0_137 = arith.constant 0 : index
    %182 = vector.load %arg14[%c151_136, %c0_137] : memref<408x128xf32, #tpu.memory_space<vmem>>, vector<128x128xf32>
    %c20_i32_138 = arith.constant 20 : i32
    %183 = tpu.dynamic_rotate %182 by %c20_i32_138 dim 1 : vector<128x128xf32>, i32 -> vector<128x128xf32>
    %184 = arith.addf %181, %183 : vector<128x128xf32>
    %c170_139 = arith.constant 170 : index
    %c0_140 = arith.constant 0 : index
    %185 = vector.load %arg14[%c170_139, %c0_140] : memref<408x128xf32, #tpu.memory_space<vmem>>, vector<128x128xf32>
    %c24_i32_141 = arith.constant 24 : i32
    %186 = tpu.dynamic_rotate %185 by %c24_i32_141 dim 1 : vector<128x128xf32>, i32 -> vector<128x128xf32>
    %187 = arith.addf %184, %186 : vector<128x128xf32>
    %c171_142 = arith.constant 171 : index
    %c0_143 = arith.constant 0 : index
    %188 = vector.load %arg14[%c171_142, %c0_143] : memref<408x128xf32, #tpu.memory_space<vmem>>, vector<128x128xf32>
    %c28_i32_144 = arith.constant 28 : i32
    %189 = tpu.dynamic_rotate %188 by %c28_i32_144 dim 1 : vector<128x128xf32>, i32 -> vector<128x128xf32>
    %190 = arith.addf %187, %189 : vector<128x128xf32>
    %c172_145 = arith.constant 172 : index
    %c0_146 = arith.constant 0 : index
    %191 = vector.load %arg14[%c172_145, %c0_146] : memref<408x128xf32, #tpu.memory_space<vmem>>, vector<128x128xf32>
    %c32_i32_147 = arith.constant 32 : i32
    %192 = tpu.dynamic_rotate %191 by %c32_i32_147 dim 1 : vector<128x128xf32>, i32 -> vector<128x128xf32>
    %193 = arith.addf %190, %192 : vector<128x128xf32>
    %c128_148 = arith.constant 128 : index
    %c0_149 = arith.constant 0 : index
    %194 = vector.load %arg15[%c128_148, %c0_149] : memref<360x128xf32, #tpu.memory_space<vmem>>, vector<128x128xf32>
    tpu.vector_store %arg15[%c128_148, %c0_149], %193 {strides = array<i32>} : memref<360x128xf32, #tpu.memory_space<vmem>>, vector<128x128xf32>,
    %c256_150 = arith.constant 256 : index
    %c0_151 = arith.constant 0 : index
    %195 = vector.load %arg14[%c256_150, %c0_151] : memref<408x128xf32, #tpu.memory_space<vmem>>, vector<104x128xf32>
    %c257_152 = arith.constant 257 : index
    %c0_153 = arith.constant 0 : index
    %196 = vector.load %arg14[%c257_152, %c0_153] : memref<408x128xf32, #tpu.memory_space<vmem>>, vector<104x128xf32>
    %c4_i32_154 = arith.constant 4 : i32
    %197 = tpu.dynamic_rotate %196 by %c4_i32_154 dim 1 : vector<104x128xf32>, i32 -> vector<104x128xf32>
    %198 = arith.addf %195, %197 : vector<104x128xf32>
    %c258_155 = arith.constant 258 : index
    %c0_156 = arith.constant 0 : index
    %199 = vector.load %arg14[%c258_155, %c0_156] : memref<408x128xf32, #tpu.memory_space<vmem>>, vector<104x128xf32>
    %c8_i32_157 = arith.constant 8 : i32
    %200 = tpu.dynamic_rotate %199 by %c8_i32_157 dim 1 : vector<104x128xf32>, i32 -> vector<104x128xf32>
    %201 = arith.addf %198, %200 : vector<104x128xf32>
    %c277_158 = arith.constant 277 : index
    %c0_159 = arith.constant 0 : index
    %202 = vector.load %arg14[%c277_158, %c0_159] : memref<408x128xf32, #tpu.memory_space<vmem>>, vector<104x128xf32>
    %c12_i32_160 = arith.constant 12 : i32
    %203 = tpu.dynamic_rotate %202 by %c12_i32_160 dim 1 : vector<104x128xf32>, i32 -> vector<104x128xf32>
    %204 = arith.addf %201, %203 : vector<104x128xf32>
    %c278_161 = arith.constant 278 : index
    %c0_162 = arith.constant 0 : index
    %205 = vector.load %arg14[%c278_161, %c0_162] : memref<408x128xf32, #tpu.memory_space<vmem>>, vector<104x128xf32>
    %c16_i32_163 = arith.constant 16 : i32
    %206 = tpu.dynamic_rotate %205 by %c16_i32_163 dim 1 : vector<104x128xf32>, i32 -> vector<104x128xf32>
    %207 = arith.addf %204, %206 : vector<104x128xf32>
    %c279_164 = arith.constant 279 : index
    %c0_165 = arith.constant 0 : index
    %208 = vector.load %arg14[%c279_164, %c0_165] : memref<408x128xf32, #tpu.memory_space<vmem>>, vector<104x128xf32>
    %c20_i32_166 = arith.constant 20 : i32
    %209 = tpu.dynamic_rotate %208 by %c20_i32_166 dim 1 : vector<104x128xf32>, i32 -> vector<104x128xf32>
    %210 = arith.addf %207, %209 : vector<104x128xf32>
    %c298_167 = arith.constant 298 : index
    %c0_168 = arith.constant 0 : index
    %211 = vector.load %arg14[%c298_167, %c0_168] : memref<408x128xf32, #tpu.memory_space<vmem>>, vector<104x128xf32>
    %c24_i32_169 = arith.constant 24 : i32
    %212 = tpu.dynamic_rotate %211 by %c24_i32_169 dim 1 : vector<104x128xf32>, i32 -> vector<104x128xf32>
    %213 = arith.addf %210, %212 : vector<104x128xf32>
    %c299_170 = arith.constant 299 : index
    %c0_171 = arith.constant 0 : index
    %214 = vector.load %arg14[%c299_170, %c0_171] : memref<408x128xf32, #tpu.memory_space<vmem>>, vector<104x128xf32>
    %c28_i32_172 = arith.constant 28 : i32
    %215 = tpu.dynamic_rotate %214 by %c28_i32_172 dim 1 : vector<104x128xf32>, i32 -> vector<104x128xf32>
    %216 = arith.addf %213, %215 : vector<104x128xf32>
    %c300_173 = arith.constant 300 : index
    %c0_174 = arith.constant 0 : index
    %217 = vector.load %arg14[%c300_173, %c0_174] : memref<408x128xf32, #tpu.memory_space<vmem>>, vector<104x128xf32>
    %c32_i32_175 = arith.constant 32 : i32
    %218 = tpu.dynamic_rotate %217 by %c32_i32_175 dim 1 : vector<104x128xf32>, i32 -> vector<104x128xf32>
    %219 = arith.addf %216, %218 : vector<104x128xf32>
    %c256_176 = arith.constant 256 : index
    %c0_177 = arith.constant 0 : index
    %220 = vector.load %arg15[%c256_176, %c0_177] : memref<360x128xf32, #tpu.memory_space<vmem>>, vector<104x128xf32>
    tpu.vector_store %arg15[%c256_176, %c0_177], %219 {strides = array<i32>} : memref<360x128xf32, #tpu.memory_space<vmem>>, vector<104x128xf32>,
    %c0_178 = arith.constant 0 : index
    %c0_179 = arith.constant 0 : index
    %221 = vector.load %arg18[%c0_178, %c0_179] : memref<88x360xf32, #tpu.memory_space<vmem>>, vector<88x360xf32>
    %c0_180 = arith.constant 0 : index
    %c0_181 = arith.constant 0 : index
    %222 = vector.load %arg15[%c0_180, %c0_181] : memref<360x128xf32, #tpu.memory_space<vmem>>, vector<360x128xf32>
    %cst_182 = arith.constant dense<0.000000e+00> : vector<88x128xf32>
    %223 = tpu.matmul %221, %222, %cst_182 {dimension_numbers = #tpu.dot_dimension_numbers<[1], [0], [0], [1], [0, 0, 1, 1], [], []>} : vector<88x360xf32>, vector<360x128xf32>, vector<88x128xf32> -> vector<88x128xf32>
    %c0_183 = arith.constant 0 : index
    %c0_184 = arith.constant 0 : index
    %224 = vector.load %arg4[%c0_183, %c0_184] : memref<128x128xf32, #tpu.memory_space<vmem>>, vector<128x128xf32>
    %cst_185 = arith.constant dense<0.000000e+00> : vector<88x128xf32>
    %225 = tpu.matmul %223, %224, %cst_185 {dimension_numbers = #tpu.dot_dimension_numbers<[1], [0], [0], [1], [0, 0, 1, 1], [], []>} : vector<88x128xf32>, vector<128x128xf32>, vector<88x128xf32> -> vector<88x128xf32>
    %c1_186 = arith.constant 1 : index
    %c0_187 = arith.constant 0 : index
    %c0_188 = arith.constant 0 : index
    %226 = vector.load %arg16[%c1_186, %c0_187, %c0_188] : memref<2x88x128xf32, #tpu.memory_space<vmem>>, vector<1x88x128xf32>
    %227 = vector.shape_cast %226 : vector<1x88x128xf32> to vector<88x128xf32>
    %228 = vector.shape_cast %225 : vector<88x128xf32> to vector<1x88x128xf32>
    tpu.vector_store %arg16[%c1_186, %c0_187, %c0_188], %228 {strides = array<i32>} : memref<2x88x128xf32, #tpu.memory_space<vmem>>, vector<1x88x128xf32>,
    %cst_189 = arith.constant dense<0.000000e+00> : vector<128xf32>
    %229 = vector.multi_reduction <add>, %225, %cst_189 [0] : vector<88x128xf32> to vector<128xf32>
    %230 = vector.shape_cast %229 : vector<128xf32> to vector<1x128xf32>
    %231 = arith.addf %127, %230 : vector<1x128xf32>
    %232 = arith.mulf %225, %225 : vector<88x128xf32>
    %cst_190 = arith.constant dense<0.000000e+00> : vector<128xf32>
    %233 = vector.multi_reduction <add>, %232, %cst_190 [0] : vector<88x128xf32> to vector<128xf32>
    %234 = vector.shape_cast %233 : vector<128xf32> to vector<1x128xf32>
    %235 = arith.addf %131, %234 : vector<1x128xf32>
    %cst_191 = arith.constant 0.00617283955 : f32
    %236 = vector.broadcast %cst_191 : f32 to vector<1x128xf32>
    %237 = arith.mulf %231, %236 : vector<1x128xf32>
    %cst_192 = arith.constant 0.00617283955 : f32
    %238 = vector.broadcast %cst_192 : f32 to vector<1x128xf32>
    %239 = arith.mulf %235, %238 : vector<1x128xf32>
    %240 = arith.mulf %237, %237 : vector<1x128xf32>
    %241 = arith.subf %239, %240 : vector<1x128xf32>
    %c0_193 = arith.constant 0 : index
    %c0_194 = arith.constant 0 : index
    %242 = vector.load %arg5[%c0_193, %c0_194] : memref<1x128xf32, #tpu.memory_space<vmem>>, vector<1x128xf32>
    %cst_195 = arith.constant 9.99999974E-6 : f32
    %243 = vector.broadcast %cst_195 : f32 to vector<1x128xf32>
    %244 = arith.addf %241, %243 : vector<1x128xf32>
    %245 = math.rsqrt %244 : vector<1x128xf32>
    %246 = arith.mulf %242, %245 : vector<1x128xf32>
    %c0_196 = arith.constant 0 : index
    %c0_197 = arith.constant 0 : index
    %247 = vector.load %arg6[%c0_196, %c0_197] : memref<1x128xf32, #tpu.memory_space<vmem>>, vector<1x128xf32>
    %248 = arith.mulf %237, %246 : vector<1x128xf32>
    %249 = arith.subf %247, %248 : vector<1x128xf32>
    %c8_i32_198 = arith.constant 8 : i32
    %250 = tpu.dynamic_rotate %246 by %c8_i32_198 dim 1 : vector<1x128xf32>, i32 -> vector<1x128xf32>
    %251 = arith.addf %246, %250 : vector<1x128xf32>
    %c8_i32_199 = arith.constant 8 : i32
    %252 = tpu.dynamic_rotate %249 by %c8_i32_199 dim 1 : vector<1x128xf32>, i32 -> vector<1x128xf32>
    %253 = arith.addf %249, %252 : vector<1x128xf32>
    %c16_i32_200 = arith.constant 16 : i32
    %254 = tpu.dynamic_rotate %246 by %c16_i32_200 dim 1 : vector<1x128xf32>, i32 -> vector<1x128xf32>
    %255 = arith.addf %251, %254 : vector<1x128xf32>
    %c16_i32_201 = arith.constant 16 : i32
    %256 = tpu.dynamic_rotate %249 by %c16_i32_201 dim 1 : vector<1x128xf32>, i32 -> vector<1x128xf32>
    %257 = arith.addf %253, %256 : vector<1x128xf32>
    %c24_i32_202 = arith.constant 24 : i32
    %258 = tpu.dynamic_rotate %246 by %c24_i32_202 dim 1 : vector<1x128xf32>, i32 -> vector<1x128xf32>
    %259 = arith.addf %255, %258 : vector<1x128xf32>
    %c24_i32_203 = arith.constant 24 : i32
    %260 = tpu.dynamic_rotate %249 by %c24_i32_203 dim 1 : vector<1x128xf32>, i32 -> vector<1x128xf32>
    %261 = arith.addf %257, %260 : vector<1x128xf32>
    %c32_i32_204 = arith.constant 32 : i32
    %262 = tpu.dynamic_rotate %246 by %c32_i32_204 dim 1 : vector<1x128xf32>, i32 -> vector<1x128xf32>
    %263 = arith.addf %259, %262 : vector<1x128xf32>
    %c32_i32_205 = arith.constant 32 : i32
    %264 = tpu.dynamic_rotate %249 by %c32_i32_205 dim 1 : vector<1x128xf32>, i32 -> vector<1x128xf32>
    %265 = arith.addf %261, %264 : vector<1x128xf32>
    %c40_i32 = arith.constant 40 : i32
    %266 = tpu.dynamic_rotate %246 by %c40_i32 dim 1 : vector<1x128xf32>, i32 -> vector<1x128xf32>
    %267 = arith.addf %263, %266 : vector<1x128xf32>
    %c40_i32_206 = arith.constant 40 : i32
    %268 = tpu.dynamic_rotate %249 by %c40_i32_206 dim 1 : vector<1x128xf32>, i32 -> vector<1x128xf32>
    %269 = arith.addf %265, %268 : vector<1x128xf32>
    %c48_i32 = arith.constant 48 : i32
    %270 = tpu.dynamic_rotate %246 by %c48_i32 dim 1 : vector<1x128xf32>, i32 -> vector<1x128xf32>
    %271 = arith.addf %267, %270 : vector<1x128xf32>
    %c48_i32_207 = arith.constant 48 : i32
    %272 = tpu.dynamic_rotate %249 by %c48_i32_207 dim 1 : vector<1x128xf32>, i32 -> vector<1x128xf32>
    %273 = arith.addf %269, %272 : vector<1x128xf32>
    %c56_i32 = arith.constant 56 : i32
    %274 = tpu.dynamic_rotate %246 by %c56_i32 dim 1 : vector<1x128xf32>, i32 -> vector<1x128xf32>
    %275 = arith.addf %271, %274 : vector<1x128xf32>
    %c56_i32_208 = arith.constant 56 : i32
    %276 = tpu.dynamic_rotate %249 by %c56_i32_208 dim 1 : vector<1x128xf32>, i32 -> vector<1x128xf32>
    %277 = arith.addf %273, %276 : vector<1x128xf32>
    %c64_i32 = arith.constant 64 : i32
    %278 = tpu.dynamic_rotate %246 by %c64_i32 dim 1 : vector<1x128xf32>, i32 -> vector<1x128xf32>
    %279 = arith.addf %275, %278 : vector<1x128xf32>
    %c64_i32_209 = arith.constant 64 : i32
    %280 = tpu.dynamic_rotate %249 by %c64_i32_209 dim 1 : vector<1x128xf32>, i32 -> vector<1x128xf32>
    %281 = arith.addf %277, %280 : vector<1x128xf32>
    %c0_210 = arith.constant 0 : index
    %c0_211 = arith.constant 0 : index
    %282 = vector.load %arg7[%c0_210, %c0_211] : memref<128x128xf32, #tpu.memory_space<vmem>>, vector<128x128xf32>
    %cst_212 = arith.constant dense<0.000000e+00> : vector<1x128xf32>
    %283 = tpu.matmul %281, %282, %cst_212 {dimension_numbers = #tpu.dot_dimension_numbers<[1], [0], [0], [1], [0, 0, 1, 1], [], []>} : vector<1x128xf32>, vector<128x128xf32>, vector<1x128xf32> -> vector<1x128xf32>
    %284 = tpu.iota {dimensions = array<i32: 0>} : vector<16x64xi32>
    %285 = arith.sitofp %284 : vector<16x64xi32> to vector<16x64xf32>
    %286 = tpu.iota {dimensions = array<i32: 1>} : vector<16x64xi32>
    %287 = arith.sitofp %286 : vector<16x64xi32> to vector<16x64xf32>
    %cst_213 = arith.constant 5.000000e-01 : f32
    %288 = vector.broadcast %cst_213 : f32 to vector<16x64xf32>
    %289 = arith.addf %285, %288 : vector<16x64xf32>
    %cst_214 = arith.constant 2.500000e-01 : f32
    %290 = vector.broadcast %cst_214 : f32 to vector<16x64xf32>
    %291 = arith.mulf %289, %290 : vector<16x64xf32>
    %292 = math.floor %291 : vector<16x64xf32>
    %cst_215 = arith.constant 4.000000e+00 : f32
    %293 = vector.broadcast %cst_215 : f32 to vector<16x64xf32>
    %294 = arith.mulf %292, %293 : vector<16x64xf32>
    %295 = arith.subf %285, %294 : vector<16x64xf32>
    %cst_216 = arith.constant 2.000000e+00 : f32
    %296 = vector.broadcast %cst_216 : f32 to vector<16x64xf32>
    %297 = arith.mulf %296, %292 : vector<16x64xf32>
    %cst_217 = arith.constant 9.000000e+00 : f32
    %298 = vector.broadcast %cst_217 : f32 to vector<16x64xf32>
    %299 = arith.mulf %297, %298 : vector<16x64xf32>
    %cst_218 = arith.constant 2.000000e+00 : f32
    %300 = vector.broadcast %cst_218 : f32 to vector<16x64xf32>
    %301 = arith.mulf %300, %295 : vector<16x64xf32>
    %302 = arith.addf %299, %301 : vector<16x64xf32>
    %303 = arith.cmpf oeq, %287, %302 : vector<16x64xf32>
    %cst_219 = arith.constant 1.600000e+01 : f32
    %304 = vector.broadcast %cst_219 : f32 to vector<16x64xf32>
    %305 = arith.cmpf olt, %285, %304 : vector<16x64xf32>
    %306 = arith.andi %303, %305 : vector<16x64xi1>
    %307 = arith.extui %306 : vector<16x64xi1> to vector<16x64xi32>
    %308 = arith.sitofp %307 : vector<16x64xi32> to vector<16x64xf32>
    %cst_220 = arith.constant 0.000000e+00 : f32
    %309 = vector.broadcast %cst_220 : f32 to vector<1x128xf32>
    %cst_221 = arith.constant 0.000000e+00 : f32
    %310 = vector.broadcast %cst_221 : f32 to vector<1x128xf32>
    %c0_222 = arith.constant 0 : index
    %c0_223 = arith.constant 0 : index
    %c0_224 = arith.constant 0 : index
    %311 = vector.load %arg16[%c0_222, %c0_223, %c0_224] : memref<2x88x128xf32, #tpu.memory_space<vmem>>, vector<1x64x128xf32>
    %312 = vector.shape_cast %311 : vector<1x64x128xf32> to vector<64x128xf32>
    %c0_225 = arith.constant 0 : index
    %c1_226 = arith.constant 1 : index
    %c0_227 = arith.constant 0 : index
    %313 = vector.load %arg16[%c0_225, %c1_226, %c0_227] : memref<2x88x128xf32, #tpu.memory_space<vmem>>, vector<1x64x128xf32>
    %314 = vector.shape_cast %313 : vector<1x64x128xf32> to vector<64x128xf32>
    %c8_i32_228 = arith.constant 8 : i32
    %315 = tpu.dynamic_rotate %314 by %c8_i32_228 dim 1 : vector<64x128xf32>, i32 -> vector<64x128xf32>
    %316 = arith.addf %312, %315 : vector<64x128xf32>
    %c0_229 = arith.constant 0 : index
    %c2_230 = arith.constant 2 : index
    %c0_231 = arith.constant 0 : index
    %317 = vector.load %arg16[%c0_229, %c2_230, %c0_231] : memref<2x88x128xf32, #tpu.memory_space<vmem>>, vector<1x64x128xf32>
    %318 = vector.shape_cast %317 : vector<1x64x128xf32> to vector<64x128xf32>
    %c16_i32_232 = arith.constant 16 : i32
    %319 = tpu.dynamic_rotate %318 by %c16_i32_232 dim 1 : vector<64x128xf32>, i32 -> vector<64x128xf32>
    %320 = arith.addf %316, %319 : vector<64x128xf32>
    %c0_233 = arith.constant 0 : index
    %c9 = arith.constant 9 : index
    %c0_234 = arith.constant 0 : index
    %321 = vector.load %arg16[%c0_233, %c9, %c0_234] : memref<2x88x128xf32, #tpu.memory_space<vmem>>, vector<1x64x128xf32>
    %322 = vector.shape_cast %321 : vector<1x64x128xf32> to vector<64x128xf32>
    %c24_i32_235 = arith.constant 24 : i32
    %323 = tpu.dynamic_rotate %322 by %c24_i32_235 dim 1 : vector<64x128xf32>, i32 -> vector<64x128xf32>
    %324 = arith.addf %320, %323 : vector<64x128xf32>
    %c0_236 = arith.constant 0 : index
    %c10 = arith.constant 10 : index
    %c0_237 = arith.constant 0 : index
    %325 = vector.load %arg16[%c0_236, %c10, %c0_237] : memref<2x88x128xf32, #tpu.memory_space<vmem>>, vector<1x64x128xf32>
    %326 = vector.shape_cast %325 : vector<1x64x128xf32> to vector<64x128xf32>
    %c32_i32_238 = arith.constant 32 : i32
    %327 = tpu.dynamic_rotate %326 by %c32_i32_238 dim 1 : vector<64x128xf32>, i32 -> vector<64x128xf32>
    %328 = arith.addf %324, %327 : vector<64x128xf32>
    %c0_239 = arith.constant 0 : index
    %c11 = arith.constant 11 : index
    %c0_240 = arith.constant 0 : index
    %329 = vector.load %arg16[%c0_239, %c11, %c0_240] : memref<2x88x128xf32, #tpu.memory_space<vmem>>, vector<1x64x128xf32>
    %330 = vector.shape_cast %329 : vector<1x64x128xf32> to vector<64x128xf32>
    %c40_i32_241 = arith.constant 40 : i32
    %331 = tpu.dynamic_rotate %330 by %c40_i32_241 dim 1 : vector<64x128xf32>, i32 -> vector<64x128xf32>
    %332 = arith.addf %328, %331 : vector<64x128xf32>
    %c0_242 = arith.constant 0 : index
    %c18 = arith.constant 18 : index
    %c0_243 = arith.constant 0 : index
    %333 = vector.load %arg16[%c0_242, %c18, %c0_243] : memref<2x88x128xf32, #tpu.memory_space<vmem>>, vector<1x64x128xf32>
    %334 = vector.shape_cast %333 : vector<1x64x128xf32> to vector<64x128xf32>
    %c48_i32_244 = arith.constant 48 : i32
    %335 = tpu.dynamic_rotate %334 by %c48_i32_244 dim 1 : vector<64x128xf32>, i32 -> vector<64x128xf32>
    %336 = arith.addf %332, %335 : vector<64x128xf32>
    %c0_245 = arith.constant 0 : index
    %c19 = arith.constant 19 : index
    %c0_246 = arith.constant 0 : index
    %337 = vector.load %arg16[%c0_245, %c19, %c0_246] : memref<2x88x128xf32, #tpu.memory_space<vmem>>, vector<1x64x128xf32>
    %338 = vector.shape_cast %337 : vector<1x64x128xf32> to vector<64x128xf32>
    %c56_i32_247 = arith.constant 56 : i32
    %339 = tpu.dynamic_rotate %338 by %c56_i32_247 dim 1 : vector<64x128xf32>, i32 -> vector<64x128xf32>
    %340 = arith.addf %336, %339 : vector<64x128xf32>
    %c0_248 = arith.constant 0 : index
    %c20 = arith.constant 20 : index
    %c0_249 = arith.constant 0 : index
    %341 = vector.load %arg16[%c0_248, %c20, %c0_249] : memref<2x88x128xf32, #tpu.memory_space<vmem>>, vector<1x64x128xf32>
    %342 = vector.shape_cast %341 : vector<1x64x128xf32> to vector<64x128xf32>
    %c64_i32_250 = arith.constant 64 : i32
    %343 = tpu.dynamic_rotate %342 by %c64_i32_250 dim 1 : vector<64x128xf32>, i32 -> vector<64x128xf32>
    %344 = arith.addf %340, %343 : vector<64x128xf32>
    %cst_251 = arith.constant dense<0.000000e+00> : vector<16x128xf32>
    %345 = tpu.matmul %308, %344, %cst_251 {dimension_numbers = #tpu.dot_dimension_numbers<[1], [0], [0], [1], [0, 0, 1, 1], [], []>} : vector<16x64xf32>, vector<64x128xf32>, vector<16x128xf32> -> vector<16x128xf32>
    %346 = vector.broadcast %279 : vector<1x128xf32> to vector<16x128xf32>
    %347 = arith.mulf %345, %346 : vector<16x128xf32>
    %c0_252 = arith.constant 0 : index
    %c0_253 = arith.constant 0 : index
    %348 = vector.load %arg7[%c0_252, %c0_253] : memref<128x128xf32, #tpu.memory_space<vmem>>, vector<128x128xf32>
    %cst_254 = arith.constant dense<0.000000e+00> : vector<16x128xf32>
    %349 = tpu.matmul %347, %348, %cst_254 {dimension_numbers = #tpu.dot_dimension_numbers<[1], [0], [0], [1], [0, 0, 1, 1], [], []>} : vector<16x128xf32>, vector<128x128xf32>, vector<16x128xf32> -> vector<16x128xf32>
    %350 = vector.broadcast %283 : vector<1x128xf32> to vector<16x128xf32>
    %351 = arith.addf %349, %350 : vector<16x128xf32>
    %c0_255 = arith.constant 0 : index
    %c0_256 = arith.constant 0 : index
    %c0_257 = arith.constant 0 : index
    %352 = vector.load %arg17[%c0_255, %c0_256, %c0_257] : memref<2x16x128xf32, #tpu.memory_space<vmem>>, vector<1x16x128xf32>
    %353 = vector.shape_cast %352 : vector<1x16x128xf32> to vector<16x128xf32>
    %354 = vector.shape_cast %351 : vector<16x128xf32> to vector<1x16x128xf32>
    tpu.vector_store %arg17[%c0_255, %c0_256, %c0_257], %354 {strides = array<i32>} : memref<2x16x128xf32, #tpu.memory_space<vmem>>, vector<1x16x128xf32>,
    %cst_258 = arith.constant dense<0.000000e+00> : vector<128xf32>
    %355 = vector.multi_reduction <add>, %351, %cst_258 [0] : vector<16x128xf32> to vector<128xf32>
    %356 = vector.shape_cast %355 : vector<128xf32> to vector<1x128xf32>
    %357 = arith.addf %309, %356 : vector<1x128xf32>
    %358 = arith.mulf %351, %351 : vector<16x128xf32>
    %cst_259 = arith.constant dense<0.000000e+00> : vector<128xf32>
    %359 = vector.multi_reduction <add>, %358, %cst_259 [0] : vector<16x128xf32> to vector<128xf32>
    %360 = vector.shape_cast %359 : vector<128xf32> to vector<1x128xf32>
    %361 = arith.addf %310, %360 : vector<1x128xf32>
    %c1_260 = arith.constant 1 : index
    %c0_261 = arith.constant 0 : index
    %c0_262 = arith.constant 0 : index
    %362 = vector.load %arg16[%c1_260, %c0_261, %c0_262] : memref<2x88x128xf32, #tpu.memory_space<vmem>>, vector<1x64x128xf32>
    %363 = vector.shape_cast %362 : vector<1x64x128xf32> to vector<64x128xf32>
    %c1_263 = arith.constant 1 : index
    %c1_264 = arith.constant 1 : index
    %c0_265 = arith.constant 0 : index
    %364 = vector.load %arg16[%c1_263, %c1_264, %c0_265] : memref<2x88x128xf32, #tpu.memory_space<vmem>>, vector<1x64x128xf32>
    %365 = vector.shape_cast %364 : vector<1x64x128xf32> to vector<64x128xf32>
    %c8_i32_266 = arith.constant 8 : i32
    %366 = tpu.dynamic_rotate %365 by %c8_i32_266 dim 1 : vector<64x128xf32>, i32 -> vector<64x128xf32>
    %367 = arith.addf %363, %366 : vector<64x128xf32>
    %c1_267 = arith.constant 1 : index
    %c2_268 = arith.constant 2 : index
    %c0_269 = arith.constant 0 : index
    %368 = vector.load %arg16[%c1_267, %c2_268, %c0_269] : memref<2x88x128xf32, #tpu.memory_space<vmem>>, vector<1x64x128xf32>
    %369 = vector.shape_cast %368 : vector<1x64x128xf32> to vector<64x128xf32>
    %c16_i32_270 = arith.constant 16 : i32
    %370 = tpu.dynamic_rotate %369 by %c16_i32_270 dim 1 : vector<64x128xf32>, i32 -> vector<64x128xf32>
    %371 = arith.addf %367, %370 : vector<64x128xf32>
    %c1_271 = arith.constant 1 : index
    %c9_272 = arith.constant 9 : index
    %c0_273 = arith.constant 0 : index
    %372 = vector.load %arg16[%c1_271, %c9_272, %c0_273] : memref<2x88x128xf32, #tpu.memory_space<vmem>>, vector<1x64x128xf32>
    %373 = vector.shape_cast %372 : vector<1x64x128xf32> to vector<64x128xf32>
    %c24_i32_274 = arith.constant 24 : i32
    %374 = tpu.dynamic_rotate %373 by %c24_i32_274 dim 1 : vector<64x128xf32>, i32 -> vector<64x128xf32>
    %375 = arith.addf %371, %374 : vector<64x128xf32>
    %c1_275 = arith.constant 1 : index
    %c10_276 = arith.constant 10 : index
    %c0_277 = arith.constant 0 : index
    %376 = vector.load %arg16[%c1_275, %c10_276, %c0_277] : memref<2x88x128xf32, #tpu.memory_space<vmem>>, vector<1x64x128xf32>
    %377 = vector.shape_cast %376 : vector<1x64x128xf32> to vector<64x128xf32>
    %c32_i32_278 = arith.constant 32 : i32
    %378 = tpu.dynamic_rotate %377 by %c32_i32_278 dim 1 : vector<64x128xf32>, i32 -> vector<64x128xf32>
    %379 = arith.addf %375, %378 : vector<64x128xf32>
    %c1_279 = arith.constant 1 : index
    %c11_280 = arith.constant 11 : index
    %c0_281 = arith.constant 0 : index
    %380 = vector.load %arg16[%c1_279, %c11_280, %c0_281] : memref<2x88x128xf32, #tpu.memory_space<vmem>>, vector<1x64x128xf32>
    %381 = vector.shape_cast %380 : vector<1x64x128xf32> to vector<64x128xf32>
    %c40_i32_282 = arith.constant 40 : i32
    %382 = tpu.dynamic_rotate %381 by %c40_i32_282 dim 1 : vector<64x128xf32>, i32 -> vector<64x128xf32>
    %383 = arith.addf %379, %382 : vector<64x128xf32>
    %c1_283 = arith.constant 1 : index
    %c18_284 = arith.constant 18 : index
    %c0_285 = arith.constant 0 : index
    %384 = vector.load %arg16[%c1_283, %c18_284, %c0_285] : memref<2x88x128xf32, #tpu.memory_space<vmem>>, vector<1x64x128xf32>
    %385 = vector.shape_cast %384 : vector<1x64x128xf32> to vector<64x128xf32>
    %c48_i32_286 = arith.constant 48 : i32
    %386 = tpu.dynamic_rotate %385 by %c48_i32_286 dim 1 : vector<64x128xf32>, i32 -> vector<64x128xf32>
    %387 = arith.addf %383, %386 : vector<64x128xf32>
    %c1_287 = arith.constant 1 : index
    %c19_288 = arith.constant 19 : index
    %c0_289 = arith.constant 0 : index
    %388 = vector.load %arg16[%c1_287, %c19_288, %c0_289] : memref<2x88x128xf32, #tpu.memory_space<vmem>>, vector<1x64x128xf32>
    %389 = vector.shape_cast %388 : vector<1x64x128xf32> to vector<64x128xf32>
    %c56_i32_290 = arith.constant 56 : i32
    %390 = tpu.dynamic_rotate %389 by %c56_i32_290 dim 1 : vector<64x128xf32>, i32 -> vector<64x128xf32>
    %391 = arith.addf %387, %390 : vector<64x128xf32>
    %c1_291 = arith.constant 1 : index
    %c20_292 = arith.constant 20 : index
    %c0_293 = arith.constant 0 : index
    %392 = vector.load %arg16[%c1_291, %c20_292, %c0_293] : memref<2x88x128xf32, #tpu.memory_space<vmem>>, vector<1x64x128xf32>
    %393 = vector.shape_cast %392 : vector<1x64x128xf32> to vector<64x128xf32>
    %c64_i32_294 = arith.constant 64 : i32
    %394 = tpu.dynamic_rotate %393 by %c64_i32_294 dim 1 : vector<64x128xf32>, i32 -> vector<64x128xf32>
    %395 = arith.addf %391, %394 : vector<64x128xf32>
    %cst_295 = arith.constant dense<0.000000e+00> : vector<16x128xf32>
    %396 = tpu.matmul %308, %395, %cst_295 {dimension_numbers = #tpu.dot_dimension_numbers<[1], [0], [0], [1], [0, 0, 1, 1], [], []>} : vector<16x64xf32>, vector<64x128xf32>, vector<16x128xf32> -> vector<16x128xf32>
    %397 = vector.broadcast %279 : vector<1x128xf32> to vector<16x128xf32>
    %398 = arith.mulf %396, %397 : vector<16x128xf32>
    %c0_296 = arith.constant 0 : index
    %c0_297 = arith.constant 0 : index
    %399 = vector.load %arg7[%c0_296, %c0_297] : memref<128x128xf32, #tpu.memory_space<vmem>>, vector<128x128xf32>
    %cst_298 = arith.constant dense<0.000000e+00> : vector<16x128xf32>
    %400 = tpu.matmul %398, %399, %cst_298 {dimension_numbers = #tpu.dot_dimension_numbers<[1], [0], [0], [1], [0, 0, 1, 1], [], []>} : vector<16x128xf32>, vector<128x128xf32>, vector<16x128xf32> -> vector<16x128xf32>
    %401 = vector.broadcast %283 : vector<1x128xf32> to vector<16x128xf32>
    %402 = arith.addf %400, %401 : vector<16x128xf32>
    %c1_299 = arith.constant 1 : index
    %c0_300 = arith.constant 0 : index
    %c0_301 = arith.constant 0 : index
    %403 = vector.load %arg17[%c1_299, %c0_300, %c0_301] : memref<2x16x128xf32, #tpu.memory_space<vmem>>, vector<1x16x128xf32>
    %404 = vector.shape_cast %403 : vector<1x16x128xf32> to vector<16x128xf32>
    %405 = vector.shape_cast %402 : vector<16x128xf32> to vector<1x16x128xf32>
    tpu.vector_store %arg17[%c1_299, %c0_300, %c0_301], %405 {strides = array<i32>} : memref<2x16x128xf32, #tpu.memory_space<vmem>>, vector<1x16x128xf32>,
    %cst_302 = arith.constant dense<0.000000e+00> : vector<128xf32>
    %406 = vector.multi_reduction <add>, %402, %cst_302 [0] : vector<16x128xf32> to vector<128xf32>
    %407 = vector.shape_cast %406 : vector<128xf32> to vector<1x128xf32>
    %408 = arith.addf %357, %407 : vector<1x128xf32>
    %409 = arith.mulf %402, %402 : vector<16x128xf32>
    %cst_303 = arith.constant dense<0.000000e+00> : vector<128xf32>
    %410 = vector.multi_reduction <add>, %409, %cst_303 [0] : vector<16x128xf32> to vector<128xf32>
    %411 = vector.shape_cast %410 : vector<128xf32> to vector<1x128xf32>
    %412 = arith.addf %361, %411 : vector<1x128xf32>
    %cst_304 = arith.constant 3.125000e-02 : f32
    %413 = vector.broadcast %cst_304 : f32 to vector<1x128xf32>
    %414 = arith.mulf %408, %413 : vector<1x128xf32>
    %cst_305 = arith.constant 3.125000e-02 : f32
    %415 = vector.broadcast %cst_305 : f32 to vector<1x128xf32>
    %416 = arith.mulf %412, %415 : vector<1x128xf32>
    %417 = arith.mulf %414, %414 : vector<1x128xf32>
    %418 = arith.subf %416, %417 : vector<1x128xf32>
    %c0_306 = arith.constant 0 : index
    %c0_307 = arith.constant 0 : index
    %419 = vector.load %arg8[%c0_306, %c0_307] : memref<1x128xf32, #tpu.memory_space<vmem>>, vector<1x128xf32>
    %cst_308 = arith.constant 9.99999974E-6 : f32
    %420 = vector.broadcast %cst_308 : f32 to vector<1x128xf32>
    %421 = arith.addf %418, %420 : vector<1x128xf32>
    %422 = math.rsqrt %421 : vector<1x128xf32>
    %423 = arith.mulf %419, %422 : vector<1x128xf32>
    %c0_309 = arith.constant 0 : index
    %c0_310 = arith.constant 0 : index
    %424 = vector.load %arg9[%c0_309, %c0_310] : memref<1x128xf32, #tpu.memory_space<vmem>>, vector<1x128xf32>
    %425 = arith.mulf %414, %423 : vector<1x128xf32>
    %426 = arith.subf %424, %425 : vector<1x128xf32>
    %cst_311 = arith.constant 0.000000e+00 : f32
    %427 = vector.broadcast %cst_311 : f32 to vector<8x2048xf32>
    %c0_312 = arith.constant 0 : index
    %c0_313 = arith.constant 0 : index
    %428 = vector.load %arg19[%c0_312, %c0_313] : memref<8x2048xf32, #tpu.memory_space<vmem>>, vector<8x2048xf32>
    tpu.vector_store %arg19[%c0_312, %c0_313], %427 {strides = array<i32>} : memref<8x2048xf32, #tpu.memory_space<vmem>>, vector<8x2048xf32>,
    %c0_314 = arith.constant 0 : index
    %c0_315 = arith.constant 0 : index
    %c0_316 = arith.constant 0 : index
    %429 = vector.load %arg17[%c0_314, %c0_315, %c0_316] : memref<2x16x128xf32, #tpu.memory_space<vmem>>, vector<1x16x128xf32>
    %430 = vector.shape_cast %429 : vector<1x16x128xf32> to vector<16x128xf32>
    %431 = vector.broadcast %423 : vector<1x128xf32> to vector<16x128xf32>
    %432 = arith.mulf %430, %431 : vector<16x128xf32>
    %433 = vector.broadcast %426 : vector<1x128xf32> to vector<16x128xf32>
    %434 = arith.addf %432, %433 : vector<16x128xf32>
    %cst_317 = arith.constant 0.00999999977 : f32
    %435 = vector.broadcast %cst_317 : f32 to vector<16x128xf32>
    %436 = arith.mulf %435, %434 : vector<16x128xf32>
    %437 = arith.maximumf %434, %436 : vector<16x128xf32>
    %c0_318 = arith.constant 0 : index
    %c0_319 = arith.constant 0 : index
    %c0_320 = arith.constant 0 : index
    %438 = vector.load %arg12[%c0_318, %c0_319, %c0_320] : memref<2x16x128xf32, #tpu.memory_space<vmem>>, vector<1x16x128xf32>
    %439 = vector.shape_cast %438 : vector<1x16x128xf32> to vector<16x128xf32>
    %440 = vector.shape_cast %437 : vector<16x128xf32> to vector<1x16x128xf32>
    tpu.vector_store %arg12[%c0_318, %c0_319, %c0_320], %440 {strides = array<i32>} : memref<2x16x128xf32, #tpu.memory_space<vmem>>, vector<1x16x128xf32>,
    %441 = vector.extract_strided_slice %437 {offsets = [0, 0], sizes = [1, 128], strides = [1, 1]} : vector<16x128xf32> to vector<1x128xf32>
    %c0_321 = arith.constant 0 : index
    %c0_322 = arith.constant 0 : index
    %442 = vector.load %arg19[%c0_321, %c0_322] : memref<8x2048xf32, #tpu.memory_space<vmem>>, vector<1x128xf32>
    tpu.vector_store %arg19[%c0_321, %c0_322], %441 {strides = array<i32>} : memref<8x2048xf32, #tpu.memory_space<vmem>>, vector<1x128xf32>,
    %443 = vector.extract_strided_slice %437 {offsets = [1, 0], sizes = [1, 128], strides = [1, 1]} : vector<16x128xf32> to vector<1x128xf32>
    %c0_323 = arith.constant 0 : index
    %c128_324 = arith.constant 128 : index
    %444 = vector.load %arg19[%c0_323, %c128_324] : memref<8x2048xf32, #tpu.memory_space<vmem>>, vector<1x128xf32>
    tpu.vector_store %arg19[%c0_323, %c128_324], %443 {strides = array<i32>} : memref<8x2048xf32, #tpu.memory_space<vmem>>, vector<1x128xf32>,
    %445 = vector.extract_strided_slice %437 {offsets = [2, 0], sizes = [1, 128], strides = [1, 1]} : vector<16x128xf32> to vector<1x128xf32>
    %c0_325 = arith.constant 0 : index
    %c256_326 = arith.constant 256 : index
    %446 = vector.load %arg19[%c0_325, %c256_326] : memref<8x2048xf32, #tpu.memory_space<vmem>>, vector<1x128xf32>
    tpu.vector_store %arg19[%c0_325, %c256_326], %445 {strides = array<i32>} : memref<8x2048xf32, #tpu.memory_space<vmem>>, vector<1x128xf32>,
    %447 = vector.extract_strided_slice %437 {offsets = [3, 0], sizes = [1, 128], strides = [1, 1]} : vector<16x128xf32> to vector<1x128xf32>
    %c0_327 = arith.constant 0 : index
    %c384 = arith.constant 384 : index
    %448 = vector.load %arg19[%c0_327, %c384] : memref<8x2048xf32, #tpu.memory_space<vmem>>, vector<1x128xf32>
    tpu.vector_store %arg19[%c0_327, %c384], %447 {strides = array<i32>} : memref<8x2048xf32, #tpu.memory_space<vmem>>, vector<1x128xf32>,
    %449 = vector.extract_strided_slice %437 {offsets = [4, 0], sizes = [1, 128], strides = [1, 1]} : vector<16x128xf32> to vector<1x128xf32>
    %c0_328 = arith.constant 0 : index
    %c512 = arith.constant 512 : index
    %450 = vector.load %arg19[%c0_328, %c512] : memref<8x2048xf32, #tpu.memory_space<vmem>>, vector<1x128xf32>
    tpu.vector_store %arg19[%c0_328, %c512], %449 {strides = array<i32>} : memref<8x2048xf32, #tpu.memory_space<vmem>>, vector<1x128xf32>,
    %451 = vector.extract_strided_slice %437 {offsets = [5, 0], sizes = [1, 128], strides = [1, 1]} : vector<16x128xf32> to vector<1x128xf32>
    %c0_329 = arith.constant 0 : index
    %c640 = arith.constant 640 : index
    %452 = vector.load %arg19[%c0_329, %c640] : memref<8x2048xf32, #tpu.memory_space<vmem>>, vector<1x128xf32>
    tpu.vector_store %arg19[%c0_329, %c640], %451 {strides = array<i32>} : memref<8x2048xf32, #tpu.memory_space<vmem>>, vector<1x128xf32>,
    %453 = vector.extract_strided_slice %437 {offsets = [6, 0], sizes = [1, 128], strides = [1, 1]} : vector<16x128xf32> to vector<1x128xf32>
    %c0_330 = arith.constant 0 : index
    %c768 = arith.constant 768 : index
    %454 = vector.load %arg19[%c0_330, %c768] : memref<8x2048xf32, #tpu.memory_space<vmem>>, vector<1x128xf32>
    tpu.vector_store %arg19[%c0_330, %c768], %453 {strides = array<i32>} : memref<8x2048xf32, #tpu.memory_space<vmem>>, vector<1x128xf32>,
    %455 = vector.extract_strided_slice %437 {offsets = [7, 0], sizes = [1, 128], strides = [1, 1]} : vector<16x128xf32> to vector<1x128xf32>
    %c0_331 = arith.constant 0 : index
    %c896 = arith.constant 896 : index
    %456 = vector.load %arg19[%c0_331, %c896] : memref<8x2048xf32, #tpu.memory_space<vmem>>, vector<1x128xf32>
    tpu.vector_store %arg19[%c0_331, %c896], %455 {strides = array<i32>} : memref<8x2048xf32, #tpu.memory_space<vmem>>, vector<1x128xf32>,
    %457 = vector.extract_strided_slice %437 {offsets = [8, 0], sizes = [1, 128], strides = [1, 1]} : vector<16x128xf32> to vector<1x128xf32>
    %c0_332 = arith.constant 0 : index
    %c1024 = arith.constant 1024 : index
    %458 = vector.load %arg19[%c0_332, %c1024] : memref<8x2048xf32, #tpu.memory_space<vmem>>, vector<1x128xf32>
    tpu.vector_store %arg19[%c0_332, %c1024], %457 {strides = array<i32>} : memref<8x2048xf32, #tpu.memory_space<vmem>>, vector<1x128xf32>,
    %459 = vector.extract_strided_slice %437 {offsets = [9, 0], sizes = [1, 128], strides = [1, 1]} : vector<16x128xf32> to vector<1x128xf32>
    %c0_333 = arith.constant 0 : index
    %c1152 = arith.constant 1152 : index
    %460 = vector.load %arg19[%c0_333, %c1152] : memref<8x2048xf32, #tpu.memory_space<vmem>>, vector<1x128xf32>
    tpu.vector_store %arg19[%c0_333, %c1152], %459 {strides = array<i32>} : memref<8x2048xf32, #tpu.memory_space<vmem>>, vector<1x128xf32>,
    %461 = vector.extract_strided_slice %437 {offsets = [10, 0], sizes = [1, 128], strides = [1, 1]} : vector<16x128xf32> to vector<1x128xf32>
    %c0_334 = arith.constant 0 : index
    %c1280 = arith.constant 1280 : index
    %462 = vector.load %arg19[%c0_334, %c1280] : memref<8x2048xf32, #tpu.memory_space<vmem>>, vector<1x128xf32>
    tpu.vector_store %arg19[%c0_334, %c1280], %461 {strides = array<i32>} : memref<8x2048xf32, #tpu.memory_space<vmem>>, vector<1x128xf32>,
    %463 = vector.extract_strided_slice %437 {offsets = [11, 0], sizes = [1, 128], strides = [1, 1]} : vector<16x128xf32> to vector<1x128xf32>
    %c0_335 = arith.constant 0 : index
    %c1408 = arith.constant 1408 : index
    %464 = vector.load %arg19[%c0_335, %c1408] : memref<8x2048xf32, #tpu.memory_space<vmem>>, vector<1x128xf32>
    tpu.vector_store %arg19[%c0_335, %c1408], %463 {strides = array<i32>} : memref<8x2048xf32, #tpu.memory_space<vmem>>, vector<1x128xf32>,
    %465 = vector.extract_strided_slice %437 {offsets = [12, 0], sizes = [1, 128], strides = [1, 1]} : vector<16x128xf32> to vector<1x128xf32>
    %c0_336 = arith.constant 0 : index
    %c1536 = arith.constant 1536 : index
    %466 = vector.load %arg19[%c0_336, %c1536] : memref<8x2048xf32, #tpu.memory_space<vmem>>, vector<1x128xf32>
    tpu.vector_store %arg19[%c0_336, %c1536], %465 {strides = array<i32>} : memref<8x2048xf32, #tpu.memory_space<vmem>>, vector<1x128xf32>,
    %467 = vector.extract_strided_slice %437 {offsets = [13, 0], sizes = [1, 128], strides = [1, 1]} : vector<16x128xf32> to vector<1x128xf32>
    %c0_337 = arith.constant 0 : index
    %c1664 = arith.constant 1664 : index
    %468 = vector.load %arg19[%c0_337, %c1664] : memref<8x2048xf32, #tpu.memory_space<vmem>>, vector<1x128xf32>
    tpu.vector_store %arg19[%c0_337, %c1664], %467 {strides = array<i32>} : memref<8x2048xf32, #tpu.memory_space<vmem>>, vector<1x128xf32>,
    %469 = vector.extract_strided_slice %437 {offsets = [14, 0], sizes = [1, 128], strides = [1, 1]} : vector<16x128xf32> to vector<1x128xf32>
    %c0_338 = arith.constant 0 : index
    %c1792 = arith.constant 1792 : index
    %470 = vector.load %arg19[%c0_338, %c1792] : memref<8x2048xf32, #tpu.memory_space<vmem>>, vector<1x128xf32>
    tpu.vector_store %arg19[%c0_338, %c1792], %469 {strides = array<i32>} : memref<8x2048xf32, #tpu.memory_space<vmem>>, vector<1x128xf32>,
    %471 = vector.extract_strided_slice %437 {offsets = [15, 0], sizes = [1, 128], strides = [1, 1]} : vector<16x128xf32> to vector<1x128xf32>
    %c0_339 = arith.constant 0 : index
    %c1920 = arith.constant 1920 : index
    %472 = vector.load %arg19[%c0_339, %c1920] : memref<8x2048xf32, #tpu.memory_space<vmem>>, vector<1x128xf32>
    tpu.vector_store %arg19[%c0_339, %c1920], %471 {strides = array<i32>} : memref<8x2048xf32, #tpu.memory_space<vmem>>, vector<1x128xf32>,
    %c1_340 = arith.constant 1 : index
    %c0_341 = arith.constant 0 : index
    %c0_342 = arith.constant 0 : index
    %473 = vector.load %arg17[%c1_340, %c0_341, %c0_342] : memref<2x16x128xf32, #tpu.memory_space<vmem>>, vector<1x16x128xf32>
    %474 = vector.shape_cast %473 : vector<1x16x128xf32> to vector<16x128xf32>
    %475 = vector.broadcast %423 : vector<1x128xf32> to vector<16x128xf32>
    %476 = arith.mulf %474, %475 : vector<16x128xf32>
    %477 = vector.broadcast %426 : vector<1x128xf32> to vector<16x128xf32>
    %478 = arith.addf %476, %477 : vector<16x128xf32>
    %cst_343 = arith.constant 0.00999999977 : f32
    %479 = vector.broadcast %cst_343 : f32 to vector<16x128xf32>
    %480 = arith.mulf %479, %478 : vector<16x128xf32>
    %481 = arith.maximumf %478, %480 : vector<16x128xf32>
    %c1_344 = arith.constant 1 : index
    %c0_345 = arith.constant 0 : index
    %c0_346 = arith.constant 0 : index
    %482 = vector.load %arg12[%c1_344, %c0_345, %c0_346] : memref<2x16x128xf32, #tpu.memory_space<vmem>>, vector<1x16x128xf32>
    %483 = vector.shape_cast %482 : vector<1x16x128xf32> to vector<16x128xf32>
    %484 = vector.shape_cast %481 : vector<16x128xf32> to vector<1x16x128xf32>
    tpu.vector_store %arg12[%c1_344, %c0_345, %c0_346], %484 {strides = array<i32>} : memref<2x16x128xf32, #tpu.memory_space<vmem>>, vector<1x16x128xf32>,
    %485 = vector.extract_strided_slice %481 {offsets = [0, 0], sizes = [1, 128], strides = [1, 1]} : vector<16x128xf32> to vector<1x128xf32>
    %c1_347 = arith.constant 1 : index
    %c0_348 = arith.constant 0 : index
    %486 = vector.load %arg19[%c1_347, %c0_348] : memref<8x2048xf32, #tpu.memory_space<vmem>>, vector<1x128xf32>
    tpu.vector_store %arg19[%c1_347, %c0_348], %485 {strides = array<i32>} : memref<8x2048xf32, #tpu.memory_space<vmem>>, vector<1x128xf32>,
    %487 = vector.extract_strided_slice %481 {offsets = [1, 0], sizes = [1, 128], strides = [1, 1]} : vector<16x128xf32> to vector<1x128xf32>
    %c1_349 = arith.constant 1 : index
    %c128_350 = arith.constant 128 : index
    %488 = vector.load %arg19[%c1_349, %c128_350] : memref<8x2048xf32, #tpu.memory_space<vmem>>, vector<1x128xf32>
    tpu.vector_store %arg19[%c1_349, %c128_350], %487 {strides = array<i32>} : memref<8x2048xf32, #tpu.memory_space<vmem>>, vector<1x128xf32>,
    %489 = vector.extract_strided_slice %481 {offsets = [2, 0], sizes = [1, 128], strides = [1, 1]} : vector<16x128xf32> to vector<1x128xf32>
    %c1_351 = arith.constant 1 : index
    %c256_352 = arith.constant 256 : index
    %490 = vector.load %arg19[%c1_351, %c256_352] : memref<8x2048xf32, #tpu.memory_space<vmem>>, vector<1x128xf32>
    tpu.vector_store %arg19[%c1_351, %c256_352], %489 {strides = array<i32>} : memref<8x2048xf32, #tpu.memory_space<vmem>>, vector<1x128xf32>,
    %491 = vector.extract_strided_slice %481 {offsets = [3, 0], sizes = [1, 128], strides = [1, 1]} : vector<16x128xf32> to vector<1x128xf32>
    %c1_353 = arith.constant 1 : index
    %c384_354 = arith.constant 384 : index
    %492 = vector.load %arg19[%c1_353, %c384_354] : memref<8x2048xf32, #tpu.memory_space<vmem>>, vector<1x128xf32>
    tpu.vector_store %arg19[%c1_353, %c384_354], %491 {strides = array<i32>} : memref<8x2048xf32, #tpu.memory_space<vmem>>, vector<1x128xf32>,
    %493 = vector.extract_strided_slice %481 {offsets = [4, 0], sizes = [1, 128], strides = [1, 1]} : vector<16x128xf32> to vector<1x128xf32>
    %c1_355 = arith.constant 1 : index
    %c512_356 = arith.constant 512 : index
    %494 = vector.load %arg19[%c1_355, %c512_356] : memref<8x2048xf32, #tpu.memory_space<vmem>>, vector<1x128xf32>
    tpu.vector_store %arg19[%c1_355, %c512_356], %493 {strides = array<i32>} : memref<8x2048xf32, #tpu.memory_space<vmem>>, vector<1x128xf32>,
    %495 = vector.extract_strided_slice %481 {offsets = [5, 0], sizes = [1, 128], strides = [1, 1]} : vector<16x128xf32> to vector<1x128xf32>
    %c1_357 = arith.constant 1 : index
    %c640_358 = arith.constant 640 : index
    %496 = vector.load %arg19[%c1_357, %c640_358] : memref<8x2048xf32, #tpu.memory_space<vmem>>, vector<1x128xf32>
    tpu.vector_store %arg19[%c1_357, %c640_358], %495 {strides = array<i32>} : memref<8x2048xf32, #tpu.memory_space<vmem>>, vector<1x128xf32>,
    %497 = vector.extract_strided_slice %481 {offsets = [6, 0], sizes = [1, 128], strides = [1, 1]} : vector<16x128xf32> to vector<1x128xf32>
    %c1_359 = arith.constant 1 : index
    %c768_360 = arith.constant 768 : index
    %498 = vector.load %arg19[%c1_359, %c768_360] : memref<8x2048xf32, #tpu.memory_space<vmem>>, vector<1x128xf32>
    tpu.vector_store %arg19[%c1_359, %c768_360], %497 {strides = array<i32>} : memref<8x2048xf32, #tpu.memory_space<vmem>>, vector<1x128xf32>,
    %499 = vector.extract_strided_slice %481 {offsets = [7, 0], sizes = [1, 128], strides = [1, 1]} : vector<16x128xf32> to vector<1x128xf32>
    %c1_361 = arith.constant 1 : index
    %c896_362 = arith.constant 896 : index
    %500 = vector.load %arg19[%c1_361, %c896_362] : memref<8x2048xf32, #tpu.memory_space<vmem>>, vector<1x128xf32>
    tpu.vector_store %arg19[%c1_361, %c896_362], %499 {strides = array<i32>} : memref<8x2048xf32, #tpu.memory_space<vmem>>, vector<1x128xf32>,
    %501 = vector.extract_strided_slice %481 {offsets = [8, 0], sizes = [1, 128], strides = [1, 1]} : vector<16x128xf32> to vector<1x128xf32>
    %c1_363 = arith.constant 1 : index
    %c1024_364 = arith.constant 1024 : index
    %502 = vector.load %arg19[%c1_363, %c1024_364] : memref<8x2048xf32, #tpu.memory_space<vmem>>, vector<1x128xf32>
    tpu.vector_store %arg19[%c1_363, %c1024_364], %501 {strides = array<i32>} : memref<8x2048xf32, #tpu.memory_space<vmem>>, vector<1x128xf32>,
    %503 = vector.extract_strided_slice %481 {offsets = [9, 0], sizes = [1, 128], strides = [1, 1]} : vector<16x128xf32> to vector<1x128xf32>
    %c1_365 = arith.constant 1 : index
    %c1152_366 = arith.constant 1152 : index
    %504 = vector.load %arg19[%c1_365, %c1152_366] : memref<8x2048xf32, #tpu.memory_space<vmem>>, vector<1x128xf32>
    tpu.vector_store %arg19[%c1_365, %c1152_366], %503 {strides = array<i32>} : memref<8x2048xf32, #tpu.memory_space<vmem>>, vector<1x128xf32>,
    %505 = vector.extract_strided_slice %481 {offsets = [10, 0], sizes = [1, 128], strides = [1, 1]} : vector<16x128xf32> to vector<1x128xf32>
    %c1_367 = arith.constant 1 : index
    %c1280_368 = arith.constant 1280 : index
    %506 = vector.load %arg19[%c1_367, %c1280_368] : memref<8x2048xf32, #tpu.memory_space<vmem>>, vector<1x128xf32>
    tpu.vector_store %arg19[%c1_367, %c1280_368], %505 {strides = array<i32>} : memref<8x2048xf32, #tpu.memory_space<vmem>>, vector<1x128xf32>,
    %507 = vector.extract_strided_slice %481 {offsets = [11, 0], sizes = [1, 128], strides = [1, 1]} : vector<16x128xf32> to vector<1x128xf32>
    %c1_369 = arith.constant 1 : index
    %c1408_370 = arith.constant 1408 : index
    %508 = vector.load %arg19[%c1_369, %c1408_370] : memref<8x2048xf32, #tpu.memory_space<vmem>>, vector<1x128xf32>
    tpu.vector_store %arg19[%c1_369, %c1408_370], %507 {strides = array<i32>} : memref<8x2048xf32, #tpu.memory_space<vmem>>, vector<1x128xf32>,
    %509 = vector.extract_strided_slice %481 {offsets = [12, 0], sizes = [1, 128], strides = [1, 1]} : vector<16x128xf32> to vector<1x128xf32>
    %c1_371 = arith.constant 1 : index
    %c1536_372 = arith.constant 1536 : index
    %510 = vector.load %arg19[%c1_371, %c1536_372] : memref<8x2048xf32, #tpu.memory_space<vmem>>, vector<1x128xf32>
    tpu.vector_store %arg19[%c1_371, %c1536_372], %509 {strides = array<i32>} : memref<8x2048xf32, #tpu.memory_space<vmem>>, vector<1x128xf32>,
    %511 = vector.extract_strided_slice %481 {offsets = [13, 0], sizes = [1, 128], strides = [1, 1]} : vector<16x128xf32> to vector<1x128xf32>
    %c1_373 = arith.constant 1 : index
    %c1664_374 = arith.constant 1664 : index
    %512 = vector.load %arg19[%c1_373, %c1664_374] : memref<8x2048xf32, #tpu.memory_space<vmem>>, vector<1x128xf32>
    tpu.vector_store %arg19[%c1_373, %c1664_374], %511 {strides = array<i32>} : memref<8x2048xf32, #tpu.memory_space<vmem>>, vector<1x128xf32>,
    %513 = vector.extract_strided_slice %481 {offsets = [14, 0], sizes = [1, 128], strides = [1, 1]} : vector<16x128xf32> to vector<1x128xf32>
    %c1_375 = arith.constant 1 : index
    %c1792_376 = arith.constant 1792 : index
    %514 = vector.load %arg19[%c1_375, %c1792_376] : memref<8x2048xf32, #tpu.memory_space<vmem>>, vector<1x128xf32>
    tpu.vector_store %arg19[%c1_375, %c1792_376], %513 {strides = array<i32>} : memref<8x2048xf32, #tpu.memory_space<vmem>>, vector<1x128xf32>,
    %515 = vector.extract_strided_slice %481 {offsets = [15, 0], sizes = [1, 128], strides = [1, 1]} : vector<16x128xf32> to vector<1x128xf32>
    %c1_377 = arith.constant 1 : index
    %c1920_378 = arith.constant 1920 : index
    %516 = vector.load %arg19[%c1_377, %c1920_378] : memref<8x2048xf32, #tpu.memory_space<vmem>>, vector<1x128xf32>
    tpu.vector_store %arg19[%c1_377, %c1920_378], %515 {strides = array<i32>} : memref<8x2048xf32, #tpu.memory_space<vmem>>, vector<1x128xf32>,
    %c0_379 = arith.constant 0 : index
    %c0_380 = arith.constant 0 : index
    %517 = vector.load %arg19[%c0_379, %c0_380] : memref<8x2048xf32, #tpu.memory_space<vmem>>, vector<8x2048xf32>
    %c0_381 = arith.constant 0 : index
    %c0_382 = arith.constant 0 : index
    %518 = vector.load %arg10[%c0_381, %c0_382] : memref<2048x128xf32, #tpu.memory_space<vmem>>, vector<2048x128xf32>
    %cst_383 = arith.constant dense<0.000000e+00> : vector<8x128xf32>
    %519 = tpu.matmul %517, %518, %cst_383 {dimension_numbers = #tpu.dot_dimension_numbers<[1], [0], [0], [1], [0, 0, 1, 1], [], []>} : vector<8x2048xf32>, vector<2048x128xf32>, vector<8x128xf32> -> vector<8x128xf32>
    %c0_384 = arith.constant 0 : index
    %c0_385 = arith.constant 0 : index
    %520 = vector.load %arg11[%c0_384, %c0_385] : memref<1x128xf32, #tpu.memory_space<vmem>>, vector<1x128xf32>
    %521 = vector.broadcast %520 : vector<1x128xf32> to vector<8x128xf32>
    %522 = arith.addf %519, %521 : vector<8x128xf32>
    %c0_386 = arith.constant 0 : index
    %c0_387 = arith.constant 0 : index
    %523 = vector.load %arg13[%c0_386, %c0_387] : memref<8x128xf32, #tpu.memory_space<vmem>>, vector<8x128xf32>
    tpu.vector_store %arg13[%c0_386, %c0_387], %522 {strides = array<i32>} : memref<8x128xf32, #tpu.memory_space<vmem>>, vector<8x128xf32>,
    return
  }
  func.func @transform_0(%arg0: i32) -> (i32, i32, i32) {
    %c0_i32 = arith.constant 0 : i32
    %c0_i32_0 = arith.constant 0 : i32
    %c0_i32_1 = arith.constant 0 : i32
    %c0_i32_2 = arith.constant 0 : i32
    return %c0_i32, %c0_i32_0, %c0_i32_1 : i32, i32, i32
  }
  func.func @transform_1(%arg0: i32) -> (i32, i32) {
    %c0_i32 = arith.constant 0 : i32
    %c0_i32_0 = arith.constant 0 : i32
    %c0_i32_1 = arith.constant 0 : i32
    return %c0_i32, %c0_i32_0 : i32, i32
  }
  func.func @transform_2(%arg0: i32) -> (i32, i32) {
    %c0_i32 = arith.constant 0 : i32
    %c0_i32_0 = arith.constant 0 : i32
    %c0_i32_1 = arith.constant 0 : i32
    return %c0_i32, %c0_i32_0 : i32, i32
  }
  func.func @transform_3(%arg0: i32) -> (i32, i32) {
    %c0_i32 = arith.constant 0 : i32
    %c0_i32_0 = arith.constant 0 : i32
    %c0_i32_1 = arith.constant 0 : i32
    return %c0_i32, %c0_i32_0 : i32, i32
  }
  func.func @transform_4(%arg0: i32) -> (i32, i32) {
    %c0_i32 = arith.constant 0 : i32
    %c0_i32_0 = arith.constant 0 : i32
    %c0_i32_1 = arith.constant 0 : i32
    return %c0_i32, %c0_i32_0 : i32, i32
  }
  func.func @transform_5(%arg0: i32) -> (i32, i32) {
    %c0_i32 = arith.constant 0 : i32
    %c0_i32_0 = arith.constant 0 : i32
    %c0_i32_1 = arith.constant 0 : i32
    return %c0_i32, %c0_i32_0 : i32, i32
  }
  func.func @transform_6(%arg0: i32) -> (i32, i32) {
    %c0_i32 = arith.constant 0 : i32
    %c0_i32_0 = arith.constant 0 : i32
    %c0_i32_1 = arith.constant 0 : i32
    return %c0_i32, %c0_i32_0 : i32, i32
  }
  func.func @transform_7(%arg0: i32) -> (i32, i32) {
    %c0_i32 = arith.constant 0 : i32
    %c0_i32_0 = arith.constant 0 : i32
    %c0_i32_1 = arith.constant 0 : i32
    return %c0_i32, %c0_i32_0 : i32, i32
  }
  func.func @transform_8(%arg0: i32) -> (i32, i32) {
    %c0_i32 = arith.constant 0 : i32
    %c0_i32_0 = arith.constant 0 : i32
    %c0_i32_1 = arith.constant 0 : i32
    return %c0_i32, %c0_i32_0 : i32, i32
  }
  func.func @transform_9(%arg0: i32) -> (i32, i32) {
    %c0_i32 = arith.constant 0 : i32
    %c0_i32_0 = arith.constant 0 : i32
    %c0_i32_1 = arith.constant 0 : i32
    return %c0_i32, %c0_i32_0 : i32, i32
  }
  func.func @transform_10(%arg0: i32) -> (i32, i32) {
    %c0_i32 = arith.constant 0 : i32
    %c0_i32_0 = arith.constant 0 : i32
    %c0_i32_1 = arith.constant 0 : i32
    return %c0_i32, %c0_i32_0 : i32, i32
  }
  func.func @transform_11(%arg0: i32) -> (i32, i32, i32) {
    %c0_i32 = arith.constant 0 : i32
    %c0_i32_0 = arith.constant 0 : i32
    %c0_i32_1 = arith.constant 0 : i32
    %c0_i32_2 = arith.constant 0 : i32
    return %c0_i32, %c0_i32_0, %c0_i32_1 : i32, i32, i32
  }
  func.func @transform_12(%arg0: i32) -> (i32, i32) {
    %c0_i32 = arith.constant 0 : i32
    %c0_i32_0 = arith.constant 0 : i32
    %c0_i32_1 = arith.constant 0 : i32
    return %c0_i32, %c0_i32_0 : i32, i32
  }
}

</mosaic_0001>

<llo_original>
// kernel: base_encoder_forward.1
$region0: #{base_encoder_forward.1}
  #allocation0 [shape = 'u32[]', space=smem, size = 0x4, offset = 0x4, fixed_abs, tag = 'smem constant byte address 0x4 - core index']
  #allocation1 [shape = 'u32[144,128]{1,0:T(1,128)}', space=vmem, size = 0x12000, scoped, tag = 'internal scratch']
  #allocation2 [shape = 'f32[408,128]{1,0:T(8,128)}', space=vmem, size = 0x33000, scoped, tag = 'scratch operand']
  #allocation3 [shape = 'f32[360,128]{1,0:T(8,128)}', space=vmem, size = 0x2d000, scoped, tag = 'scratch operand']
  #allocation4 [shape = 'f32[2,88,128]{2,1,0:T(8,128)}', space=vmem, size = 0x16000, scoped, tag = 'scratch operand']
  #allocation5 [shape = 'f32[2,16,128]{2,1,0:T(8,128)}', space=vmem, size = 0x4000, scoped, tag = 'scratch operand']
  #allocation6 [shape = 'f32[88,360]{1,0:T(8,128)}', space=vmem, size = 0x21000, scoped, tag = 'scratch operand']
  #allocation7 [shape = 'f32[8,2048]{1,0:T(8,128)}', space=vmem, size = 0x10000, scoped, tag = 'scratch operand']
  %s0 = inlined_call_operand.vmem [shape: f32[2,408,128], index: 0, kind: input, shape index: {}]
  %s1 = inlined_call_operand.vmem [shape: f32[128,128], index: 1, kind: input, shape index: {}]
  %s2 = inlined_call_operand.vmem [shape: f32[1,128], index: 2, kind: input, shape index: {}]
  %s3 = inlined_call_operand.vmem [shape: f32[128,128], index: 3, kind: input, shape index: {}]
  %s4 = inlined_call_operand.vmem [shape: f32[1,128], index: 4, kind: input, shape index: {}]
  %s5 = inlined_call_operand.vmem [shape: f32[1,128], index: 5, kind: input, shape index: {}]
  %s6 = inlined_call_operand.vmem [shape: f32[128,128], index: 6, kind: input, shape index: {}]
  %s7 = inlined_call_operand.vmem [shape: f32[1,128], index: 7, kind: input, shape index: {}]
  %s8 = inlined_call_operand.vmem [shape: f32[1,128], index: 8, kind: input, shape index: {}]
  %s9 = inlined_call_operand.vmem [shape: f32[2048,128], index: 9, kind: input, shape index: {}]
  %s10 = inlined_call_operand.vmem [shape: f32[1,128], index: 10, kind: input, shape index: {}]
  %s11 = inlined_call_operand.vmem [shape: f32[2,16,128], index: 11, kind: output, shape index: {0}]
  %s12 = inlined_call_operand.vmem [shape: f32[8,128], index: 12, kind: output, shape index: {1}]
  %13 = xla_tuple %s11, %s12
  %s14 = sld [smem:[#allocation0]]
  $region62: #{base_encoder_forward.1} parent=0
    _
  %s16 = ssub.s32 1, %s14
  %s17 = scalar_select 0, %s16, %s14
  // Predicated region
  $region2: #{base_encoder_forward.1} parent=0 // pred_check
    _
  $region3: #{base_encoder_forward.1} parent=0 // pred_check_branch
    %19 = sbr.rel (0) target = $region5
  $region4: #{base_encoder_forward.1} parent=0 // pred_region
    _
  $region5: #{base_encoder_forward.1} parent=0 // pred_fallthru
    _
  // Predicated region
  $region6: #{base_encoder_forward.1} parent=0 // pred_check
    _
  $region7: #{base_encoder_forward.1} parent=0 // pred_check_branch
    %21 = sbr.rel (0) target = $region9
  $region8: #{base_encoder_forward.1} parent=0 // pred_region
    _
  $region9: #{base_encoder_forward.1} parent=0 // pred_fallthru
    _
  // Predicated region
  $region10: #{base_encoder_forward.1} parent=0 // pred_check
    _
  $region11: #{base_encoder_forward.1} parent=0 // pred_check_branch
    %23 = sbr.rel (0) target = $region13
  $region12: #{base_encoder_forward.1} parent=0 // pred_region
    _
  $region13: #{base_encoder_forward.1} parent=0 // pred_fallthru
    _
  // Predicated region
  $region14: #{base_encoder_forward.1} parent=0 // pred_check
    _
  $region15: #{base_encoder_forward.1} parent=0 // pred_check_branch
    %25 = sbr.rel (0) target = $region17
  $region16: #{base_encoder_forward.1} parent=0 // pred_region
    _
  $region17: #{base_encoder_forward.1} parent=0 // pred_fallthru
    _
  // Predicated region
  $region18: #{base_encoder_forward.1} parent=0 // pred_check
    _
  $region19: #{base_encoder_forward.1} parent=0 // pred_check_branch
    %27 = sbr.rel (0) target = $region21
  $region20: #{base_encoder_forward.1} parent=0 // pred_region
    _
  $region21: #{base_encoder_forward.1} parent=0 // pred_fallthru
    _
  // Predicated region
  $region22: #{base_encoder_forward.1} parent=0 // pred_check
    _
  $region23: #{base_encoder_forward.1} parent=0 // pred_check_branch
    %29 = sbr.rel (0) target = $region25
  $region24: #{base_encoder_forward.1} parent=0 // pred_region
    _
  $region25: #{base_encoder_forward.1} parent=0 // pred_fallthru
    _
  // Predicated region
  $region26: #{base_encoder_forward.1} parent=0 // pred_check
    _
  $region27: #{base_encoder_forward.1} parent=0 // pred_check_branch
    %31 = sbr.rel (0) target = $region29
  $region28: #{base_encoder_forward.1} parent=0 // pred_region
    _
  $region29: #{base_encoder_forward.1} parent=0 // pred_fallthru
    _
  // Predicated region
  $region30: #{base_encoder_forward.1} parent=0 // pred_check
    _
  $region31: #{base_encoder_forward.1} parent=0 // pred_check_branch
    %33 = sbr.rel (0) target = $region33
  $region32: #{base_encoder_forward.1} parent=0 // pred_region
    _
  $region33: #{base_encoder_forward.1} parent=0 // pred_fallthru
    _
  // Predicated region
  $region34: #{base_encoder_forward.1} parent=0 // pred_check
    _
  $region35: #{base_encoder_forward.1} parent=0 // pred_check_branch
    %35 = sbr.rel (0) target = $region37
  $region36: #{base_encoder_forward.1} parent=0 // pred_region
    _
  $region37: #{base_encoder_forward.1} parent=0 // pred_fallthru
    _
  // Predicated region
  $region38: #{base_encoder_forward.1} parent=0 // pred_check
    _
  $region39: #{base_encoder_forward.1} parent=0 // pred_check_branch
    %37 = sbr.rel (0) target = $region41
  $region40: #{base_encoder_forward.1} parent=0 // pred_region
    _
  $region41: #{base_encoder_forward.1} parent=0 // pred_fallthru
    _
  // Predicated region
  $region42: #{base_encoder_forward.1} parent=0 // pred_check
    _
  $region43: #{base_encoder_forward.1} parent=0 // pred_check_branch
    %39 = sbr.rel (0) target = $region45
  $region44: #{base_encoder_forward.1} parent=0 // pred_region
    _
  $region45: #{base_encoder_forward.1} parent=0 // pred_fallthru
    _
  %v40 = vlaneseq
  %v41 = vshrl.u32 %v40, 7
  %v42 = vadd.s32 %v41, 8
  %v43 = vadd.s32 %v41, 16
  %v44 = vadd.s32 %v41, 24
  %v45 = vadd.s32 %v41, 32
  %v46 = vadd.s32 %v41, 40
  %v47 = vadd.s32 %v41, 48
  %v48 = vadd.s32 %v41, 56
  %v49 = vadd.s32 %v41, 64
  %v50 = vadd.s32 %v41, 72
  %v51 = vadd.s32 %v41, 80
  %v52 = vcvt.s32.f32 %v41
  %v53 = vcvt.s32.f32 %v42
  %v54 = vcvt.s32.f32 %v43
  %v55 = vcvt.s32.f32 %v44
  %v56 = vcvt.s32.f32 %v45
  %v57 = vcvt.s32.f32 %v46
  %v58 = vcvt.s32.f32 %v47
  %v59 = vcvt.s32.f32 %v48
  %v60 = vcvt.s32.f32 %v49
  %v61 = vcvt.s32.f32 %v50
  %v62 = vcvt.s32.f32 %v51
  %v63 = vlaneseq
  %v64 = vand.u32 %v63, 127
  %v65 = vadd.s32 %v64, 128
  %v66 = vadd.s32 %v64, 256
  %v67 = vcvt.s32.f32 %v64
  %v68 = vcvt.s32.f32 %v65
  %v69 = vcvt.s32.f32 %v66
  %v70 = vadd.f32 %v52, 0.5
  %v71 = vadd.f32 %v53, 0.5
  %v72 = vadd.f32 %v54, 0.5
  %v73 = vadd.f32 %v55, 0.5
  %v74 = vadd.f32 %v56, 0.5
  %v75 = vadd.f32 %v57, 0.5
  %v76 = vadd.f32 %v58, 0.5
  %v77 = vadd.f32 %v59, 0.5
  %v78 = vadd.f32 %v60, 0.5
  %v79 = vadd.f32 %v61, 0.5
  %v80 = vadd.f32 %v62, 0.5
  %v81 = vmul.f32 %v70, 0.11111111
  %v82 = vmul.f32 %v71, 0.11111111
  %v83 = vmul.f32 %v72, 0.11111111
  %v84 = vmul.f32 %v73, 0.11111111
  %v85 = vmul.f32 %v74, 0.11111111
  %v86 = vmul.f32 %v75, 0.11111111
  %v87 = vmul.f32 %v76, 0.11111111
  %v88 = vmul.f32 %v77, 0.11111111
  %v89 = vmul.f32 %v78, 0.11111111
  %v90 = vmul.f32 %v79, 0.11111111
  %v91 = vmul.f32 %v80, 0.11111111
  %v92 = vfloor.f32 %v81
  %v93 = vfloor.f32 %v82
  %v94 = vfloor.f32 %v83
  %v95 = vfloor.f32 %v84
  %v96 = vfloor.f32 %v85
  %v97 = vfloor.f32 %v86
  %v98 = vfloor.f32 %v87
  %v99 = vfloor.f32 %v88
  %v100 = vfloor.f32 %v89
  %v101 = vfloor.f32 %v90
  %v102 = vfloor.f32 %v91
  %v103 = vmul.f32 %v92, 9.0
  %v104 = vmul.f32 %v93, 9.0
  %v105 = vmul.f32 %v94, 9.0
  %v106 = vmul.f32 %v95, 9.0
  %v107 = vmul.f32 %v96, 9.0
  %v108 = vmul.f32 %v97, 9.0
  %v109 = vmul.f32 %v98, 9.0
  %v110 = vmul.f32 %v99, 9.0
  %v111 = vmul.f32 %v100, 9.0
  %v112 = vmul.f32 %v101, 9.0
  %v113 = vmul.f32 %v102, 9.0
  %v114 = vsub.f32 %v52, %v103
  %v115 = vsub.f32 %v53, %v104
  %v116 = vsub.f32 %v54, %v105
  %v117 = vsub.f32 %v55, %v106
  %v118 = vsub.f32 %v56, %v107
  %v119 = vsub.f32 %v57, %v108
  %v120 = vsub.f32 %v58, %v109
  %v121 = vsub.f32 %v59, %v110
  %v122 = vsub.f32 %v60, %v111
  %v123 = vsub.f32 %v61, %v112
  %v124 = vsub.f32 %v62, %v113
  %v125 = vmul.f32 %v92, 2.0
  %v126 = vmul.f32 %v93, 2.0
  %v127 = vmul.f32 %v94, 2.0
  %v128 = vmul.f32 %v95, 2.0
  %v129 = vmul.f32 %v96, 2.0
  %v130 = vmul.f32 %v97, 2.0
  %v131 = vmul.f32 %v98, 2.0
  %v132 = vmul.f32 %v99, 2.0
  %v133 = vmul.f32 %v100, 2.0
  %v134 = vmul.f32 %v101, 2.0
  %v135 = vmul.f32 %v102, 2.0
  %v136 = vmul.f32 %v125, 21.0
  %v137 = vmul.f32 %v126, 21.0
  %v138 = vmul.f32 %v127, 21.0
  %v139 = vmul.f32 %v128, 21.0
  %v140 = vmul.f32 %v129, 21.0
  %v141 = vmul.f32 %v130, 21.0
  %v142 = vmul.f32 %v131, 21.0
  %v143 = vmul.f32 %v132, 21.0
  %v144 = vmul.f32 %v133, 21.0
  %v145 = vmul.f32 %v134, 21.0
  %v146 = vmul.f32 %v135, 21.0
  %v147 = vmul.f32 %v114, 2.0
  %v148 = vmul.f32 %v115, 2.0
  %v149 = vmul.f32 %v116, 2.0
  %v150 = vmul.f32 %v117, 2.0
  %v151 = vmul.f32 %v118, 2.0
  %v152 = vmul.f32 %v119, 2.0
  %v153 = vmul.f32 %v120, 2.0
  %v154 = vmul.f32 %v121, 2.0
  %v155 = vmul.f32 %v122, 2.0
  %v156 = vmul.f32 %v123, 2.0
  %v157 = vmul.f32 %v124, 2.0
  %v158 = vadd.f32 %v136, %v147
  %v159 = vadd.f32 %v137, %v148
  %v160 = vadd.f32 %v138, %v149
  %v161 = vadd.f32 %v139, %v150
  %v162 = vadd.f32 %v140, %v151
  %v163 = vadd.f32 %v141, %v152
  %v164 = vadd.f32 %v142, %v153
  %v165 = vadd.f32 %v143, %v154
  %v166 = vadd.f32 %v144, %v155
  %v167 = vadd.f32 %v145, %v156
  %v168 = vadd.f32 %v146, %v157
  %vm169 = vcmp.eq.f32.partialorder %v67, %v158
  %vm170 = vcmp.eq.f32.partialorder %v68, %v158
  %vm171 = vcmp.eq.f32.partialorder %v69, %v158
  %vm172 = vcmp.eq.f32.partialorder %v67, %v159
  %vm173 = vcmp.eq.f32.partialorder %v68, %v159
  %vm174 = vcmp.eq.f32.partialorder %v69, %v159
  %vm175 = vcmp.eq.f32.partialorder %v67, %v160
  %vm176 = vcmp.eq.f32.partialorder %v68, %v160
  %vm177 = vcmp.eq.f32.partialorder %v69, %v160
  %vm178 = vcmp.eq.f32.partialorder %v67, %v161
  %vm179 = vcmp.eq.f32.partialorder %v68, %v161
  %vm180 = vcmp.eq.f32.partialorder %v69, %v161
  %vm181 = vcmp.eq.f32.partialorder %v67, %v162
  %vm182 = vcmp.eq.f32.partialorder %v68, %v162
  %vm183 = vcmp.eq.f32.partialorder %v69, %v162
  %vm184 = vcmp.eq.f32.partialorder %v67, %v163
  %vm185 = vcmp.eq.f32.partialorder %v68, %v163
  %vm186 = vcmp.eq.f32.partialorder %v69, %v163
  %vm187 = vcmp.eq.f32.partialorder %v67, %v164
  %vm188 = vcmp.eq.f32.partialorder %v68, %v164
  %vm189 = vcmp.eq.f32.partialorder %v69, %v164
  %vm190 = vcmp.eq.f32.partialorder %v67, %v165
  %vm191 = vcmp.eq.f32.partialorder %v68, %v165
  %vm192 = vcmp.eq.f32.partialorder %v69, %v165
  %vm193 = vcmp.eq.f32.partialorder %v67, %v166
  %vm194 = vcmp.eq.f32.partialorder %v68, %v166
  %vm195 = vcmp.eq.f32.partialorder %v69, %v166
  %vm196 = vcmp.eq.f32.partialorder %v67, %v167
  %vm197 = vcmp.eq.f32.partialorder %v68, %v167
  %vm198 = vcmp.eq.f32.partialorder %v69, %v167
  %vm199 = vcmp.eq.f32.partialorder %v67, %v168
  %vm200 = vcmp.eq.f32.partialorder %v68, %v168
  %vm201 = vcmp.eq.f32.partialorder %v69, %v168
  %vm202 = vcmp.lt.f32.partialorder %v52, 81.0
  %vm203 = vcmp.lt.f32.partialorder %v53, 81.0
  %vm204 = vcmp.lt.f32.partialorder %v54, 81.0
  %vm205 = vcmp.lt.f32.partialorder %v55, 81.0
  %vm206 = vcmp.lt.f32.partialorder %v56, 81.0
  %vm207 = vcmp.lt.f32.partialorder %v57, 81.0
  %vm208 = vcmp.lt.f32.partialorder %v58, 81.0
  %vm209 = vcmp.lt.f32.partialorder %v59, 81.0
  %vm210 = vcmp.lt.f32.partialorder %v60, 81.0
  %vm211 = vcmp.lt.f32.partialorder %v61, 81.0
  %vm212 = vcmp.lt.f32.partialorder %v62, 81.0
  %vm213 = vmand %vm169, %vm202
  %vm214 = vmand %vm170, %vm202
  %vm215 = vmand %vm171, %vm202
  %vm216 = vmand %vm172, %vm203
  %vm217 = vmand %vm173, %vm203
  %vm218 = vmand %vm174, %vm203
  %vm219 = vmand %vm175, %vm204
  %vm220 = vmand %vm176, %vm204
  %vm221 = vmand %vm177, %vm204
  %vm222 = vmand %vm178, %vm205
  %vm223 = vmand %vm179, %vm205
  %vm224 = vmand %vm180, %vm205
  %vm225 = vmand %vm181, %vm206
  %vm226 = vmand %vm182, %vm206
  %vm227 = vmand %vm183, %vm206
  %vm228 = vmand %vm184, %vm207
  %vm229 = vmand %vm185, %vm207
  %vm230 = vmand %vm186, %vm207
  %vm231 = vmand %vm187, %vm208
  %vm232 = vmand %vm188, %vm208
  %vm233 = vmand %vm189, %vm208
  %vm234 = vmand %vm190, %vm209
  %vm235 = vmand %vm191, %vm209
  %vm236 = vmand %vm192, %vm209
  %vm237 = vmand %vm193, %vm210
  %vm238 = vmand %vm194, %vm210
  %vm239 = vmand %vm195, %vm210
  %vm240 = vmand %vm196, %vm211
  %vm241 = vmand %vm197, %vm211
  %vm242 = vmand %vm198, %vm211
  %vm243 = vmand %vm199, %vm212
  %vm244 = vmand %vm200, %vm212
  %vm245 = vmand %vm201, %vm212
  %v246 = vsel %vm213, 1, 0
  %v247 = vsel %vm214, 1, 0
  %v248 = vsel %vm215, 1, 0
  %v249 = vsel %vm216, 1, 0
  %v250 = vsel %vm217, 1, 0
  %v251 = vsel %vm218, 1, 0
  %v252 = vsel %vm219, 1, 0
  %v253 = vsel %vm220, 1, 0
  %v254 = vsel %vm221, 1, 0
  %v255 = vsel %vm222, 1, 0
  %v256 = vsel %vm223, 1, 0
  %v257 = vsel %vm224, 1, 0
  %v258 = vsel %vm225, 1, 0
  %v259 = vsel %vm226, 1, 0
  %v260 = vsel %vm227, 1, 0
  %v261 = vsel %vm228, 1, 0
  %v262 = vsel %vm229, 1, 0
  %v263 = vsel %vm230, 1, 0
  %v264 = vsel %vm231, 1, 0
  %v265 = vsel %vm232, 1, 0
  %v266 = vsel %vm233, 1, 0
  %v267 = vsel %vm234, 1, 0
  %v268 = vsel %vm235, 1, 0
  %v269 = vsel %vm236, 1, 0
  %v270 = vsel %vm237, 1, 0
  %v271 = vsel %vm238, 1, 0
  %v272 = vsel %vm239, 1, 0
  %v273 = vsel %vm240, 1, 0
  %v274 = vsel %vm241, 1, 0
  %v275 = vsel %vm242, 1, 0
  %v276 = vsel %vm243, 1, 0
  %v277 = vsel %vm244, 1, 0
  %v278 = vsel %vm245, 1, 0
  %v279 = vcvt.s32.f32 %v246
  %v280 = vcvt.s32.f32 %v247
  %v281 = vcvt.s32.f32 %v248
  %v282 = vcvt.s32.f32 %v249
  %v283 = vcvt.s32.f32 %v250
  %v284 = vcvt.s32.f32 %v251
  %v285 = vcvt.s32.f32 %v252
  %v286 = vcvt.s32.f32 %v253
  %v287 = vcvt.s32.f32 %v254
  %v288 = vcvt.s32.f32 %v255
  %v289 = vcvt.s32.f32 %v256
  %v290 = vcvt.s32.f32 %v257
  %v291 = vcvt.s32.f32 %v258
  %v292 = vcvt.s32.f32 %v259
  %v293 = vcvt.s32.f32 %v260
  %v294 = vcvt.s32.f32 %v261
  %v295 = vcvt.s32.f32 %v262
  %v296 = vcvt.s32.f32 %v263
  %v297 = vcvt.s32.f32 %v264
  %v298 = vcvt.s32.f32 %v265
  %v299 = vcvt.s32.f32 %v266
  %v300 = vcvt.s32.f32 %v267
  %v301 = vcvt.s32.f32 %v268
  %v302 = vcvt.s32.f32 %v269
  %v303 = vcvt.s32.f32 %v270
  %v304 = vcvt.s32.f32 %v271
  %v305 = vcvt.s32.f32 %v272
  %v306 = vcvt.s32.f32 %v273
  %v307 = vcvt.s32.f32 %v274
  %v308 = vcvt.s32.f32 %v275
  %v309 = vcvt.s32.f32 %v276
  %v310 = vcvt.s32.f32 %v277
  %v311 = vcvt.s32.f32 %v278
  %312 = vst [vmem:[#allocation6] sm:$0xff] %v279
  %313 = vst [vmem:[#allocation6 + $0x8] sm:$0xff] %v280
  %vm314 = vcmask 850944
  %315 = vst.msk [vmem:[#allocation6 + $0x10] sm:$0xff] %vm314, %v281
  %316 = vst [vmem:[#allocation6 + $0x18] sm:$0xff] %v282
  %317 = vst [vmem:[#allocation6 + $0x20] sm:$0xff] %v283
  %318 = vst.msk [vmem:[#allocation6 + $0x28] sm:$0xff] %vm314, %v284
  %319 = vst [vmem:[#allocation6 + $0x30] sm:$0xff] %v285
  %320 = vst [vmem:[#allocation6 + $0x38] sm:$0xff] %v286
  %321 = vst.msk [vmem:[#allocation6 + $0x40] sm:$0xff] %vm314, %v287
  %322 = vst [vmem:[#allocation6 + $0x48] sm:$0xff] %v288
  %323 = vst [vmem:[#allocation6 + $0x50] sm:$0xff] %v289
  %324 = vst.msk [vmem:[#allocation6 + $0x58] sm:$0xff] %vm314, %v290
  %325 = vst [vmem:[#allocation6 + $0x60] sm:$0xff] %v291
  %326 = vst [vmem:[#allocation6 + $0x68] sm:$0xff] %v292
  %327 = vst.msk [vmem:[#allocation6 + $0x70] sm:$0xff] %vm314, %v293
  %328 = vst [vmem:[#allocation6 + $0x78] sm:$0xff] %v294
  %329 = vst [vmem:[#allocation6 + $0x80] sm:$0xff] %v295
  %330 = vst.msk [vmem:[#allocation6 + $0x88] sm:$0xff] %vm314, %v296
  %331 = vst [vmem:[#allocation6 + $0x90] sm:$0xff] %v297
  %332 = vst [vmem:[#allocation6 + $0x98] sm:$0xff] %v298
  %333 = vst.msk [vmem:[#allocation6 + $0xa0] sm:$0xff] %vm314, %v299
  %334 = vst [vmem:[#allocation6 + $0xa8] sm:$0xff] %v300
  %335 = vst [vmem:[#allocation6 + $0xb0] sm:$0xff] %v301
  %336 = vst.msk [vmem:[#allocation6 + $0xb8] sm:$0xff] %vm314, %v302
  %337 = vst [vmem:[#allocation6 + $0xc0] sm:$0xff] %v303
  %338 = vst [vmem:[#allocation6 + $0xc8] sm:$0xff] %v304
  %339 = vst.msk [vmem:[#allocation6 + $0xd0] sm:$0xff] %vm314, %v305
  %340 = vst [vmem:[#allocation6 + $0xd8] sm:$0xff] %v306
  %341 = vst [vmem:[#allocation6 + $0xe0] sm:$0xff] %v307
  %342 = vst.msk [vmem:[#allocation6 + $0xe8] sm:$0xff] %vm314, %v308
  %343 = vst [vmem:[#allocation6 + $0xf0] sm:$0xff] %v309
  %344 = vst [vmem:[#allocation6 + $0xf8] sm:$0xff] %v310
  %345 = vst.msk [vmem:[#allocation6 + $0x100] sm:$0xff] %vm314, %v311
  %v346 = vld [vmem:[%s0] sm:$0xff]
  %v347 = vld [vmem:[%s0 + $0x8] sm:$0xff]
  %v348 = vld [vmem:[%s0 + $0x10] sm:$0xff]
  %v349 = vld [vmem:[%s0 + $0x18] sm:$0xff]
  %v350 = vld [vmem:[%s0 + $0x20] sm:$0xff]
  %v351 = vld [vmem:[%s0 + $0x28] sm:$0xff]
  %v352 = vld [vmem:[%s0 + $0x30] sm:$0xff]
  %v353 = vld [vmem:[%s0 + $0x38] sm:$0xff]
  %v354 = vld [vmem:[%s0 + $0x40] sm:$0xff]
  %v355 = vld [vmem:[%s0 + $0x48] sm:$0xff]
  %v356 = vld [vmem:[%s0 + $0x50] sm:$0xff]
  %v357 = vld [vmem:[%s0 + $0x58] sm:$0xff]
  %v358 = vld [vmem:[%s0 + $0x60] sm:$0xff]
  %v359 = vld [vmem:[%s0 + $0x68] sm:$0xff]
  %v360 = vld [vmem:[%s0 + $0x70] sm:$0xff]
  %v361 = vld [vmem:[%s0 + $0x78] sm:$0xff]
  %v362 = vld [vmem:[%s0 + $0x80] sm:$0xff]
  %v363 = vld [vmem:[%s0 + $0x88] sm:$0xff]
  %v364 = vld [vmem:[%s0 + $0x90] sm:$0xff]
  %v365 = vld [vmem:[%s0 + $0x98] sm:$0xff]
  %v366 = vld [vmem:[%s0 + $0xa0] sm:$0xff]
  %v367 = vld [vmem:[%s0 + $0xa8] sm:$0xff]
  %v368 = vld [vmem:[%s0 + $0xb0] sm:$0xff]
  %v369 = vld [vmem:[%s0 + $0xb8] sm:$0xff]
  %v370 = vld [vmem:[%s0 + $0xc0] sm:$0xff]
  %v371 = vld [vmem:[%s0 + $0xc8] sm:$0xff]
  %v372 = vld [vmem:[%s0 + $0xd0] sm:$0xff]
  %v373 = vld [vmem:[%s0 + $0xd8] sm:$0xff]
  %v374 = vld [vmem:[%s0 + $0xe0] sm:$0xff]
  %v375 = vld [vmem:[%s0 + $0xe8] sm:$0xff]
  %v376 = vld [vmem:[%s0 + $0xf0] sm:$0xff]
  %v377 = vld [vmem:[%s0 + $0xf8] sm:$0xff]
  %v378 = vld [vmem:[%s0 + $0x100] sm:$0xff]
  %v379 = vld [vmem:[%s0 + $0x108] sm:$0xff]
  %v380 = vld [vmem:[%s0 + $0x110] sm:$0xff]
  %v381 = vld [vmem:[%s0 + $0x118] sm:$0xff]
  %v382 = vld [vmem:[%s0 + $0x120] sm:$0xff]
  %v383 = vld [vmem:[%s0 + $0x128] sm:$0xff]
  %v384 = vld [vmem:[%s0 + $0x130] sm:$0xff]
  %v385 = vld [vmem:[%s0 + $0x138] sm:$0xff]
  %v386 = vld [vmem:[%s0 + $0x140] sm:$0xff]
  %v387 = vld [vmem:[%s0 + $0x148] sm:$0xff]
  %v388 = vld [vmem:[%s0 + $0x150] sm:$0xff]
  %v389 = vld [vmem:[%s0 + $0x158] sm:$0xff]
  %v390 = vld [vmem:[%s0 + $0x160] sm:$0xff]
  %v391 = vld [vmem:[%s0 + $0x168] sm:$0xff]
  %v392 = vld [vmem:[%s0 + $0x170] sm:$0xff]
  %v393 = vld [vmem:[%s0 + $0x178] sm:$0xff]
  %v394 = vld [vmem:[%s0 + $0x180] sm:$0xff]
  %v395 = vld [vmem:[%s0 + $0x188] sm:$0xff]
  %v396 = vld [vmem:[%s0 + $0x190] sm:$0xff]
  %v397 = vld [vmem:[%s1] sm:$0xff]
  %v398 = vld [vmem:[%s1 + $0x8] sm:$0xff]
  %v399 = vld [vmem:[%s1 + $0x10] sm:$0xff]
  %v400 = vld [vmem:[%s1 + $0x18] sm:$0xff]
  %v401 = vld [vmem:[%s1 + $0x20] sm:$0xff]
  %v402 = vld [vmem:[%s1 + $0x28] sm:$0xff]
  %v403 = vld [vmem:[%s1 + $0x30] sm:$0xff]
  %v404 = vld [vmem:[%s1 + $0x38] sm:$0xff]
  %v405 = vld [vmem:[%s1 + $0x40] sm:$0xff]
  %v406 = vld [vmem:[%s1 + $0x48] sm:$0xff]
  %v407 = vld [vmem:[%s1 + $0x50] sm:$0xff]
  %v408 = vld [vmem:[%s1 + $0x58] sm:$0xff]
  %v409 = vld [vmem:[%s1 + $0x60] sm:$0xff]
  %v410 = vld [vmem:[%s1 + $0x68] sm:$0xff]
  %v411 = vld [vmem:[%s1 + $0x70] sm:$0xff]
  %v412 = vld [vmem:[%s1 + $0x78] sm:$0xff]
  %v413 = vld [vmem:[%s2] sm:$0x1]
  %v415 = vlaneseq
  %v416 = vshrl.u32 %v415, 7
  %v417 = vsub.s32 0, %v416
  %v418 = vrot.slane %v413, %v417
  %420 = vmatprep.subr.mxu0 0.0
  %421 = vmatpush1.msra.mxu0 %v397
  %422 = vmatprep.subr.mxu0 0.0
  %423 = vmatpush1.msra.mxu0 %v398
  %424 = vmatprep.subr.mxu0 0.0
  %425 = vmatpush1.msra.mxu0 %v399
  %426 = vmatprep.subr.mxu0 0.0
  %427 = vmatpush1.msra.mxu0 %v400
  %428 = vmatprep.subr.mxu0 0.0
  %429 = vmatpush1.msra.mxu0 %v401
  %430 = vmatprep.subr.mxu0 0.0
  %431 = vmatpush1.msra.mxu0 %v402
  %432 = vmatprep.subr.mxu0 0.0
  %433 = vmatpush1.msra.mxu0 %v403
  %434 = vmatprep.subr.mxu0 0.0
  %435 = vmatpush1.msra.mxu0 %v404
  %436 = vmatprep.subr.mxu0 0.0
  %437 = vmatpush1.msra.mxu0 %v405
  %438 = vmatprep.subr.mxu0 0.0
  %439 = vmatpush1.msra.mxu0 %v406
  %440 = vmatprep.subr.mxu0 0.0
  %441 = vmatpush1.msra.mxu0 %v407
  %442 = vmatprep.subr.mxu0 0.0
  %443 = vmatpush1.msra.mxu0 %v408
  %444 = vmatprep.subr.mxu0 0.0
  %445 = vmatpush1.msra.mxu0 %v409
  %446 = vmatprep.subr.mxu0 0.0
  %447 = vmatpush1.msra.mxu0 %v410
  %448 = vmatprep.subr.mxu0 0.0
  %449 = vmatpush1.msra.mxu0 %v411
  %450 = vmatprep.subr.mxu0 0.0
  %451 = vmatpush1.msra.mxu0 %v412
  %452 = vmatprep.subr.mxu0 0.0
  %453 = vmatpush1.msra.mxu0 0.0
  %454 = vmatprep.subr.mxu0 0.0
  %455 = vmatpush1.msra.mxu0 0.0
  %456 = vmatprep.subr.mxu0 0.0
  %457 = vmatpush1.msra.mxu0 0.0
  %458 = vmatprep.subr.mxu0 0.0
  %459 = vmatpush1.msra.mxu0 0.0
  %460 = vmatprep.subr.mxu0 0.0
  %461 = vmatpush1.msra.mxu0 0.0
  %462 = vmatprep.subr.mxu0 0.0
  %463 = vmatpush1.msra.mxu0 0.0
  %464 = vmatprep.subr.mxu0 0.0
  %465 = vmatpush1.msra.mxu0 0.0
  %466 = vmatprep.subr.mxu0 0.0
  %467 = vmatpush1.msra.mxu0 0.0
  %468 = vmatprep.subr.mxu0 0.0
  %469 = vmatpush1.msra.mxu0 0.0
  %470 = vmatprep.subr.mxu0 0.0
  %471 = vmatpush1.msra.mxu0 0.0
  %472 = vmatprep.subr.mxu0 0.0
  %473 = vmatpush1.msra.mxu0 0.0
  %474 = vmatprep.subr.mxu0 0.0
  %475 = vmatpush1.msra.mxu0 0.0
  %476 = vmatprep.subr.mxu0 0.0
  %477 = vmatpush1.msra.mxu0 0.0
  %478 = vmatprep.subr.mxu0 0.0
  %479 = vmatpush1.msra.mxu0 0.0
  %480 = vmatprep.subr.mxu0 0.0
  %481 = vmatpush1.msra.mxu0 0.0
  %482 = vmatprep.subr.mxu0 0.0
  %483 = vmatpush1.msra.mxu0 0.0
  %484 = vmatprep.mubr.f32.mxu0 0.0
  %485 = vmatmul.mubr.f32.gmra.mrb[0].mxu0 %v346
  %v486 = vpop.f32.mrb[0].mxu0
  %v487 = vadd.f32 %v418, %v486
  %v488 = vpop.f32.mrb[0].mxu0
  %489 = vmatprep.mubr.f32.mxu0 0.0
  %490 = vmatmul.mubr.f32.gmra.mrb[0].mxu0 %v347
  %v491 = vpop.f32.mrb[0].mxu0
  %v492 = vadd.f32 %v418, %v491
  %v493 = vpop.f32.mrb[0].mxu0
  %494 = vmatprep.mubr.f32.mxu0 0.0
  %495 = vmatmul.mubr.f32.gmra.mrb[0].mxu0 %v348
  %v496 = vpop.f32.mrb[0].mxu0
  %v497 = vadd.f32 %v418, %v496
  %v498 = vpop.f32.mrb[0].mxu0
  %499 = vmatprep.mubr.f32.mxu0 0.0
  %500 = vmatmul.mubr.f32.gmra.mrb[0].mxu0 %v349
  %v501 = vpop.f32.mrb[0].mxu0
  %v502 = vadd.f32 %v418, %v501
  %v503 = vpop.f32.mrb[0].mxu0
  %504 = vmatprep.mubr.f32.mxu0 0.0
  %505 = vmatmul.mubr.f32.gmra.mrb[0].mxu0 %v350
  %v506 = vpop.f32.mrb[0].mxu0
  %v507 = vadd.f32 %v418, %v506
  %v508 = vpop.f32.mrb[0].mxu0
  %509 = vmatprep.mubr.f32.mxu0 0.0
  %510 = vmatmul.mubr.f32.gmra.mrb[0].mxu0 %v351
  %v511 = vpop.f32.mrb[0].mxu0
  %v512 = vadd.f32 %v418, %v511
  %v513 = vpop.f32.mrb[0].mxu0
  %514 = vmatprep.mubr.f32.mxu0 0.0
  %515 = vmatmul.mubr.f32.gmra.mrb[0].mxu0 %v352
  %v516 = vpop.f32.mrb[0].mxu0
  %v517 = vadd.f32 %v418, %v516
  %v518 = vpop.f32.mrb[0].mxu0
  %519 = vmatprep.mubr.f32.mxu0 0.0
  %520 = vmatmul.mubr.f32.gmra.mrb[0].mxu0 %v353
  %v521 = vpop.f32.mrb[0].mxu0
  %v522 = vadd.f32 %v418, %v521
  %v523 = vpop.f32.mrb[0].mxu0
  %524 = vmatprep.mubr.f32.mxu0 0.0
  %525 = vmatmul.mubr.f32.gmra.mrb[0].mxu0 %v354
  %v526 = vpop.f32.mrb[0].mxu0
  %v527 = vadd.f32 %v418, %v526
  %v528 = vpop.f32.mrb[0].mxu0
  %529 = vmatprep.mubr.f32.mxu0 0.0
  %530 = vmatmul.mubr.f32.gmra.mrb[0].mxu0 %v355
  %v531 = vpop.f32.mrb[0].mxu0
  %v532 = vadd.f32 %v418, %v531
  %v533 = vpop.f32.mrb[0].mxu0
  %534 = vmatprep.mubr.f32.mxu0 0.0
  %535 = vmatmul.mubr.f32.gmra.mrb[0].mxu0 %v356
  %v536 = vpop.f32.mrb[0].mxu0
  %v537 = vadd.f32 %v418, %v536
  %v538 = vpop.f32.mrb[0].mxu0
  %539 = vmatprep.mubr.f32.mxu0 0.0
  %540 = vmatmul.mubr.f32.gmra.mrb[0].mxu0 %v357
  %v541 = vpop.f32.mrb[0].mxu0
  %v542 = vadd.f32 %v418, %v541
  %v543 = vpop.f32.mrb[0].mxu0
  %544 = vmatprep.mubr.f32.mxu0 0.0
  %545 = vmatmul.mubr.f32.gmra.mrb[0].mxu0 %v358
  %v546 = vpop.f32.mrb[0].mxu0
  %v547 = vadd.f32 %v418, %v546
  %v548 = vpop.f32.mrb[0].mxu0
  %549 = vmatprep.mubr.f32.mxu0 0.0
  %550 = vmatmul.mubr.f32.gmra.mrb[0].mxu0 %v359
  %v551 = vpop.f32.mrb[0].mxu0
  %v552 = vadd.f32 %v418, %v551
  %v553 = vpop.f32.mrb[0].mxu0
  %554 = vmatprep.mubr.f32.mxu0 0.0
  %555 = vmatmul.mubr.f32.gmra.mrb[0].mxu0 %v360
  %v556 = vpop.f32.mrb[0].mxu0
  %v557 = vadd.f32 %v418, %v556
  %v558 = vpop.f32.mrb[0].mxu0
  %559 = vmatprep.mubr.f32.mxu0 0.0
  %560 = vmatmul.mubr.f32.gmra.mrb[0].mxu0 %v361
  %v561 = vpop.f32.mrb[0].mxu0
  %v562 = vadd.f32 %v418, %v561
  %v563 = vpop.f32.mrb[0].mxu0
  %564 = vmatprep.mubr.f32.mxu0 0.0
  %565 = vmatmul.mubr.f32.gmra.mrb[0].mxu0 %v362
  %v566 = vpop.f32.mrb[0].mxu0
  %v567 = vadd.f32 %v418, %v566
  %v568 = vpop.f32.mrb[0].mxu0
  %569 = vmatprep.mubr.f32.mxu0 0.0
  %570 = vmatmul.mubr.f32.gmra.mrb[0].mxu0 %v363
  %v571 = vpop.f32.mrb[0].mxu0
  %v572 = vadd.f32 %v418, %v571
  %v573 = vpop.f32.mrb[0].mxu0
  %574 = vmatprep.mubr.f32.mxu0 0.0
  %575 = vmatmul.mubr.f32.gmra.mrb[0].mxu0 %v364
  %v576 = vpop.f32.mrb[0].mxu0
  %v577 = vadd.f32 %v418, %v576
  %v578 = vpop.f32.mrb[0].mxu0
  %579 = vmatprep.mubr.f32.mxu0 0.0
  %580 = vmatmul.mubr.f32.gmra.mrb[0].mxu0 %v365
  %v581 = vpop.f32.mrb[0].mxu0
  %v582 = vadd.f32 %v418, %v581
  %v583 = vpop.f32.mrb[0].mxu0
  %584 = vmatprep.mubr.f32.mxu0 0.0
  %585 = vmatmul.mubr.f32.gmra.mrb[0].mxu0 %v366
  %v586 = vpop.f32.mrb[0].mxu0
  %v587 = vadd.f32 %v418, %v586
  %v588 = vpop.f32.mrb[0].mxu0
  %589 = vmatprep.mubr.f32.mxu0 0.0
  %590 = vmatmul.mubr.f32.gmra.mrb[0].mxu0 %v367
  %v591 = vpop.f32.mrb[0].mxu0
  %v592 = vadd.f32 %v418, %v591
  %v593 = vpop.f32.mrb[0].mxu0
  %594 = vmatprep.mubr.f32.mxu0 0.0
  %595 = vmatmul.mubr.f32.gmra.mrb[0].mxu0 %v368
  %v596 = vpop.f32.mrb[0].mxu0
  %v597 = vadd.f32 %v418, %v596
  %v598 = vpop.f32.mrb[0].mxu0
  %599 = vmatprep.mubr.f32.mxu0 0.0
  %600 = vmatmul.mubr.f32.gmra.mrb[0].mxu0 %v369
  %v601 = vpop.f32.mrb[0].mxu0
  %v602 = vadd.f32 %v418, %v601
  %v603 = vpop.f32.mrb[0].mxu0
  %604 = vmatprep.mubr.f32.mxu0 0.0
  %605 = vmatmul.mubr.f32.gmra.mrb[0].mxu0 %v370
  %v606 = vpop.f32.mrb[0].mxu0
  %v607 = vadd.f32 %v418, %v606
  %v608 = vpop.f32.mrb[0].mxu0
  %609 = vmatprep.mubr.f32.mxu0 0.0
  %610 = vmatmul.mubr.f32.gmra.mrb[0].mxu0 %v371
  %v611 = vpop.f32.mrb[0].mxu0
  %v612 = vadd.f32 %v418, %v611
  %v613 = vpop.f32.mrb[0].mxu0
  %614 = vmatprep.mubr.f32.mxu0 0.0
  %615 = vmatmul.mubr.f32.gmra.mrb[0].mxu0 %v372
  %v616 = vpop.f32.mrb[0].mxu0
  %v617 = vadd.f32 %v418, %v616
  %v618 = vpop.f32.mrb[0].mxu0
  %619 = vmatprep.mubr.f32.mxu0 0.0
  %620 = vmatmul.mubr.f32.gmra.mrb[0].mxu0 %v373
  %v621 = vpop.f32.mrb[0].mxu0
  %v622 = vadd.f32 %v418, %v621
  %v623 = vpop.f32.mrb[0].mxu0
  %624 = vmatprep.mubr.f32.mxu0 0.0
  %625 = vmatmul.mubr.f32.gmra.mrb[0].mxu0 %v374
  %v626 = vpop.f32.mrb[0].mxu0
  %v627 = vadd.f32 %v418, %v626
  %v628 = vpop.f32.mrb[0].mxu0
  %629 = vmatprep.mubr.f32.mxu0 0.0
  %630 = vmatmul.mubr.f32.gmra.mrb[0].mxu0 %v375
  %v631 = vpop.f32.mrb[0].mxu0
  %v632 = vadd.f32 %v418, %v631
  %v633 = vpop.f32.mrb[0].mxu0
  %634 = vmatprep.mubr.f32.mxu0 0.0
  %635 = vmatmul.mubr.f32.gmra.mrb[0].mxu0 %v376
  %v636 = vpop.f32.mrb[0].mxu0
  %v637 = vadd.f32 %v418, %v636
  %v638 = vpop.f32.mrb[0].mxu0
  %639 = vmatprep.mubr.f32.mxu0 0.0
  %640 = vmatmul.mubr.f32.gmra.mrb[0].mxu0 %v377
  %v641 = vpop.f32.mrb[0].mxu0
  %v642 = vadd.f32 %v418, %v641
  %v643 = vpop.f32.mrb[0].mxu0
  %644 = vmatprep.mubr.f32.mxu0 0.0
  %645 = vmatmul.mubr.f32.gmra.mrb[0].mxu0 %v378
  %v646 = vpop.f32.mrb[0].mxu0
  %v647 = vadd.f32 %v418, %v646
  %v648 = vpop.f32.mrb[0].mxu0
  %649 = vmatprep.mubr.f32.mxu0 0.0
  %650 = vmatmul.mubr.f32.gmra.mrb[0].mxu0 %v379
  %v651 = vpop.f32.mrb[0].mxu0
  %v652 = vadd.f32 %v418, %v651
  %v653 = vpop.f32.mrb[0].mxu0
  %654 = vmatprep.mubr.f32.mxu0 0.0
  %655 = vmatmul.mubr.f32.gmra.mrb[0].mxu0 %v380
  %v656 = vpop.f32.mrb[0].mxu0
  %v657 = vadd.f32 %v418, %v656
  %v658 = vpop.f32.mrb[0].mxu0
  %659 = vmatprep.mubr.f32.mxu0 0.0
  %660 = vmatmul.mubr.f32.gmra.mrb[0].mxu0 %v381
  %v661 = vpop.f32.mrb[0].mxu0
  %v662 = vadd.f32 %v418, %v661
  %v663 = vpop.f32.mrb[0].mxu0
  %664 = vmatprep.mubr.f32.mxu0 0.0
  %665 = vmatmul.mubr.f32.gmra.mrb[0].mxu0 %v382
  %v666 = vpop.f32.mrb[0].mxu0
  %v667 = vadd.f32 %v418, %v666
  %v668 = vpop.f32.mrb[0].mxu0
  %669 = vmatprep.mubr.f32.mxu0 0.0
  %670 = vmatmul.mubr.f32.gmra.mrb[0].mxu0 %v383
  %v671 = vpop.f32.mrb[0].mxu0
  %v672 = vadd.f32 %v418, %v671
  %v673 = vpop.f32.mrb[0].mxu0
  %674 = vmatprep.mubr.f32.mxu0 0.0
  %675 = vmatmul.mubr.f32.gmra.mrb[0].mxu0 %v384
  %v676 = vpop.f32.mrb[0].mxu0
  %v677 = vadd.f32 %v418, %v676
  %v678 = vpop.f32.mrb[0].mxu0
  %679 = vmatprep.mubr.f32.mxu0 0.0
  %680 = vmatmul.mubr.f32.gmra.mrb[0].mxu0 %v385
  %v681 = vpop.f32.mrb[0].mxu0
  %v682 = vadd.f32 %v418, %v681
  %v683 = vpop.f32.mrb[0].mxu0
  %684 = vmatprep.mubr.f32.mxu0 0.0
  %685 = vmatmul.mubr.f32.gmra.mrb[0].mxu0 %v386
  %v686 = vpop.f32.mrb[0].mxu0
  %v687 = vadd.f32 %v418, %v686
  %v688 = vpop.f32.mrb[0].mxu0
  %689 = vmatprep.mubr.f32.mxu0 0.0
  %690 = vmatmul.mubr.f32.gmra.mrb[0].mxu0 %v387
  %v691 = vpop.f32.mrb[0].mxu0
  %v692 = vadd.f32 %v418, %v691
  %v693 = vpop.f32.mrb[0].mxu0
  %694 = vmatprep.mubr.f32.mxu0 0.0
  %695 = vmatmul.mubr.f32.gmra.mrb[0].mxu0 %v388
  %v696 = vpop.f32.mrb[0].mxu0
  %v697 = vadd.f32 %v418, %v696
  %v698 = vpop.f32.mrb[0].mxu0
  %699 = vmatprep.mubr.f32.mxu0 0.0
  %700 = vmatmul.mubr.f32.gmra.mrb[0].mxu0 %v389
  %v701 = vpop.f32.mrb[0].mxu0
  %v702 = vadd.f32 %v418, %v701
  %v703 = vpop.f32.mrb[0].mxu0
  %704 = vmatprep.mubr.f32.mxu0 0.0
  %705 = vmatmul.mubr.f32.gmra.mrb[0].mxu0 %v390
  %v706 = vpop.f32.mrb[0].mxu0
  %v707 = vadd.f32 %v418, %v706
  %v708 = vpop.f32.mrb[0].mxu0
  %709 = vmatprep.mubr.f32.mxu0 0.0
  %710 = vmatmul.mubr.f32.gmra.mrb[0].mxu0 %v391
  %v711 = vpop.f32.mrb[0].mxu0
  %v712 = vadd.f32 %v418, %v711
  %v713 = vpop.f32.mrb[0].mxu0
  %714 = vmatprep.mubr.f32.mxu0 0.0
  %715 = vmatmul.mubr.f32.gmra.mrb[0].mxu0 %v392
  %v716 = vpop.f32.mrb[0].mxu0
  %v717 = vadd.f32 %v418, %v716
  %v718 = vpop.f32.mrb[0].mxu0
  %719 = vmatprep.mubr.f32.mxu0 0.0
  %720 = vmatmul.mubr.f32.gmra.mrb[0].mxu0 %v393
  %v721 = vpop.f32.mrb[0].mxu0
  %v722 = vadd.f32 %v418, %v721
  %v723 = vpop.f32.mrb[0].mxu0
  %724 = vmatprep.mubr.f32.mxu0 0.0
  %725 = vmatmul.mubr.f32.gmra.mrb[0].mxu0 %v394
  %v726 = vpop.f32.mrb[0].mxu0
  %v727 = vadd.f32 %v418, %v726
  %v728 = vpop.f32.mrb[0].mxu0
  %729 = vmatprep.mubr.f32.mxu0 0.0
  %730 = vmatmul.mubr.f32.gmra.mrb[0].mxu0 %v395
  %v731 = vpop.f32.mrb[0].mxu0
  %v732 = vadd.f32 %v418, %v731
  %v733 = vpop.f32.mrb[0].mxu0
  %734 = vmatprep.mubr.f32.mxu0 0.0
  %735 = vmatmul.mubr.f32.gmra.mrb[0].mxu0 %v396
  %v736 = vpop.f32.mrb[0].mxu0
  %v737 = vadd.f32 %v418, %v736
  %v738 = vpop.f32.mrb[0].mxu0
  %739 = vdwg.mxu0
  %v740 = vmul.f32 %v487, 0.01
  %v741 = vmul.f32 %v492, 0.01
  %v742 = vmul.f32 %v497, 0.01
  %v743 = vmul.f32 %v502, 0.01
  %v744 = vmul.f32 %v507, 0.01
  %v745 = vmul.f32 %v512, 0.01
  %v746 = vmul.f32 %v517, 0.01
  %v747 = vmul.f32 %v522, 0.01
  %v748 = vmul.f32 %v527, 0.01
  %v749 = vmul.f32 %v532, 0.01
  %v750 = vmul.f32 %v537, 0.01
  %v751 = vmul.f32 %v542, 0.01
  %v752 = vmul.f32 %v547, 0.01
  %v753 = vmul.f32 %v552, 0.01
  %v754 = vmul.f32 %v557, 0.01
  %v755 = vmul.f32 %v562, 0.01
  %v756 = vmul.f32 %v567, 0.01
  %v757 = vmul.f32 %v572, 0.01
  %v758 = vmul.f32 %v577, 0.01
  %v759 = vmul.f32 %v582, 0.01
  %v760 = vmul.f32 %v587, 0.01
  %v761 = vmul.f32 %v592, 0.01
  %v762 = vmul.f32 %v597, 0.01
  %v763 = vmul.f32 %v602, 0.01
  %v764 = vmul.f32 %v607, 0.01
  %v765 = vmul.f32 %v612, 0.01
  %v766 = vmul.f32 %v617, 0.01
  %v767 = vmul.f32 %v622, 0.01
  %v768 = vmul.f32 %v627, 0.01
  %v769 = vmul.f32 %v632, 0.01
  %v770 = vmul.f32 %v637, 0.01
  %v771 = vmul.f32 %v642, 0.01
  %v772 = vmul.f32 %v647, 0.01
  %v773 = vmul.f32 %v652, 0.01
  %v774 = vmul.f32 %v657, 0.01
  %v775 = vmul.f32 %v662, 0.01
  %v776 = vmul.f32 %v667, 0.01
  %v777 = vmul.f32 %v672, 0.01
  %v778 = vmul.f32 %v677, 0.01
  %v779 = vmul.f32 %v682, 0.01
  %v780 = vmul.f32 %v687, 0.01
  %v781 = vmul.f32 %v692, 0.01
  %v782 = vmul.f32 %v697, 0.01
  %v783 = vmul.f32 %v702, 0.01
  %v784 = vmul.f32 %v707, 0.01
  %v785 = vmul.f32 %v712, 0.01
  %v786 = vmul.f32 %v717, 0.01
  %v787 = vmul.f32 %v722, 0.01
  %v788 = vmul.f32 %v727, 0.01
  %v789 = vmul.f32 %v732, 0.01
  %v790 = vmul.f32 %v737, 0.01
  %v791 = vmax.f32 %v487, %v740
  %v792 = vmax.f32 %v492, %v741
  %v793 = vmax.f32 %v497, %v742
  %v794 = vmax.f32 %v502, %v743
  %v795 = vmax.f32 %v507, %v744
  %v796 = vmax.f32 %v512, %v745
  %v797 = vmax.f32 %v517, %v746
  %v798 = vmax.f32 %v522, %v747
  %v799 = vmax.f32 %v527, %v748
  %v800 = vmax.f32 %v532, %v749
  %v801 = vmax.f32 %v537, %v750
  %v802 = vmax.f32 %v542, %v751
  %v803 = vmax.f32 %v547, %v752
  %v804 = vmax.f32 %v552, %v753
  %v805 = vmax.f32 %v557, %v754
  %v806 = vmax.f32 %v562, %v755
  %v807 = vmax.f32 %v567, %v756
  %v808 = vmax.f32 %v572, %v757
  %v809 = vmax.f32 %v577, %v758
  %v810 = vmax.f32 %v582, %v759
  %v811 = vmax.f32 %v587, %v760
  %v812 = vmax.f32 %v592, %v761
  %v813 = vmax.f32 %v597, %v762
  %v814 = vmax.f32 %v602, %v763
  %v815 = vmax.f32 %v607, %v764
  %v816 = vmax.f32 %v612, %v765
  %v817 = vmax.f32 %v617, %v766
  %v818 = vmax.f32 %v622, %v767
  %v819 = vmax.f32 %v627, %v768
  %v820 = vmax.f32 %v632, %v769
  %v821 = vmax.f32 %v637, %v770
  %v822 = vmax.f32 %v642, %v771
  %v823 = vmax.f32 %v647, %v772
  %v824 = vmax.f32 %v652, %v773
  %v825 = vmax.f32 %v657, %v774
  %v826 = vmax.f32 %v662, %v775
  %v827 = vmax.f32 %v667, %v776
  %v828 = vmax.f32 %v672, %v777
  %v829 = vmax.f32 %v677, %v778
  %v830 = vmax.f32 %v682, %v779
  %v831 = vmax.f32 %v687, %v780
  %v832 = vmax.f32 %v692, %v781
  %v833 = vmax.f32 %v697, %v782
  %v834 = vmax.f32 %v702, %v783
  %v835 = vmax.f32 %v707, %v784
  %v836 = vmax.f32 %v712, %v785
  %v837 = vmax.f32 %v717, %v786
  %v838 = vmax.f32 %v722, %v787
  %v839 = vmax.f32 %v727, %v788
  %v840 = vmax.f32 %v732, %v789
  %v841 = vmax.f32 %v737, %v790
  %842 = vst [vmem:[#allocation2] sm:$0xff] %v791
  %843 = vst [vmem:[#allocation2 + $0x8] sm:$0xff] %v792
  %844 = vst [vmem:[#allocation2 + $0x10] sm:$0xff] %v793
  %845 = vst [vmem:[#allocation2 + $0x18] sm:$0xff] %v794
  %846 = vst [vmem:[#allocation2 + $0x20] sm:$0xff] %v795
  %847 = vst [vmem:[#allocation2 + $0x28] sm:$0xff] %v796
  %848 = vst [vmem:[#allocation2 + $0x30] sm:$0xff] %v797
  %849 = vst [vmem:[#allocation2 + $0x38] sm:$0xff] %v798
  %850 = vst [vmem:[#allocation2 + $0x40] sm:$0xff] %v799
  %851 = vst [vmem:[#allocation2 + $0x48] sm:$0xff] %v800
  %852 = vst [vmem:[#allocation2 + $0x50] sm:$0xff] %v801
  %853 = vst [vmem:[#allocation2 + $0x58] sm:$0xff] %v802
  %854 = vst [vmem:[#allocation2 + $0x60] sm:$0xff] %v803
  %855 = vst [vmem:[#allocation2 + $0x68] sm:$0xff] %v804
  %856 = vst [vmem:[#allocation2 + $0x70] sm:$0xff] %v805
  %857 = vst [vmem:[#allocation2 + $0x78] sm:$0xff] %v806
  %858 = vst [vmem:[#allocation2 + $0x80] sm:$0xff] %v807
  %859 = vst [vmem:[#allocation2 + $0x88] sm:$0xff] %v808
  %860 = vst [vmem:[#allocation2 + $0x90] sm:$0xff] %v809
  %861 = vst [vmem:[#allocation2 + $0x98] sm:$0xff] %v810
  %862 = vst [vmem:[#allocation2 + $0xa0] sm:$0xff] %v811
  %863 = vst [vmem:[#allocation2 + $0xa8] sm:$0xff] %v812
  %864 = vst [vmem:[#allocation2 + $0xb0] sm:$0xff] %v813
  %865 = vst [vmem:[#allocation2 + $0xb8] sm:$0xff] %v814
  %866 = vst [vmem:[#allocation2 + $0xc0] sm:$0xff] %v815
  %867 = vst [vmem:[#allocation2 + $0xc8] sm:$0xff] %v816
  %868 = vst [vmem:[#allocation2 + $0xd0] sm:$0xff] %v817
  %869 = vst [vmem:[#allocation2 + $0xd8] sm:$0xff] %v818
  %870 = vst [vmem:[#allocation2 + $0xe0] sm:$0xff] %v819
  %871 = vst [vmem:[#allocation2 + $0xe8] sm:$0xff] %v820
  %872 = vst [vmem:[#allocation2 + $0xf0] sm:$0xff] %v821
  %873 = vst [vmem:[#allocation2 + $0xf8] sm:$0xff] %v822
  %874 = vst [vmem:[#allocation2 + $0x100] sm:$0xff] %v823
  %875 = vst [vmem:[#allocation2 + $0x108] sm:$0xff] %v824
  %876 = vst [vmem:[#allocation2 + $0x110] sm:$0xff] %v825
  %877 = vst [vmem:[#allocation2 + $0x118] sm:$0xff] %v826
  %878 = vst [vmem:[#allocation2 + $0x120] sm:$0xff] %v827
  %879 = vst [vmem:[#allocation2 + $0x128] sm:$0xff] %v828
  %880 = vst [vmem:[#allocation2 + $0x130] sm:$0xff] %v829
  %881 = vst [vmem:[#allocation2 + $0x138] sm:$0xff] %v830
  %882 = vst [vmem:[#allocation2 + $0x140] sm:$0xff] %v831
  %883 = vst [vmem:[#allocation2 + $0x148] sm:$0xff] %v832
  %884 = vst [vmem:[#allocation2 + $0x150] sm:$0xff] %v833
  %885 = vst [vmem:[#allocation2 + $0x158] sm:$0xff] %v834
  %886 = vst [vmem:[#allocation2 + $0x160] sm:$0xff] %v835
  %887 = vst [vmem:[#allocation2 + $0x168] sm:$0xff] %v836
  %888 = vst [vmem:[#allocation2 + $0x170] sm:$0xff] %v837
  %889 = vst [vmem:[#allocation2 + $0x178] sm:$0xff] %v838
  %890 = vst [vmem:[#allocation2 + $0x180] sm:$0xff] %v839
  %891 = vst [vmem:[#allocation2 + $0x188] sm:$0xff] %v840
  %892 = vst [vmem:[#allocation2 + $0x190] sm:$0xff] %v841
  %v893 = vld [vmem:[#allocation2] sm:$0xff]
  %v894 = vld [vmem:[#allocation2 + $0x8] sm:$0xff]
  %v895 = vld [vmem:[#allocation2 + $0x10] sm:$0xff]
  %v896 = vld [vmem:[#allocation2 + $0x18] sm:$0xff]
  %v897 = vld [vmem:[#allocation2 + $0x20] sm:$0xff]
  %v898 = vld [vmem:[#allocation2 + $0x28] sm:$0xff]
  %v899 = vld [vmem:[#allocation2 + $0x30] sm:$0xff]
  %v900 = vld [vmem:[#allocation2 + $0x38] sm:$0xff]
  %v901 = vld [vmem:[#allocation2 + $0x40] sm:$0xff]
  %v902 = vld [vmem:[#allocation2 + $0x48] sm:$0xff]
  %v903 = vld [vmem:[#allocation2 + $0x50] sm:$0xff]
  %v904 = vld [vmem:[#allocation2 + $0x58] sm:$0xff]
  %v905 = vld [vmem:[#allocation2 + $0x60] sm:$0xff]
  %v906 = vld [vmem:[#allocation2 + $0x68] sm:$0xff]
  %v907 = vld [vmem:[#allocation2 + $0x70] sm:$0xff]
  %v908 = vld [vmem:[#allocation2 + $0x78] sm:$0xff]
  %v909 = vld [vmem:[#allocation2 + $0x1] sm:$0xff]
  %v910 = vld [vmem:[#allocation2 + $0x9] sm:$0xff]
  %v911 = vld [vmem:[#allocation2 + $0x11] sm:$0xff]
  %v912 = vld [vmem:[#allocation2 + $0x19] sm:$0xff]
  %v913 = vld [vmem:[#allocation2 + $0x21] sm:$0xff]
  %v914 = vld [vmem:[#allocation2 + $0x29] sm:$0xff]
  %v915 = vld [vmem:[#allocation2 + $0x31] sm:$0xff]
  %v916 = vld [vmem:[#allocation2 + $0x39] sm:$0xff]
  %v917 = vld [vmem:[#allocation2 + $0x41] sm:$0xff]
  %v918 = vld [vmem:[#allocation2 + $0x49] sm:$0xff]
  %v919 = vld [vmem:[#allocation2 + $0x51] sm:$0xff]
  %v920 = vld [vmem:[#allocation2 + $0x59] sm:$0xff]
  %v921 = vld [vmem:[#allocation2 + $0x61] sm:$0xff]
  %v922 = vld [vmem:[#allocation2 + $0x69] sm:$0xff]
  %v923 = vld [vmem:[#allocation2 + $0x71] sm:$0xff]
  %v924 = vld [vmem:[#allocation2 + $0x79] sm:$0xff]
  %925 = vrot.lane.b32.xlu0 %v909, 4
  %v926 = vpop.permute.xlu0 %925
  %927 = vrot.lane.b32.xlu0 %v910, 4
  %v928 = vpop.permute.xlu0 %927
  %929 = vrot.lane.b32.xlu0 %v911, 4
  %v930 = vpop.permute.xlu0 %929
  %931 = vrot.lane.b32.xlu0 %v912, 4
  %v932 = vpop.permute.xlu0 %931
  %933 = vrot.lane.b32.xlu0 %v913, 4
  %v934 = vpop.permute.xlu0 %933
  %935 = vrot.lane.b32.xlu0 %v914, 4
  %v936 = vpop.permute.xlu0 %935
  %937 = vrot.lane.b32.xlu0 %v915, 4
  %v938 = vpop.permute.xlu0 %937
  %939 = vrot.lane.b32.xlu0 %v916, 4
  %v940 = vpop.permute.xlu0 %939
  %941 = vrot.lane.b32.xlu0 %v917, 4
  %v942 = vpop.permute.xlu0 %941
  %943 = vrot.lane.b32.xlu0 %v918, 4
  %v944 = vpop.permute.xlu0 %943
  %945 = vrot.lane.b32.xlu0 %v919, 4
  %v946 = vpop.permute.xlu0 %945
  %947 = vrot.lane.b32.xlu0 %v920, 4
  %v948 = vpop.permute.xlu0 %947
  %949 = vrot.lane.b32.xlu0 %v921, 4
  %v950 = vpop.permute.xlu0 %949
  %951 = vrot.lane.b32.xlu0 %v922, 4
  %v952 = vpop.permute.xlu0 %951
  %953 = vrot.lane.b32.xlu0 %v923, 4
  %v954 = vpop.permute.xlu0 %953
  %955 = vrot.lane.b32.xlu0 %v924, 4
  %v956 = vpop.permute.xlu0 %955
  %v957 = vadd.f32 %v893, %v926
  %v958 = vadd.f32 %v894, %v928
  %v959 = vadd.f32 %v895, %v930
  %v960 = vadd.f32 %v896, %v932
  %v961 = vadd.f32 %v897, %v934
  %v962 = vadd.f32 %v898, %v936
  %v963 = vadd.f32 %v899, %v938
  %v964 = vadd.f32 %v900, %v940
  %v965 = vadd.f32 %v901, %v942
  %v966 = vadd.f32 %v902, %v944
  %v967 = vadd.f32 %v903, %v946
  %v968 = vadd.f32 %v904, %v948
  %v969 = vadd.f32 %v905, %v950
  %v970 = vadd.f32 %v906, %v952
  %v971 = vadd.f32 %v907, %v954
  %v972 = vadd.f32 %v908, %v956
  %v973 = vld [vmem:[#allocation2 + $0x2] sm:$0xff]
  %v974 = vld [vmem:[#allocation2 + $0xa] sm:$0xff]
  %v975 = vld [vmem:[#allocation2 + $0x12] sm:$0xff]
  %v976 = vld [vmem:[#allocation2 + $0x1a] sm:$0xff]
  %v977 = vld [vmem:[#allocation2 + $0x22] sm:$0xff]
  %v978 = vld [vmem:[#allocation2 + $0x2a] sm:$0xff]
  %v979 = vld [vmem:[#allocation2 + $0x32] sm:$0xff]
  %v980 = vld [vmem:[#allocation2 + $0x3a] sm:$0xff]
  %v981 = vld [vmem:[#allocation2 + $0x42] sm:$0xff]
  %v982 = vld [vmem:[#allocation2 + $0x4a] sm:$0xff]
  %v983 = vld [vmem:[#allocation2 + $0x52] sm:$0xff]
  %v984 = vld [vmem:[#allocation2 + $0x5a] sm:$0xff]
  %v985 = vld [vmem:[#allocation2 + $0x62] sm:$0xff]
  %v986 = vld [vmem:[#allocation2 + $0x6a] sm:$0xff]
  %v987 = vld [vmem:[#allocation2 + $0x72] sm:$0xff]
  %v988 = vld [vmem:[#allocation2 + $0x7a] sm:$0xff]
  %989 = vrot.lane.b32.xlu0 %v973, 8
  %v990 = vpop.permute.xlu0 %989
  %991 = vrot.lane.b32.xlu0 %v974, 8
  %v992 = vpop.permute.xlu0 %991
  %993 = vrot.lane.b32.xlu0 %v975, 8
  %v994 = vpop.permute.xlu0 %993
  %995 = vrot.lane.b32.xlu0 %v976, 8
  %v996 = vpop.permute.xlu0 %995
  %997 = vrot.lane.b32.xlu0 %v977, 8
  %v998 = vpop.permute.xlu0 %997
  %999 = vrot.lane.b32.xlu0 %v978, 8
  %v1000 = vpop.permute.xlu0 %999
  %1001 = vrot.lane.b32.xlu0 %v979, 8
  %v1002 = vpop.permute.xlu0 %1001
  %1003 = vrot.lane.b32.xlu0 %v980, 8
  %v1004 = vpop.permute.xlu0 %1003
  %1005 = vrot.lane.b32.xlu0 %v981, 8
  %v1006 = vpop.permute.xlu0 %1005
  %1007 = vrot.lane.b32.xlu0 %v982, 8
  %v1008 = vpop.permute.xlu0 %1007
  %1009 = vrot.lane.b32.xlu0 %v983, 8
  %v1010 = vpop.permute.xlu0 %1009
  %1011 = vrot.lane.b32.xlu0 %v984, 8
  %v1012 = vpop.permute.xlu0 %1011
  %1013 = vrot.lane.b32.xlu0 %v985, 8
  %v1014 = vpop.permute.xlu0 %1013
  %1015 = vrot.lane.b32.xlu0 %v986, 8
  %v1016 = vpop.permute.xlu0 %1015
  %1017 = vrot.lane.b32.xlu0 %v987, 8
  %v1018 = vpop.permute.xlu0 %1017
  %1019 = vrot.lane.b32.xlu0 %v988, 8
  %v1020 = vpop.permute.xlu0 %1019
  %v1021 = vadd.f32 %v957, %v990
  %v1022 = vadd.f32 %v958, %v992
  %v1023 = vadd.f32 %v959, %v994
  %v1024 = vadd.f32 %v960, %v996
  %v1025 = vadd.f32 %v961, %v998
  %v1026 = vadd.f32 %v962, %v1000
  %v1027 = vadd.f32 %v963, %v1002
  %v1028 = vadd.f32 %v964, %v1004
  %v1029 = vadd.f32 %v965, %v1006
  %v1030 = vadd.f32 %v966, %v1008
  %v1031 = vadd.f32 %v967, %v1010
  %v1032 = vadd.f32 %v968, %v1012
  %v1033 = vadd.f32 %v969, %v1014
  %v1034 = vadd.f32 %v970, %v1016
  %v1035 = vadd.f32 %v971, %v1018
  %v1036 = vadd.f32 %v972, %v1020
  %v1037 = vld [vmem:[#allocation2 + $0x15] sm:$0xff]
  %v1038 = vld [vmem:[#allocation2 + $0x1d] sm:$0xff]
  %v1039 = vld [vmem:[#allocation2 + $0x25] sm:$0xff]
  %v1040 = vld [vmem:[#allocation2 + $0x2d] sm:$0xff]
  %v1041 = vld [vmem:[#allocation2 + $0x35] sm:$0xff]
  %v1042 = vld [vmem:[#allocation2 + $0x3d] sm:$0xff]
  %v1043 = vld [vmem:[#allocation2 + $0x45] sm:$0xff]
  %v1044 = vld [vmem:[#allocation2 + $0x4d] sm:$0xff]
  %v1045 = vld [vmem:[#allocation2 + $0x55] sm:$0xff]
  %v1046 = vld [vmem:[#allocation2 + $0x5d] sm:$0xff]
  %v1047 = vld [vmem:[#allocation2 + $0x65] sm:$0xff]
  %v1048 = vld [vmem:[#allocation2 + $0x6d] sm:$0xff]
  %v1049 = vld [vmem:[#allocation2 + $0x75] sm:$0xff]
  %v1050 = vld [vmem:[#allocation2 + $0x7d] sm:$0xff]
  %v1051 = vld [vmem:[#allocation2 + $0x85] sm:$0xff]
  %v1052 = vld [vmem:[#allocation2 + $0x8d] sm:$0xff]
  %1053 = vrot.lane.b32.xlu0 %v1037, 12
  %v1054 = vpop.permute.xlu0 %1053
  %1055 = vrot.lane.b32.xlu0 %v1038, 12
  %v1056 = vpop.permute.xlu0 %1055
  %1057 = vrot.lane.b32.xlu0 %v1039, 12
  %v1058 = vpop.permute.xlu0 %1057
  %1059 = vrot.lane.b32.xlu0 %v1040, 12
  %v1060 = vpop.permute.xlu0 %1059
  %1061 = vrot.lane.b32.xlu0 %v1041, 12
  %v1062 = vpop.permute.xlu0 %1061
  %1063 = vrot.lane.b32.xlu0 %v1042, 12
  %v1064 = vpop.permute.xlu0 %1063
  %1065 = vrot.lane.b32.xlu0 %v1043, 12
  %v1066 = vpop.permute.xlu0 %1065
  %1067 = vrot.lane.b32.xlu0 %v1044, 12
  %v1068 = vpop.permute.xlu0 %1067
  %1069 = vrot.lane.b32.xlu0 %v1045, 12
  %v1070 = vpop.permute.xlu0 %1069
  %1071 = vrot.lane.b32.xlu0 %v1046, 12
  %v1072 = vpop.permute.xlu0 %1071
  %1073 = vrot.lane.b32.xlu0 %v1047, 12
  %v1074 = vpop.permute.xlu0 %1073
  %1075 = vrot.lane.b32.xlu0 %v1048, 12
  %v1076 = vpop.permute.xlu0 %1075
  %1077 = vrot.lane.b32.xlu0 %v1049, 12
  %v1078 = vpop.permute.xlu0 %1077
  %1079 = vrot.lane.b32.xlu0 %v1050, 12
  %v1080 = vpop.permute.xlu0 %1079
  %1081 = vrot.lane.b32.xlu0 %v1051, 12
  %v1082 = vpop.permute.xlu0 %1081
  %1083 = vrot.lane.b32.xlu0 %v1052, 12
  %v1084 = vpop.permute.xlu0 %1083
  %v1085 = vadd.f32 %v1021, %v1054
  %v1086 = vadd.f32 %v1022, %v1056
  %v1087 = vadd.f32 %v1023, %v1058
  %v1088 = vadd.f32 %v1024, %v1060
  %v1089 = vadd.f32 %v1025, %v1062
  %v1090 = vadd.f32 %v1026, %v1064
  %v1091 = vadd.f32 %v1027, %v1066
  %v1092 = vadd.f32 %v1028, %v1068
  %v1093 = vadd.f32 %v1029, %v1070
  %v1094 = vadd.f32 %v1030, %v1072
  %v1095 = vadd.f32 %v1031, %v1074
  %v1096 = vadd.f32 %v1032, %v1076
  %v1097 = vadd.f32 %v1033, %v1078
  %v1098 = vadd.f32 %v1034, %v1080
  %v1099 = vadd.f32 %v1035, %v1082
  %v1100 = vadd.f32 %v1036, %v1084
  %v1101 = vld [vmem:[#allocation2 + $0x16] sm:$0xff]
  %v1102 = vld [vmem:[#allocation2 + $0x1e] sm:$0xff]
  %v1103 = vld [vmem:[#allocation2 + $0x26] sm:$0xff]
  %v1104 = vld [vmem:[#allocation2 + $0x2e] sm:$0xff]
  %v1105 = vld [vmem:[#allocation2 + $0x36] sm:$0xff]
  %v1106 = vld [vmem:[#allocation2 + $0x3e] sm:$0xff]
  %v1107 = vld [vmem:[#allocation2 + $0x46] sm:$0xff]
  %v1108 = vld [vmem:[#allocation2 + $0x4e] sm:$0xff]
  %v1109 = vld [vmem:[#allocation2 + $0x56] sm:$0xff]
  %v1110 = vld [vmem:[#allocation2 + $0x5e] sm:$0xff]
  %v1111 = vld [vmem:[#allocation2 + $0x66] sm:$0xff]
  %v1112 = vld [vmem:[#allocation2 + $0x6e] sm:$0xff]
  %v1113 = vld [vmem:[#allocation2 + $0x76] sm:$0xff]
  %v1114 = vld [vmem:[#allocation2 + $0x7e] sm:$0xff]
  %v1115 = vld [vmem:[#allocation2 + $0x86] sm:$0xff]
  %v1116 = vld [vmem:[#allocation2 + $0x8e] sm:$0xff]
  %1117 = vrot.lane.b32.xlu0 %v1101, 16
  %v1118 = vpop.permute.xlu0 %1117
  %1119 = vrot.lane.b32.xlu0 %v1102, 16
  %v1120 = vpop.permute.xlu0 %1119
  %1121 = vrot.lane.b32.xlu0 %v1103, 16
  %v1122 = vpop.permute.xlu0 %1121
  %1123 = vrot.lane.b32.xlu0 %v1104, 16
  %v1124 = vpop.permute.xlu0 %1123
  %1125 = vrot.lane.b32.xlu0 %v1105, 16
  %v1126 = vpop.permute.xlu0 %1125
  %1127 = vrot.lane.b32.xlu0 %v1106, 16
  %v1128 = vpop.permute.xlu0 %1127
  %1129 = vrot.lane.b32.xlu0 %v1107, 16
  %v1130 = vpop.permute.xlu0 %1129
  %1131 = vrot.lane.b32.xlu0 %v1108, 16
  %v1132 = vpop.permute.xlu0 %1131
  %1133 = vrot.lane.b32.xlu0 %v1109, 16
  %v1134 = vpop.permute.xlu0 %1133
  %1135 = vrot.lane.b32.xlu0 %v1110, 16
  %v1136 = vpop.permute.xlu0 %1135
  %1137 = vrot.lane.b32.xlu0 %v1111, 16
  %v1138 = vpop.permute.xlu0 %1137
  %1139 = vrot.lane.b32.xlu0 %v1112, 16
  %v1140 = vpop.permute.xlu0 %1139
  %1141 = vrot.lane.b32.xlu0 %v1113, 16
  %v1142 = vpop.permute.xlu0 %1141
  %1143 = vrot.lane.b32.xlu0 %v1114, 16
  %v1144 = vpop.permute.xlu0 %1143
  %1145 = vrot.lane.b32.xlu0 %v1115, 16
  %v1146 = vpop.permute.xlu0 %1145
  %1147 = vrot.lane.b32.xlu0 %v1116, 16
  %v1148 = vpop.permute.xlu0 %1147
  %v1149 = vadd.f32 %v1085, %v1118
  %v1150 = vadd.f32 %v1086, %v1120
  %v1151 = vadd.f32 %v1087, %v1122
  %v1152 = vadd.f32 %v1088, %v1124
  %v1153 = vadd.f32 %v1089, %v1126
  %v1154 = vadd.f32 %v1090, %v1128
  %v1155 = vadd.f32 %v1091, %v1130
  %v1156 = vadd.f32 %v1092, %v1132
  %v1157 = vadd.f32 %v1093, %v1134
  %v1158 = vadd.f32 %v1094, %v1136
  %v1159 = vadd.f32 %v1095, %v1138
  %v1160 = vadd.f32 %v1096, %v1140
  %v1161 = vadd.f32 %v1097, %v1142
  %v1162 = vadd.f32 %v1098, %v1144
  %v1163 = vadd.f32 %v1099, %v1146
  %v1164 = vadd.f32 %v1100, %v1148
  %v1165 = vld [vmem:[#allocation2 + $0x17] sm:$0xff]
  %v1166 = vld [vmem:[#allocation2 + $0x1f] sm:$0xff]
  %v1167 = vld [vmem:[#allocation2 + $0x27] sm:$0xff]
  %v1168 = vld [vmem:[#allocation2 + $0x2f] sm:$0xff]
  %v1169 = vld [vmem:[#allocation2 + $0x37] sm:$0xff]
  %v1170 = vld [vmem:[#allocation2 + $0x3f] sm:$0xff]
  %v1171 = vld [vmem:[#allocation2 + $0x47] sm:$0xff]
  %v1172 = vld [vmem:[#allocation2 + $0x4f] sm:$0xff]
  %v1173 = vld [vmem:[#allocation2 + $0x57] sm:$0xff]
  %v1174 = vld [vmem:[#allocation2 + $0x5f] sm:$0xff]
  %v1175 = vld [vmem:[#allocation2 + $0x67] sm:$0xff]
  %v1176 = vld [vmem:[#allocation2 + $0x6f] sm:$0xff]
  %v1177 = vld [vmem:[#allocation2 + $0x77] sm:$0xff]
  %v1178 = vld [vmem:[#allocation2 + $0x7f] sm:$0xff]
  %v1179 = vld [vmem:[#allocation2 + $0x87] sm:$0xff]
  %v1180 = vld [vmem:[#allocation2 + $0x8f] sm:$0xff]
  %1181 = vrot.lane.b32.xlu0 %v1165, 20
  %v1182 = vpop.permute.xlu0 %1181
  %1183 = vrot.lane.b32.xlu0 %v1166, 20
  %v1184 = vpop.permute.xlu0 %1183
  %1185 = vrot.lane.b32.xlu0 %v1167, 20
  %v1186 = vpop.permute.xlu0 %1185
  %1187 = vrot.lane.b32.xlu0 %v1168, 20
  %v1188 = vpop.permute.xlu0 %1187
  %1189 = vrot.lane.b32.xlu0 %v1169, 20
  %v1190 = vpop.permute.xlu0 %1189
  %1191 = vrot.lane.b32.xlu0 %v1170, 20
  %v1192 = vpop.permute.xlu0 %1191
  %1193 = vrot.lane.b32.xlu0 %v1171, 20
  %v1194 = vpop.permute.xlu0 %1193
  %1195 = vrot.lane.b32.xlu0 %v1172, 20
  %v1196 = vpop.permute.xlu0 %1195
  %1197 = vrot.lane.b32.xlu0 %v1173, 20
  %v1198 = vpop.permute.xlu0 %1197
  %1199 = vrot.lane.b32.xlu0 %v1174, 20
  %v1200 = vpop.permute.xlu0 %1199
  %1201 = vrot.lane.b32.xlu0 %v1175, 20
  %v1202 = vpop.permute.xlu0 %1201
  %1203 = vrot.lane.b32.xlu0 %v1176, 20
  %v1204 = vpop.permute.xlu0 %1203
  %1205 = vrot.lane.b32.xlu0 %v1177, 20
  %v1206 = vpop.permute.xlu0 %1205
  %1207 = vrot.lane.b32.xlu0 %v1178, 20
  %v1208 = vpop.permute.xlu0 %1207
  %1209 = vrot.lane.b32.xlu0 %v1179, 20
  %v1210 = vpop.permute.xlu0 %1209
  %1211 = vrot.lane.b32.xlu0 %v1180, 20
  %v1212 = vpop.permute.xlu0 %1211
  %v1213 = vadd.f32 %v1149, %v1182
  %v1214 = vadd.f32 %v1150, %v1184
  %v1215 = vadd.f32 %v1151, %v1186
  %v1216 = vadd.f32 %v1152, %v1188
  %v1217 = vadd.f32 %v1153, %v1190
  %v1218 = vadd.f32 %v1154, %v1192
  %v1219 = vadd.f32 %v1155, %v1194
  %v1220 = vadd.f32 %v1156, %v1196
  %v1221 = vadd.f32 %v1157, %v1198
  %v1222 = vadd.f32 %v1158, %v1200
  %v1223 = vadd.f32 %v1159, %v1202
  %v1224 = vadd.f32 %v1160, %v1204
  %v1225 = vadd.f32 %v1161, %v1206
  %v1226 = vadd.f32 %v1162, %v1208
  %v1227 = vadd.f32 %v1163, %v1210
  %v1228 = vadd.f32 %v1164, %v1212
  %v1229 = vld [vmem:[#allocation2 + $0x82] sm:$0xff]
  %v1230 = vld [vmem:[#allocation2 + $0x8a] sm:$0xff]
  %v1231 = vld [vmem:[#allocation2 + $0x92] sm:$0xff]
  %v1232 = vld [vmem:[#allocation2 + $0x9a] sm:$0xff]
  %v1233 = vld [vmem:[#allocation2 + $0xa2] sm:$0xff]
  %1234 = vrot.lane.b32.xlu0 %v978, 24
  %v1235 = vpop.permute.xlu0 %1234
  %1236 = vrot.lane.b32.xlu0 %v979, 24
  %v1237 = vpop.permute.xlu0 %1236
  %1238 = vrot.lane.b32.xlu0 %v980, 24
  %v1239 = vpop.permute.xlu0 %1238
  %1240 = vrot.lane.b32.xlu0 %v981, 24
  %v1241 = vpop.permute.xlu0 %1240
  %1242 = vrot.lane.b32.xlu0 %v982, 24
  %v1243 = vpop.permute.xlu0 %1242
  %1244 = vrot.lane.b32.xlu0 %v983, 24
  %v1245 = vpop.permute.xlu0 %1244
  %1246 = vrot.lane.b32.xlu0 %v984, 24
  %v1247 = vpop.permute.xlu0 %1246
  %1248 = vrot.lane.b32.xlu0 %v985, 24
  %v1249 = vpop.permute.xlu0 %1248
  %1250 = vrot.lane.b32.xlu0 %v986, 24
  %v1251 = vpop.permute.xlu0 %1250
  %1252 = vrot.lane.b32.xlu0 %v987, 24
  %v1253 = vpop.permute.xlu0 %1252
  %1254 = vrot.lane.b32.xlu0 %v988, 24
  %v1255 = vpop.permute.xlu0 %1254
  %1256 = vrot.lane.b32.xlu0 %v1229, 24
  %v1257 = vpop.permute.xlu0 %1256
  %1258 = vrot.lane.b32.xlu0 %v1230, 24
  %v1259 = vpop.permute.xlu0 %1258
  %1260 = vrot.lane.b32.xlu0 %v1231, 24
  %v1261 = vpop.permute.xlu0 %1260
  %1262 = vrot.lane.b32.xlu0 %v1232, 24
  %v1263 = vpop.permute.xlu0 %1262
  %1264 = vrot.lane.b32.xlu0 %v1233, 24
  %v1265 = vpop.permute.xlu0 %1264
  %v1266 = vadd.f32 %v1213, %v1235
  %v1267 = vadd.f32 %v1214, %v1237
  %v1268 = vadd.f32 %v1215, %v1239
  %v1269 = vadd.f32 %v1216, %v1241
  %v1270 = vadd.f32 %v1217, %v1243
  %v1271 = vadd.f32 %v1218, %v1245
  %v1272 = vadd.f32 %v1219, %v1247
  %v1273 = vadd.f32 %v1220, %v1249
  %v1274 = vadd.f32 %v1221, %v1251
  %v1275 = vadd.f32 %v1222, %v1253
  %v1276 = vadd.f32 %v1223, %v1255
  %v1277 = vadd.f32 %v1224, %v1257
  %v1278 = vadd.f32 %v1225, %v1259
  %v1279 = vadd.f32 %v1226, %v1261
  %v1280 = vadd.f32 %v1227, %v1263
  %v1281 = vadd.f32 %v1228, %v1265
  %v1282 = vld [vmem:[#allocation2 + $0x2b] sm:$0xff]
  %v1283 = vld [vmem:[#allocation2 + $0x33] sm:$0xff]
  %v1284 = vld [vmem:[#allocation2 + $0x3b] sm:$0xff]
  %v1285 = vld [vmem:[#allocation2 + $0x43] sm:$0xff]
  %v1286 = vld [vmem:[#allocation2 + $0x4b] sm:$0xff]
  %v1287 = vld [vmem:[#allocation2 + $0x53] sm:$0xff]
  %v1288 = vld [vmem:[#allocation2 + $0x5b] sm:$0xff]
  %v1289 = vld [vmem:[#allocation2 + $0x63] sm:$0xff]
  %v1290 = vld [vmem:[#allocation2 + $0x6b] sm:$0xff]
  %v1291 = vld [vmem:[#allocation2 + $0x73] sm:$0xff]
  %v1292 = vld [vmem:[#allocation2 + $0x7b] sm:$0xff]
  %v1293 = vld [vmem:[#allocation2 + $0x83] sm:$0xff]
  %v1294 = vld [vmem:[#allocation2 + $0x8b] sm:$0xff]
  %v1295 = vld [vmem:[#allocation2 + $0x93] sm:$0xff]
  %v1296 = vld [vmem:[#allocation2 + $0x9b] sm:$0xff]
  %v1297 = vld [vmem:[#allocation2 + $0xa3] sm:$0xff]
  %1298 = vrot.lane.b32.xlu0 %v1282, 28
  %v1299 = vpop.permute.xlu0 %1298
  %1300 = vrot.lane.b32.xlu0 %v1283, 28
  %v1301 = vpop.permute.xlu0 %1300
  %1302 = vrot.lane.b32.xlu0 %v1284, 28
  %v1303 = vpop.permute.xlu0 %1302
  %1304 = vrot.lane.b32.xlu0 %v1285, 28
  %v1305 = vpop.permute.xlu0 %1304
  %1306 = vrot.lane.b32.xlu0 %v1286, 28
  %v1307 = vpop.permute.xlu0 %1306
  %1308 = vrot.lane.b32.xlu0 %v1287, 28
  %v1309 = vpop.permute.xlu0 %1308
  %1310 = vrot.lane.b32.xlu0 %v1288, 28
  %v1311 = vpop.permute.xlu0 %1310
  %1312 = vrot.lane.b32.xlu0 %v1289, 28
  %v1313 = vpop.permute.xlu0 %1312
  %1314 = vrot.lane.b32.xlu0 %v1290, 28
  %v1315 = vpop.permute.xlu0 %1314
  %1316 = vrot.lane.b32.xlu0 %v1291, 28
  %v1317 = vpop.permute.xlu0 %1316
  %1318 = vrot.lane.b32.xlu0 %v1292, 28
  %v1319 = vpop.permute.xlu0 %1318
  %1320 = vrot.lane.b32.xlu0 %v1293, 28
  %v1321 = vpop.permute.xlu0 %1320
  %1322 = vrot.lane.b32.xlu0 %v1294, 28
  %v1323 = vpop.permute.xlu0 %1322
  %1324 = vrot.lane.b32.xlu0 %v1295, 28
  %v1325 = vpop.permute.xlu0 %1324
  %1326 = vrot.lane.b32.xlu0 %v1296, 28
  %v1327 = vpop.permute.xlu0 %1326
  %1328 = vrot.lane.b32.xlu0 %v1297, 28
  %v1329 = vpop.permute.xlu0 %1328
  %v1330 = vadd.f32 %v1266, %v1299
  %v1331 = vadd.f32 %v1267, %v1301
  %v1332 = vadd.f32 %v1268, %v1303
  %v1333 = vadd.f32 %v1269, %v1305
  %v1334 = vadd.f32 %v1270, %v1307
  %v1335 = vadd.f32 %v1271, %v1309
  %v1336 = vadd.f32 %v1272, %v1311
  %v1337 = vadd.f32 %v1273, %v1313
  %v1338 = vadd.f32 %v1274, %v1315
  %v1339 = vadd.f32 %v1275, %v1317
  %v1340 = vadd.f32 %v1276, %v1319
  %v1341 = vadd.f32 %v1277, %v1321
  %v1342 = vadd.f32 %v1278, %v1323
  %v1343 = vadd.f32 %v1279, %v1325
  %v1344 = vadd.f32 %v1280, %v1327
  %v1345 = vadd.f32 %v1281, %v1329
  %v1346 = vld [vmem:[#allocation2 + $0x2c] sm:$0xff]
  %v1347 = vld [vmem:[#allocation2 + $0x34] sm:$0xff]
  %v1348 = vld [vmem:[#allocation2 + $0x3c] sm:$0xff]
  %v1349 = vld [vmem:[#allocation2 + $0x44] sm:$0xff]
  %v1350 = vld [vmem:[#allocation2 + $0x4c] sm:$0xff]
  %v1351 = vld [vmem:[#allocation2 + $0x54] sm:$0xff]
  %v1352 = vld [vmem:[#allocation2 + $0x5c] sm:$0xff]
  %v1353 = vld [vmem:[#allocation2 + $0x64] sm:$0xff]
  %v1354 = vld [vmem:[#allocation2 + $0x6c] sm:$0xff]
  %v1355 = vld [vmem:[#allocation2 + $0x74] sm:$0xff]
  %v1356 = vld [vmem:[#allocation2 + $0x7c] sm:$0xff]
  %v1357 = vld [vmem:[#allocation2 + $0x84] sm:$0xff]
  %v1358 = vld [vmem:[#allocation2 + $0x8c] sm:$0xff]
  %v1359 = vld [vmem:[#allocation2 + $0x94] sm:$0xff]
  %v1360 = vld [vmem:[#allocation2 + $0x9c] sm:$0xff]
  %v1361 = vld [vmem:[#allocation2 + $0xa4] sm:$0xff]
  %1362 = vrot.lane.b32.xlu0 %v1346, 32
  %v1363 = vpop.permute.xlu0 %1362
  %1364 = vrot.lane.b32.xlu0 %v1347, 32
  %v1365 = vpop.permute.xlu0 %1364
  %1366 = vrot.lane.b32.xlu0 %v1348, 32
  %v1367 = vpop.permute.xlu0 %1366
  %1368 = vrot.lane.b32.xlu0 %v1349, 32
  %v1369 = vpop.permute.xlu0 %1368
  %1370 = vrot.lane.b32.xlu0 %v1350, 32
  %v1371 = vpop.permute.xlu0 %1370
  %1372 = vrot.lane.b32.xlu0 %v1351, 32
  %v1373 = vpop.permute.xlu0 %1372
  %1374 = vrot.lane.b32.xlu0 %v1352, 32
  %v1375 = vpop.permute.xlu0 %1374
  %1376 = vrot.lane.b32.xlu0 %v1353, 32
  %v1377 = vpop.permute.xlu0 %1376
  %1378 = vrot.lane.b32.xlu0 %v1354, 32
  %v1379 = vpop.permute.xlu0 %1378
  %1380 = vrot.lane.b32.xlu0 %v1355, 32
  %v1381 = vpop.permute.xlu0 %1380
  %1382 = vrot.lane.b32.xlu0 %v1356, 32
  %v1383 = vpop.permute.xlu0 %1382
  %1384 = vrot.lane.b32.xlu0 %v1357, 32
  %v1385 = vpop.permute.xlu0 %1384
  %1386 = vrot.lane.b32.xlu0 %v1358, 32
  %v1387 = vpop.permute.xlu0 %1386
  %1388 = vrot.lane.b32.xlu0 %v1359, 32
  %v1389 = vpop.permute.xlu0 %1388
  %1390 = vrot.lane.b32.xlu0 %v1360, 32
  %v1391 = vpop.permute.xlu0 %1390
  %1392 = vrot.lane.b32.xlu0 %v1361, 32
  %v1393 = vpop.permute.xlu0 %1392
  %v1394 = vadd.f32 %v1330, %v1363
  %v1395 = vadd.f32 %v1331, %v1365
  %v1396 = vadd.f32 %v1332, %v1367
  %v1397 = vadd.f32 %v1333, %v1369
  %v1398 = vadd.f32 %v1334, %v1371
  %v1399 = vadd.f32 %v1335, %v1373
  %v1400 = vadd.f32 %v1336, %v1375
  %v1401 = vadd.f32 %v1337, %v1377
  %v1402 = vadd.f32 %v1338, %v1379
  %v1403 = vadd.f32 %v1339, %v1381
  %v1404 = vadd.f32 %v1340, %v1383
  %v1405 = vadd.f32 %v1341, %v1385
  %v1406 = vadd.f32 %v1342, %v1387
  %v1407 = vadd.f32 %v1343, %v1389
  %v1408 = vadd.f32 %v1344, %v1391
  %v1409 = vadd.f32 %v1345, %v1393
  %1410 = vst [vmem:[#allocation3] sm:$0xff] %v1394
  %1411 = vst [vmem:[#allocation3 + $0x8] sm:$0xff] %v1395
  %1412 = vst [vmem:[#allocation3 + $0x10] sm:$0xff] %v1396
  %1413 = vst [vmem:[#allocation3 + $0x18] sm:$0xff] %v1397
  %1414 = vst [vmem:[#allocation3 + $0x20] sm:$0xff] %v1398
  %1415 = vst [vmem:[#allocation3 + $0x28] sm:$0xff] %v1399
  %1416 = vst [vmem:[#allocation3 + $0x30] sm:$0xff] %v1400
  %1417 = vst [vmem:[#allocation3 + $0x38] sm:$0xff] %v1401
  %1418 = vst [vmem:[#allocation3 + $0x40] sm:$0xff] %v1402
  %1419 = vst [vmem:[#allocation3 + $0x48] sm:$0xff] %v1403
  %1420 = vst [vmem:[#allocation3 + $0x50] sm:$0xff] %v1404
  %1421 = vst [vmem:[#allocation3 + $0x58] sm:$0xff] %v1405
  %1422 = vst [vmem:[#allocation3 + $0x60] sm:$0xff] %v1406
  %1423 = vst [vmem:[#allocation3 + $0x68] sm:$0xff] %v1407
  %1424 = vst [vmem:[#allocation3 + $0x70] sm:$0xff] %v1408
  %1425 = vst [vmem:[#allocation3 + $0x78] sm:$0xff] %v1409
  %v1426 = vld [vmem:[#allocation2 + $0x80] sm:$0xff]
  %v1427 = vld [vmem:[#allocation2 + $0x88] sm:$0xff]
  %v1428 = vld [vmem:[#allocation2 + $0x90] sm:$0xff]
  %v1429 = vld [vmem:[#allocation2 + $0x98] sm:$0xff]
  %v1430 = vld [vmem:[#allocation2 + $0xa0] sm:$0xff]
  %v1431 = vld [vmem:[#allocation2 + $0xa8] sm:$0xff]
  %v1432 = vld [vmem:[#allocation2 + $0xb0] sm:$0xff]
  %v1433 = vld [vmem:[#allocation2 + $0xb8] sm:$0xff]
  %v1434 = vld [vmem:[#allocation2 + $0xc0] sm:$0xff]
  %v1435 = vld [vmem:[#allocation2 + $0xc8] sm:$0xff]
  %v1436 = vld [vmem:[#allocation2 + $0xd0] sm:$0xff]
  %v1437 = vld [vmem:[#allocation2 + $0xd8] sm:$0xff]
  %v1438 = vld [vmem:[#allocation2 + $0xe0] sm:$0xff]
  %v1439 = vld [vmem:[#allocation2 + $0xe8] sm:$0xff]
  %v1440 = vld [vmem:[#allocation2 + $0xf0] sm:$0xff]
  %v1441 = vld [vmem:[#allocation2 + $0xf8] sm:$0xff]
  %v1442 = vld [vmem:[#allocation2 + $0x81] sm:$0xff]
  %v1443 = vld [vmem:[#allocation2 + $0x89] sm:$0xff]
  %v1444 = vld [vmem:[#allocation2 + $0x91] sm:$0xff]
  %v1445 = vld [vmem:[#allocation2 + $0x99] sm:$0xff]
  %v1446 = vld [vmem:[#allocation2 + $0xa1] sm:$0xff]
  %v1447 = vld [vmem:[#allocation2 + $0xa9] sm:$0xff]
  %v1448 = vld [vmem:[#allocation2 + $0xb1] sm:$0xff]
  %v1449 = vld [vmem:[#allocation2 + $0xb9] sm:$0xff]
  %v1450 = vld [vmem:[#allocation2 + $0xc1] sm:$0xff]
  %v1451 = vld [vmem:[#allocation2 + $0xc9] sm:$0xff]
  %v1452 = vld [vmem:[#allocation2 + $0xd1] sm:$0xff]
  %v1453 = vld [vmem:[#allocation2 + $0xd9] sm:$0xff]
  %v1454 = vld [vmem:[#allocation2 + $0xe1] sm:$0xff]
  %v1455 = vld [vmem:[#allocation2 + $0xe9] sm:$0xff]
  %v1456 = vld [vmem:[#allocation2 + $0xf1] sm:$0xff]
  %v1457 = vld [vmem:[#allocation2 + $0xf9] sm:$0xff]
  %1458 = vrot.lane.b32.xlu0 %v1442, 4
  %v1459 = vpop.permute.xlu0 %1458
  %1460 = vrot.lane.b32.xlu0 %v1443, 4
  %v1461 = vpop.permute.xlu0 %1460
  %1462 = vrot.lane.b32.xlu0 %v1444, 4
  %v1463 = vpop.permute.xlu0 %1462
  %1464 = vrot.lane.b32.xlu0 %v1445, 4
  %v1465 = vpop.permute.xlu0 %1464
  %1466 = vrot.lane.b32.xlu0 %v1446, 4
  %v1467 = vpop.permute.xlu0 %1466
  %1468 = vrot.lane.b32.xlu0 %v1447, 4
  %v1469 = vpop.permute.xlu0 %1468
  %1470 = vrot.lane.b32.xlu0 %v1448, 4
  %v1471 = vpop.permute.xlu0 %1470
  %1472 = vrot.lane.b32.xlu0 %v1449, 4
  %v1473 = vpop.permute.xlu0 %1472
  %1474 = vrot.lane.b32.xlu0 %v1450, 4
  %v1475 = vpop.permute.xlu0 %1474
  %1476 = vrot.lane.b32.xlu0 %v1451, 4
  %v1477 = vpop.permute.xlu0 %1476
  %1478 = vrot.lane.b32.xlu0 %v1452, 4
  %v1479 = vpop.permute.xlu0 %1478
  %1480 = vrot.lane.b32.xlu0 %v1453, 4
  %v1481 = vpop.permute.xlu0 %1480
  %1482 = vrot.lane.b32.xlu0 %v1454, 4
  %v1483 = vpop.permute.xlu0 %1482
  %1484 = vrot.lane.b32.xlu0 %v1455, 4
  %v1485 = vpop.permute.xlu0 %1484
  %1486 = vrot.lane.b32.xlu0 %v1456, 4
  %v1487 = vpop.permute.xlu0 %1486
  %1488 = vrot.lane.b32.xlu0 %v1457, 4
  %v1489 = vpop.permute.xlu0 %1488
  %v1490 = vadd.f32 %v1426, %v1459
  %v1491 = vadd.f32 %v1427, %v1461
  %v1492 = vadd.f32 %v1428, %v1463
  %v1493 = vadd.f32 %v1429, %v1465
  %v1494 = vadd.f32 %v1430, %v1467
  %v1495 = vadd.f32 %v1431, %v1469
  %v1496 = vadd.f32 %v1432, %v1471
  %v1497 = vadd.f32 %v1433, %v1473
  %v1498 = vadd.f32 %v1434, %v1475
  %v1499 = vadd.f32 %v1435, %v1477
  %v1500 = vadd.f32 %v1436, %v1479
  %v1501 = vadd.f32 %v1437, %v1481
  %v1502 = vadd.f32 %v1438, %v1483
  %v1503 = vadd.f32 %v1439, %v1485
  %v1504 = vadd.f32 %v1440, %v1487
  %v1505 = vadd.f32 %v1441, %v1489
  %v1506 = vld [vmem:[#allocation2 + $0x82] sm:$0xff]
  %v1507 = vld [vmem:[#allocation2 + $0x8a] sm:$0xff]
  %v1508 = vld [vmem:[#allocation2 + $0x92] sm:$0xff]
  %v1509 = vld [vmem:[#allocation2 + $0x9a] sm:$0xff]
  %v1510 = vld [vmem:[#allocation2 + $0xa2] sm:$0xff]
  %v1511 = vld [vmem:[#allocation2 + $0xaa] sm:$0xff]
  %v1512 = vld [vmem:[#allocation2 + $0xb2] sm:$0xff]
  %v1513 = vld [vmem:[#allocation2 + $0xba] sm:$0xff]
  %v1514 = vld [vmem:[#allocation2 + $0xc2] sm:$0xff]
  %v1515 = vld [vmem:[#allocation2 + $0xca] sm:$0xff]
  %v1516 = vld [vmem:[#allocation2 + $0xd2] sm:$0xff]
  %v1517 = vld [vmem:[#allocation2 + $0xda] sm:$0xff]
  %v1518 = vld [vmem:[#allocation2 + $0xe2] sm:$0xff]
  %v1519 = vld [vmem:[#allocation2 + $0xea] sm:$0xff]
  %v1520 = vld [vmem:[#allocation2 + $0xf2] sm:$0xff]
  %v1521 = vld [vmem:[#allocation2 + $0xfa] sm:$0xff]
  %1522 = vrot.lane.b32.xlu0 %v1506, 8
  %v1523 = vpop.permute.xlu0 %1522
  %1524 = vrot.lane.b32.xlu0 %v1507, 8
  %v1525 = vpop.permute.xlu0 %1524
  %1526 = vrot.lane.b32.xlu0 %v1508, 8
  %v1527 = vpop.permute.xlu0 %1526
  %1528 = vrot.lane.b32.xlu0 %v1509, 8
  %v1529 = vpop.permute.xlu0 %1528
  %1530 = vrot.lane.b32.xlu0 %v1510, 8
  %v1531 = vpop.permute.xlu0 %1530
  %1532 = vrot.lane.b32.xlu0 %v1511, 8
  %v1533 = vpop.permute.xlu0 %1532
  %1534 = vrot.lane.b32.xlu0 %v1512, 8
  %v1535 = vpop.permute.xlu0 %1534
  %1536 = vrot.lane.b32.xlu0 %v1513, 8
  %v1537 = vpop.permute.xlu0 %1536
  %1538 = vrot.lane.b32.xlu0 %v1514, 8
  %v1539 = vpop.permute.xlu0 %1538
  %1540 = vrot.lane.b32.xlu0 %v1515, 8
  %v1541 = vpop.permute.xlu0 %1540
  %1542 = vrot.lane.b32.xlu0 %v1516, 8
  %v1543 = vpop.permute.xlu0 %1542
  %1544 = vrot.lane.b32.xlu0 %v1517, 8
  %v1545 = vpop.permute.xlu0 %1544
  %1546 = vrot.lane.b32.xlu0 %v1518, 8
  %v1547 = vpop.permute.xlu0 %1546
  %1548 = vrot.lane.b32.xlu0 %v1519, 8
  %v1549 = vpop.permute.xlu0 %1548
  %1550 = vrot.lane.b32.xlu0 %v1520, 8
  %v1551 = vpop.permute.xlu0 %1550
  %1552 = vrot.lane.b32.xlu0 %v1521, 8
  %v1553 = vpop.permute.xlu0 %1552
  %v1554 = vadd.f32 %v1490, %v1523
  %v1555 = vadd.f32 %v1491, %v1525
  %v1556 = vadd.f32 %v1492, %v1527
  %v1557 = vadd.f32 %v1493, %v1529
  %v1558 = vadd.f32 %v1494, %v1531
  %v1559 = vadd.f32 %v1495, %v1533
  %v1560 = vadd.f32 %v1496, %v1535
  %v1561 = vadd.f32 %v1497, %v1537
  %v1562 = vadd.f32 %v1498, %v1539
  %v1563 = vadd.f32 %v1499, %v1541
  %v1564 = vadd.f32 %v1500, %v1543
  %v1565 = vadd.f32 %v1501, %v1545
  %v1566 = vadd.f32 %v1502, %v1547
  %v1567 = vadd.f32 %v1503, %v1549
  %v1568 = vadd.f32 %v1504, %v1551
  %v1569 = vadd.f32 %v1505, %v1553
  %v1570 = vld [vmem:[#allocation2 + $0x95] sm:$0xff]
  %v1571 = vld [vmem:[#allocation2 + $0x9d] sm:$0xff]
  %v1572 = vld [vmem:[#allocation2 + $0xa5] sm:$0xff]
  %v1573 = vld [vmem:[#allocation2 + $0xad] sm:$0xff]
  %v1574 = vld [vmem:[#allocation2 + $0xb5] sm:$0xff]
  %v1575 = vld [vmem:[#allocation2 + $0xbd] sm:$0xff]
  %v1576 = vld [vmem:[#allocation2 + $0xc5] sm:$0xff]
  %v1577 = vld [vmem:[#allocation2 + $0xcd] sm:$0xff]
  %v1578 = vld [vmem:[#allocation2 + $0xd5] sm:$0xff]
  %v1579 = vld [vmem:[#allocation2 + $0xdd] sm:$0xff]
  %v1580 = vld [vmem:[#allocation2 + $0xe5] sm:$0xff]
  %v1581 = vld [vmem:[#allocation2 + $0xed] sm:$0xff]
  %v1582 = vld [vmem:[#allocation2 + $0xf5] sm:$0xff]
  %v1583 = vld [vmem:[#allocation2 + $0xfd] sm:$0xff]
  %v1584 = vld [vmem:[#allocation2 + $0x105] sm:$0xff]
  %v1585 = vld [vmem:[#allocation2 + $0x10d] sm:$0xff]
  %1586 = vrot.lane.b32.xlu0 %v1570, 12
  %v1587 = vpop.permute.xlu0 %1586
  %1588 = vrot.lane.b32.xlu0 %v1571, 12
  %v1589 = vpop.permute.xlu0 %1588
  %1590 = vrot.lane.b32.xlu0 %v1572, 12
  %v1591 = vpop.permute.xlu0 %1590
  %1592 = vrot.lane.b32.xlu0 %v1573, 12
  %v1593 = vpop.permute.xlu0 %1592
  %1594 = vrot.lane.b32.xlu0 %v1574, 12
  %v1595 = vpop.permute.xlu0 %1594
  %1596 = vrot.lane.b32.xlu0 %v1575, 12
  %v1597 = vpop.permute.xlu0 %1596
  %1598 = vrot.lane.b32.xlu0 %v1576, 12
  %v1599 = vpop.permute.xlu0 %1598
  %1600 = vrot.lane.b32.xlu0 %v1577, 12
  %v1601 = vpop.permute.xlu0 %1600
  %1602 = vrot.lane.b32.xlu0 %v1578, 12
  %v1603 = vpop.permute.xlu0 %1602
  %1604 = vrot.lane.b32.xlu0 %v1579, 12
  %v1605 = vpop.permute.xlu0 %1604
  %1606 = vrot.lane.b32.xlu0 %v1580, 12
  %v1607 = vpop.permute.xlu0 %1606
  %1608 = vrot.lane.b32.xlu0 %v1581, 12
  %v1609 = vpop.permute.xlu0 %1608
  %1610 = vrot.lane.b32.xlu0 %v1582, 12
  %v1611 = vpop.permute.xlu0 %1610
  %1612 = vrot.lane.b32.xlu0 %v1583, 12
  %v1613 = vpop.permute.xlu0 %1612
  %1614 = vrot.lane.b32.xlu0 %v1584, 12
  %v1615 = vpop.permute.xlu0 %1614
  %1616 = vrot.lane.b32.xlu0 %v1585, 12
  %v1617 = vpop.permute.xlu0 %1616
  %v1618 = vadd.f32 %v1554, %v1587
  %v1619 = vadd.f32 %v1555, %v1589
  %v1620 = vadd.f32 %v1556, %v1591
  %v1621 = vadd.f32 %v1557, %v1593
  %v1622 = vadd.f32 %v1558, %v1595
  %v1623 = vadd.f32 %v1559, %v1597
  %v1624 = vadd.f32 %v1560, %v1599
  %v1625 = vadd.f32 %v1561, %v1601
  %v1626 = vadd.f32 %v1562, %v1603
  %v1627 = vadd.f32 %v1563, %v1605
  %v1628 = vadd.f32 %v1564, %v1607
  %v1629 = vadd.f32 %v1565, %v1609
  %v1630 = vadd.f32 %v1566, %v1611
  %v1631 = vadd.f32 %v1567, %v1613
  %v1632 = vadd.f32 %v1568, %v1615
  %v1633 = vadd.f32 %v1569, %v1617
  %v1634 = vld [vmem:[#allocation2 + $0x96] sm:$0xff]
  %v1635 = vld [vmem:[#allocation2 + $0x9e] sm:$0xff]
  %v1636 = vld [vmem:[#allocation2 + $0xa6] sm:$0xff]
  %v1637 = vld [vmem:[#allocation2 + $0xae] sm:$0xff]
  %v1638 = vld [vmem:[#allocation2 + $0xb6] sm:$0xff]
  %v1639 = vld [vmem:[#allocation2 + $0xbe] sm:$0xff]
  %v1640 = vld [vmem:[#allocation2 + $0xc6] sm:$0xff]
  %v1641 = vld [vmem:[#allocation2 + $0xce] sm:$0xff]
  %v1642 = vld [vmem:[#allocation2 + $0xd6] sm:$0xff]
  %v1643 = vld [vmem:[#allocation2 + $0xde] sm:$0xff]
  %v1644 = vld [vmem:[#allocation2 + $0xe6] sm:$0xff]
  %v1645 = vld [vmem:[#allocation2 + $0xee] sm:$0xff]
  %v1646 = vld [vmem:[#allocation2 + $0xf6] sm:$0xff]
  %v1647 = vld [vmem:[#allocation2 + $0xfe] sm:$0xff]
  %v1648 = vld [vmem:[#allocation2 + $0x106] sm:$0xff]
  %v1649 = vld [vmem:[#allocation2 + $0x10e] sm:$0xff]
  %1650 = vrot.lane.b32.xlu0 %v1634, 16
  %v1651 = vpop.permute.xlu0 %1650
  %1652 = vrot.lane.b32.xlu0 %v1635, 16
  %v1653 = vpop.permute.xlu0 %1652
  %1654 = vrot.lane.b32.xlu0 %v1636, 16
  %v1655 = vpop.permute.xlu0 %1654
  %1656 = vrot.lane.b32.xlu0 %v1637, 16
  %v1657 = vpop.permute.xlu0 %1656
  %1658 = vrot.lane.b32.xlu0 %v1638, 16
  %v1659 = vpop.permute.xlu0 %1658
  %1660 = vrot.lane.b32.xlu0 %v1639, 16
  %v1661 = vpop.permute.xlu0 %1660
  %1662 = vrot.lane.b32.xlu0 %v1640, 16
  %v1663 = vpop.permute.xlu0 %1662
  %1664 = vrot.lane.b32.xlu0 %v1641, 16
  %v1665 = vpop.permute.xlu0 %1664
  %1666 = vrot.lane.b32.xlu0 %v1642, 16
  %v1667 = vpop.permute.xlu0 %1666
  %1668 = vrot.lane.b32.xlu0 %v1643, 16
  %v1669 = vpop.permute.xlu0 %1668
  %1670 = vrot.lane.b32.xlu0 %v1644, 16
  %v1671 = vpop.permute.xlu0 %1670
  %1672 = vrot.lane.b32.xlu0 %v1645, 16
  %v1673 = vpop.permute.xlu0 %1672
  %1674 = vrot.lane.b32.xlu0 %v1646, 16
  %v1675 = vpop.permute.xlu0 %1674
  %1676 = vrot.lane.b32.xlu0 %v1647, 16
  %v1677 = vpop.permute.xlu0 %1676
  %1678 = vrot.lane.b32.xlu0 %v1648, 16
  %v1679 = vpop.permute.xlu0 %1678
  %1680 = vrot.lane.b32.xlu0 %v1649, 16
  %v1681 = vpop.permute.xlu0 %1680
  %v1682 = vadd.f32 %v1618, %v1651
  %v1683 = vadd.f32 %v1619, %v1653
  %v1684 = vadd.f32 %v1620, %v1655
  %v1685 = vadd.f32 %v1621, %v1657
  %v1686 = vadd.f32 %v1622, %v1659
  %v1687 = vadd.f32 %v1623, %v1661
  %v1688 = vadd.f32 %v1624, %v1663
  %v1689 = vadd.f32 %v1625, %v1665
  %v1690 = vadd.f32 %v1626, %v1667
  %v1691 = vadd.f32 %v1627, %v1669
  %v1692 = vadd.f32 %v1628, %v1671
  %v1693 = vadd.f32 %v1629, %v1673
  %v1694 = vadd.f32 %v1630, %v1675
  %v1695 = vadd.f32 %v1631, %v1677
  %v1696 = vadd.f32 %v1632, %v1679
  %v1697 = vadd.f32 %v1633, %v1681
  %v1698 = vld [vmem:[#allocation2 + $0x97] sm:$0xff]
  %v1699 = vld [vmem:[#allocation2 + $0x9f] sm:$0xff]
  %v1700 = vld [vmem:[#allocation2 + $0xa7] sm:$0xff]
  %v1701 = vld [vmem:[#allocation2 + $0xaf] sm:$0xff]
  %v1702 = vld [vmem:[#allocation2 + $0xb7] sm:$0xff]
  %v1703 = vld [vmem:[#allocation2 + $0xbf] sm:$0xff]
  %v1704 = vld [vmem:[#allocation2 + $0xc7] sm:$0xff]
  %v1705 = vld [vmem:[#allocation2 + $0xcf] sm:$0xff]
  %v1706 = vld [vmem:[#allocation2 + $0xd7] sm:$0xff]
  %v1707 = vld [vmem:[#allocation2 + $0xdf] sm:$0xff]
  %v1708 = vld [vmem:[#allocation2 + $0xe7] sm:$0xff]
  %v1709 = vld [vmem:[#allocation2 + $0xef] sm:$0xff]
  %v1710 = vld [vmem:[#allocation2 + $0xf7] sm:$0xff]
  %v1711 = vld [vmem:[#allocation2 + $0xff] sm:$0xff]
  %v1712 = vld [vmem:[#allocation2 + $0x107] sm:$0xff]
  %v1713 = vld [vmem:[#allocation2 + $0x10f] sm:$0xff]
  %1714 = vrot.lane.b32.xlu0 %v1698, 20
  %v1715 = vpop.permute.xlu0 %1714
  %1716 = vrot.lane.b32.xlu0 %v1699, 20
  %v1717 = vpop.permute.xlu0 %1716
  %1718 = vrot.lane.b32.xlu0 %v1700, 20
  %v1719 = vpop.permute.xlu0 %1718
  %1720 = vrot.lane.b32.xlu0 %v1701, 20
  %v1721 = vpop.permute.xlu0 %1720
  %1722 = vrot.lane.b32.xlu0 %v1702, 20
  %v1723 = vpop.permute.xlu0 %1722
  %1724 = vrot.lane.b32.xlu0 %v1703, 20
  %v1725 = vpop.permute.xlu0 %1724
  %1726 = vrot.lane.b32.xlu0 %v1704, 20
  %v1727 = vpop.permute.xlu0 %1726
  %1728 = vrot.lane.b32.xlu0 %v1705, 20
  %v1729 = vpop.permute.xlu0 %1728
  %1730 = vrot.lane.b32.xlu0 %v1706, 20
  %v1731 = vpop.permute.xlu0 %1730
  %1732 = vrot.lane.b32.xlu0 %v1707, 20
  %v1733 = vpop.permute.xlu0 %1732
  %1734 = vrot.lane.b32.xlu0 %v1708, 20
  %v1735 = vpop.permute.xlu0 %1734
  %1736 = vrot.lane.b32.xlu0 %v1709, 20
  %v1737 = vpop.permute.xlu0 %1736
  %1738 = vrot.lane.b32.xlu0 %v1710, 20
  %v1739 = vpop.permute.xlu0 %1738
  %1740 = vrot.lane.b32.xlu0 %v1711, 20
  %v1741 = vpop.permute.xlu0 %1740
  %1742 = vrot.lane.b32.xlu0 %v1712, 20
  %v1743 = vpop.permute.xlu0 %1742
  %1744 = vrot.lane.b32.xlu0 %v1713, 20
  %v1745 = vpop.permute.xlu0 %1744
  %v1746 = vadd.f32 %v1682, %v1715
  %v1747 = vadd.f32 %v1683, %v1717
  %v1748 = vadd.f32 %v1684, %v1719
  %v1749 = vadd.f32 %v1685, %v1721
  %v1750 = vadd.f32 %v1686, %v1723
  %v1751 = vadd.f32 %v1687, %v1725
  %v1752 = vadd.f32 %v1688, %v1727
  %v1753 = vadd.f32 %v1689, %v1729
  %v1754 = vadd.f32 %v1690, %v1731
  %v1755 = vadd.f32 %v1691, %v1733
  %v1756 = vadd.f32 %v1692, %v1735
  %v1757 = vadd.f32 %v1693, %v1737
  %v1758 = vadd.f32 %v1694, %v1739
  %v1759 = vadd.f32 %v1695, %v1741
  %v1760 = vadd.f32 %v1696, %v1743
  %v1761 = vadd.f32 %v1697, %v1745
  %v1762 = vld [vmem:[#allocation2 + $0x102] sm:$0xff]
  %v1763 = vld [vmem:[#allocation2 + $0x10a] sm:$0xff]
  %v1764 = vld [vmem:[#allocation2 + $0x112] sm:$0xff]
  %v1765 = vld [vmem:[#allocation2 + $0x11a] sm:$0xff]
  %v1766 = vld [vmem:[#allocation2 + $0x122] sm:$0xff]
  %1767 = vrot.lane.b32.xlu0 %v1511, 24
  %v1768 = vpop.permute.xlu0 %1767
  %1769 = vrot.lane.b32.xlu0 %v1512, 24
  %v1770 = vpop.permute.xlu0 %1769
  %1771 = vrot.lane.b32.xlu0 %v1513, 24
  %v1772 = vpop.permute.xlu0 %1771
  %1773 = vrot.lane.b32.xlu0 %v1514, 24
  %v1774 = vpop.permute.xlu0 %1773
  %1775 = vrot.lane.b32.xlu0 %v1515, 24
  %v1776 = vpop.permute.xlu0 %1775
  %1777 = vrot.lane.b32.xlu0 %v1516, 24
  %v1778 = vpop.permute.xlu0 %1777
  %1779 = vrot.lane.b32.xlu0 %v1517, 24
  %v1780 = vpop.permute.xlu0 %1779
  %1781 = vrot.lane.b32.xlu0 %v1518, 24
  %v1782 = vpop.permute.xlu0 %1781
  %1783 = vrot.lane.b32.xlu0 %v1519, 24
  %v1784 = vpop.permute.xlu0 %1783
  %1785 = vrot.lane.b32.xlu0 %v1520, 24
  %v1786 = vpop.permute.xlu0 %1785
  %1787 = vrot.lane.b32.xlu0 %v1521, 24
  %v1788 = vpop.permute.xlu0 %1787
  %1789 = vrot.lane.b32.xlu0 %v1762, 24
  %v1790 = vpop.permute.xlu0 %1789
  %1791 = vrot.lane.b32.xlu0 %v1763, 24
  %v1792 = vpop.permute.xlu0 %1791
  %1793 = vrot.lane.b32.xlu0 %v1764, 24
  %v1794 = vpop.permute.xlu0 %1793
  %1795 = vrot.lane.b32.xlu0 %v1765, 24
  %v1796 = vpop.permute.xlu0 %1795
  %1797 = vrot.lane.b32.xlu0 %v1766, 24
  %v1798 = vpop.permute.xlu0 %1797
  %v1799 = vadd.f32 %v1746, %v1768
  %v1800 = vadd.f32 %v1747, %v1770
  %v1801 = vadd.f32 %v1748, %v1772
  %v1802 = vadd.f32 %v1749, %v1774
  %v1803 = vadd.f32 %v1750, %v1776
  %v1804 = vadd.f32 %v1751, %v1778
  %v1805 = vadd.f32 %v1752, %v1780
  %v1806 = vadd.f32 %v1753, %v1782
  %v1807 = vadd.f32 %v1754, %v1784
  %v1808 = vadd.f32 %v1755, %v1786
  %v1809 = vadd.f32 %v1756, %v1788
  %v1810 = vadd.f32 %v1757, %v1790
  %v1811 = vadd.f32 %v1758, %v1792
  %v1812 = vadd.f32 %v1759, %v1794
  %v1813 = vadd.f32 %v1760, %v1796
  %v1814 = vadd.f32 %v1761, %v1798
  %v1815 = vld [vmem:[#allocation2 + $0xab] sm:$0xff]
  %v1816 = vld [vmem:[#allocation2 + $0xb3] sm:$0xff]
  %v1817 = vld [vmem:[#allocation2 + $0xbb] sm:$0xff]
  %v1818 = vld [vmem:[#allocation2 + $0xc3] sm:$0xff]
  %v1819 = vld [vmem:[#allocation2 + $0xcb] sm:$0xff]
  %v1820 = vld [vmem:[#allocation2 + $0xd3] sm:$0xff]
  %v1821 = vld [vmem:[#allocation2 + $0xdb] sm:$0xff]
  %v1822 = vld [vmem:[#allocation2 + $0xe3] sm:$0xff]
  %v1823 = vld [vmem:[#allocation2 + $0xeb] sm:$0xff]
  %v1824 = vld [vmem:[#allocation2 + $0xf3] sm:$0xff]
  %v1825 = vld [vmem:[#allocation2 + $0xfb] sm:$0xff]
  %v1826 = vld [vmem:[#allocation2 + $0x103] sm:$0xff]
  %v1827 = vld [vmem:[#allocation2 + $0x10b] sm:$0xff]
  %v1828 = vld [vmem:[#allocation2 + $0x113] sm:$0xff]
  %v1829 = vld [vmem:[#allocation2 + $0x11b] sm:$0xff]
  %v1830 = vld [vmem:[#allocation2 + $0x123] sm:$0xff]
  %1831 = vrot.lane.b32.xlu0 %v1815, 28
  %v1832 = vpop.permute.xlu0 %1831
  %1833 = vrot.lane.b32.xlu0 %v1816, 28
  %v1834 = vpop.permute.xlu0 %1833
  %1835 = vrot.lane.b32.xlu0 %v1817, 28
  %v1836 = vpop.permute.xlu0 %1835
  %1837 = vrot.lane.b32.xlu0 %v1818, 28
  %v1838 = vpop.permute.xlu0 %1837
  %1839 = vrot.lane.b32.xlu0 %v1819, 28
  %v1840 = vpop.permute.xlu0 %1839
  %1841 = vrot.lane.b32.xlu0 %v1820, 28
  %v1842 = vpop.permute.xlu0 %1841
  %1843 = vrot.lane.b32.xlu0 %v1821, 28
  %v1844 = vpop.permute.xlu0 %1843
  %1845 = vrot.lane.b32.xlu0 %v1822, 28
  %v1846 = vpop.permute.xlu0 %1845
  %1847 = vrot.lane.b32.xlu0 %v1823, 28
  %v1848 = vpop.permute.xlu0 %1847
  %1849 = vrot.lane.b32.xlu0 %v1824, 28
  %v1850 = vpop.permute.xlu0 %1849
  %1851 = vrot.lane.b32.xlu0 %v1825, 28
  %v1852 = vpop.permute.xlu0 %1851
  %1853 = vrot.lane.b32.xlu0 %v1826, 28
  %v1854 = vpop.permute.xlu0 %1853
  %1855 = vrot.lane.b32.xlu0 %v1827, 28
  %v1856 = vpop.permute.xlu0 %1855
  %1857 = vrot.lane.b32.xlu0 %v1828, 28
  %v1858 = vpop.permute.xlu0 %1857
  %1859 = vrot.lane.b32.xlu0 %v1829, 28
  %v1860 = vpop.permute.xlu0 %1859
  %1861 = vrot.lane.b32.xlu0 %v1830, 28
  %v1862 = vpop.permute.xlu0 %1861
  %v1863 = vadd.f32 %v1799, %v1832
  %v1864 = vadd.f32 %v1800, %v1834
  %v1865 = vadd.f32 %v1801, %v1836
  %v1866 = vadd.f32 %v1802, %v1838
  %v1867 = vadd.f32 %v1803, %v1840
  %v1868 = vadd.f32 %v1804, %v1842
  %v1869 = vadd.f32 %v1805, %v1844
  %v1870 = vadd.f32 %v1806, %v1846
  %v1871 = vadd.f32 %v1807, %v1848
  %v1872 = vadd.f32 %v1808, %v1850
  %v1873 = vadd.f32 %v1809, %v1852
  %v1874 = vadd.f32 %v1810, %v1854
  %v1875 = vadd.f32 %v1811, %v1856
  %v1876 = vadd.f32 %v1812, %v1858
  %v1877 = vadd.f32 %v1813, %v1860
  %v1878 = vadd.f32 %v1814, %v1862
  %v1879 = vld [vmem:[#allocation2 + $0xac] sm:$0xff]
  %v1880 = vld [vmem:[#allocation2 + $0xb4] sm:$0xff]
  %v1881 = vld [vmem:[#allocation2 + $0xbc] sm:$0xff]
  %v1882 = vld [vmem:[#allocation2 + $0xc4] sm:$0xff]
  %v1883 = vld [vmem:[#allocation2 + $0xcc] sm:$0xff]
  %v1884 = vld [vmem:[#allocation2 + $0xd4] sm:$0xff]
  %v1885 = vld [vmem:[#allocation2 + $0xdc] sm:$0xff]
  %v1886 = vld [vmem:[#allocation2 + $0xe4] sm:$0xff]
  %v1887 = vld [vmem:[#allocation2 + $0xec] sm:$0xff]
  %v1888 = vld [vmem:[#allocation2 + $0xf4] sm:$0xff]
  %v1889 = vld [vmem:[#allocation2 + $0xfc] sm:$0xff]
  %v1890 = vld [vmem:[#allocation2 + $0x104] sm:$0xff]
  %v1891 = vld [vmem:[#allocation2 + $0x10c] sm:$0xff]
  %v1892 = vld [vmem:[#allocation2 + $0x114] sm:$0xff]
  %v1893 = vld [vmem:[#allocation2 + $0x11c] sm:$0xff]
  %v1894 = vld [vmem:[#allocation2 + $0x124] sm:$0xff]
  %1895 = vrot.lane.b32.xlu0 %v1879, 32
  %v1896 = vpop.permute.xlu0 %1895
  %1897 = vrot.lane.b32.xlu0 %v1880, 32
  %v1898 = vpop.permute.xlu0 %1897
  %1899 = vrot.lane.b32.xlu0 %v1881, 32
  %v1900 = vpop.permute.xlu0 %1899
  %1901 = vrot.lane.b32.xlu0 %v1882, 32
  %v1902 = vpop.permute.xlu0 %1901
  %1903 = vrot.lane.b32.xlu0 %v1883, 32
  %v1904 = vpop.permute.xlu0 %1903
  %1905 = vrot.lane.b32.xlu0 %v1884, 32
  %v1906 = vpop.permute.xlu0 %1905
  %1907 = vrot.lane.b32.xlu0 %v1885, 32
  %v1908 = vpop.permute.xlu0 %1907
  %1909 = vrot.lane.b32.xlu0 %v1886, 32
  %v1910 = vpop.permute.xlu0 %1909
  %1911 = vrot.lane.b32.xlu0 %v1887, 32
  %v1912 = vpop.permute.xlu0 %1911
  %1913 = vrot.lane.b32.xlu0 %v1888, 32
  %v1914 = vpop.permute.xlu0 %1913
  %1915 = vrot.lane.b32.xlu0 %v1889, 32
  %v1916 = vpop.permute.xlu0 %1915
  %1917 = vrot.lane.b32.xlu0 %v1890, 32
  %v1918 = vpop.permute.xlu0 %1917
  %1919 = vrot.lane.b32.xlu0 %v1891, 32
  %v1920 = vpop.permute.xlu0 %1919
  %1921 = vrot.lane.b32.xlu0 %v1892, 32
  %v1922 = vpop.permute.xlu0 %1921
  %1923 = vrot.lane.b32.xlu0 %v1893, 32
  %v1924 = vpop.permute.xlu0 %1923
  %1925 = vrot.lane.b32.xlu0 %v1894, 32
  %v1926 = vpop.permute.xlu0 %1925
  %v1927 = vadd.f32 %v1863, %v1896
  %v1928 = vadd.f32 %v1864, %v1898
  %v1929 = vadd.f32 %v1865, %v1900
  %v1930 = vadd.f32 %v1866, %v1902
  %v1931 = vadd.f32 %v1867, %v1904
  %v1932 = vadd.f32 %v1868, %v1906
  %v1933 = vadd.f32 %v1869, %v1908
  %v1934 = vadd.f32 %v1870, %v1910
  %v1935 = vadd.f32 %v1871, %v1912
  %v1936 = vadd.f32 %v1872, %v1914
  %v1937 = vadd.f32 %v1873, %v1916
  %v1938 = vadd.f32 %v1874, %v1918
  %v1939 = vadd.f32 %v1875, %v1920
  %v1940 = vadd.f32 %v1876, %v1922
  %v1941 = vadd.f32 %v1877, %v1924
  %v1942 = vadd.f32 %v1878, %v1926
  %1943 = vst [vmem:[#allocation3 + $0x80] sm:$0xff] %v1927
  %1944 = vst [vmem:[#allocation3 + $0x88] sm:$0xff] %v1928
  %1945 = vst [vmem:[#allocation3 + $0x90] sm:$0xff] %v1929
  %1946 = vst [vmem:[#allocation3 + $0x98] sm:$0xff] %v1930
  %1947 = vst [vmem:[#allocation3 + $0xa0] sm:$0xff] %v1931
  %1948 = vst [vmem:[#allocation3 + $0xa8] sm:$0xff] %v1932
  %1949 = vst [vmem:[#allocation3 + $0xb0] sm:$0xff] %v1933
  %1950 = vst [vmem:[#allocation3 + $0xb8] sm:$0xff] %v1934
  %1951 = vst [vmem:[#allocation3 + $0xc0] sm:$0xff] %v1935
  %1952 = vst [vmem:[#allocation3 + $0xc8] sm:$0xff] %v1936
  %1953 = vst [vmem:[#allocation3 + $0xd0] sm:$0xff] %v1937
  %1954 = vst [vmem:[#allocation3 + $0xd8] sm:$0xff] %v1938
  %1955 = vst [vmem:[#allocation3 + $0xe0] sm:$0xff] %v1939
  %1956 = vst [vmem:[#allocation3 + $0xe8] sm:$0xff] %v1940
  %1957 = vst [vmem:[#allocation3 + $0xf0] sm:$0xff] %v1941
  %1958 = vst [vmem:[#allocation3 + $0xf8] sm:$0xff] %v1942
  %v1959 = vld [vmem:[#allocation2 + $0x100] sm:$0xff]
  %v1960 = vld [vmem:[#allocation2 + $0x108] sm:$0xff]
  %v1961 = vld [vmem:[#allocation2 + $0x110] sm:$0xff]
  %v1962 = vld [vmem:[#allocation2 + $0x118] sm:$0xff]
  %v1963 = vld [vmem:[#allocation2 + $0x120] sm:$0xff]
  %v1964 = vld [vmem:[#allocation2 + $0x128] sm:$0xff]
  %v1965 = vld [vmem:[#allocation2 + $0x130] sm:$0xff]
  %v1966 = vld [vmem:[#allocation2 + $0x138] sm:$0xff]
  %v1967 = vld [vmem:[#allocation2 + $0x140] sm:$0xff]
  %v1968 = vld [vmem:[#allocation2 + $0x148] sm:$0xff]
  %v1969 = vld [vmem:[#allocation2 + $0x150] sm:$0xff]
  %v1970 = vld [vmem:[#allocation2 + $0x158] sm:$0xff]
  %v1971 = vld [vmem:[#allocation2 + $0x160] sm:$0xff]
  %v1972 = vld [vmem:[#allocation2 + $0x101] sm:$0xff]
  %v1973 = vld [vmem:[#allocation2 + $0x109] sm:$0xff]
  %v1974 = vld [vmem:[#allocation2 + $0x111] sm:$0xff]
  %v1975 = vld [vmem:[#allocation2 + $0x119] sm:$0xff]
  %v1976 = vld [vmem:[#allocation2 + $0x121] sm:$0xff]
  %v1977 = vld [vmem:[#allocation2 + $0x129] sm:$0xff]
  %v1978 = vld [vmem:[#allocation2 + $0x131] sm:$0xff]
  %v1979 = vld [vmem:[#allocation2 + $0x139] sm:$0xff]
  %v1980 = vld [vmem:[#allocation2 + $0x141] sm:$0xff]
  %v1981 = vld [vmem:[#allocation2 + $0x149] sm:$0xff]
  %v1982 = vld [vmem:[#allocation2 + $0x151] sm:$0xff]
  %v1983 = vld [vmem:[#allocation2 + $0x159] sm:$0xff]
  %v1984 = vld [vmem:[#allocation2 + $0x161] sm:$0xff]
  %1985 = vrot.lane.b32.xlu0 %v1972, 4
  %v1986 = vpop.permute.xlu0 %1985
  %1987 = vrot.lane.b32.xlu0 %v1973, 4
  %v1988 = vpop.permute.xlu0 %1987
  %1989 = vrot.lane.b32.xlu0 %v1974, 4
  %v1990 = vpop.permute.xlu0 %1989
  %1991 = vrot.lane.b32.xlu0 %v1975, 4
  %v1992 = vpop.permute.xlu0 %1991
  %1993 = vrot.lane.b32.xlu0 %v1976, 4
  %v1994 = vpop.permute.xlu0 %1993
  %1995 = vrot.lane.b32.xlu0 %v1977, 4
  %v1996 = vpop.permute.xlu0 %1995
  %1997 = vrot.lane.b32.xlu0 %v1978, 4
  %v1998 = vpop.permute.xlu0 %1997
  %1999 = vrot.lane.b32.xlu0 %v1979, 4
  %v2000 = vpop.permute.xlu0 %1999
  %2001 = vrot.lane.b32.xlu0 %v1980, 4
  %v2002 = vpop.permute.xlu0 %2001
  %2003 = vrot.lane.b32.xlu0 %v1981, 4
  %v2004 = vpop.permute.xlu0 %2003
  %2005 = vrot.lane.b32.xlu0 %v1982, 4
  %v2006 = vpop.permute.xlu0 %2005
  %2007 = vrot.lane.b32.xlu0 %v1983, 4
  %v2008 = vpop.permute.xlu0 %2007
  %2009 = vrot.lane.b32.xlu0 %v1984, 4
  %v2010 = vpop.permute.xlu0 %2009
  %v2011 = vadd.f32 %v1959, %v1986
  %v2012 = vadd.f32 %v1960, %v1988
  %v2013 = vadd.f32 %v1961, %v1990
  %v2014 = vadd.f32 %v1962, %v1992
  %v2015 = vadd.f32 %v1963, %v1994
  %v2016 = vadd.f32 %v1964, %v1996
  %v2017 = vadd.f32 %v1965, %v1998
  %v2018 = vadd.f32 %v1966, %v2000
  %v2019 = vadd.f32 %v1967, %v2002
  %v2020 = vadd.f32 %v1968, %v2004
  %v2021 = vadd.f32 %v1969, %v2006
  %v2022 = vadd.f32 %v1970, %v2008
  %v2023 = vadd.f32 %v1971, %v2010
  %v2024 = vld [vmem:[#allocation2 + $0x102] sm:$0xff]
  %v2025 = vld [vmem:[#allocation2 + $0x10a] sm:$0xff]
  %v2026 = vld [vmem:[#allocation2 + $0x112] sm:$0xff]
  %v2027 = vld [vmem:[#allocation2 + $0x11a] sm:$0xff]
  %v2028 = vld [vmem:[#allocation2 + $0x122] sm:$0xff]
  %v2029 = vld [vmem:[#allocation2 + $0x12a] sm:$0xff]
  %v2030 = vld [vmem:[#allocation2 + $0x132] sm:$0xff]
  %v2031 = vld [vmem:[#allocation2 + $0x13a] sm:$0xff]
  %v2032 = vld [vmem:[#allocation2 + $0x142] sm:$0xff]
  %v2033 = vld [vmem:[#allocation2 + $0x14a] sm:$0xff]
  %v2034 = vld [vmem:[#allocation2 + $0x152] sm:$0xff]
  %v2035 = vld [vmem:[#allocation2 + $0x15a] sm:$0xff]
  %v2036 = vld [vmem:[#allocation2 + $0x162] sm:$0xff]
  %2037 = vrot.lane.b32.xlu0 %v2024, 8
  %v2038 = vpop.permute.xlu0 %2037
  %2039 = vrot.lane.b32.xlu0 %v2025, 8
  %v2040 = vpop.permute.xlu0 %2039
  %2041 = vrot.lane.b32.xlu0 %v2026, 8
  %v2042 = vpop.permute.xlu0 %2041
  %2043 = vrot.lane.b32.xlu0 %v2027, 8
  %v2044 = vpop.permute.xlu0 %2043
  %2045 = vrot.lane.b32.xlu0 %v2028, 8
  %v2046 = vpop.permute.xlu0 %2045
  %2047 = vrot.lane.b32.xlu0 %v2029, 8
  %v2048 = vpop.permute.xlu0 %2047
  %2049 = vrot.lane.b32.xlu0 %v2030, 8
  %v2050 = vpop.permute.xlu0 %2049
  %2051 = vrot.lane.b32.xlu0 %v2031, 8
  %v2052 = vpop.permute.xlu0 %2051
  %2053 = vrot.lane.b32.xlu0 %v2032, 8
  %v2054 = vpop.permute.xlu0 %2053
  %2055 = vrot.lane.b32.xlu0 %v2033, 8
  %v2056 = vpop.permute.xlu0 %2055
  %2057 = vrot.lane.b32.xlu0 %v2034, 8
  %v2058 = vpop.permute.xlu0 %2057
  %2059 = vrot.lane.b32.xlu0 %v2035, 8
  %v2060 = vpop.permute.xlu0 %2059
  %2061 = vrot.lane.b32.xlu0 %v2036, 8
  %v2062 = vpop.permute.xlu0 %2061
  %v2063 = vadd.f32 %v2011, %v2038
  %v2064 = vadd.f32 %v2012, %v2040
  %v2065 = vadd.f32 %v2013, %v2042
  %v2066 = vadd.f32 %v2014, %v2044
  %v2067 = vadd.f32 %v2015, %v2046
  %v2068 = vadd.f32 %v2016, %v2048
  %v2069 = vadd.f32 %v2017, %v2050
  %v2070 = vadd.f32 %v2018, %v2052
  %v2071 = vadd.f32 %v2019, %v2054
  %v2072 = vadd.f32 %v2020, %v2056
  %v2073 = vadd.f32 %v2021, %v2058
  %v2074 = vadd.f32 %v2022, %v2060
  %v2075 = vadd.f32 %v2023, %v2062
  %v2076 = vld [vmem:[#allocation2 + $0x115] sm:$0xff]
  %v2077 = vld [vmem:[#allocation2 + $0x11d] sm:$0xff]
  %v2078 = vld [vmem:[#allocation2 + $0x125] sm:$0xff]
  %v2079 = vld [vmem:[#allocation2 + $0x12d] sm:$0xff]
  %v2080 = vld [vmem:[#allocation2 + $0x135] sm:$0xff]
  %v2081 = vld [vmem:[#allocation2 + $0x13d] sm:$0xff]
  %v2082 = vld [vmem:[#allocation2 + $0x145] sm:$0xff]
  %v2083 = vld [vmem:[#allocation2 + $0x14d] sm:$0xff]
  %v2084 = vld [vmem:[#allocation2 + $0x155] sm:$0xff]
  %v2085 = vld [vmem:[#allocation2 + $0x15d] sm:$0xff]
  %v2086 = vld [vmem:[#allocation2 + $0x165] sm:$0xff]
  %v2087 = vld [vmem:[#allocation2 + $0x16d] sm:$0xff]
  %v2088 = vld [vmem:[#allocation2 + $0x175] sm:$0xff]
  %2089 = vrot.lane.b32.xlu0 %v2076, 12
  %v2090 = vpop.permute.xlu0 %2089
  %2091 = vrot.lane.b32.xlu0 %v2077, 12
  %v2092 = vpop.permute.xlu0 %2091
  %2093 = vrot.lane.b32.xlu0 %v2078, 12
  %v2094 = vpop.permute.xlu0 %2093
  %2095 = vrot.lane.b32.xlu0 %v2079, 12
  %v2096 = vpop.permute.xlu0 %2095
  %2097 = vrot.lane.b32.xlu0 %v2080, 12
  %v2098 = vpop.permute.xlu0 %2097
  %2099 = vrot.lane.b32.xlu0 %v2081, 12
  %v2100 = vpop.permute.xlu0 %2099
  %2101 = vrot.lane.b32.xlu0 %v2082, 12
  %v2102 = vpop.permute.xlu0 %2101
  %2103 = vrot.lane.b32.xlu0 %v2083, 12
  %v2104 = vpop.permute.xlu0 %2103
  %2105 = vrot.lane.b32.xlu0 %v2084, 12
  %v2106 = vpop.permute.xlu0 %2105
  %2107 = vrot.lane.b32.xlu0 %v2085, 12
  %v2108 = vpop.permute.xlu0 %2107
  %2109 = vrot.lane.b32.xlu0 %v2086, 12
  %v2110 = vpop.permute.xlu0 %2109
  %2111 = vrot.lane.b32.xlu0 %v2087, 12
  %v2112 = vpop.permute.xlu0 %2111
  %2113 = vrot.lane.b32.xlu0 %v2088, 12
  %v2114 = vpop.permute.xlu0 %2113
  %v2115 = vadd.f32 %v2063, %v2090
  %v2116 = vadd.f32 %v2064, %v2092
  %v2117 = vadd.f32 %v2065, %v2094
  %v2118 = vadd.f32 %v2066, %v2096
  %v2119 = vadd.f32 %v2067, %v2098
  %v2120 = vadd.f32 %v2068, %v2100
  %v2121 = vadd.f32 %v2069, %v2102
  %v2122 = vadd.f32 %v2070, %v2104
  %v2123 = vadd.f32 %v2071, %v2106
  %v2124 = vadd.f32 %v2072, %v2108
  %v2125 = vadd.f32 %v2073, %v2110
  %v2126 = vadd.f32 %v2074, %v2112
  %v2127 = vadd.f32 %v2075, %v2114
  %v2128 = vld [vmem:[#allocation2 + $0x116] sm:$0xff]
  %v2129 = vld [vmem:[#allocation2 + $0x11e] sm:$0xff]
  %v2130 = vld [vmem:[#allocation2 + $0x126] sm:$0xff]
  %v2131 = vld [vmem:[#allocation2 + $0x12e] sm:$0xff]
  %v2132 = vld [vmem:[#allocation2 + $0x136] sm:$0xff]
  %v2133 = vld [vmem:[#allocation2 + $0x13e] sm:$0xff]
  %v2134 = vld [vmem:[#allocation2 + $0x146] sm:$0xff]
  %v2135 = vld [vmem:[#allocation2 + $0x14e] sm:$0xff]
  %v2136 = vld [vmem:[#allocation2 + $0x156] sm:$0xff]
  %v2137 = vld [vmem:[#allocation2 + $0x15e] sm:$0xff]
  %v2138 = vld [vmem:[#allocation2 + $0x166] sm:$0xff]
  %v2139 = vld [vmem:[#allocation2 + $0x16e] sm:$0xff]
  %v2140 = vld [vmem:[#allocation2 + $0x176] sm:$0xff]
  %2141 = vrot.lane.b32.xlu0 %v2128, 16
  %v2142 = vpop.permute.xlu0 %2141
  %2143 = vrot.lane.b32.xlu0 %v2129, 16
  %v2144 = vpop.permute.xlu0 %2143
  %2145 = vrot.lane.b32.xlu0 %v2130, 16
  %v2146 = vpop.permute.xlu0 %2145
  %2147 = vrot.lane.b32.xlu0 %v2131, 16
  %v2148 = vpop.permute.xlu0 %2147
  %2149 = vrot.lane.b32.xlu0 %v2132, 16
  %v2150 = vpop.permute.xlu0 %2149
  %2151 = vrot.lane.b32.xlu0 %v2133, 16
  %v2152 = vpop.permute.xlu0 %2151
  %2153 = vrot.lane.b32.xlu0 %v2134, 16
  %v2154 = vpop.permute.xlu0 %2153
  %2155 = vrot.lane.b32.xlu0 %v2135, 16
  %v2156 = vpop.permute.xlu0 %2155
  %2157 = vrot.lane.b32.xlu0 %v2136, 16
  %v2158 = vpop.permute.xlu0 %2157
  %2159 = vrot.lane.b32.xlu0 %v2137, 16
  %v2160 = vpop.permute.xlu0 %2159
  %2161 = vrot.lane.b32.xlu0 %v2138, 16
  %v2162 = vpop.permute.xlu0 %2161
  %2163 = vrot.lane.b32.xlu0 %v2139, 16
  %v2164 = vpop.permute.xlu0 %2163
  %2165 = vrot.lane.b32.xlu0 %v2140, 16
  %v2166 = vpop.permute.xlu0 %2165
  %v2167 = vadd.f32 %v2115, %v2142
  %v2168 = vadd.f32 %v2116, %v2144
  %v2169 = vadd.f32 %v2117, %v2146
  %v2170 = vadd.f32 %v2118, %v2148
  %v2171 = vadd.f32 %v2119, %v2150
  %v2172 = vadd.f32 %v2120, %v2152
  %v2173 = vadd.f32 %v2121, %v2154
  %v2174 = vadd.f32 %v2122, %v2156
  %v2175 = vadd.f32 %v2123, %v2158
  %v2176 = vadd.f32 %v2124, %v2160
  %v2177 = vadd.f32 %v2125, %v2162
  %v2178 = vadd.f32 %v2126, %v2164
  %v2179 = vadd.f32 %v2127, %v2166
  %v2180 = vld [vmem:[#allocation2 + $0x117] sm:$0xff]
  %v2181 = vld [vmem:[#allocation2 + $0x11f] sm:$0xff]
  %v2182 = vld [vmem:[#allocation2 + $0x127] sm:$0xff]
  %v2183 = vld [vmem:[#allocation2 + $0x12f] sm:$0xff]
  %v2184 = vld [vmem:[#allocation2 + $0x137] sm:$0xff]
  %v2185 = vld [vmem:[#allocation2 + $0x13f] sm:$0xff]
  %v2186 = vld [vmem:[#allocation2 + $0x147] sm:$0xff]
  %v2187 = vld [vmem:[#allocation2 + $0x14f] sm:$0xff]
  %v2188 = vld [vmem:[#allocation2 + $0x157] sm:$0xff]
  %v2189 = vld [vmem:[#allocation2 + $0x15f] sm:$0xff]
  %v2190 = vld [vmem:[#allocation2 + $0x167] sm:$0xff]
  %v2191 = vld [vmem:[#allocation2 + $0x16f] sm:$0xff]
  %v2192 = vld [vmem:[#allocation2 + $0x177] sm:$0xff]
  %2193 = vrot.lane.b32.xlu0 %v2180, 20
  %v2194 = vpop.permute.xlu0 %2193
  %2195 = vrot.lane.b32.xlu0 %v2181, 20
  %v2196 = vpop.permute.xlu0 %2195
  %2197 = vrot.lane.b32.xlu0 %v2182, 20
  %v2198 = vpop.permute.xlu0 %2197
  %2199 = vrot.lane.b32.xlu0 %v2183, 20
  %v2200 = vpop.permute.xlu0 %2199
  %2201 = vrot.lane.b32.xlu0 %v2184, 20
  %v2202 = vpop.permute.xlu0 %2201
  %2203 = vrot.lane.b32.xlu0 %v2185, 20
  %v2204 = vpop.permute.xlu0 %2203
  %2205 = vrot.lane.b32.xlu0 %v2186, 20
  %v2206 = vpop.permute.xlu0 %2205
  %2207 = vrot.lane.b32.xlu0 %v2187, 20
  %v2208 = vpop.permute.xlu0 %2207
  %2209 = vrot.lane.b32.xlu0 %v2188, 20
  %v2210 = vpop.permute.xlu0 %2209
  %2211 = vrot.lane.b32.xlu0 %v2189, 20
  %v2212 = vpop.permute.xlu0 %2211
  %2213 = vrot.lane.b32.xlu0 %v2190, 20
  %v2214 = vpop.permute.xlu0 %2213
  %2215 = vrot.lane.b32.xlu0 %v2191, 20
  %v2216 = vpop.permute.xlu0 %2215
  %2217 = vrot.lane.b32.xlu0 %v2192, 20
  %v2218 = vpop.permute.xlu0 %2217
  %v2219 = vadd.f32 %v2167, %v2194
  %v2220 = vadd.f32 %v2168, %v2196
  %v2221 = vadd.f32 %v2169, %v2198
  %v2222 = vadd.f32 %v2170, %v2200
  %v2223 = vadd.f32 %v2171, %v2202
  %v2224 = vadd.f32 %v2172, %v2204
  %v2225 = vadd.f32 %v2173, %v2206
  %v2226 = vadd.f32 %v2174, %v2208
  %v2227 = vadd.f32 %v2175, %v2210
  %v2228 = vadd.f32 %v2176, %v2212
  %v2229 = vadd.f32 %v2177, %v2214
  %v2230 = vadd.f32 %v2178, %v2216
  %v2231 = vadd.f32 %v2179, %v2218
  %v2232 = vld [vmem:[#allocation2 + $0x16a] sm:$0xff]
  %v2233 = vld [vmem:[#allocation2 + $0x172] sm:$0xff]
  %v2234 = vld [vmem:[#allocation2 + $0x17a] sm:$0xff]
  %v2235 = vld [vmem:[#allocation2 + $0x182] sm:$0xff]
  %v2236 = vld [vmem:[#allocation2 + $0x18a] sm:$0xff]
  %2237 = vrot.lane.b32.xlu0 %v2029, 24
  %v2238 = vpop.permute.xlu0 %2237
  %2239 = vrot.lane.b32.xlu0 %v2030, 24
  %v2240 = vpop.permute.xlu0 %2239
  %2241 = vrot.lane.b32.xlu0 %v2031, 24
  %v2242 = vpop.permute.xlu0 %2241
  %2243 = vrot.lane.b32.xlu0 %v2032, 24
  %v2244 = vpop.permute.xlu0 %2243
  %2245 = vrot.lane.b32.xlu0 %v2033, 24
  %v2246 = vpop.permute.xlu0 %2245
  %2247 = vrot.lane.b32.xlu0 %v2034, 24
  %v2248 = vpop.permute.xlu0 %2247
  %2249 = vrot.lane.b32.xlu0 %v2035, 24
  %v2250 = vpop.permute.xlu0 %2249
  %2251 = vrot.lane.b32.xlu0 %v2036, 24
  %v2252 = vpop.permute.xlu0 %2251
  %2253 = vrot.lane.b32.xlu0 %v2232, 24
  %v2254 = vpop.permute.xlu0 %2253
  %2255 = vrot.lane.b32.xlu0 %v2233, 24
  %v2256 = vpop.permute.xlu0 %2255
  %2257 = vrot.lane.b32.xlu0 %v2234, 24
  %v2258 = vpop.permute.xlu0 %2257
  %2259 = vrot.lane.b32.xlu0 %v2235, 24
  %v2260 = vpop.permute.xlu0 %2259
  %2261 = vrot.lane.b32.xlu0 %v2236, 24
  %v2262 = vpop.permute.xlu0 %2261
  %v2263 = vadd.f32 %v2219, %v2238
  %v2264 = vadd.f32 %v2220, %v2240
  %v2265 = vadd.f32 %v2221, %v2242
  %v2266 = vadd.f32 %v2222, %v2244
  %v2267 = vadd.f32 %v2223, %v2246
  %v2268 = vadd.f32 %v2224, %v2248
  %v2269 = vadd.f32 %v2225, %v2250
  %v2270 = vadd.f32 %v2226, %v2252
  %v2271 = vadd.f32 %v2227, %v2254
  %v2272 = vadd.f32 %v2228, %v2256
  %v2273 = vadd.f32 %v2229, %v2258
  %v2274 = vadd.f32 %v2230, %v2260
  %v2275 = vadd.f32 %v2231, %v2262
  %v2276 = vld [vmem:[#allocation2 + $0x12b] sm:$0xff]
  %v2277 = vld [vmem:[#allocation2 + $0x133] sm:$0xff]
  %v2278 = vld [vmem:[#allocation2 + $0x13b] sm:$0xff]
  %v2279 = vld [vmem:[#allocation2 + $0x143] sm:$0xff]
  %v2280 = vld [vmem:[#allocation2 + $0x14b] sm:$0xff]
  %v2281 = vld [vmem:[#allocation2 + $0x153] sm:$0xff]
  %v2282 = vld [vmem:[#allocation2 + $0x15b] sm:$0xff]
  %v2283 = vld [vmem:[#allocation2 + $0x163] sm:$0xff]
  %v2284 = vld [vmem:[#allocation2 + $0x16b] sm:$0xff]
  %v2285 = vld [vmem:[#allocation2 + $0x173] sm:$0xff]
  %v2286 = vld [vmem:[#allocation2 + $0x17b] sm:$0xff]
  %v2287 = vld [vmem:[#allocation2 + $0x183] sm:$0xff]
  %v2288 = vld [vmem:[#allocation2 + $0x18b] sm:$0xff]
  %2289 = vrot.lane.b32.xlu0 %v2276, 28
  %v2290 = vpop.permute.xlu0 %2289
  %2291 = vrot.lane.b32.xlu0 %v2277, 28
  %v2292 = vpop.permute.xlu0 %2291
  %2293 = vrot.lane.b32.xlu0 %v2278, 28
  %v2294 = vpop.permute.xlu0 %2293
  %2295 = vrot.lane.b32.xlu0 %v2279, 28
  %v2296 = vpop.permute.xlu0 %2295
  %2297 = vrot.lane.b32.xlu0 %v2280, 28
  %v2298 = vpop.permute.xlu0 %2297
  %2299 = vrot.lane.b32.xlu0 %v2281, 28
  %v2300 = vpop.permute.xlu0 %2299
  %2301 = vrot.lane.b32.xlu0 %v2282, 28
  %v2302 = vpop.permute.xlu0 %2301
  %2303 = vrot.lane.b32.xlu0 %v2283, 28
  %v2304 = vpop.permute.xlu0 %2303
  %2305 = vrot.lane.b32.xlu0 %v2284, 28
  %v2306 = vpop.permute.xlu0 %2305
  %2307 = vrot.lane.b32.xlu0 %v2285, 28
  %v2308 = vpop.permute.xlu0 %2307
  %2309 = vrot.lane.b32.xlu0 %v2286, 28
  %v2310 = vpop.permute.xlu0 %2309
  %2311 = vrot.lane.b32.xlu0 %v2287, 28
  %v2312 = vpop.permute.xlu0 %2311
  %2313 = vrot.lane.b32.xlu0 %v2288, 28
  %v2314 = vpop.permute.xlu0 %2313
  %v2315 = vadd.f32 %v2263, %v2290
  %v2316 = vadd.f32 %v2264, %v2292
  %v2317 = vadd.f32 %v2265, %v2294
  %v2318 = vadd.f32 %v2266, %v2296
  %v2319 = vadd.f32 %v2267, %v2298
  %v2320 = vadd.f32 %v2268, %v2300
  %v2321 = vadd.f32 %v2269, %v2302
  %v2322 = vadd.f32 %v2270, %v2304
  %v2323 = vadd.f32 %v2271, %v2306
  %v2324 = vadd.f32 %v2272, %v2308
  %v2325 = vadd.f32 %v2273, %v2310
  %v2326 = vadd.f32 %v2274, %v2312
  %v2327 = vadd.f32 %v2275, %v2314
  %v2328 = vld [vmem:[#allocation2 + $0x12c] sm:$0xff]
  %v2329 = vld [vmem:[#allocation2 + $0x134] sm:$0xff]
  %v2330 = vld [vmem:[#allocation2 + $0x13c] sm:$0xff]
  %v2331 = vld [vmem:[#allocation2 + $0x144] sm:$0xff]
  %v2332 = vld [vmem:[#allocation2 + $0x14c] sm:$0xff]
  %v2333 = vld [vmem:[#allocation2 + $0x154] sm:$0xff]
  %v2334 = vld [vmem:[#allocation2 + $0x15c] sm:$0xff]
  %v2335 = vld [vmem:[#allocation2 + $0x164] sm:$0xff]
  %v2336 = vld [vmem:[#allocation2 + $0x16c] sm:$0xff]
  %v2337 = vld [vmem:[#allocation2 + $0x174] sm:$0xff]
  %v2338 = vld [vmem:[#allocation2 + $0x17c] sm:$0xff]
  %v2339 = vld [vmem:[#allocation2 + $0x184] sm:$0xff]
  %v2340 = vld [vmem:[#allocation2 + $0x18c] sm:$0xff]
  %2341 = vrot.lane.b32.xlu0 %v2328, 32
  %v2342 = vpop.permute.xlu0 %2341
  %2343 = vrot.lane.b32.xlu0 %v2329, 32
  %v2344 = vpop.permute.xlu0 %2343
  %2345 = vrot.lane.b32.xlu0 %v2330, 32
  %v2346 = vpop.permute.xlu0 %2345
  %2347 = vrot.lane.b32.xlu0 %v2331, 32
  %v2348 = vpop.permute.xlu0 %2347
  %2349 = vrot.lane.b32.xlu0 %v2332, 32
  %v2350 = vpop.permute.xlu0 %2349
  %2351 = vrot.lane.b32.xlu0 %v2333, 32
  %v2352 = vpop.permute.xlu0 %2351
  %2353 = vrot.lane.b32.xlu0 %v2334, 32
  %v2354 = vpop.permute.xlu0 %2353
  %2355 = vrot.lane.b32.xlu0 %v2335, 32
  %v2356 = vpop.permute.xlu0 %2355
  %2357 = vrot.lane.b32.xlu0 %v2336, 32
  %v2358 = vpop.permute.xlu0 %2357
  %2359 = vrot.lane.b32.xlu0 %v2337, 32
  %v2360 = vpop.permute.xlu0 %2359
  %2361 = vrot.lane.b32.xlu0 %v2338, 32
  %v2362 = vpop.permute.xlu0 %2361
  %2363 = vrot.lane.b32.xlu0 %v2339, 32
  %v2364 = vpop.permute.xlu0 %2363
  %2365 = vrot.lane.b32.xlu0 %v2340, 32
  %v2366 = vpop.permute.xlu0 %2365
  %v2367 = vadd.f32 %v2315, %v2342
  %v2368 = vadd.f32 %v2316, %v2344
  %v2369 = vadd.f32 %v2317, %v2346
  %v2370 = vadd.f32 %v2318, %v2348
  %v2371 = vadd.f32 %v2319, %v2350
  %v2372 = vadd.f32 %v2320, %v2352
  %v2373 = vadd.f32 %v2321, %v2354
  %v2374 = vadd.f32 %v2322, %v2356
  %v2375 = vadd.f32 %v2323, %v2358
  %v2376 = vadd.f32 %v2324, %v2360
  %v2377 = vadd.f32 %v2325, %v2362
  %v2378 = vadd.f32 %v2326, %v2364
  %v2379 = vadd.f32 %v2327, %v2366
  %2380 = vst [vmem:[#allocation3 + $0x100] sm:$0xff] %v2367
  %2381 = vst [vmem:[#allocation3 + $0x108] sm:$0xff] %v2368
  %2382 = vst [vmem:[#allocation3 + $0x110] sm:$0xff] %v2369
  %2383 = vst [vmem:[#allocation3 + $0x118] sm:$0xff] %v2370
  %2384 = vst [vmem:[#allocation3 + $0x120] sm:$0xff] %v2371
  %2385 = vst [vmem:[#allocation3 + $0x128] sm:$0xff] %v2372
  %2386 = vst [vmem:[#allocation3 + $0x130] sm:$0xff] %v2373
  %2387 = vst [vmem:[#allocation3 + $0x138] sm:$0xff] %v2374
  %2388 = vst [vmem:[#allocation3 + $0x140] sm:$0xff] %v2375
  %2389 = vst [vmem:[#allocation3 + $0x148] sm:$0xff] %v2376
  %2390 = vst [vmem:[#allocation3 + $0x150] sm:$0xff] %v2377
  %2391 = vst [vmem:[#allocation3 + $0x158] sm:$0xff] %v2378
  %2392 = vst [vmem:[#allocation3 + $0x160] sm:$0xff] %v2379
  %v2393 = vld [vmem:[#allocation6] sm:$0xff]
  %v2394 = vld [vmem:[#allocation6 + $0x8] sm:$0xff]
  %v2395 = vld [vmem:[#allocation6 + $0x10] sm:$0xff]
  %v2396 = vld [vmem:[#allocation6 + $0x18] sm:$0xff]
  %v2397 = vld [vmem:[#allocation6 + $0x20] sm:$0xff]
  %v2398 = vld [vmem:[#allocation6 + $0x28] sm:$0xff]
  %v2399 = vld [vmem:[#allocation6 + $0x30] sm:$0xff]
  %v2400 = vld [vmem:[#allocation6 + $0x38] sm:$0xff]
  %v2401 = vld [vmem:[#allocation6 + $0x40] sm:$0xff]
  %v2402 = vld [vmem:[#allocation6 + $0x48] sm:$0xff]
  %v2403 = vld [vmem:[#allocation6 + $0x50] sm:$0xff]
  %v2404 = vld [vmem:[#allocation6 + $0x58] sm:$0xff]
  %v2405 = vld [vmem:[#allocation6 + $0x60] sm:$0xff]
  %v2406 = vld [vmem:[#allocation6 + $0x68] sm:$0xff]
  %v2407 = vld [vmem:[#allocation6 + $0x70] sm:$0xff]
  %v2408 = vld [vmem:[#allocation6 + $0x78] sm:$0xff]
  %v2409 = vld [vmem:[#allocation6 + $0x80] sm:$0xff]
  %v2410 = vld [vmem:[#allocation6 + $0x88] sm:$0xff]
  %v2411 = vld [vmem:[#allocation6 + $0x90] sm:$0xff]
  %v2412 = vld [vmem:[#allocation6 + $0x98] sm:$0xff]
  %v2413 = vld [vmem:[#allocation6 + $0xa0] sm:$0xff]
  %v2414 = vld [vmem:[#allocation6 + $0xa8] sm:$0xff]
  %v2415 = vld [vmem:[#allocation6 + $0xb0] sm:$0xff]
  %v2416 = vld [vmem:[#allocation6 + $0xb8] sm:$0xff]
  %v2417 = vld [vmem:[#allocation6 + $0xc0] sm:$0xff]
  %v2418 = vld [vmem:[#allocation6 + $0xc8] sm:$0xff]
  %v2419 = vld [vmem:[#allocation6 + $0xd0] sm:$0xff]
  %v2420 = vld [vmem:[#allocation6 + $0xd8] sm:$0xff]
  %v2421 = vld [vmem:[#allocation6 + $0xe0] sm:$0xff]
  %v2422 = vld [vmem:[#allocation6 + $0xe8] sm:$0xff]
  %v2423 = vld [vmem:[#allocation6 + $0xf0] sm:$0xff]
  %v2424 = vld [vmem:[#allocation6 + $0xf8] sm:$0xff]
  %v2425 = vld [vmem:[#allocation6 + $0x100] sm:$0xff]
  %v2426 = vld [vmem:[#allocation3] sm:$0xff]
  %v2427 = vld [vmem:[#allocation3 + $0x8] sm:$0xff]
  %v2428 = vld [vmem:[#allocation3 + $0x10] sm:$0xff]
  %v2429 = vld [vmem:[#allocation3 + $0x18] sm:$0xff]
  %v2430 = vld [vmem:[#allocation3 + $0x20] sm:$0xff]
  %v2431 = vld [vmem:[#allocation3 + $0x28] sm:$0xff]
  %v2432 = vld [vmem:[#allocation3 + $0x30] sm:$0xff]
  %v2433 = vld [vmem:[#allocation3 + $0x38] sm:$0xff]
  %v2434 = vld [vmem:[#allocation3 + $0x40] sm:$0xff]
  %v2435 = vld [vmem:[#allocation3 + $0x48] sm:$0xff]
  %v2436 = vld [vmem:[#allocation3 + $0x50] sm:$0xff]
  %v2437 = vld [vmem:[#allocation3 + $0x58] sm:$0xff]
  %v2438 = vld [vmem:[#allocation3 + $0x60] sm:$0xff]
  %v2439 = vld [vmem:[#allocation3 + $0x68] sm:$0xff]
  %v2440 = vld [vmem:[#allocation3 + $0x70] sm:$0xff]
  %v2441 = vld [vmem:[#allocation3 + $0x78] sm:$0xff]
  %v2442 = vld [vmem:[#allocation3 + $0x80] sm:$0xff]
  %v2443 = vld [vmem:[#allocation3 + $0x88] sm:$0xff]
  %v2444 = vld [vmem:[#allocation3 + $0x90] sm:$0xff]
  %v2445 = vld [vmem:[#allocation3 + $0x98] sm:$0xff]
  %v2446 = vld [vmem:[#allocation3 + $0xa0] sm:$0xff]
  %v2447 = vld [vmem:[#allocation3 + $0xa8] sm:$0xff]
  %v2448 = vld [vmem:[#allocation3 + $0xb0] sm:$0xff]
  %v2449 = vld [vmem:[#allocation3 + $0xb8] sm:$0xff]
  %v2450 = vld [vmem:[#allocation3 + $0xc0] sm:$0xff]
  %v2451 = vld [vmem:[#allocation3 + $0xc8] sm:$0xff]
  %v2452 = vld [vmem:[#allocation3 + $0xd0] sm:$0xff]
  %v2453 = vld [vmem:[#allocation3 + $0xd8] sm:$0xff]
  %v2454 = vld [vmem:[#allocation3 + $0xe0] sm:$0xff]
  %v2455 = vld [vmem:[#allocation3 + $0xe8] sm:$0xff]
  %v2456 = vld [vmem:[#allocation3 + $0xf0] sm:$0xff]
  %v2457 = vld [vmem:[#allocation3 + $0xf8] sm:$0xff]
  %v2458 = vld [vmem:[#allocation3 + $0x100] sm:$0xff]
  %v2459 = vld [vmem:[#allocation3 + $0x108] sm:$0xff]
  %v2460 = vld [vmem:[#allocation3 + $0x110] sm:$0xff]
  %v2461 = vld [vmem:[#allocation3 + $0x118] sm:$0xff]
  %v2462 = vld [vmem:[#allocation3 + $0x120] sm:$0xff]
  %v2463 = vld [vmem:[#allocation3 + $0x128] sm:$0xff]
  %v2464 = vld [vmem:[#allocation3 + $0x130] sm:$0xff]
  %v2465 = vld [vmem:[#allocation3 + $0x138] sm:$0xff]
  %v2466 = vld [vmem:[#allocation3 + $0x140] sm:$0xff]
  %v2467 = vld [vmem:[#allocation3 + $0x148] sm:$0xff]
  %v2468 = vld [vmem:[#allocation3 + $0x150] sm:$0xff]
  %v2469 = vld [vmem:[#allocation3 + $0x158] sm:$0xff]
  %v2470 = vld [vmem:[#allocation3 + $0x160] sm:$0xff]
  %v2472 = vsel %vm314, %v2395, 0
  %v2475 = vsel %vm314, %v2398, 0
  %v2478 = vsel %vm314, %v2401, 0
  %v2481 = vsel %vm314, %v2404, 0
  %v2484 = vsel %vm314, %v2407, 0
  %v2487 = vsel %vm314, %v2410, 0
  %v2490 = vsel %vm314, %v2413, 0
  %v2493 = vsel %vm314, %v2416, 0
  %v2496 = vsel %vm314, %v2419, 0
  %v2499 = vsel %vm314, %v2422, 0
  %v2502 = vsel %vm314, %v2425, 0
  %2504 = vmatprep.subr.mxu0 0.0
  %2505 = vmatpush1.msra.mxu0 %v2426
  %2506 = vmatprep.subr.mxu0 0.0
  %2507 = vmatpush1.msra.mxu0 %v2427
  %2508 = vmatprep.subr.mxu0 0.0
  %2509 = vmatpush1.msra.mxu0 %v2428
  %2510 = vmatprep.subr.mxu0 0.0
  %2511 = vmatpush1.msra.mxu0 %v2429
  %2512 = vmatprep.subr.mxu0 0.0
  %2513 = vmatpush1.msra.mxu0 %v2430
  %2514 = vmatprep.subr.mxu0 0.0
  %2515 = vmatpush1.msra.mxu0 %v2431
  %2516 = vmatprep.subr.mxu0 0.0
  %2517 = vmatpush1.msra.mxu0 %v2432
  %2518 = vmatprep.subr.mxu0 0.0
  %2519 = vmatpush1.msra.mxu0 %v2433
  %2520 = vmatprep.subr.mxu0 0.0
  %2521 = vmatpush1.msra.mxu0 %v2434
  %2522 = vmatprep.subr.mxu0 0.0
  %2523 = vmatpush1.msra.mxu0 %v2435
  %2524 = vmatprep.subr.mxu0 0.0
  %2525 = vmatpush1.msra.mxu0 %v2436
  %2526 = vmatprep.subr.mxu0 0.0
  %2527 = vmatpush1.msra.mxu0 %v2437
  %2528 = vmatprep.subr.mxu0 0.0
  %2529 = vmatpush1.msra.mxu0 %v2438
  %2530 = vmatprep.subr.mxu0 0.0
  %2531 = vmatpush1.msra.mxu0 %v2439
  %2532 = vmatprep.subr.mxu0 0.0
  %2533 = vmatpush1.msra.mxu0 %v2440
  %2534 = vmatprep.subr.mxu0 0.0
  %2535 = vmatpush1.msra.mxu0 %v2441
  %2536 = vmatprep.subr.mxu0 0.0
  %2537 = vmatpush1.msra.mxu0 %v2442
  %2538 = vmatprep.subr.mxu0 0.0
  %2539 = vmatpush1.msra.mxu0 %v2443
  %2540 = vmatprep.subr.mxu0 0.0
  %2541 = vmatpush1.msra.mxu0 %v2444
  %2542 = vmatprep.subr.mxu0 0.0
  %2543 = vmatpush1.msra.mxu0 %v2445
  %2544 = vmatprep.subr.mxu0 0.0
  %2545 = vmatpush1.msra.mxu0 %v2446
  %2546 = vmatprep.subr.mxu0 0.0
  %2547 = vmatpush1.msra.mxu0 %v2447
  %2548 = vmatprep.subr.mxu0 0.0
  %2549 = vmatpush1.msra.mxu0 %v2448
  %2550 = vmatprep.subr.mxu0 0.0
  %2551 = vmatpush1.msra.mxu0 %v2449
  %2552 = vmatprep.subr.mxu0 0.0
  %2553 = vmatpush1.msra.mxu0 %v2450
  %2554 = vmatprep.subr.mxu0 0.0
  %2555 = vmatpush1.msra.mxu0 %v2451
  %2556 = vmatprep.subr.mxu0 0.0
  %2557 = vmatpush1.msra.mxu0 %v2452
  %2558 = vmatprep.subr.mxu0 0.0
  %2559 = vmatpush1.msra.mxu0 %v2453
  %2560 = vmatprep.subr.mxu0 0.0
  %2561 = vmatpush1.msra.mxu0 %v2454
  %2562 = vmatprep.subr.mxu0 0.0
  %2563 = vmatpush1.msra.mxu0 %v2455
  %2564 = vmatprep.subr.mxu0 0.0
  %2565 = vmatpush1.msra.mxu0 %v2456
  %2566 = vmatprep.subr.mxu0 0.0
  %2567 = vmatpush1.msra.mxu0 %v2457
  %2568 = vmatprep.mubr.f32.mxu0 %v2394
  %2569 = vmatmul.mubr.f32.gmra.mrb[0].mxu0 %v2393
  %v2570 = vpop.f32.mrb[0].mxu0
  %v2571 = vadd.f32 0.0, %v2570
  %v2572 = vpop.f32.mrb[0].mxu0
  %2573 = vmatprep.mubr.f32.mxu0 %v2397
  %2574 = vmatmul.mubr.f32.gmra.mrb[0].mxu0 %v2396
  %v2575 = vpop.f32.mrb[0].mxu0
  %v2576 = vadd.f32 0.0, %v2575
  %v2577 = vpop.f32.mrb[0].mxu0
  %2578 = vmatprep.mubr.f32.mxu0 %v2400
  %2579 = vmatmul.mubr.f32.gmra.mrb[0].mxu0 %v2399
  %v2580 = vpop.f32.mrb[0].mxu0
  %v2581 = vadd.f32 0.0, %v2580
  %v2582 = vpop.f32.mrb[0].mxu0
  %2583 = vmatprep.mubr.f32.mxu0 %v2403
  %2584 = vmatmul.mubr.f32.gmra.mrb[0].mxu0 %v2402
  %v2585 = vpop.f32.mrb[0].mxu0
  %v2586 = vadd.f32 0.0, %v2585
  %v2587 = vpop.f32.mrb[0].mxu0
  %2588 = vmatprep.mubr.f32.mxu0 %v2406
  %2589 = vmatmul.mubr.f32.gmra.mrb[0].mxu0 %v2405
  %v2590 = vpop.f32.mrb[0].mxu0
  %v2591 = vadd.f32 0.0, %v2590
  %v2592 = vpop.f32.mrb[0].mxu0
  %2593 = vmatprep.mubr.f32.mxu0 %v2409
  %2594 = vmatmul.mubr.f32.gmra.mrb[0].mxu0 %v2408
  %v2595 = vpop.f32.mrb[0].mxu0
  %v2596 = vadd.f32 0.0, %v2595
  %v2597 = vpop.f32.mrb[0].mxu0
  %2598 = vmatprep.mubr.f32.mxu0 %v2412
  %2599 = vmatmul.mubr.f32.gmra.mrb[0].mxu0 %v2411
  %v2600 = vpop.f32.mrb[0].mxu0
  %v2601 = vadd.f32 0.0, %v2600
  %v2602 = vpop.f32.mrb[0].mxu0
  %2603 = vmatprep.mubr.f32.mxu0 %v2415
  %2604 = vmatmul.mubr.f32.gmra.mrb[0].mxu0 %v2414
  %v2605 = vpop.f32.mrb[0].mxu0
  %v2606 = vadd.f32 0.0, %v2605
  %v2607 = vpop.f32.mrb[0].mxu0
  %2608 = vmatprep.mubr.f32.mxu0 %v2418
  %2609 = vmatmul.mubr.f32.gmra.mrb[0].mxu0 %v2417
  %v2610 = vpop.f32.mrb[0].mxu0
  %v2611 = vadd.f32 0.0, %v2610
  %v2612 = vpop.f32.mrb[0].mxu0
  %2613 = vmatprep.mubr.f32.mxu0 %v2421
  %2614 = vmatmul.mubr.f32.gmra.mrb[0].mxu0 %v2420
  %v2615 = vpop.f32.mrb[0].mxu0
  %v2616 = vadd.f32 0.0, %v2615
  %v2617 = vpop.f32.mrb[0].mxu0
  %2618 = vmatprep.mubr.f32.mxu0 %v2424
  %2619 = vmatmul.mubr.f32.gmra.mrb[0].mxu0 %v2423
  %v2620 = vpop.f32.mrb[0].mxu0
  %v2621 = vadd.f32 0.0, %v2620
  %v2622 = vpop.f32.mrb[0].mxu0
  %2623 = vdwg.mxu0
  %2624 = vmatprep.subr.mxu0 0.0
  %2625 = vmatpush1.msra.mxu0 %v2458
  %2626 = vmatprep.subr.mxu0 0.0
  %2627 = vmatpush1.msra.mxu0 %v2459
  %2628 = vmatprep.subr.mxu0 0.0
  %2629 = vmatpush1.msra.mxu0 %v2460
  %2630 = vmatprep.subr.mxu0 0.0
  %2631 = vmatpush1.msra.mxu0 %v2461
  %2632 = vmatprep.subr.mxu0 0.0
  %2633 = vmatpush1.msra.mxu0 %v2462
  %2634 = vmatprep.subr.mxu0 0.0
  %2635 = vmatpush1.msra.mxu0 %v2463
  %2636 = vmatprep.subr.mxu0 0.0
  %2637 = vmatpush1.msra.mxu0 %v2464
  %2638 = vmatprep.subr.mxu0 0.0
  %2639 = vmatpush1.msra.mxu0 %v2465
  %2640 = vmatprep.subr.mxu0 0.0
  %2641 = vmatpush1.msra.mxu0 %v2466
  %2642 = vmatprep.subr.mxu0 0.0
  %2643 = vmatpush1.msra.mxu0 %v2467
  %2644 = vmatprep.subr.mxu0 0.0
  %2645 = vmatpush1.msra.mxu0 %v2468
  %2646 = vmatprep.subr.mxu0 0.0
  %2647 = vmatpush1.msra.mxu0 %v2469
  %2648 = vmatprep.subr.mxu0 0.0
  %2649 = vmatpush1.msra.mxu0 %v2470
  %2650 = vmatprep.subr.mxu0 0.0
  %2651 = vmatpush1.msra.mxu0 0.0
  %2652 = vmatprep.subr.mxu0 0.0
  %2653 = vmatpush1.msra.mxu0 0.0
  %2654 = vmatprep.subr.mxu0 0.0
  %2655 = vmatpush1.msra.mxu0 0.0
  %2656 = vmatprep.subr.mxu0 0.0
  %2657 = vmatpush1.msra.mxu0 0.0
  %2658 = vmatprep.subr.mxu0 0.0
  %2659 = vmatpush1.msra.mxu0 0.0
  %2660 = vmatprep.subr.mxu0 0.0
  %2661 = vmatpush1.msra.mxu0 0.0
  %2662 = vmatprep.subr.mxu0 0.0
  %2663 = vmatpush1.msra.mxu0 0.0
  %2664 = vmatprep.subr.mxu0 0.0
  %2665 = vmatpush1.msra.mxu0 0.0
  %2666 = vmatprep.subr.mxu0 0.0
  %2667 = vmatpush1.msra.mxu0 0.0
  %2668 = vmatprep.subr.mxu0 0.0
  %2669 = vmatpush1.msra.mxu0 0.0
  %2670 = vmatprep.subr.mxu0 0.0
  %2671 = vmatpush1.msra.mxu0 0.0
  %2672 = vmatprep.subr.mxu0 0.0
  %2673 = vmatpush1.msra.mxu0 0.0
  %2674 = vmatprep.subr.mxu0 0.0
  %2675 = vmatpush1.msra.mxu0 0.0
  %2676 = vmatprep.subr.mxu0 0.0
  %2677 = vmatpush1.msra.mxu0 0.0
  %2678 = vmatprep.subr.mxu0 0.0
  %2679 = vmatpush1.msra.mxu0 0.0
  %2680 = vmatprep.subr.mxu0 0.0
  %2681 = vmatpush1.msra.mxu0 0.0
  %2682 = vmatprep.subr.mxu0 0.0
  %2683 = vmatpush1.msra.mxu0 0.0
  %2684 = vmatprep.subr.mxu0 0.0
  %2685 = vmatpush1.msra.mxu0 0.0
  %2686 = vmatprep.subr.mxu0 0.0
  %2687 = vmatpush1.msra.mxu0 0.0
  %2688 = vmatprep.mubr.f32.mxu0 0.0
  %2689 = vmatmul.mubr.f32.gmra.mrb[0].mxu0 %v2472
  %v2690 = vpop.f32.mrb[0].mxu0
  %v2691 = vadd.f32 %v2571, %v2690
  %v2692 = vpop.f32.mrb[0].mxu0
  %2693 = vmatprep.mubr.f32.mxu0 0.0
  %2694 = vmatmul.mubr.f32.gmra.mrb[0].mxu0 %v2475
  %v2695 = vpop.f32.mrb[0].mxu0
  %v2696 = vadd.f32 %v2576, %v2695
  %v2697 = vpop.f32.mrb[0].mxu0
  %2698 = vmatprep.mubr.f32.mxu0 0.0
  %2699 = vmatmul.mubr.f32.gmra.mrb[0].mxu0 %v2478
  %v2700 = vpop.f32.mrb[0].mxu0
  %v2701 = vadd.f32 %v2581, %v2700
  %v2702 = vpop.f32.mrb[0].mxu0
  %2703 = vmatprep.mubr.f32.mxu0 0.0
  %2704 = vmatmul.mubr.f32.gmra.mrb[0].mxu0 %v2481
  %v2705 = vpop.f32.mrb[0].mxu0
  %v2706 = vadd.f32 %v2586, %v2705
  %v2707 = vpop.f32.mrb[0].mxu0
  %2708 = vmatprep.mubr.f32.mxu0 0.0
  %2709 = vmatmul.mubr.f32.gmra.mrb[0].mxu0 %v2484
  %v2710 = vpop.f32.mrb[0].mxu0
  %v2711 = vadd.f32 %v2591, %v2710
  %v2712 = vpop.f32.mrb[0].mxu0
  %2713 = vmatprep.mubr.f32.mxu0 0.0
  %2714 = vmatmul.mubr.f32.gmra.mrb[0].mxu0 %v2487
  %v2715 = vpop.f32.mrb[0].mxu0
  %v2716 = vadd.f32 %v2596, %v2715
  %v2717 = vpop.f32.mrb[0].mxu0
  %2718 = vmatprep.mubr.f32.mxu0 0.0
  %2719 = vmatmul.mubr.f32.gmra.mrb[0].mxu0 %v2490
  %v2720 = vpop.f32.mrb[0].mxu0
  %v2721 = vadd.f32 %v2601, %v2720
  %v2722 = vpop.f32.mrb[0].mxu0
  %2723 = vmatprep.mubr.f32.mxu0 0.0
  %2724 = vmatmul.mubr.f32.gmra.mrb[0].mxu0 %v2493
  %v2725 = vpop.f32.mrb[0].mxu0
  %v2726 = vadd.f32 %v2606, %v2725
  %v2727 = vpop.f32.mrb[0].mxu0
  %2728 = vmatprep.mubr.f32.mxu0 0.0
  %2729 = vmatmul.mubr.f32.gmra.mrb[0].mxu0 %v2496
  %v2730 = vpop.f32.mrb[0].mxu0
  %v2731 = vadd.f32 %v2611, %v2730
  %v2732 = vpop.f32.mrb[0].mxu0
  %2733 = vmatprep.mubr.f32.mxu0 0.0
  %2734 = vmatmul.mubr.f32.gmra.mrb[0].mxu0 %v2499
  %v2735 = vpop.f32.mrb[0].mxu0
  %v2736 = vadd.f32 %v2616, %v2735
  %v2737 = vpop.f32.mrb[0].mxu0
  %2738 = vmatprep.mubr.f32.mxu0 0.0
  %2739 = vmatmul.mubr.f32.gmra.mrb[0].mxu0 %v2502
  %v2740 = vpop.f32.mrb[0].mxu0
  %v2741 = vadd.f32 %v2621, %v2740
  %v2742 = vpop.f32.mrb[0].mxu0
  %2743 = vdwg.mxu0
  %v2744 = vld [vmem:[%s3] sm:$0xff]
  %v2745 = vld [vmem:[%s3 + $0x8] sm:$0xff]
  %v2746 = vld [vmem:[%s3 + $0x10] sm:$0xff]
  %v2747 = vld [vmem:[%s3 + $0x18] sm:$0xff]
  %v2748 = vld [vmem:[%s3 + $0x20] sm:$0xff]
  %v2749 = vld [vmem:[%s3 + $0x28] sm:$0xff]
  %v2750 = vld [vmem:[%s3 + $0x30] sm:$0xff]
  %v2751 = vld [vmem:[%s3 + $0x38] sm:$0xff]
  %v2752 = vld [vmem:[%s3 + $0x40] sm:$0xff]
  %v2753 = vld [vmem:[%s3 + $0x48] sm:$0xff]
  %v2754 = vld [vmem:[%s3 + $0x50] sm:$0xff]
  %v2755 = vld [vmem:[%s3 + $0x58] sm:$0xff]
  %v2756 = vld [vmem:[%s3 + $0x60] sm:$0xff]
  %v2757 = vld [vmem:[%s3 + $0x68] sm:$0xff]
  %v2758 = vld [vmem:[%s3 + $0x70] sm:$0xff]
  %v2759 = vld [vmem:[%s3 + $0x78] sm:$0xff]
  %2760 = vmatprep.subr.mxu0 0.0
  %2761 = vmatpush1.msra.mxu0 %v2744
  %2762 = vmatprep.subr.mxu0 0.0
  %2763 = vmatpush1.msra.mxu0 %v2745
  %2764 = vmatprep.subr.mxu0 0.0
  %2765 = vmatpush1.msra.mxu0 %v2746
  %2766 = vmatprep.subr.mxu0 0.0
  %2767 = vmatpush1.msra.mxu0 %v2747
  %2768 = vmatprep.subr.mxu0 0.0
  %2769 = vmatpush1.msra.mxu0 %v2748
  %2770 = vmatprep.subr.mxu0 0.0
  %2771 = vmatpush1.msra.mxu0 %v2749
  %2772 = vmatprep.subr.mxu0 0.0
  %2773 = vmatpush1.msra.mxu0 %v2750
  %2774 = vmatprep.subr.mxu0 0.0
  %2775 = vmatpush1.msra.mxu0 %v2751
  %2776 = vmatprep.subr.mxu0 0.0
  %2777 = vmatpush1.msra.mxu0 %v2752
  %2778 = vmatprep.subr.mxu0 0.0
  %2779 = vmatpush1.msra.mxu0 %v2753
  %2780 = vmatprep.subr.mxu0 0.0
  %2781 = vmatpush1.msra.mxu0 %v2754
  %2782 = vmatprep.subr.mxu0 0.0
  %2783 = vmatpush1.msra.mxu0 %v2755
  %2784 = vmatprep.subr.mxu0 0.0
  %2785 = vmatpush1.msra.mxu0 %v2756
  %2786 = vmatprep.subr.mxu0 0.0
  %2787 = vmatpush1.msra.mxu0 %v2757
  %2788 = vmatprep.subr.mxu0 0.0
  %2789 = vmatpush1.msra.mxu0 %v2758
  %2790 = vmatprep.subr.mxu0 0.0
  %2791 = vmatpush1.msra.mxu0 %v2759
  %2792 = vmatprep.subr.mxu0 0.0
  %2793 = vmatpush1.msra.mxu0 0.0
  %2794 = vmatprep.subr.mxu0 0.0
  %2795 = vmatpush1.msra.mxu0 0.0
  %2796 = vmatprep.subr.mxu0 0.0
  %2797 = vmatpush1.msra.mxu0 0.0
  %2798 = vmatprep.subr.mxu0 0.0
  %2799 = vmatpush1.msra.mxu0 0.0
  %2800 = vmatprep.subr.mxu0 0.0
  %2801 = vmatpush1.msra.mxu0 0.0
  %2802 = vmatprep.subr.mxu0 0.0
  %2803 = vmatpush1.msra.mxu0 0.0
  %2804 = vmatprep.subr.mxu0 0.0
  %2805 = vmatpush1.msra.mxu0 0.0
  %2806 = vmatprep.subr.mxu0 0.0
  %2807 = vmatpush1.msra.mxu0 0.0
  %2808 = vmatprep.subr.mxu0 0.0
  %2809 = vmatpush1.msra.mxu0 0.0
  %2810 = vmatprep.subr.mxu0 0.0
  %2811 = vmatpush1.msra.mxu0 0.0
  %2812 = vmatprep.subr.mxu0 0.0
  %2813 = vmatpush1.msra.mxu0 0.0
  %2814 = vmatprep.subr.mxu0 0.0
  %2815 = vmatpush1.msra.mxu0 0.0
  %2816 = vmatprep.subr.mxu0 0.0
  %2817 = vmatpush1.msra.mxu0 0.0
  %2818 = vmatprep.subr.mxu0 0.0
  %2819 = vmatpush1.msra.mxu0 0.0
  %2820 = vmatprep.subr.mxu0 0.0
  %2821 = vmatpush1.msra.mxu0 0.0
  %2822 = vmatprep.subr.mxu0 0.0
  %2823 = vmatpush1.msra.mxu0 0.0
  %2824 = vmatprep.mubr.f32.mxu0 0.0
  %2825 = vmatmul.mubr.f32.gmra.mrb[0].mxu0 %v2691
  %v2826 = vpop.f32.mrb[0].mxu0
  %v2827 = vadd.f32 0.0, %v2826
  %v2828 = vpop.f32.mrb[0].mxu0
  %2829 = vmatprep.mubr.f32.mxu0 0.0
  %2830 = vmatmul.mubr.f32.gmra.mrb[0].mxu0 %v2696
  %v2831 = vpop.f32.mrb[0].mxu0
  %v2832 = vadd.f32 0.0, %v2831
  %v2833 = vpop.f32.mrb[0].mxu0
  %2834 = vmatprep.mubr.f32.mxu0 0.0
  %2835 = vmatmul.mubr.f32.gmra.mrb[0].mxu0 %v2701
  %v2836 = vpop.f32.mrb[0].mxu0
  %v2837 = vadd.f32 0.0, %v2836
  %v2838 = vpop.f32.mrb[0].mxu0
  %2839 = vmatprep.mubr.f32.mxu0 0.0
  %2840 = vmatmul.mubr.f32.gmra.mrb[0].mxu0 %v2706
  %v2841 = vpop.f32.mrb[0].mxu0
  %v2842 = vadd.f32 0.0, %v2841
  %v2843 = vpop.f32.mrb[0].mxu0
  %2844 = vmatprep.mubr.f32.mxu0 0.0
  %2845 = vmatmul.mubr.f32.gmra.mrb[0].mxu0 %v2711
  %v2846 = vpop.f32.mrb[0].mxu0
  %v2847 = vadd.f32 0.0, %v2846
  %v2848 = vpop.f32.mrb[0].mxu0
  %2849 = vmatprep.mubr.f32.mxu0 0.0
  %2850 = vmatmul.mubr.f32.gmra.mrb[0].mxu0 %v2716
  %v2851 = vpop.f32.mrb[0].mxu0
  %v2852 = vadd.f32 0.0, %v2851
  %v2853 = vpop.f32.mrb[0].mxu0
  %2854 = vmatprep.mubr.f32.mxu0 0.0
  %2855 = vmatmul.mubr.f32.gmra.mrb[0].mxu0 %v2721
  %v2856 = vpop.f32.mrb[0].mxu0
  %v2857 = vadd.f32 0.0, %v2856
  %v2858 = vpop.f32.mrb[0].mxu0
  %2859 = vmatprep.mubr.f32.mxu0 0.0
  %2860 = vmatmul.mubr.f32.gmra.mrb[0].mxu0 %v2726
  %v2861 = vpop.f32.mrb[0].mxu0
  %v2862 = vadd.f32 0.0, %v2861
  %v2863 = vpop.f32.mrb[0].mxu0
  %2864 = vmatprep.mubr.f32.mxu0 0.0
  %2865 = vmatmul.mubr.f32.gmra.mrb[0].mxu0 %v2731
  %v2866 = vpop.f32.mrb[0].mxu0
  %v2867 = vadd.f32 0.0, %v2866
  %v2868 = vpop.f32.mrb[0].mxu0
  %2869 = vmatprep.mubr.f32.mxu0 0.0
  %2870 = vmatmul.mubr.f32.gmra.mrb[0].mxu0 %v2736
  %v2871 = vpop.f32.mrb[0].mxu0
  %v2872 = vadd.f32 0.0, %v2871
  %v2873 = vpop.f32.mrb[0].mxu0
  %2874 = vmatprep.mubr.f32.mxu0 0.0
  %2875 = vmatmul.mubr.f32.gmra.mrb[0].mxu0 %v2741
  %v2876 = vpop.f32.mrb[0].mxu0
  %v2877 = vadd.f32 0.0, %v2876
  %v2878 = vpop.f32.mrb[0].mxu0
  %2879 = vdwg.mxu0
  %2880 = vst [vmem:[#allocation4] sm:$0xff] %v2827
  %2881 = vst [vmem:[#allocation4 + $0x8] sm:$0xff] %v2832
  %2882 = vst [vmem:[#allocation4 + $0x10] sm:$0xff] %v2837
  %2883 = vst [vmem:[#allocation4 + $0x18] sm:$0xff] %v2842
  %2884 = vst [vmem:[#allocation4 + $0x20] sm:$0xff] %v2847
  %2885 = vst [vmem:[#allocation4 + $0x28] sm:$0xff] %v2852
  %2886 = vst [vmem:[#allocation4 + $0x30] sm:$0xff] %v2857
  %2887 = vst [vmem:[#allocation4 + $0x38] sm:$0xff] %v2862
  %2888 = vst [vmem:[#allocation4 + $0x40] sm:$0xff] %v2867
  %2889 = vst [vmem:[#allocation4 + $0x48] sm:$0xff] %v2872
  %2890 = vst [vmem:[#allocation4 + $0x50] sm:$0xff] %v2877
  %v2891 = vadd.f32 %v2827, %v2832
  %v2892 = vadd.f32 %v2891, %v2837
  %v2893 = vadd.f32 %v2892, %v2842
  %v2894 = vadd.f32 %v2893, %v2847
  %v2895 = vadd.f32 %v2894, %v2852
  %v2896 = vadd.f32 %v2895, %v2857
  %v2897 = vadd.f32 %v2896, %v2862
  %v2898 = vadd.f32 %v2897, %v2867
  %v2899 = vadd.f32 %v2898, %v2872
  %v2900 = vadd.f32 %v2899, %v2877
  %v2901 = vrot.slane %v2900, 4
  %v2902 = vadd.f32 %v2900, %v2901
  %v2903 = vrot.slane %v2902, 2
  %v2904 = vadd.f32 %v2902, %v2903
  %v2905 = vrot.slane %v2904, 1
  %v2906 = vadd.f32 %v2904, %v2905
  %v2907 = vadd.f32 %v2906, 0.0
  %v2908 = vmul.f32 %v2827, %v2827
  %v2909 = vmul.f32 %v2832, %v2832
  %v2910 = vmul.f32 %v2837, %v2837
  %v2911 = vmul.f32 %v2842, %v2842
  %v2912 = vmul.f32 %v2847, %v2847
  %v2913 = vmul.f32 %v2852, %v2852
  %v2914 = vmul.f32 %v2857, %v2857
  %v2915 = vmul.f32 %v2862, %v2862
  %v2916 = vmul.f32 %v2867, %v2867
  %v2917 = vmul.f32 %v2872, %v2872
  %v2918 = vmul.f32 %v2877, %v2877
  %v2919 = vadd.f32 %v2908, %v2909
  %v2920 = vadd.f32 %v2919, %v2910
  %v2921 = vadd.f32 %v2920, %v2911
  %v2922 = vadd.f32 %v2921, %v2912
  %v2923 = vadd.f32 %v2922, %v2913
  %v2924 = vadd.f32 %v2923, %v2914
  %v2925 = vadd.f32 %v2924, %v2915
  %v2926 = vadd.f32 %v2925, %v2916
  %v2927 = vadd.f32 %v2926, %v2917
  %v2928 = vadd.f32 %v2927, %v2918
  %v2929 = vrot.slane %v2928, 4
  %v2930 = vadd.f32 %v2928, %v2929
  %v2931 = vrot.slane %v2930, 2
  %v2932 = vadd.f32 %v2930, %v2931
  %v2933 = vrot.slane %v2932, 1
  %v2934 = vadd.f32 %v2932, %v2933
  %v2935 = vadd.f32 %v2934, 0.0
  %s2936 = scalar_lea.vmem %s0, 408
  %v2937 = vld [vmem:[%s2936] sm:$0xff]
  %v2938 = vld [vmem:[%s2936 + $0x8] sm:$0xff]
  %v2939 = vld [vmem:[%s2936 + $0x10] sm:$0xff]
  %v2940 = vld [vmem:[%s2936 + $0x18] sm:$0xff]
  %v2941 = vld [vmem:[%s2936 + $0x20] sm:$0xff]
  %v2942 = vld [vmem:[%s2936 + $0x28] sm:$0xff]
  %v2943 = vld [vmem:[%s2936 + $0x30] sm:$0xff]
  %v2944 = vld [vmem:[%s2936 + $0x38] sm:$0xff]
  %v2945 = vld [vmem:[%s2936 + $0x40] sm:$0xff]
  %v2946 = vld [vmem:[%s2936 + $0x48] sm:$0xff]
  %v2947 = vld [vmem:[%s2936 + $0x50] sm:$0xff]
  %v2948 = vld [vmem:[%s2936 + $0x58] sm:$0xff]
  %v2949 = vld [vmem:[%s2936 + $0x60] sm:$0xff]
  %v2950 = vld [vmem:[%s2936 + $0x68] sm:$0xff]
  %v2951 = vld [vmem:[%s2936 + $0x70] sm:$0xff]
  %v2952 = vld [vmem:[%s2936 + $0x78] sm:$0xff]
  %v2953 = vld [vmem:[%s2936 + $0x80] sm:$0xff]
  %v2954 = vld [vmem:[%s2936 + $0x88] sm:$0xff]
  %v2955 = vld [vmem:[%s2936 + $0x90] sm:$0xff]
  %v2956 = vld [vmem:[%s2936 + $0x98] sm:$0xff]
  %v2957 = vld [vmem:[%s2936 + $0xa0] sm:$0xff]
  %v2958 = vld [vmem:[%s2936 + $0xa8] sm:$0xff]
  %v2959 = vld [vmem:[%s2936 + $0xb0] sm:$0xff]
  %v2960 = vld [vmem:[%s2936 + $0xb8] sm:$0xff]
  %v2961 = vld [vmem:[%s2936 + $0xc0] sm:$0xff]
  %v2962 = vld [vmem:[%s2936 + $0xc8] sm:$0xff]
  %v2963 = vld [vmem:[%s2936 + $0xd0] sm:$0xff]
  %v2964 = vld [vmem:[%s2936 + $0xd8] sm:$0xff]
  %v2965 = vld [vmem:[%s2936 + $0xe0] sm:$0xff]
  %v2966 = vld [vmem:[%s2936 + $0xe8] sm:$0xff]
  %v2967 = vld [vmem:[%s2936 + $0xf0] sm:$0xff]
  %v2968 = vld [vmem:[%s2936 + $0xf8] sm:$0xff]
  %v2969 = vld [vmem:[%s2936 + $0x100] sm:$0xff]
  %v2970 = vld [vmem:[%s2936 + $0x108] sm:$0xff]
  %v2971 = vld [vmem:[%s2936 + $0x110] sm:$0xff]
  %v2972 = vld [vmem:[%s2936 + $0x118] sm:$0xff]
  %v2973 = vld [vmem:[%s2936 + $0x120] sm:$0xff]
  %v2974 = vld [vmem:[%s2936 + $0x128] sm:$0xff]
  %v2975 = vld [vmem:[%s2936 + $0x130] sm:$0xff]
  %v2976 = vld [vmem:[%s2936 + $0x138] sm:$0xff]
  %v2977 = vld [vmem:[%s2936 + $0x140] sm:$0xff]
  %v2978 = vld [vmem:[%s2936 + $0x148] sm:$0xff]
  %v2979 = vld [vmem:[%s2936 + $0x150] sm:$0xff]
  %v2980 = vld [vmem:[%s2936 + $0x158] sm:$0xff]
  %v2981 = vld [vmem:[%s2936 + $0x160] sm:$0xff]
  %v2982 = vld [vmem:[%s2936 + $0x168] sm:$0xff]
  %v2983 = vld [vmem:[%s2936 + $0x170] sm:$0xff]
  %v2984 = vld [vmem:[%s2936 + $0x178] sm:$0xff]
  %v2985 = vld [vmem:[%s2936 + $0x180] sm:$0xff]
  %v2986 = vld [vmem:[%s2936 + $0x188] sm:$0xff]
  %v2987 = vld [vmem:[%s2936 + $0x190] sm:$0xff]
  %v2988 = vld [vmem:[%s1] sm:$0xff]
  %v2989 = vld [vmem:[%s1 + $0x8] sm:$0xff]
  %v2990 = vld [vmem:[%s1 + $0x10] sm:$0xff]
  %v2991 = vld [vmem:[%s1 + $0x18] sm:$0xff]
  %v2992 = vld [vmem:[%s1 + $0x20] sm:$0xff]
  %v2993 = vld [vmem:[%s1 + $0x28] sm:$0xff]
  %v2994 = vld [vmem:[%s1 + $0x30] sm:$0xff]
  %v2995 = vld [vmem:[%s1 + $0x38] sm:$0xff]
  %v2996 = vld [vmem:[%s1 + $0x40] sm:$0xff]
  %v2997 = vld [vmem:[%s1 + $0x48] sm:$0xff]
  %v2998 = vld [vmem:[%s1 + $0x50] sm:$0xff]
  %v2999 = vld [vmem:[%s1 + $0x58] sm:$0xff]
  %v3000 = vld [vmem:[%s1 + $0x60] sm:$0xff]
  %v3001 = vld [vmem:[%s1 + $0x68] sm:$0xff]
  %v3002 = vld [vmem:[%s1 + $0x70] sm:$0xff]
  %v3003 = vld [vmem:[%s1 + $0x78] sm:$0xff]
  %v3004 = vld [vmem:[%s2] sm:$0x1]
  %v3006 = vlaneseq
  %v3007 = vshrl.u32 %v3006, 7
  %v3008 = vsub.s32 0, %v3007
  %v3009 = vrot.slane %v3004, %v3008
  %3011 = vmatprep.subr.mxu0 0.0
  %3012 = vmatpush1.msra.mxu0 %v2988
  %3013 = vmatprep.subr.mxu0 0.0
  %3014 = vmatpush1.msra.mxu0 %v2989
  %3015 = vmatprep.subr.mxu0 0.0
  %3016 = vmatpush1.msra.mxu0 %v2990
  %3017 = vmatprep.subr.mxu0 0.0
  %3018 = vmatpush1.msra.mxu0 %v2991
  %3019 = vmatprep.subr.mxu0 0.0
  %3020 = vmatpush1.msra.mxu0 %v2992
  %3021 = vmatprep.subr.mxu0 0.0
  %3022 = vmatpush1.msra.mxu0 %v2993
  %3023 = vmatprep.subr.mxu0 0.0
  %3024 = vmatpush1.msra.mxu0 %v2994
  %3025 = vmatprep.subr.mxu0 0.0
  %3026 = vmatpush1.msra.mxu0 %v2995
  %3027 = vmatprep.subr.mxu0 0.0
  %3028 = vmatpush1.msra.mxu0 %v2996
  %3029 = vmatprep.subr.mxu0 0.0
  %3030 = vmatpush1.msra.mxu0 %v2997
  %3031 = vmatprep.subr.mxu0 0.0
  %3032 = vmatpush1.msra.mxu0 %v2998
  %3033 = vmatprep.subr.mxu0 0.0
  %3034 = vmatpush1.msra.mxu0 %v2999
  %3035 = vmatprep.subr.mxu0 0.0
  %3036 = vmatpush1.msra.mxu0 %v3000
  %3037 = vmatprep.subr.mxu0 0.0
  %3038 = vmatpush1.msra.mxu0 %v3001
  %3039 = vmatprep.subr.mxu0 0.0
  %3040 = vmatpush1.msra.mxu0 %v3002
  %3041 = vmatprep.subr.mxu0 0.0
  %3042 = vmatpush1.msra.mxu0 %v3003
  %3043 = vmatprep.subr.mxu0 0.0
  %3044 = vmatpush1.msra.mxu0 0.0
  %3045 = vmatprep.subr.mxu0 0.0
  %3046 = vmatpush1.msra.mxu0 0.0
  %3047 = vmatprep.subr.mxu0 0.0
  %3048 = vmatpush1.msra.mxu0 0.0
  %3049 = vmatprep.subr.mxu0 0.0
  %3050 = vmatpush1.msra.mxu0 0.0
  %3051 = vmatprep.subr.mxu0 0.0
  %3052 = vmatpush1.msra.mxu0 0.0
  %3053 = vmatprep.subr.mxu0 0.0
  %3054 = vmatpush1.msra.mxu0 0.0
  %3055 = vmatprep.subr.mxu0 0.0
  %3056 = vmatpush1.msra.mxu0 0.0
  %3057 = vmatprep.subr.mxu0 0.0
  %3058 = vmatpush1.msra.mxu0 0.0
  %3059 = vmatprep.subr.mxu0 0.0
  %3060 = vmatpush1.msra.mxu0 0.0
  %3061 = vmatprep.subr.mxu0 0.0
  %3062 = vmatpush1.msra.mxu0 0.0
  %3063 = vmatprep.subr.mxu0 0.0
  %3064 = vmatpush1.msra.mxu0 0.0
  %3065 = vmatprep.subr.mxu0 0.0
  %3066 = vmatpush1.msra.mxu0 0.0
  %3067 = vmatprep.subr.mxu0 0.0
  %3068 = vmatpush1.msra.mxu0 0.0
  %3069 = vmatprep.subr.mxu0 0.0
  %3070 = vmatpush1.msra.mxu0 0.0
  %3071 = vmatprep.subr.mxu0 0.0
  %3072 = vmatpush1.msra.mxu0 0.0
  %3073 = vmatprep.subr.mxu0 0.0
  %3074 = vmatpush1.msra.mxu0 0.0
  %3075 = vmatprep.mubr.f32.mxu0 0.0
  %3076 = vmatmul.mubr.f32.gmra.mrb[0].mxu0 %v2937
  %v3077 = vpop.f32.mrb[0].mxu0
  %v3078 = vadd.f32 %v3009, %v3077
  %v3079 = vpop.f32.mrb[0].mxu0
  %3080 = vmatprep.mubr.f32.mxu0 0.0
  %3081 = vmatmul.mubr.f32.gmra.mrb[0].mxu0 %v2938
  %v3082 = vpop.f32.mrb[0].mxu0
  %v3083 = vadd.f32 %v3009, %v3082
  %v3084 = vpop.f32.mrb[0].mxu0
  %3085 = vmatprep.mubr.f32.mxu0 0.0
  %3086 = vmatmul.mubr.f32.gmra.mrb[0].mxu0 %v2939
  %v3087 = vpop.f32.mrb[0].mxu0
  %v3088 = vadd.f32 %v3009, %v3087
  %v3089 = vpop.f32.mrb[0].mxu0
  %3090 = vmatprep.mubr.f32.mxu0 0.0
  %3091 = vmatmul.mubr.f32.gmra.mrb[0].mxu0 %v2940
  %v3092 = vpop.f32.mrb[0].mxu0
  %v3093 = vadd.f32 %v3009, %v3092
  %v3094 = vpop.f32.mrb[0].mxu0
  %3095 = vmatprep.mubr.f32.mxu0 0.0
  %3096 = vmatmul.mubr.f32.gmra.mrb[0].mxu0 %v2941
  %v3097 = vpop.f32.mrb[0].mxu0
  %v3098 = vadd.f32 %v3009, %v3097
  %v3099 = vpop.f32.mrb[0].mxu0
  %3100 = vmatprep.mubr.f32.mxu0 0.0
  %3101 = vmatmul.mubr.f32.gmra.mrb[0].mxu0 %v2942
  %v3102 = vpop.f32.mrb[0].mxu0
  %v3103 = vadd.f32 %v3009, %v3102
  %v3104 = vpop.f32.mrb[0].mxu0
  %3105 = vmatprep.mubr.f32.mxu0 0.0
  %3106 = vmatmul.mubr.f32.gmra.mrb[0].mxu0 %v2943
  %v3107 = vpop.f32.mrb[0].mxu0
  %v3108 = vadd.f32 %v3009, %v3107
  %v3109 = vpop.f32.mrb[0].mxu0
  %3110 = vmatprep.mubr.f32.mxu0 0.0
  %3111 = vmatmul.mubr.f32.gmra.mrb[0].mxu0 %v2944
  %v3112 = vpop.f32.mrb[0].mxu0
  %v3113 = vadd.f32 %v3009, %v3112
  %v3114 = vpop.f32.mrb[0].mxu0
  %3115 = vmatprep.mubr.f32.mxu0 0.0
  %3116 = vmatmul.mubr.f32.gmra.mrb[0].mxu0 %v2945
  %v3117 = vpop.f32.mrb[0].mxu0
  %v3118 = vadd.f32 %v3009, %v3117
  %v3119 = vpop.f32.mrb[0].mxu0
  %3120 = vmatprep.mubr.f32.mxu0 0.0
  %3121 = vmatmul.mubr.f32.gmra.mrb[0].mxu0 %v2946
  %v3122 = vpop.f32.mrb[0].mxu0
  %v3123 = vadd.f32 %v3009, %v3122
  %v3124 = vpop.f32.mrb[0].mxu0
  %3125 = vmatprep.mubr.f32.mxu0 0.0
  %3126 = vmatmul.mubr.f32.gmra.mrb[0].mxu0 %v2947
  %v3127 = vpop.f32.mrb[0].mxu0
  %v3128 = vadd.f32 %v3009, %v3127
  %v3129 = vpop.f32.mrb[0].mxu0
  %3130 = vmatprep.mubr.f32.mxu0 0.0
  %3131 = vmatmul.mubr.f32.gmra.mrb[0].mxu0 %v2948
  %v3132 = vpop.f32.mrb[0].mxu0
  %v3133 = vadd.f32 %v3009, %v3132
  %v3134 = vpop.f32.mrb[0].mxu0
  %3135 = vmatprep.mubr.f32.mxu0 0.0
  %3136 = vmatmul.mubr.f32.gmra.mrb[0].mxu0 %v2949
  %v3137 = vpop.f32.mrb[0].mxu0
  %v3138 = vadd.f32 %v3009, %v3137
  %v3139 = vpop.f32.mrb[0].mxu0
  %3140 = vmatprep.mubr.f32.mxu0 0.0
  %3141 = vmatmul.mubr.f32.gmra.mrb[0].mxu0 %v2950
  %v3142 = vpop.f32.mrb[0].mxu0
  %v3143 = vadd.f32 %v3009, %v3142
  %v3144 = vpop.f32.mrb[0].mxu0
  %3145 = vmatprep.mubr.f32.mxu0 0.0
  %3146 = vmatmul.mubr.f32.gmra.mrb[0].mxu0 %v2951
  %v3147 = vpop.f32.mrb[0].mxu0
  %v3148 = vadd.f32 %v3009, %v3147
  %v3149 = vpop.f32.mrb[0].mxu0
  %3150 = vmatprep.mubr.f32.mxu0 0.0
  %3151 = vmatmul.mubr.f32.gmra.mrb[0].mxu0 %v2952
  %v3152 = vpop.f32.mrb[0].mxu0
  %v3153 = vadd.f32 %v3009, %v3152
  %v3154 = vpop.f32.mrb[0].mxu0
  %3155 = vmatprep.mubr.f32.mxu0 0.0
  %3156 = vmatmul.mubr.f32.gmra.mrb[0].mxu0 %v2953
  %v3157 = vpop.f32.mrb[0].mxu0
  %v3158 = vadd.f32 %v3009, %v3157
  %v3159 = vpop.f32.mrb[0].mxu0
  %3160 = vmatprep.mubr.f32.mxu0 0.0
  %3161 = vmatmul.mubr.f32.gmra.mrb[0].mxu0 %v2954
  %v3162 = vpop.f32.mrb[0].mxu0
  %v3163 = vadd.f32 %v3009, %v3162
  %v3164 = vpop.f32.mrb[0].mxu0
  %3165 = vmatprep.mubr.f32.mxu0 0.0
  %3166 = vmatmul.mubr.f32.gmra.mrb[0].mxu0 %v2955
  %v3167 = vpop.f32.mrb[0].mxu0
  %v3168 = vadd.f32 %v3009, %v3167
  %v3169 = vpop.f32.mrb[0].mxu0
  %3170 = vmatprep.mubr.f32.mxu0 0.0
  %3171 = vmatmul.mubr.f32.gmra.mrb[0].mxu0 %v2956
  %v3172 = vpop.f32.mrb[0].mxu0
  %v3173 = vadd.f32 %v3009, %v3172
  %v3174 = vpop.f32.mrb[0].mxu0
  %3175 = vmatprep.mubr.f32.mxu0 0.0
  %3176 = vmatmul.mubr.f32.gmra.mrb[0].mxu0 %v2957
  %v3177 = vpop.f32.mrb[0].mxu0
  %v3178 = vadd.f32 %v3009, %v3177
  %v3179 = vpop.f32.mrb[0].mxu0
  %3180 = vmatprep.mubr.f32.mxu0 0.0
  %3181 = vmatmul.mubr.f32.gmra.mrb[0].mxu0 %v2958
  %v3182 = vpop.f32.mrb[0].mxu0
  %v3183 = vadd.f32 %v3009, %v3182
  %v3184 = vpop.f32.mrb[0].mxu0
  %3185 = vmatprep.mubr.f32.mxu0 0.0
  %3186 = vmatmul.mubr.f32.gmra.mrb[0].mxu0 %v2959
  %v3187 = vpop.f32.mrb[0].mxu0
  %v3188 = vadd.f32 %v3009, %v3187
  %v3189 = vpop.f32.mrb[0].mxu0
  %3190 = vmatprep.mubr.f32.mxu0 0.0
  %3191 = vmatmul.mubr.f32.gmra.mrb[0].mxu0 %v2960
  %v3192 = vpop.f32.mrb[0].mxu0
  %v3193 = vadd.f32 %v3009, %v3192
  %v3194 = vpop.f32.mrb[0].mxu0
  %3195 = vmatprep.mubr.f32.mxu0 0.0
  %3196 = vmatmul.mubr.f32.gmra.mrb[0].mxu0 %v2961
  %v3197 = vpop.f32.mrb[0].mxu0
  %v3198 = vadd.f32 %v3009, %v3197
  %v3199 = vpop.f32.mrb[0].mxu0
  %3200 = vmatprep.mubr.f32.mxu0 0.0
  %3201 = vmatmul.mubr.f32.gmra.mrb[0].mxu0 %v2962
  %v3202 = vpop.f32.mrb[0].mxu0
  %v3203 = vadd.f32 %v3009, %v3202
  %v3204 = vpop.f32.mrb[0].mxu0
  %3205 = vmatprep.mubr.f32.mxu0 0.0
  %3206 = vmatmul.mubr.f32.gmra.mrb[0].mxu0 %v2963
  %v3207 = vpop.f32.mrb[0].mxu0
  %v3208 = vadd.f32 %v3009, %v3207
  %v3209 = vpop.f32.mrb[0].mxu0
  %3210 = vmatprep.mubr.f32.mxu0 0.0
  %3211 = vmatmul.mubr.f32.gmra.mrb[0].mxu0 %v2964
  %v3212 = vpop.f32.mrb[0].mxu0
  %v3213 = vadd.f32 %v3009, %v3212
  %v3214 = vpop.f32.mrb[0].mxu0
  %3215 = vmatprep.mubr.f32.mxu0 0.0
  %3216 = vmatmul.mubr.f32.gmra.mrb[0].mxu0 %v2965
  %v3217 = vpop.f32.mrb[0].mxu0
  %v3218 = vadd.f32 %v3009, %v3217
  %v3219 = vpop.f32.mrb[0].mxu0
  %3220 = vmatprep.mubr.f32.mxu0 0.0
  %3221 = vmatmul.mubr.f32.gmra.mrb[0].mxu0 %v2966
  %v3222 = vpop.f32.mrb[0].mxu0
  %v3223 = vadd.f32 %v3009, %v3222
  %v3224 = vpop.f32.mrb[0].mxu0
  %3225 = vmatprep.mubr.f32.mxu0 0.0
  %3226 = vmatmul.mubr.f32.gmra.mrb[0].mxu0 %v2967
  %v3227 = vpop.f32.mrb[0].mxu0
  %v3228 = vadd.f32 %v3009, %v3227
  %v3229 = vpop.f32.mrb[0].mxu0
  %3230 = vmatprep.mubr.f32.mxu0 0.0
  %3231 = vmatmul.mubr.f32.gmra.mrb[0].mxu0 %v2968
  %v3232 = vpop.f32.mrb[0].mxu0
  %v3233 = vadd.f32 %v3009, %v3232
  %v3234 = vpop.f32.mrb[0].mxu0
  %3235 = vmatprep.mubr.f32.mxu0 0.0
  %3236 = vmatmul.mubr.f32.gmra.mrb[0].mxu0 %v2969
  %v3237 = vpop.f32.mrb[0].mxu0
  %v3238 = vadd.f32 %v3009, %v3237
  %v3239 = vpop.f32.mrb[0].mxu0
  %3240 = vmatprep.mubr.f32.mxu0 0.0
  %3241 = vmatmul.mubr.f32.gmra.mrb[0].mxu0 %v2970
  %v3242 = vpop.f32.mrb[0].mxu0
  %v3243 = vadd.f32 %v3009, %v3242
  %v3244 = vpop.f32.mrb[0].mxu0
  %3245 = vmatprep.mubr.f32.mxu0 0.0
  %3246 = vmatmul.mubr.f32.gmra.mrb[0].mxu0 %v2971
  %v3247 = vpop.f32.mrb[0].mxu0
  %v3248 = vadd.f32 %v3009, %v3247
  %v3249 = vpop.f32.mrb[0].mxu0
  %3250 = vmatprep.mubr.f32.mxu0 0.0
  %3251 = vmatmul.mubr.f32.gmra.mrb[0].mxu0 %v2972
  %v3252 = vpop.f32.mrb[0].mxu0
  %v3253 = vadd.f32 %v3009, %v3252
  %v3254 = vpop.f32.mrb[0].mxu0
  %3255 = vmatprep.mubr.f32.mxu0 0.0
  %3256 = vmatmul.mubr.f32.gmra.mrb[0].mxu0 %v2973
  %v3257 = vpop.f32.mrb[0].mxu0
  %v3258 = vadd.f32 %v3009, %v3257
  %v3259 = vpop.f32.mrb[0].mxu0
  %3260 = vmatprep.mubr.f32.mxu0 0.0
  %3261 = vmatmul.mubr.f32.gmra.mrb[0].mxu0 %v2974
  %v3262 = vpop.f32.mrb[0].mxu0
  %v3263 = vadd.f32 %v3009, %v3262
  %v3264 = vpop.f32.mrb[0].mxu0
  %3265 = vmatprep.mubr.f32.mxu0 0.0
  %3266 = vmatmul.mubr.f32.gmra.mrb[0].mxu0 %v2975
  %v3267 = vpop.f32.mrb[0].mxu0
  %v3268 = vadd.f32 %v3009, %v3267
  %v3269 = vpop.f32.mrb[0].mxu0
  %3270 = vmatprep.mubr.f32.mxu0 0.0
  %3271 = vmatmul.mubr.f32.gmra.mrb[0].mxu0 %v2976
  %v3272 = vpop.f32.mrb[0].mxu0
  %v3273 = vadd.f32 %v3009, %v3272
  %v3274 = vpop.f32.mrb[0].mxu0
  %3275 = vmatprep.mubr.f32.mxu0 0.0
  %3276 = vmatmul.mubr.f32.gmra.mrb[0].mxu0 %v2977
  %v3277 = vpop.f32.mrb[0].mxu0
  %v3278 = vadd.f32 %v3009, %v3277
  %v3279 = vpop.f32.mrb[0].mxu0
  %3280 = vmatprep.mubr.f32.mxu0 0.0
  %3281 = vmatmul.mubr.f32.gmra.mrb[0].mxu0 %v2978
  %v3282 = vpop.f32.mrb[0].mxu0
  %v3283 = vadd.f32 %v3009, %v3282
  %v3284 = vpop.f32.mrb[0].mxu0
  %3285 = vmatprep.mubr.f32.mxu0 0.0
  %3286 = vmatmul.mubr.f32.gmra.mrb[0].mxu0 %v2979
  %v3287 = vpop.f32.mrb[0].mxu0
  %v3288 = vadd.f32 %v3009, %v3287
  %v3289 = vpop.f32.mrb[0].mxu0
  %3290 = vmatprep.mubr.f32.mxu0 0.0
  %3291 = vmatmul.mubr.f32.gmra.mrb[0].mxu0 %v2980
  %v3292 = vpop.f32.mrb[0].mxu0
  %v3293 = vadd.f32 %v3009, %v3292
  %v3294 = vpop.f32.mrb[0].mxu0
  %3295 = vmatprep.mubr.f32.mxu0 0.0
  %3296 = vmatmul.mubr.f32.gmra.mrb[0].mxu0 %v2981
  %v3297 = vpop.f32.mrb[0].mxu0
  %v3298 = vadd.f32 %v3009, %v3297
  %v3299 = vpop.f32.mrb[0].mxu0
  %3300 = vmatprep.mubr.f32.mxu0 0.0
  %3301 = vmatmul.mubr.f32.gmra.mrb[0].mxu0 %v2982
  %v3302 = vpop.f32.mrb[0].mxu0
  %v3303 = vadd.f32 %v3009, %v3302
  %v3304 = vpop.f32.mrb[0].mxu0
  %3305 = vmatprep.mubr.f32.mxu0 0.0
  %3306 = vmatmul.mubr.f32.gmra.mrb[0].mxu0 %v2983
  %v3307 = vpop.f32.mrb[0].mxu0
  %v3308 = vadd.f32 %v3009, %v3307
  %v3309 = vpop.f32.mrb[0].mxu0
  %3310 = vmatprep.mubr.f32.mxu0 0.0
  %3311 = vmatmul.mubr.f32.gmra.mrb[0].mxu0 %v2984
  %v3312 = vpop.f32.mrb[0].mxu0
  %v3313 = vadd.f32 %v3009, %v3312
  %v3314 = vpop.f32.mrb[0].mxu0
  %3315 = vmatprep.mubr.f32.mxu0 0.0
  %3316 = vmatmul.mubr.f32.gmra.mrb[0].mxu0 %v2985
  %v3317 = vpop.f32.mrb[0].mxu0
  %v3318 = vadd.f32 %v3009, %v3317
  %v3319 = vpop.f32.mrb[0].mxu0
  %3320 = vmatprep.mubr.f32.mxu0 0.0
  %3321 = vmatmul.mubr.f32.gmra.mrb[0].mxu0 %v2986
  %v3322 = vpop.f32.mrb[0].mxu0
  %v3323 = vadd.f32 %v3009, %v3322
  %v3324 = vpop.f32.mrb[0].mxu0
  %3325 = vmatprep.mubr.f32.mxu0 0.0
  %3326 = vmatmul.mubr.f32.gmra.mrb[0].mxu0 %v2987
  %v3327 = vpop.f32.mrb[0].mxu0
  %v3328 = vadd.f32 %v3009, %v3327
  %v3329 = vpop.f32.mrb[0].mxu0
  %3330 = vdwg.mxu0
  %v3331 = vmul.f32 %v3078, 0.01
  %v3332 = vmul.f32 %v3083, 0.01
  %v3333 = vmul.f32 %v3088, 0.01
  %v3334 = vmul.f32 %v3093, 0.01
  %v3335 = vmul.f32 %v3098, 0.01
  %v3336 = vmul.f32 %v3103, 0.01
  %v3337 = vmul.f32 %v3108, 0.01
  %v3338 = vmul.f32 %v3113, 0.01
  %v3339 = vmul.f32 %v3118, 0.01
  %v3340 = vmul.f32 %v3123, 0.01
  %v3341 = vmul.f32 %v3128, 0.01
  %v3342 = vmul.f32 %v3133, 0.01
  %v3343 = vmul.f32 %v3138, 0.01
  %v3344 = vmul.f32 %v3143, 0.01
  %v3345 = vmul.f32 %v3148, 0.01
  %v3346 = vmul.f32 %v3153, 0.01
  %v3347 = vmul.f32 %v3158, 0.01
  %v3348 = vmul.f32 %v3163, 0.01
  %v3349 = vmul.f32 %v3168, 0.01
  %v3350 = vmul.f32 %v3173, 0.01
  %v3351 = vmul.f32 %v3178, 0.01
  %v3352 = vmul.f32 %v3183, 0.01
  %v3353 = vmul.f32 %v3188, 0.01
  %v3354 = vmul.f32 %v3193, 0.01
  %v3355 = vmul.f32 %v3198, 0.01
  %v3356 = vmul.f32 %v3203, 0.01
  %v3357 = vmul.f32 %v3208, 0.01
  %v3358 = vmul.f32 %v3213, 0.01
  %v3359 = vmul.f32 %v3218, 0.01
  %v3360 = vmul.f32 %v3223, 0.01
  %v3361 = vmul.f32 %v3228, 0.01
  %v3362 = vmul.f32 %v3233, 0.01
  %v3363 = vmul.f32 %v3238, 0.01
  %v3364 = vmul.f32 %v3243, 0.01
  %v3365 = vmul.f32 %v3248, 0.01
  %v3366 = vmul.f32 %v3253, 0.01
  %v3367 = vmul.f32 %v3258, 0.01
  %v3368 = vmul.f32 %v3263, 0.01
  %v3369 = vmul.f32 %v3268, 0.01
  %v3370 = vmul.f32 %v3273, 0.01
  %v3371 = vmul.f32 %v3278, 0.01
  %v3372 = vmul.f32 %v3283, 0.01
  %v3373 = vmul.f32 %v3288, 0.01
  %v3374 = vmul.f32 %v3293, 0.01
  %v3375 = vmul.f32 %v3298, 0.01
  %v3376 = vmul.f32 %v3303, 0.01
  %v3377 = vmul.f32 %v3308, 0.01
  %v3378 = vmul.f32 %v3313, 0.01
  %v3379 = vmul.f32 %v3318, 0.01
  %v3380 = vmul.f32 %v3323, 0.01
  %v3381 = vmul.f32 %v3328, 0.01
  %v3382 = vmax.f32 %v3078, %v3331
  %v3383 = vmax.f32 %v3083, %v3332
  %v3384 = vmax.f32 %v3088, %v3333
  %v3385 = vmax.f32 %v3093, %v3334
  %v3386 = vmax.f32 %v3098, %v3335
  %v3387 = vmax.f32 %v3103, %v3336
  %v3388 = vmax.f32 %v3108, %v3337
  %v3389 = vmax.f32 %v3113, %v3338
  %v3390 = vmax.f32 %v3118, %v3339
  %v3391 = vmax.f32 %v3123, %v3340
  %v3392 = vmax.f32 %v3128, %v3341
  %v3393 = vmax.f32 %v3133, %v3342
  %v3394 = vmax.f32 %v3138, %v3343
  %v3395 = vmax.f32 %v3143, %v3344
  %v3396 = vmax.f32 %v3148, %v3345
  %v3397 = vmax.f32 %v3153, %v3346
  %v3398 = vmax.f32 %v3158, %v3347
  %v3399 = vmax.f32 %v3163, %v3348
  %v3400 = vmax.f32 %v3168, %v3349
  %v3401 = vmax.f32 %v3173, %v3350
  %v3402 = vmax.f32 %v3178, %v3351
  %v3403 = vmax.f32 %v3183, %v3352
  %v3404 = vmax.f32 %v3188, %v3353
  %v3405 = vmax.f32 %v3193, %v3354
  %v3406 = vmax.f32 %v3198, %v3355
  %v3407 = vmax.f32 %v3203, %v3356
  %v3408 = vmax.f32 %v3208, %v3357
  %v3409 = vmax.f32 %v3213, %v3358
  %v3410 = vmax.f32 %v3218, %v3359
  %v3411 = vmax.f32 %v3223, %v3360
  %v3412 = vmax.f32 %v3228, %v3361
  %v3413 = vmax.f32 %v3233, %v3362
  %v3414 = vmax.f32 %v3238, %v3363
  %v3415 = vmax.f32 %v3243, %v3364
  %v3416 = vmax.f32 %v3248, %v3365
  %v3417 = vmax.f32 %v3253, %v3366
  %v3418 = vmax.f32 %v3258, %v3367
  %v3419 = vmax.f32 %v3263, %v3368
  %v3420 = vmax.f32 %v3268, %v3369
  %v3421 = vmax.f32 %v3273, %v3370
  %v3422 = vmax.f32 %v3278, %v3371
  %v3423 = vmax.f32 %v3283, %v3372
  %v3424 = vmax.f32 %v3288, %v3373
  %v3425 = vmax.f32 %v3293, %v3374
  %v3426 = vmax.f32 %v3298, %v3375
  %v3427 = vmax.f32 %v3303, %v3376
  %v3428 = vmax.f32 %v3308, %v3377
  %v3429 = vmax.f32 %v3313, %v3378
  %v3430 = vmax.f32 %v3318, %v3379
  %v3431 = vmax.f32 %v3323, %v3380
  %v3432 = vmax.f32 %v3328, %v3381
  %3433 = vst [vmem:[#allocation2] sm:$0xff] %v3382
  %3434 = vst [vmem:[#allocation2 + $0x8] sm:$0xff] %v3383
  %3435 = vst [vmem:[#allocation2 + $0x10] sm:$0xff] %v3384
  %3436 = vst [vmem:[#allocation2 + $0x18] sm:$0xff] %v3385
  %3437 = vst [vmem:[#allocation2 + $0x20] sm:$0xff] %v3386
  %3438 = vst [vmem:[#allocation2 + $0x28] sm:$0xff] %v3387
  %3439 = vst [vmem:[#allocation2 + $0x30] sm:$0xff] %v3388
  %3440 = vst [vmem:[#allocation2 + $0x38] sm:$0xff] %v3389
  %3441 = vst [vmem:[#allocation2 + $0x40] sm:$0xff] %v3390
  %3442 = vst [vmem:[#allocation2 + $0x48] sm:$0xff] %v3391
  %3443 = vst [vmem:[#allocation2 + $0x50] sm:$0xff] %v3392
  %3444 = vst [vmem:[#allocation2 + $0x58] sm:$0xff] %v3393
  %3445 = vst [vmem:[#allocation2 + $0x60] sm:$0xff] %v3394
  %3446 = vst [vmem:[#allocation2 + $0x68] sm:$0xff] %v3395
  %3447 = vst [vmem:[#allocation2 + $0x70] sm:$0xff] %v3396
  %3448 = vst [vmem:[#allocation2 + $0x78] sm:$0xff] %v3397
  %3449 = vst [vmem:[#allocation2 + $0x80] sm:$0xff] %v3398
  %3450 = vst [vmem:[#allocation2 + $0x88] sm:$0xff] %v3399
  %3451 = vst [vmem:[#allocation2 + $0x90] sm:$0xff] %v3400
  %3452 = vst [vmem:[#allocation2 + $0x98] sm:$0xff] %v3401
  %3453 = vst [vmem:[#allocation2 + $0xa0] sm:$0xff] %v3402
  %3454 = vst [vmem:[#allocation2 + $0xa8] sm:$0xff] %v3403
  %3455 = vst [vmem:[#allocation2 + $0xb0] sm:$0xff] %v3404
  %3456 = vst [vmem:[#allocation2 + $0xb8] sm:$0xff] %v3405
  %3457 = vst [vmem:[#allocation2 + $0xc0] sm:$0xff] %v3406
  %3458 = vst [vmem:[#allocation2 + $0xc8] sm:$0xff] %v3407
  %3459 = vst [vmem:[#allocation2 + $0xd0] sm:$0xff] %v3408
  %3460 = vst [vmem:[#allocation2 + $0xd8] sm:$0xff] %v3409
  %3461 = vst [vmem:[#allocation2 + $0xe0] sm:$0xff] %v3410
  %3462 = vst [vmem:[#allocation2 + $0xe8] sm:$0xff] %v3411
  %3463 = vst [vmem:[#allocation2 + $0xf0] sm:$0xff] %v3412
  %3464 = vst [vmem:[#allocation2 + $0xf8] sm:$0xff] %v3413
  %3465 = vst [vmem:[#allocation2 + $0x100] sm:$0xff] %v3414
  %3466 = vst [vmem:[#allocation2 + $0x108] sm:$0xff] %v3415
  %3467 = vst [vmem:[#allocation2 + $0x110] sm:$0xff] %v3416
  %3468 = vst [vmem:[#allocation2 + $0x118] sm:$0xff] %v3417
  %3469 = vst [vmem:[#allocation2 + $0x120] sm:$0xff] %v3418
  %3470 = vst [vmem:[#allocation2 + $0x128] sm:$0xff] %v3419
  %3471 = vst [vmem:[#allocation2 + $0x130] sm:$0xff] %v3420
  %3472 = vst [vmem:[#allocation2 + $0x138] sm:$0xff] %v3421
  %3473 = vst [vmem:[#allocation2 + $0x140] sm:$0xff] %v3422
  %3474 = vst [vmem:[#allocation2 + $0x148] sm:$0xff] %v3423
  %3475 = vst [vmem:[#allocation2 + $0x150] sm:$0xff] %v3424
  %3476 = vst [vmem:[#allocation2 + $0x158] sm:$0xff] %v3425
  %3477 = vst [vmem:[#allocation2 + $0x160] sm:$0xff] %v3426
  %3478 = vst [vmem:[#allocation2 + $0x168] sm:$0xff] %v3427
  %3479 = vst [vmem:[#allocation2 + $0x170] sm:$0xff] %v3428
  %3480 = vst [vmem:[#allocation2 + $0x178] sm:$0xff] %v3429
  %3481 = vst [vmem:[#allocation2 + $0x180] sm:$0xff] %v3430
  %3482 = vst [vmem:[#allocation2 + $0x188] sm:$0xff] %v3431
  %3483 = vst [vmem:[#allocation2 + $0x190] sm:$0xff] %v3432
  %v3484 = vld [vmem:[#allocation2] sm:$0xff]
  %v3485 = vld [vmem:[#allocation2 + $0x8] sm:$0xff]
  %v3486 = vld [vmem:[#allocation2 + $0x10] sm:$0xff]
  %v3487 = vld [vmem:[#allocation2 + $0x18] sm:$0xff]
  %v3488 = vld [vmem:[#allocation2 + $0x20] sm:$0xff]
  %v3489 = vld [vmem:[#allocation2 + $0x28] sm:$0xff]
  %v3490 = vld [vmem:[#allocation2 + $0x30] sm:$0xff]
  %v3491 = vld [vmem:[#allocation2 + $0x38] sm:$0xff]
  %v3492 = vld [vmem:[#allocation2 + $0x40] sm:$0xff]
  %v3493 = vld [vmem:[#allocation2 + $0x48] sm:$0xff]
  %v3494 = vld [vmem:[#allocation2 + $0x50] sm:$0xff]
  %v3495 = vld [vmem:[#allocation2 + $0x58] sm:$0xff]
  %v3496 = vld [vmem:[#allocation2 + $0x60] sm:$0xff]
  %v3497 = vld [vmem:[#allocation2 + $0x68] sm:$0xff]
  %v3498 = vld [vmem:[#allocation2 + $0x70] sm:$0xff]
  %v3499 = vld [vmem:[#allocation2 + $0x78] sm:$0xff]
  %v3500 = vld [vmem:[#allocation2 + $0x1] sm:$0xff]
  %v3501 = vld [vmem:[#allocation2 + $0x9] sm:$0xff]
  %v3502 = vld [vmem:[#allocation2 + $0x11] sm:$0xff]
  %v3503 = vld [vmem:[#allocation2 + $0x19] sm:$0xff]
  %v3504 = vld [vmem:[#allocation2 + $0x21] sm:$0xff]
  %v3505 = vld [vmem:[#allocation2 + $0x29] sm:$0xff]
  %v3506 = vld [vmem:[#allocation2 + $0x31] sm:$0xff]
  %v3507 = vld [vmem:[#allocation2 + $0x39] sm:$0xff]
  %v3508 = vld [vmem:[#allocation2 + $0x41] sm:$0xff]
  %v3509 = vld [vmem:[#allocation2 + $0x49] sm:$0xff]
  %v3510 = vld [vmem:[#allocation2 + $0x51] sm:$0xff]
  %v3511 = vld [vmem:[#allocation2 + $0x59] sm:$0xff]
  %v3512 = vld [vmem:[#allocation2 + $0x61] sm:$0xff]
  %v3513 = vld [vmem:[#allocation2 + $0x69] sm:$0xff]
  %v3514 = vld [vmem:[#allocation2 + $0x71] sm:$0xff]
  %v3515 = vld [vmem:[#allocation2 + $0x79] sm:$0xff]
  %3516 = vrot.lane.b32.xlu0 %v3500, 4
  %v3517 = vpop.permute.xlu0 %3516
  %3518 = vrot.lane.b32.xlu0 %v3501, 4
  %v3519 = vpop.permute.xlu0 %3518
  %3520 = vrot.lane.b32.xlu0 %v3502, 4
  %v3521 = vpop.permute.xlu0 %3520
  %3522 = vrot.lane.b32.xlu0 %v3503, 4
  %v3523 = vpop.permute.xlu0 %3522
  %3524 = vrot.lane.b32.xlu0 %v3504, 4
  %v3525 = vpop.permute.xlu0 %3524
  %3526 = vrot.lane.b32.xlu0 %v3505, 4
  %v3527 = vpop.permute.xlu0 %3526
  %3528 = vrot.lane.b32.xlu0 %v3506, 4
  %v3529 = vpop.permute.xlu0 %3528
  %3530 = vrot.lane.b32.xlu0 %v3507, 4
  %v3531 = vpop.permute.xlu0 %3530
  %3532 = vrot.lane.b32.xlu0 %v3508, 4
  %v3533 = vpop.permute.xlu0 %3532
  %3534 = vrot.lane.b32.xlu0 %v3509, 4
  %v3535 = vpop.permute.xlu0 %3534
  %3536 = vrot.lane.b32.xlu0 %v3510, 4
  %v3537 = vpop.permute.xlu0 %3536
  %3538 = vrot.lane.b32.xlu0 %v3511, 4
  %v3539 = vpop.permute.xlu0 %3538
  %3540 = vrot.lane.b32.xlu0 %v3512, 4
  %v3541 = vpop.permute.xlu0 %3540
  %3542 = vrot.lane.b32.xlu0 %v3513, 4
  %v3543 = vpop.permute.xlu0 %3542
  %3544 = vrot.lane.b32.xlu0 %v3514, 4
  %v3545 = vpop.permute.xlu0 %3544
  %3546 = vrot.lane.b32.xlu0 %v3515, 4
  %v3547 = vpop.permute.xlu0 %3546
  %v3548 = vadd.f32 %v3484, %v3517
  %v3549 = vadd.f32 %v3485, %v3519
  %v3550 = vadd.f32 %v3486, %v3521
  %v3551 = vadd.f32 %v3487, %v3523
  %v3552 = vadd.f32 %v3488, %v3525
  %v3553 = vadd.f32 %v3489, %v3527
  %v3554 = vadd.f32 %v3490, %v3529
  %v3555 = vadd.f32 %v3491, %v3531
  %v3556 = vadd.f32 %v3492, %v3533
  %v3557 = vadd.f32 %v3493, %v3535
  %v3558 = vadd.f32 %v3494, %v3537
  %v3559 = vadd.f32 %v3495, %v3539
  %v3560 = vadd.f32 %v3496, %v3541
  %v3561 = vadd.f32 %v3497, %v3543
  %v3562 = vadd.f32 %v3498, %v3545
  %v3563 = vadd.f32 %v3499, %v3547
  %v3564 = vld [vmem:[#allocation2 + $0x2] sm:$0xff]
  %v3565 = vld [vmem:[#allocation2 + $0xa] sm:$0xff]
  %v3566 = vld [vmem:[#allocation2 + $0x12] sm:$0xff]
  %v3567 = vld [vmem:[#allocation2 + $0x1a] sm:$0xff]
  %v3568 = vld [vmem:[#allocation2 + $0x22] sm:$0xff]
  %v3569 = vld [vmem:[#allocation2 + $0x2a] sm:$0xff]
  %v3570 = vld [vmem:[#allocation2 + $0x32] sm:$0xff]
  %v3571 = vld [vmem:[#allocation2 + $0x3a] sm:$0xff]
  %v3572 = vld [vmem:[#allocation2 + $0x42] sm:$0xff]
  %v3573 = vld [vmem:[#allocation2 + $0x4a] sm:$0xff]
  %v3574 = vld [vmem:[#allocation2 + $0x52] sm:$0xff]
  %v3575 = vld [vmem:[#allocation2 + $0x5a] sm:$0xff]
  %v3576 = vld [vmem:[#allocation2 + $0x62] sm:$0xff]
  %v3577 = vld [vmem:[#allocation2 + $0x6a] sm:$0xff]
  %v3578 = vld [vmem:[#allocation2 + $0x72] sm:$0xff]
  %v3579 = vld [vmem:[#allocation2 + $0x7a] sm:$0xff]
  %3580 = vrot.lane.b32.xlu0 %v3564, 8
  %v3581 = vpop.permute.xlu0 %3580
  %3582 = vrot.lane.b32.xlu0 %v3565, 8
  %v3583 = vpop.permute.xlu0 %3582
  %3584 = vrot.lane.b32.xlu0 %v3566, 8
  %v3585 = vpop.permute.xlu0 %3584
  %3586 = vrot.lane.b32.xlu0 %v3567, 8
  %v3587 = vpop.permute.xlu0 %3586
  %3588 = vrot.lane.b32.xlu0 %v3568, 8
  %v3589 = vpop.permute.xlu0 %3588
  %3590 = vrot.lane.b32.xlu0 %v3569, 8
  %v3591 = vpop.permute.xlu0 %3590
  %3592 = vrot.lane.b32.xlu0 %v3570, 8
  %v3593 = vpop.permute.xlu0 %3592
  %3594 = vrot.lane.b32.xlu0 %v3571, 8
  %v3595 = vpop.permute.xlu0 %3594
  %3596 = vrot.lane.b32.xlu0 %v3572, 8
  %v3597 = vpop.permute.xlu0 %3596
  %3598 = vrot.lane.b32.xlu0 %v3573, 8
  %v3599 = vpop.permute.xlu0 %3598
  %3600 = vrot.lane.b32.xlu0 %v3574, 8
  %v3601 = vpop.permute.xlu0 %3600
  %3602 = vrot.lane.b32.xlu0 %v3575, 8
  %v3603 = vpop.permute.xlu0 %3602
  %3604 = vrot.lane.b32.xlu0 %v3576, 8
  %v3605 = vpop.permute.xlu0 %3604
  %3606 = vrot.lane.b32.xlu0 %v3577, 8
  %v3607 = vpop.permute.xlu0 %3606
  %3608 = vrot.lane.b32.xlu0 %v3578, 8
  %v3609 = vpop.permute.xlu0 %3608
  %3610 = vrot.lane.b32.xlu0 %v3579, 8
  %v3611 = vpop.permute.xlu0 %3610
  %v3612 = vadd.f32 %v3548, %v3581
  %v3613 = vadd.f32 %v3549, %v3583
  %v3614 = vadd.f32 %v3550, %v3585
  %v3615 = vadd.f32 %v3551, %v3587
  %v3616 = vadd.f32 %v3552, %v3589
  %v3617 = vadd.f32 %v3553, %v3591
  %v3618 = vadd.f32 %v3554, %v3593
  %v3619 = vadd.f32 %v3555, %v3595
  %v3620 = vadd.f32 %v3556, %v3597
  %v3621 = vadd.f32 %v3557, %v3599
  %v3622 = vadd.f32 %v3558, %v3601
  %v3623 = vadd.f32 %v3559, %v3603
  %v3624 = vadd.f32 %v3560, %v3605
  %v3625 = vadd.f32 %v3561, %v3607
  %v3626 = vadd.f32 %v3562, %v3609
  %v3627 = vadd.f32 %v3563, %v3611
  %v3628 = vld [vmem:[#allocation2 + $0x15] sm:$0xff]
  %v3629 = vld [vmem:[#allocation2 + $0x1d] sm:$0xff]
  %v3630 = vld [vmem:[#allocation2 + $0x25] sm:$0xff]
  %v3631 = vld [vmem:[#allocation2 + $0x2d] sm:$0xff]
  %v3632 = vld [vmem:[#allocation2 + $0x35] sm:$0xff]
  %v3633 = vld [vmem:[#allocation2 + $0x3d] sm:$0xff]
  %v3634 = vld [vmem:[#allocation2 + $0x45] sm:$0xff]
  %v3635 = vld [vmem:[#allocation2 + $0x4d] sm:$0xff]
  %v3636 = vld [vmem:[#allocation2 + $0x55] sm:$0xff]
  %v3637 = vld [vmem:[#allocation2 + $0x5d] sm:$0xff]
  %v3638 = vld [vmem:[#allocation2 + $0x65] sm:$0xff]
  %v3639 = vld [vmem:[#allocation2 + $0x6d] sm:$0xff]
  %v3640 = vld [vmem:[#allocation2 + $0x75] sm:$0xff]
  %v3641 = vld [vmem:[#allocation2 + $0x7d] sm:$0xff]
  %v3642 = vld [vmem:[#allocation2 + $0x85] sm:$0xff]
  %v3643 = vld [vmem:[#allocation2 + $0x8d] sm:$0xff]
  %3644 = vrot.lane.b32.xlu0 %v3628, 12
  %v3645 = vpop.permute.xlu0 %3644
  %3646 = vrot.lane.b32.xlu0 %v3629, 12
  %v3647 = vpop.permute.xlu0 %3646
  %3648 = vrot.lane.b32.xlu0 %v3630, 12
  %v3649 = vpop.permute.xlu0 %3648
  %3650 = vrot.lane.b32.xlu0 %v3631, 12
  %v3651 = vpop.permute.xlu0 %3650
  %3652 = vrot.lane.b32.xlu0 %v3632, 12
  %v3653 = vpop.permute.xlu0 %3652
  %3654 = vrot.lane.b32.xlu0 %v3633, 12
  %v3655 = vpop.permute.xlu0 %3654
  %3656 = vrot.lane.b32.xlu0 %v3634, 12
  %v3657 = vpop.permute.xlu0 %3656
  %3658 = vrot.lane.b32.xlu0 %v3635, 12
  %v3659 = vpop.permute.xlu0 %3658
  %3660 = vrot.lane.b32.xlu0 %v3636, 12
  %v3661 = vpop.permute.xlu0 %3660
  %3662 = vrot.lane.b32.xlu0 %v3637, 12
  %v3663 = vpop.permute.xlu0 %3662
  %3664 = vrot.lane.b32.xlu0 %v3638, 12
  %v3665 = vpop.permute.xlu0 %3664
  %3666 = vrot.lane.b32.xlu0 %v3639, 12
  %v3667 = vpop.permute.xlu0 %3666
  %3668 = vrot.lane.b32.xlu0 %v3640, 12
  %v3669 = vpop.permute.xlu0 %3668
  %3670 = vrot.lane.b32.xlu0 %v3641, 12
  %v3671 = vpop.permute.xlu0 %3670
  %3672 = vrot.lane.b32.xlu0 %v3642, 12
  %v3673 = vpop.permute.xlu0 %3672
  %3674 = vrot.lane.b32.xlu0 %v3643, 12
  %v3675 = vpop.permute.xlu0 %3674
  %v3676 = vadd.f32 %v3612, %v3645
  %v3677 = vadd.f32 %v3613, %v3647
  %v3678 = vadd.f32 %v3614, %v3649
  %v3679 = vadd.f32 %v3615, %v3651
  %v3680 = vadd.f32 %v3616, %v3653
  %v3681 = vadd.f32 %v3617, %v3655
  %v3682 = vadd.f32 %v3618, %v3657
  %v3683 = vadd.f32 %v3619, %v3659
  %v3684 = vadd.f32 %v3620, %v3661
  %v3685 = vadd.f32 %v3621, %v3663
  %v3686 = vadd.f32 %v3622, %v3665
  %v3687 = vadd.f32 %v3623, %v3667
  %v3688 = vadd.f32 %v3624, %v3669
  %v3689 = vadd.f32 %v3625, %v3671
  %v3690 = vadd.f32 %v3626, %v3673
  %v3691 = vadd.f32 %v3627, %v3675
  %v3692 = vld [vmem:[#allocation2 + $0x16] sm:$0xff]
  %v3693 = vld [vmem:[#allocation2 + $0x1e] sm:$0xff]
  %v3694 = vld [vmem:[#allocation2 + $0x26] sm:$0xff]
  %v3695 = vld [vmem:[#allocation2 + $0x2e] sm:$0xff]
  %v3696 = vld [vmem:[#allocation2 + $0x36] sm:$0xff]
  %v3697 = vld [vmem:[#allocation2 + $0x3e] sm:$0xff]
  %v3698 = vld [vmem:[#allocation2 + $0x46] sm:$0xff]
  %v3699 = vld [vmem:[#allocation2 + $0x4e] sm:$0xff]
  %v3700 = vld [vmem:[#allocation2 + $0x56] sm:$0xff]
  %v3701 = vld [vmem:[#allocation2 + $0x5e] sm:$0xff]
  %v3702 = vld [vmem:[#allocation2 + $0x66] sm:$0xff]
  %v3703 = vld [vmem:[#allocation2 + $0x6e] sm:$0xff]
  %v3704 = vld [vmem:[#allocation2 + $0x76] sm:$0xff]
  %v3705 = vld [vmem:[#allocation2 + $0x7e] sm:$0xff]
  %v3706 = vld [vmem:[#allocation2 + $0x86] sm:$0xff]
  %v3707 = vld [vmem:[#allocation2 + $0x8e] sm:$0xff]
  %3708 = vrot.lane.b32.xlu0 %v3692, 16
  %v3709 = vpop.permute.xlu0 %3708
  %3710 = vrot.lane.b32.xlu0 %v3693, 16
  %v3711 = vpop.permute.xlu0 %3710
  %3712 = vrot.lane.b32.xlu0 %v3694, 16
  %v3713 = vpop.permute.xlu0 %3712
  %3714 = vrot.lane.b32.xlu0 %v3695, 16
  %v3715 = vpop.permute.xlu0 %3714
  %3716 = vrot.lane.b32.xlu0 %v3696, 16
  %v3717 = vpop.permute.xlu0 %3716
  %3718 = vrot.lane.b32.xlu0 %v3697, 16
  %v3719 = vpop.permute.xlu0 %3718
  %3720 = vrot.lane.b32.xlu0 %v3698, 16
  %v3721 = vpop.permute.xlu0 %3720
  %3722 = vrot.lane.b32.xlu0 %v3699, 16
  %v3723 = vpop.permute.xlu0 %3722
  %3724 = vrot.lane.b32.xlu0 %v3700, 16
  %v3725 = vpop.permute.xlu0 %3724
  %3726 = vrot.lane.b32.xlu0 %v3701, 16
  %v3727 = vpop.permute.xlu0 %3726
  %3728 = vrot.lane.b32.xlu0 %v3702, 16
  %v3729 = vpop.permute.xlu0 %3728
  %3730 = vrot.lane.b32.xlu0 %v3703, 16
  %v3731 = vpop.permute.xlu0 %3730
  %3732 = vrot.lane.b32.xlu0 %v3704, 16
  %v3733 = vpop.permute.xlu0 %3732
  %3734 = vrot.lane.b32.xlu0 %v3705, 16
  %v3735 = vpop.permute.xlu0 %3734
  %3736 = vrot.lane.b32.xlu0 %v3706, 16
  %v3737 = vpop.permute.xlu0 %3736
  %3738 = vrot.lane.b32.xlu0 %v3707, 16
  %v3739 = vpop.permute.xlu0 %3738
  %v3740 = vadd.f32 %v3676, %v3709
  %v3741 = vadd.f32 %v3677, %v3711
  %v3742 = vadd.f32 %v3678, %v3713
  %v3743 = vadd.f32 %v3679, %v3715
  %v3744 = vadd.f32 %v3680, %v3717
  %v3745 = vadd.f32 %v3681, %v3719
  %v3746 = vadd.f32 %v3682, %v3721
  %v3747 = vadd.f32 %v3683, %v3723
  %v3748 = vadd.f32 %v3684, %v3725
  %v3749 = vadd.f32 %v3685, %v3727
  %v3750 = vadd.f32 %v3686, %v3729
  %v3751 = vadd.f32 %v3687, %v3731
  %v3752 = vadd.f32 %v3688, %v3733
  %v3753 = vadd.f32 %v3689, %v3735
  %v3754 = vadd.f32 %v3690, %v3737
  %v3755 = vadd.f32 %v3691, %v3739
  %v3756 = vld [vmem:[#allocation2 + $0x17] sm:$0xff]
  %v3757 = vld [vmem:[#allocation2 + $0x1f] sm:$0xff]
  %v3758 = vld [vmem:[#allocation2 + $0x27] sm:$0xff]
  %v3759 = vld [vmem:[#allocation2 + $0x2f] sm:$0xff]
  %v3760 = vld [vmem:[#allocation2 + $0x37] sm:$0xff]
  %v3761 = vld [vmem:[#allocation2 + $0x3f] sm:$0xff]
  %v3762 = vld [vmem:[#allocation2 + $0x47] sm:$0xff]
  %v3763 = vld [vmem:[#allocation2 + $0x4f] sm:$0xff]
  %v3764 = vld [vmem:[#allocation2 + $0x57] sm:$0xff]
  %v3765 = vld [vmem:[#allocation2 + $0x5f] sm:$0xff]
  %v3766 = vld [vmem:[#allocation2 + $0x67] sm:$0xff]
  %v3767 = vld [vmem:[#allocation2 + $0x6f] sm:$0xff]
  %v3768 = vld [vmem:[#allocation2 + $0x77] sm:$0xff]
  %v3769 = vld [vmem:[#allocation2 + $0x7f] sm:$0xff]
  %v3770 = vld [vmem:[#allocation2 + $0x87] sm:$0xff]
  %v3771 = vld [vmem:[#allocation2 + $0x8f] sm:$0xff]
  %3772 = vrot.lane.b32.xlu0 %v3756, 20
  %v3773 = vpop.permute.xlu0 %3772
  %3774 = vrot.lane.b32.xlu0 %v3757, 20
  %v3775 = vpop.permute.xlu0 %3774
  %3776 = vrot.lane.b32.xlu0 %v3758, 20
  %v3777 = vpop.permute.xlu0 %3776
  %3778 = vrot.lane.b32.xlu0 %v3759, 20
  %v3779 = vpop.permute.xlu0 %3778
  %3780 = vrot.lane.b32.xlu0 %v3760, 20
  %v3781 = vpop.permute.xlu0 %3780
  %3782 = vrot.lane.b32.xlu0 %v3761, 20
  %v3783 = vpop.permute.xlu0 %3782
  %3784 = vrot.lane.b32.xlu0 %v3762, 20
  %v3785 = vpop.permute.xlu0 %3784
  %3786 = vrot.lane.b32.xlu0 %v3763, 20
  %v3787 = vpop.permute.xlu0 %3786
  %3788 = vrot.lane.b32.xlu0 %v3764, 20
  %v3789 = vpop.permute.xlu0 %3788
  %3790 = vrot.lane.b32.xlu0 %v3765, 20
  %v3791 = vpop.permute.xlu0 %3790
  %3792 = vrot.lane.b32.xlu0 %v3766, 20
  %v3793 = vpop.permute.xlu0 %3792
  %3794 = vrot.lane.b32.xlu0 %v3767, 20
  %v3795 = vpop.permute.xlu0 %3794
  %3796 = vrot.lane.b32.xlu0 %v3768, 20
  %v3797 = vpop.permute.xlu0 %3796
  %3798 = vrot.lane.b32.xlu0 %v3769, 20
  %v3799 = vpop.permute.xlu0 %3798
  %3800 = vrot.lane.b32.xlu0 %v3770, 20
  %v3801 = vpop.permute.xlu0 %3800
  %3802 = vrot.lane.b32.xlu0 %v3771, 20
  %v3803 = vpop.permute.xlu0 %3802
  %v3804 = vadd.f32 %v3740, %v3773
  %v3805 = vadd.f32 %v3741, %v3775
  %v3806 = vadd.f32 %v3742, %v3777
  %v3807 = vadd.f32 %v3743, %v3779
  %v3808 = vadd.f32 %v3744, %v3781
  %v3809 = vadd.f32 %v3745, %v3783
  %v3810 = vadd.f32 %v3746, %v3785
  %v3811 = vadd.f32 %v3747, %v3787
  %v3812 = vadd.f32 %v3748, %v3789
  %v3813 = vadd.f32 %v3749, %v3791
  %v3814 = vadd.f32 %v3750, %v3793
  %v3815 = vadd.f32 %v3751, %v3795
  %v3816 = vadd.f32 %v3752, %v3797
  %v3817 = vadd.f32 %v3753, %v3799
  %v3818 = vadd.f32 %v3754, %v3801
  %v3819 = vadd.f32 %v3755, %v3803
  %v3820 = vld [vmem:[#allocation2 + $0x82] sm:$0xff]
  %v3821 = vld [vmem:[#allocation2 + $0x8a] sm:$0xff]
  %v3822 = vld [vmem:[#allocation2 + $0x92] sm:$0xff]
  %v3823 = vld [vmem:[#allocation2 + $0x9a] sm:$0xff]
  %v3824 = vld [vmem:[#allocation2 + $0xa2] sm:$0xff]
  %3825 = vrot.lane.b32.xlu0 %v3569, 24
  %v3826 = vpop.permute.xlu0 %3825
  %3827 = vrot.lane.b32.xlu0 %v3570, 24
  %v3828 = vpop.permute.xlu0 %3827
  %3829 = vrot.lane.b32.xlu0 %v3571, 24
  %v3830 = vpop.permute.xlu0 %3829
  %3831 = vrot.lane.b32.xlu0 %v3572, 24
  %v3832 = vpop.permute.xlu0 %3831
  %3833 = vrot.lane.b32.xlu0 %v3573, 24
  %v3834 = vpop.permute.xlu0 %3833
  %3835 = vrot.lane.b32.xlu0 %v3574, 24
  %v3836 = vpop.permute.xlu0 %3835
  %3837 = vrot.lane.b32.xlu0 %v3575, 24
  %v3838 = vpop.permute.xlu0 %3837
  %3839 = vrot.lane.b32.xlu0 %v3576, 24
  %v3840 = vpop.permute.xlu0 %3839
  %3841 = vrot.lane.b32.xlu0 %v3577, 24
  %v3842 = vpop.permute.xlu0 %3841
  %3843 = vrot.lane.b32.xlu0 %v3578, 24
  %v3844 = vpop.permute.xlu0 %3843
  %3845 = vrot.lane.b32.xlu0 %v3579, 24
  %v3846 = vpop.permute.xlu0 %3845
  %3847 = vrot.lane.b32.xlu0 %v3820, 24
  %v3848 = vpop.permute.xlu0 %3847
  %3849 = vrot.lane.b32.xlu0 %v3821, 24
  %v3850 = vpop.permute.xlu0 %3849
  %3851 = vrot.lane.b32.xlu0 %v3822, 24
  %v3852 = vpop.permute.xlu0 %3851
  %3853 = vrot.lane.b32.xlu0 %v3823, 24
  %v3854 = vpop.permute.xlu0 %3853
  %3855 = vrot.lane.b32.xlu0 %v3824, 24
  %v3856 = vpop.permute.xlu0 %3855
  %v3857 = vadd.f32 %v3804, %v3826
  %v3858 = vadd.f32 %v3805, %v3828
  %v3859 = vadd.f32 %v3806, %v3830
  %v3860 = vadd.f32 %v3807, %v3832
  %v3861 = vadd.f32 %v3808, %v3834
  %v3862 = vadd.f32 %v3809, %v3836
  %v3863 = vadd.f32 %v3810, %v3838
  %v3864 = vadd.f32 %v3811, %v3840
  %v3865 = vadd.f32 %v3812, %v3842
  %v3866 = vadd.f32 %v3813, %v3844
  %v3867 = vadd.f32 %v3814, %v3846
  %v3868 = vadd.f32 %v3815, %v3848
  %v3869 = vadd.f32 %v3816, %v3850
  %v3870 = vadd.f32 %v3817, %v3852
  %v3871 = vadd.f32 %v3818, %v3854
  %v3872 = vadd.f32 %v3819, %v3856
  %v3873 = vld [vmem:[#allocation2 + $0x2b] sm:$0xff]
  %v3874 = vld [vmem:[#allocation2 + $0x33] sm:$0xff]
  %v3875 = vld [vmem:[#allocation2 + $0x3b] sm:$0xff]
  %v3876 = vld [vmem:[#allocation2 + $0x43] sm:$0xff]
  %v3877 = vld [vmem:[#allocation2 + $0x4b] sm:$0xff]
  %v3878 = vld [vmem:[#allocation2 + $0x53] sm:$0xff]
  %v3879 = vld [vmem:[#allocation2 + $0x5b] sm:$0xff]
  %v3880 = vld [vmem:[#allocation2 + $0x63] sm:$0xff]
  %v3881 = vld [vmem:[#allocation2 + $0x6b] sm:$0xff]
  %v3882 = vld [vmem:[#allocation2 + $0x73] sm:$0xff]
  %v3883 = vld [vmem:[#allocation2 + $0x7b] sm:$0xff]
  %v3884 = vld [vmem:[#allocation2 + $0x83] sm:$0xff]
  %v3885 = vld [vmem:[#allocation2 + $0x8b] sm:$0xff]
  %v3886 = vld [vmem:[#allocation2 + $0x93] sm:$0xff]
  %v3887 = vld [vmem:[#allocation2 + $0x9b] sm:$0xff]
  %v3888 = vld [vmem:[#allocation2 + $0xa3] sm:$0xff]
  %3889 = vrot.lane.b32.xlu0 %v3873, 28
  %v3890 = vpop.permute.xlu0 %3889
  %3891 = vrot.lane.b32.xlu0 %v3874, 28
  %v3892 = vpop.permute.xlu0 %3891
  %3893 = vrot.lane.b32.xlu0 %v3875, 28
  %v3894 = vpop.permute.xlu0 %3893
  %3895 = vrot.lane.b32.xlu0 %v3876, 28
  %v3896 = vpop.permute.xlu0 %3895
  %3897 = vrot.lane.b32.xlu0 %v3877, 28
  %v3898 = vpop.permute.xlu0 %3897
  %3899 = vrot.lane.b32.xlu0 %v3878, 28
  %v3900 = vpop.permute.xlu0 %3899
  %3901 = vrot.lane.b32.xlu0 %v3879, 28
  %v3902 = vpop.permute.xlu0 %3901
  %3903 = vrot.lane.b32.xlu0 %v3880, 28
  %v3904 = vpop.permute.xlu0 %3903
  %3905 = vrot.lane.b32.xlu0 %v3881, 28
  %v3906 = vpop.permute.xlu0 %3905
  %3907 = vrot.lane.b32.xlu0 %v3882, 28
  %v3908 = vpop.permute.xlu0 %3907
  %3909 = vrot.lane.b32.xlu0 %v3883, 28
  %v3910 = vpop.permute.xlu0 %3909
  %3911 = vrot.lane.b32.xlu0 %v3884, 28
  %v3912 = vpop.permute.xlu0 %3911
  %3913 = vrot.lane.b32.xlu0 %v3885, 28
  %v3914 = vpop.permute.xlu0 %3913
  %3915 = vrot.lane.b32.xlu0 %v3886, 28
  %v3916 = vpop.permute.xlu0 %3915
  %3917 = vrot.lane.b32.xlu0 %v3887, 28
  %v3918 = vpop.permute.xlu0 %3917
  %3919 = vrot.lane.b32.xlu0 %v3888, 28
  %v3920 = vpop.permute.xlu0 %3919
  %v3921 = vadd.f32 %v3857, %v3890
  %v3922 = vadd.f32 %v3858, %v3892
  %v3923 = vadd.f32 %v3859, %v3894
  %v3924 = vadd.f32 %v3860, %v3896
  %v3925 = vadd.f32 %v3861, %v3898
  %v3926 = vadd.f32 %v3862, %v3900
  %v3927 = vadd.f32 %v3863, %v3902
  %v3928 = vadd.f32 %v3864, %v3904
  %v3929 = vadd.f32 %v3865, %v3906
  %v3930 = vadd.f32 %v3866, %v3908
  %v3931 = vadd.f32 %v3867, %v3910
  %v3932 = vadd.f32 %v3868, %v3912
  %v3933 = vadd.f32 %v3869, %v3914
  %v3934 = vadd.f32 %v3870, %v3916
  %v3935 = vadd.f32 %v3871, %v3918
  %v3936 = vadd.f32 %v3872, %v3920
  %v3937 = vld [vmem:[#allocation2 + $0x2c] sm:$0xff]
  %v3938 = vld [vmem:[#allocation2 + $0x34] sm:$0xff]
  %v3939 = vld [vmem:[#allocation2 + $0x3c] sm:$0xff]
  %v3940 = vld [vmem:[#allocation2 + $0x44] sm:$0xff]
  %v3941 = vld [vmem:[#allocation2 + $0x4c] sm:$0xff]
  %v3942 = vld [vmem:[#allocation2 + $0x54] sm:$0xff]
  %v3943 = vld [vmem:[#allocation2 + $0x5c] sm:$0xff]
  %v3944 = vld [vmem:[#allocation2 + $0x64] sm:$0xff]
  %v3945 = vld [vmem:[#allocation2 + $0x6c] sm:$0xff]
  %v3946 = vld [vmem:[#allocation2 + $0x74] sm:$0xff]
  %v3947 = vld [vmem:[#allocation2 + $0x7c] sm:$0xff]
  %v3948 = vld [vmem:[#allocation2 + $0x84] sm:$0xff]
  %v3949 = vld [vmem:[#allocation2 + $0x8c] sm:$0xff]
  %v3950 = vld [vmem:[#allocation2 + $0x94] sm:$0xff]
  %v3951 = vld [vmem:[#allocation2 + $0x9c] sm:$0xff]
  %v3952 = vld [vmem:[#allocation2 + $0xa4] sm:$0xff]
  %3953 = vrot.lane.b32.xlu0 %v3937, 32
  %v3954 = vpop.permute.xlu0 %3953
  %3955 = vrot.lane.b32.xlu0 %v3938, 32
  %v3956 = vpop.permute.xlu0 %3955
  %3957 = vrot.lane.b32.xlu0 %v3939, 32
  %v3958 = vpop.permute.xlu0 %3957
  %3959 = vrot.lane.b32.xlu0 %v3940, 32
  %v3960 = vpop.permute.xlu0 %3959
  %3961 = vrot.lane.b32.xlu0 %v3941, 32
  %v3962 = vpop.permute.xlu0 %3961
  %3963 = vrot.lane.b32.xlu0 %v3942, 32
  %v3964 = vpop.permute.xlu0 %3963
  %3965 = vrot.lane.b32.xlu0 %v3943, 32
  %v3966 = vpop.permute.xlu0 %3965
  %3967 = vrot.lane.b32.xlu0 %v3944, 32
  %v3968 = vpop.permute.xlu0 %3967
  %3969 = vrot.lane.b32.xlu0 %v3945, 32
  %v3970 = vpop.permute.xlu0 %3969
  %3971 = vrot.lane.b32.xlu0 %v3946, 32
  %v3972 = vpop.permute.xlu0 %3971
  %3973 = vrot.lane.b32.xlu0 %v3947, 32
  %v3974 = vpop.permute.xlu0 %3973
  %3975 = vrot.lane.b32.xlu0 %v3948, 32
  %v3976 = vpop.permute.xlu0 %3975
  %3977 = vrot.lane.b32.xlu0 %v3949, 32
  %v3978 = vpop.permute.xlu0 %3977
  %3979 = vrot.lane.b32.xlu0 %v3950, 32
  %v3980 = vpop.permute.xlu0 %3979
  %3981 = vrot.lane.b32.xlu0 %v3951, 32
  %v3982 = vpop.permute.xlu0 %3981
  %3983 = vrot.lane.b32.xlu0 %v3952, 32
  %v3984 = vpop.permute.xlu0 %3983
  %v3985 = vadd.f32 %v3921, %v3954
  %v3986 = vadd.f32 %v3922, %v3956
  %v3987 = vadd.f32 %v3923, %v3958
  %v3988 = vadd.f32 %v3924, %v3960
  %v3989 = vadd.f32 %v3925, %v3962
  %v3990 = vadd.f32 %v3926, %v3964
  %v3991 = vadd.f32 %v3927, %v3966
  %v3992 = vadd.f32 %v3928, %v3968
  %v3993 = vadd.f32 %v3929, %v3970
  %v3994 = vadd.f32 %v3930, %v3972
  %v3995 = vadd.f32 %v3931, %v3974
  %v3996 = vadd.f32 %v3932, %v3976
  %v3997 = vadd.f32 %v3933, %v3978
  %v3998 = vadd.f32 %v3934, %v3980
  %v3999 = vadd.f32 %v3935, %v3982
  %v4000 = vadd.f32 %v3936, %v3984
  %4001 = vst [vmem:[#allocation3] sm:$0xff] %v3985
  %4002 = vst [vmem:[#allocation3 + $0x8] sm:$0xff] %v3986
  %4003 = vst [vmem:[#allocation3 + $0x10] sm:$0xff] %v3987
  %4004 = vst [vmem:[#allocation3 + $0x18] sm:$0xff] %v3988
  %4005 = vst [vmem:[#allocation3 + $0x20] sm:$0xff] %v3989
  %4006 = vst [vmem:[#allocation3 + $0x28] sm:$0xff] %v3990
  %4007 = vst [vmem:[#allocation3 + $0x30] sm:$0xff] %v3991
  %4008 = vst [vmem:[#allocation3 + $0x38] sm:$0xff] %v3992
  %4009 = vst [vmem:[#allocation3 + $0x40] sm:$0xff] %v3993
  %4010 = vst [vmem:[#allocation3 + $0x48] sm:$0xff] %v3994
  %4011 = vst [vmem:[#allocation3 + $0x50] sm:$0xff] %v3995
  %4012 = vst [vmem:[#allocation3 + $0x58] sm:$0xff] %v3996
  %4013 = vst [vmem:[#allocation3 + $0x60] sm:$0xff] %v3997
  %4014 = vst [vmem:[#allocation3 + $0x68] sm:$0xff] %v3998
  %4015 = vst [vmem:[#allocation3 + $0x70] sm:$0xff] %v3999
  %4016 = vst [vmem:[#allocation3 + $0x78] sm:$0xff] %v4000
  %v4017 = vld [vmem:[#allocation2 + $0x80] sm:$0xff]
  %v4018 = vld [vmem:[#allocation2 + $0x88] sm:$0xff]
  %v4019 = vld [vmem:[#allocation2 + $0x90] sm:$0xff]
  %v4020 = vld [vmem:[#allocation2 + $0x98] sm:$0xff]
  %v4021 = vld [vmem:[#allocation2 + $0xa0] sm:$0xff]
  %v4022 = vld [vmem:[#allocation2 + $0xa8] sm:$0xff]
  %v4023 = vld [vmem:[#allocation2 + $0xb0] sm:$0xff]
  %v4024 = vld [vmem:[#allocation2 + $0xb8] sm:$0xff]
  %v4025 = vld [vmem:[#allocation2 + $0xc0] sm:$0xff]
  %v4026 = vld [vmem:[#allocation2 + $0xc8] sm:$0xff]
  %v4027 = vld [vmem:[#allocation2 + $0xd0] sm:$0xff]
  %v4028 = vld [vmem:[#allocation2 + $0xd8] sm:$0xff]
  %v4029 = vld [vmem:[#allocation2 + $0xe0] sm:$0xff]
  %v4030 = vld [vmem:[#allocation2 + $0xe8] sm:$0xff]
  %v4031 = vld [vmem:[#allocation2 + $0xf0] sm:$0xff]
  %v4032 = vld [vmem:[#allocation2 + $0xf8] sm:$0xff]
  %v4033 = vld [vmem:[#allocation2 + $0x81] sm:$0xff]
  %v4034 = vld [vmem:[#allocation2 + $0x89] sm:$0xff]
  %v4035 = vld [vmem:[#allocation2 + $0x91] sm:$0xff]
  %v4036 = vld [vmem:[#allocation2 + $0x99] sm:$0xff]
  %v4037 = vld [vmem:[#allocation2 + $0xa1] sm:$0xff]
  %v4038 = vld [vmem:[#allocation2 + $0xa9] sm:$0xff]
  %v4039 = vld [vmem:[#allocation2 + $0xb1] sm:$0xff]
  %v4040 = vld [vmem:[#allocation2 + $0xb9] sm:$0xff]
  %v4041 = vld [vmem:[#allocation2 + $0xc1] sm:$0xff]
  %v4042 = vld [vmem:[#allocation2 + $0xc9] sm:$0xff]
  %v4043 = vld [vmem:[#allocation2 + $0xd1] sm:$0xff]
  %v4044 = vld [vmem:[#allocation2 + $0xd9] sm:$0xff]
  %v4045 = vld [vmem:[#allocation2 + $0xe1] sm:$0xff]
  %v4046 = vld [vmem:[#allocation2 + $0xe9] sm:$0xff]
  %v4047 = vld [vmem:[#allocation2 + $0xf1] sm:$0xff]
  %v4048 = vld [vmem:[#allocation2 + $0xf9] sm:$0xff]
  %4049 = vrot.lane.b32.xlu0 %v4033, 4
  %v4050 = vpop.permute.xlu0 %4049
  %4051 = vrot.lane.b32.xlu0 %v4034, 4
  %v4052 = vpop.permute.xlu0 %4051
  %4053 = vrot.lane.b32.xlu0 %v4035, 4
  %v4054 = vpop.permute.xlu0 %4053
  %4055 = vrot.lane.b32.xlu0 %v4036, 4
  %v4056 = vpop.permute.xlu0 %4055
  %4057 = vrot.lane.b32.xlu0 %v4037, 4
  %v4058 = vpop.permute.xlu0 %4057
  %4059 = vrot.lane.b32.xlu0 %v4038, 4
  %v4060 = vpop.permute.xlu0 %4059
  %4061 = vrot.lane.b32.xlu0 %v4039, 4
  %v4062 = vpop.permute.xlu0 %4061
  %4063 = vrot.lane.b32.xlu0 %v4040, 4
  %v4064 = vpop.permute.xlu0 %4063
  %4065 = vrot.lane.b32.xlu0 %v4041, 4
  %v4066 = vpop.permute.xlu0 %4065
  %4067 = vrot.lane.b32.xlu0 %v4042, 4
  %v4068 = vpop.permute.xlu0 %4067
  %4069 = vrot.lane.b32.xlu0 %v4043, 4
  %v4070 = vpop.permute.xlu0 %4069
  %4071 = vrot.lane.b32.xlu0 %v4044, 4
  %v4072 = vpop.permute.xlu0 %4071
  %4073 = vrot.lane.b32.xlu0 %v4045, 4
  %v4074 = vpop.permute.xlu0 %4073
  %4075 = vrot.lane.b32.xlu0 %v4046, 4
  %v4076 = vpop.permute.xlu0 %4075
  %4077 = vrot.lane.b32.xlu0 %v4047, 4
  %v4078 = vpop.permute.xlu0 %4077
  %4079 = vrot.lane.b32.xlu0 %v4048, 4
  %v4080 = vpop.permute.xlu0 %4079
  %v4081 = vadd.f32 %v4017, %v4050
  %v4082 = vadd.f32 %v4018, %v4052
  %v4083 = vadd.f32 %v4019, %v4054
  %v4084 = vadd.f32 %v4020, %v4056
  %v4085 = vadd.f32 %v4021, %v4058
  %v4086 = vadd.f32 %v4022, %v4060
  %v4087 = vadd.f32 %v4023, %v4062
  %v4088 = vadd.f32 %v4024, %v4064
  %v4089 = vadd.f32 %v4025, %v4066
  %v4090 = vadd.f32 %v4026, %v4068
  %v4091 = vadd.f32 %v4027, %v4070
  %v4092 = vadd.f32 %v4028, %v4072
  %v4093 = vadd.f32 %v4029, %v4074
  %v4094 = vadd.f32 %v4030, %v4076
  %v4095 = vadd.f32 %v4031, %v4078
  %v4096 = vadd.f32 %v4032, %v4080
  %v4097 = vld [vmem:[#allocation2 + $0x82] sm:$0xff]
  %v4098 = vld [vmem:[#allocation2 + $0x8a] sm:$0xff]
  %v4099 = vld [vmem:[#allocation2 + $0x92] sm:$0xff]
  %v4100 = vld [vmem:[#allocation2 + $0x9a] sm:$0xff]
  %v4101 = vld [vmem:[#allocation2 + $0xa2] sm:$0xff]
  %v4102 = vld [vmem:[#allocation2 + $0xaa] sm:$0xff]
  %v4103 = vld [vmem:[#allocation2 + $0xb2] sm:$0xff]
  %v4104 = vld [vmem:[#allocation2 + $0xba] sm:$0xff]
  %v4105 = vld [vmem:[#allocation2 + $0xc2] sm:$0xff]
  %v4106 = vld [vmem:[#allocation2 + $0xca] sm:$0xff]
  %v4107 = vld [vmem:[#allocation2 + $0xd2] sm:$0xff]
  %v4108 = vld [vmem:[#allocation2 + $0xda] sm:$0xff]
  %v4109 = vld [vmem:[#allocation2 + $0xe2] sm:$0xff]
  %v4110 = vld [vmem:[#allocation2 + $0xea] sm:$0xff]
  %v4111 = vld [vmem:[#allocation2 + $0xf2] sm:$0xff]
  %v4112 = vld [vmem:[#allocation2 + $0xfa] sm:$0xff]
  %4113 = vrot.lane.b32.xlu0 %v4097, 8
  %v4114 = vpop.permute.xlu0 %4113
  %4115 = vrot.lane.b32.xlu0 %v4098, 8
  %v4116 = vpop.permute.xlu0 %4115
  %4117 = vrot.lane.b32.xlu0 %v4099, 8
  %v4118 = vpop.permute.xlu0 %4117
  %4119 = vrot.lane.b32.xlu0 %v4100, 8
  %v4120 = vpop.permute.xlu0 %4119
  %4121 = vrot.lane.b32.xlu0 %v4101, 8
  %v4122 = vpop.permute.xlu0 %4121
  %4123 = vrot.lane.b32.xlu0 %v4102, 8
  %v4124 = vpop.permute.xlu0 %4123
  %4125 = vrot.lane.b32.xlu0 %v4103, 8
  %v4126 = vpop.permute.xlu0 %4125
  %4127 = vrot.lane.b32.xlu0 %v4104, 8
  %v4128 = vpop.permute.xlu0 %4127
  %4129 = vrot.lane.b32.xlu0 %v4105, 8
  %v4130 = vpop.permute.xlu0 %4129
  %4131 = vrot.lane.b32.xlu0 %v4106, 8
  %v4132 = vpop.permute.xlu0 %4131
  %4133 = vrot.lane.b32.xlu0 %v4107, 8
  %v4134 = vpop.permute.xlu0 %4133
  %4135 = vrot.lane.b32.xlu0 %v4108, 8
  %v4136 = vpop.permute.xlu0 %4135
  %4137 = vrot.lane.b32.xlu0 %v4109, 8
  %v4138 = vpop.permute.xlu0 %4137
  %4139 = vrot.lane.b32.xlu0 %v4110, 8
  %v4140 = vpop.permute.xlu0 %4139
  %4141 = vrot.lane.b32.xlu0 %v4111, 8
  %v4142 = vpop.permute.xlu0 %4141
  %4143 = vrot.lane.b32.xlu0 %v4112, 8
  %v4144 = vpop.permute.xlu0 %4143
  %v4145 = vadd.f32 %v4081, %v4114
  %v4146 = vadd.f32 %v4082, %v4116
  %v4147 = vadd.f32 %v4083, %v4118
  %v4148 = vadd.f32 %v4084, %v4120
  %v4149 = vadd.f32 %v4085, %v4122
  %v4150 = vadd.f32 %v4086, %v4124
  %v4151 = vadd.f32 %v4087, %v4126
  %v4152 = vadd.f32 %v4088, %v4128
  %v4153 = vadd.f32 %v4089, %v4130
  %v4154 = vadd.f32 %v4090, %v4132
  %v4155 = vadd.f32 %v4091, %v4134
  %v4156 = vadd.f32 %v4092, %v4136
  %v4157 = vadd.f32 %v4093, %v4138
  %v4158 = vadd.f32 %v4094, %v4140
  %v4159 = vadd.f32 %v4095, %v4142
  %v4160 = vadd.f32 %v4096, %v4144
  %v4161 = vld [vmem:[#allocation2 + $0x95] sm:$0xff]
  %v4162 = vld [vmem:[#allocation2 + $0x9d] sm:$0xff]
  %v4163 = vld [vmem:[#allocation2 + $0xa5] sm:$0xff]
  %v4164 = vld [vmem:[#allocation2 + $0xad] sm:$0xff]
  %v4165 = vld [vmem:[#allocation2 + $0xb5] sm:$0xff]
  %v4166 = vld [vmem:[#allocation2 + $0xbd] sm:$0xff]
  %v4167 = vld [vmem:[#allocation2 + $0xc5] sm:$0xff]
  %v4168 = vld [vmem:[#allocation2 + $0xcd] sm:$0xff]
  %v4169 = vld [vmem:[#allocation2 + $0xd5] sm:$0xff]
  %v4170 = vld [vmem:[#allocation2 + $0xdd] sm:$0xff]
  %v4171 = vld [vmem:[#allocation2 + $0xe5] sm:$0xff]
  %v4172 = vld [vmem:[#allocation2 + $0xed] sm:$0xff]
  %v4173 = vld [vmem:[#allocation2 + $0xf5] sm:$0xff]
  %v4174 = vld [vmem:[#allocation2 + $0xfd] sm:$0xff]
  %v4175 = vld [vmem:[#allocation2 + $0x105] sm:$0xff]
  %v4176 = vld [vmem:[#allocation2 + $0x10d] sm:$0xff]
  %4177 = vrot.lane.b32.xlu0 %v4161, 12
  %v4178 = vpop.permute.xlu0 %4177
  %4179 = vrot.lane.b32.xlu0 %v4162, 12
  %v4180 = vpop.permute.xlu0 %4179
  %4181 = vrot.lane.b32.xlu0 %v4163, 12
  %v4182 = vpop.permute.xlu0 %4181
  %4183 = vrot.lane.b32.xlu0 %v4164, 12
  %v4184 = vpop.permute.xlu0 %4183
  %4185 = vrot.lane.b32.xlu0 %v4165, 12
  %v4186 = vpop.permute.xlu0 %4185
  %4187 = vrot.lane.b32.xlu0 %v4166, 12
  %v4188 = vpop.permute.xlu0 %4187
  %4189 = vrot.lane.b32.xlu0 %v4167, 12
  %v4190 = vpop.permute.xlu0 %4189
  %4191 = vrot.lane.b32.xlu0 %v4168, 12
  %v4192 = vpop.permute.xlu0 %4191
  %4193 = vrot.lane.b32.xlu0 %v4169, 12
  %v4194 = vpop.permute.xlu0 %4193
  %4195 = vrot.lane.b32.xlu0 %v4170, 12
  %v4196 = vpop.permute.xlu0 %4195
  %4197 = vrot.lane.b32.xlu0 %v4171, 12
  %v4198 = vpop.permute.xlu0 %4197
  %4199 = vrot.lane.b32.xlu0 %v4172, 12
  %v4200 = vpop.permute.xlu0 %4199
  %4201 = vrot.lane.b32.xlu0 %v4173, 12
  %v4202 = vpop.permute.xlu0 %4201
  %4203 = vrot.lane.b32.xlu0 %v4174, 12
  %v4204 = vpop.permute.xlu0 %4203
  %4205 = vrot.lane.b32.xlu0 %v4175, 12
  %v4206 = vpop.permute.xlu0 %4205
  %4207 = vrot.lane.b32.xlu0 %v4176, 12
  %v4208 = vpop.permute.xlu0 %4207
  %v4209 = vadd.f32 %v4145, %v4178
  %v4210 = vadd.f32 %v4146, %v4180
  %v4211 = vadd.f32 %v4147, %v4182
  %v4212 = vadd.f32 %v4148, %v4184
  %v4213 = vadd.f32 %v4149, %v4186
  %v4214 = vadd.f32 %v4150, %v4188
  %v4215 = vadd.f32 %v4151, %v4190
  %v4216 = vadd.f32 %v4152, %v4192
  %v4217 = vadd.f32 %v4153, %v4194
  %v4218 = vadd.f32 %v4154, %v4196
  %v4219 = vadd.f32 %v4155, %v4198
  %v4220 = vadd.f32 %v4156, %v4200
  %v4221 = vadd.f32 %v4157, %v4202
  %v4222 = vadd.f32 %v4158, %v4204
  %v4223 = vadd.f32 %v4159, %v4206
  %v4224 = vadd.f32 %v4160, %v4208
  %v4225 = vld [vmem:[#allocation2 + $0x96] sm:$0xff]
  %v4226 = vld [vmem:[#allocation2 + $0x9e] sm:$0xff]
  %v4227 = vld [vmem:[#allocation2 + $0xa6] sm:$0xff]
  %v4228 = vld [vmem:[#allocation2 + $0xae] sm:$0xff]
  %v4229 = vld [vmem:[#allocation2 + $0xb6] sm:$0xff]
  %v4230 = vld [vmem:[#allocation2 + $0xbe] sm:$0xff]
  %v4231 = vld [vmem:[#allocation2 + $0xc6] sm:$0xff]
  %v4232 = vld [vmem:[#allocation2 + $0xce] sm:$0xff]
  %v4233 = vld [vmem:[#allocation2 + $0xd6] sm:$0xff]
  %v4234 = vld [vmem:[#allocation2 + $0xde] sm:$0xff]
  %v4235 = vld [vmem:[#allocation2 + $0xe6] sm:$0xff]
  %v4236 = vld [vmem:[#allocation2 + $0xee] sm:$0xff]
  %v4237 = vld [vmem:[#allocation2 + $0xf6] sm:$0xff]
  %v4238 = vld [vmem:[#allocation2 + $0xfe] sm:$0xff]
  %v4239 = vld [vmem:[#allocation2 + $0x106] sm:$0xff]
  %v4240 = vld [vmem:[#allocation2 + $0x10e] sm:$0xff]
  %4241 = vrot.lane.b32.xlu0 %v4225, 16
  %v4242 = vpop.permute.xlu0 %4241
  %4243 = vrot.lane.b32.xlu0 %v4226, 16
  %v4244 = vpop.permute.xlu0 %4243
  %4245 = vrot.lane.b32.xlu0 %v4227, 16
  %v4246 = vpop.permute.xlu0 %4245
  %4247 = vrot.lane.b32.xlu0 %v4228, 16
  %v4248 = vpop.permute.xlu0 %4247
  %4249 = vrot.lane.b32.xlu0 %v4229, 16
  %v4250 = vpop.permute.xlu0 %4249
  %4251 = vrot.lane.b32.xlu0 %v4230, 16
  %v4252 = vpop.permute.xlu0 %4251
  %4253 = vrot.lane.b32.xlu0 %v4231, 16
  %v4254 = vpop.permute.xlu0 %4253
  %4255 = vrot.lane.b32.xlu0 %v4232, 16
  %v4256 = vpop.permute.xlu0 %4255
  %4257 = vrot.lane.b32.xlu0 %v4233, 16
  %v4258 = vpop.permute.xlu0 %4257
  %4259 = vrot.lane.b32.xlu0 %v4234, 16
  %v4260 = vpop.permute.xlu0 %4259
  %4261 = vrot.lane.b32.xlu0 %v4235, 16
  %v4262 = vpop.permute.xlu0 %4261
  %4263 = vrot.lane.b32.xlu0 %v4236, 16
  %v4264 = vpop.permute.xlu0 %4263
  %4265 = vrot.lane.b32.xlu0 %v4237, 16
  %v4266 = vpop.permute.xlu0 %4265
  %4267 = vrot.lane.b32.xlu0 %v4238, 16
  %v4268 = vpop.permute.xlu0 %4267
  %4269 = vrot.lane.b32.xlu0 %v4239, 16
  %v4270 = vpop.permute.xlu0 %4269
  %4271 = vrot.lane.b32.xlu0 %v4240, 16
  %v4272 = vpop.permute.xlu0 %4271
  %v4273 = vadd.f32 %v4209, %v4242
  %v4274 = vadd.f32 %v4210, %v4244
  %v4275 = vadd.f32 %v4211, %v4246
  %v4276 = vadd.f32 %v4212, %v4248
  %v4277 = vadd.f32 %v4213, %v4250
  %v4278 = vadd.f32 %v4214, %v4252
  %v4279 = vadd.f32 %v4215, %v4254
  %v4280 = vadd.f32 %v4216, %v4256
  %v4281 = vadd.f32 %v4217, %v4258
  %v4282 = vadd.f32 %v4218, %v4260
  %v4283 = vadd.f32 %v4219, %v4262
  %v4284 = vadd.f32 %v4220, %v4264
  %v4285 = vadd.f32 %v4221, %v4266
  %v4286 = vadd.f32 %v4222, %v4268
  %v4287 = vadd.f32 %v4223, %v4270
  %v4288 = vadd.f32 %v4224, %v4272
  %v4289 = vld [vmem:[#allocation2 + $0x97] sm:$0xff]
  %v4290 = vld [vmem:[#allocation2 + $0x9f] sm:$0xff]
  %v4291 = vld [vmem:[#allocation2 + $0xa7] sm:$0xff]
  %v4292 = vld [vmem:[#allocation2 + $0xaf] sm:$0xff]
  %v4293 = vld [vmem:[#allocation2 + $0xb7] sm:$0xff]
  %v4294 = vld [vmem:[#allocation2 + $0xbf] sm:$0xff]
  %v4295 = vld [vmem:[#allocation2 + $0xc7] sm:$0xff]
  %v4296 = vld [vmem:[#allocation2 + $0xcf] sm:$0xff]
  %v4297 = vld [vmem:[#allocation2 + $0xd7] sm:$0xff]
  %v4298 = vld [vmem:[#allocation2 + $0xdf] sm:$0xff]
  %v4299 = vld [vmem:[#allocation2 + $0xe7] sm:$0xff]
  %v4300 = vld [vmem:[#allocation2 + $0xef] sm:$0xff]
  %v4301 = vld [vmem:[#allocation2 + $0xf7] sm:$0xff]
  %v4302 = vld [vmem:[#allocation2 + $0xff] sm:$0xff]
  %v4303 = vld [vmem:[#allocation2 + $0x107] sm:$0xff]
  %v4304 = vld [vmem:[#allocation2 + $0x10f] sm:$0xff]
  %4305 = vrot.lane.b32.xlu0 %v4289, 20
  %v4306 = vpop.permute.xlu0 %4305
  %4307 = vrot.lane.b32.xlu0 %v4290, 20
  %v4308 = vpop.permute.xlu0 %4307
  %4309 = vrot.lane.b32.xlu0 %v4291, 20
  %v4310 = vpop.permute.xlu0 %4309
  %4311 = vrot.lane.b32.xlu0 %v4292, 20
  %v4312 = vpop.permute.xlu0 %4311
  %4313 = vrot.lane.b32.xlu0 %v4293, 20
  %v4314 = vpop.permute.xlu0 %4313
  %4315 = vrot.lane.b32.xlu0 %v4294, 20
  %v4316 = vpop.permute.xlu0 %4315
  %4317 = vrot.lane.b32.xlu0 %v4295, 20
  %v4318 = vpop.permute.xlu0 %4317
  %4319 = vrot.lane.b32.xlu0 %v4296, 20
  %v4320 = vpop.permute.xlu0 %4319
  %4321 = vrot.lane.b32.xlu0 %v4297, 20
  %v4322 = vpop.permute.xlu0 %4321
  %4323 = vrot.lane.b32.xlu0 %v4298, 20
  %v4324 = vpop.permute.xlu0 %4323
  %4325 = vrot.lane.b32.xlu0 %v4299, 20
  %v4326 = vpop.permute.xlu0 %4325
  %4327 = vrot.lane.b32.xlu0 %v4300, 20
  %v4328 = vpop.permute.xlu0 %4327
  %4329 = vrot.lane.b32.xlu0 %v4301, 20
  %v4330 = vpop.permute.xlu0 %4329
  %4331 = vrot.lane.b32.xlu0 %v4302, 20
  %v4332 = vpop.permute.xlu0 %4331
  %4333 = vrot.lane.b32.xlu0 %v4303, 20
  %v4334 = vpop.permute.xlu0 %4333
  %4335 = vrot.lane.b32.xlu0 %v4304, 20
  %v4336 = vpop.permute.xlu0 %4335
  %v4337 = vadd.f32 %v4273, %v4306
  %v4338 = vadd.f32 %v4274, %v4308
  %v4339 = vadd.f32 %v4275, %v4310
  %v4340 = vadd.f32 %v4276, %v4312
  %v4341 = vadd.f32 %v4277, %v4314
  %v4342 = vadd.f32 %v4278, %v4316
  %v4343 = vadd.f32 %v4279, %v4318
  %v4344 = vadd.f32 %v4280, %v4320
  %v4345 = vadd.f32 %v4281, %v4322
  %v4346 = vadd.f32 %v4282, %v4324
  %v4347 = vadd.f32 %v4283, %v4326
  %v4348 = vadd.f32 %v4284, %v4328
  %v4349 = vadd.f32 %v4285, %v4330
  %v4350 = vadd.f32 %v4286, %v4332
  %v4351 = vadd.f32 %v4287, %v4334
  %v4352 = vadd.f32 %v4288, %v4336
  %v4353 = vld [vmem:[#allocation2 + $0x102] sm:$0xff]
  %v4354 = vld [vmem:[#allocation2 + $0x10a] sm:$0xff]
  %v4355 = vld [vmem:[#allocation2 + $0x112] sm:$0xff]
  %v4356 = vld [vmem:[#allocation2 + $0x11a] sm:$0xff]
  %v4357 = vld [vmem:[#allocation2 + $0x122] sm:$0xff]
  %4358 = vrot.lane.b32.xlu0 %v4102, 24
  %v4359 = vpop.permute.xlu0 %4358
  %4360 = vrot.lane.b32.xlu0 %v4103, 24
  %v4361 = vpop.permute.xlu0 %4360
  %4362 = vrot.lane.b32.xlu0 %v4104, 24
  %v4363 = vpop.permute.xlu0 %4362
  %4364 = vrot.lane.b32.xlu0 %v4105, 24
  %v4365 = vpop.permute.xlu0 %4364
  %4366 = vrot.lane.b32.xlu0 %v4106, 24
  %v4367 = vpop.permute.xlu0 %4366
  %4368 = vrot.lane.b32.xlu0 %v4107, 24
  %v4369 = vpop.permute.xlu0 %4368
  %4370 = vrot.lane.b32.xlu0 %v4108, 24
  %v4371 = vpop.permute.xlu0 %4370
  %4372 = vrot.lane.b32.xlu0 %v4109, 24
  %v4373 = vpop.permute.xlu0 %4372
  %4374 = vrot.lane.b32.xlu0 %v4110, 24
  %v4375 = vpop.permute.xlu0 %4374
  %4376 = vrot.lane.b32.xlu0 %v4111, 24
  %v4377 = vpop.permute.xlu0 %4376
  %4378 = vrot.lane.b32.xlu0 %v4112, 24
  %v4379 = vpop.permute.xlu0 %4378
  %4380 = vrot.lane.b32.xlu0 %v4353, 24
  %v4381 = vpop.permute.xlu0 %4380
  %4382 = vrot.lane.b32.xlu0 %v4354, 24
  %v4383 = vpop.permute.xlu0 %4382
  %4384 = vrot.lane.b32.xlu0 %v4355, 24
  %v4385 = vpop.permute.xlu0 %4384
  %4386 = vrot.lane.b32.xlu0 %v4356, 24
  %v4387 = vpop.permute.xlu0 %4386
  %4388 = vrot.lane.b32.xlu0 %v4357, 24
  %v4389 = vpop.permute.xlu0 %4388
  %v4390 = vadd.f32 %v4337, %v4359
  %v4391 = vadd.f32 %v4338, %v4361
  %v4392 = vadd.f32 %v4339, %v4363
  %v4393 = vadd.f32 %v4340, %v4365
  %v4394 = vadd.f32 %v4341, %v4367
  %v4395 = vadd.f32 %v4342, %v4369
  %v4396 = vadd.f32 %v4343, %v4371
  %v4397 = vadd.f32 %v4344, %v4373
  %v4398 = vadd.f32 %v4345, %v4375
  %v4399 = vadd.f32 %v4346, %v4377
  %v4400 = vadd.f32 %v4347, %v4379
  %v4401 = vadd.f32 %v4348, %v4381
  %v4402 = vadd.f32 %v4349, %v4383
  %v4403 = vadd.f32 %v4350, %v4385
  %v4404 = vadd.f32 %v4351, %v4387
  %v4405 = vadd.f32 %v4352, %v4389
  %v4406 = vld [vmem:[#allocation2 + $0xab] sm:$0xff]
  %v4407 = vld [vmem:[#allocation2 + $0xb3] sm:$0xff]
  %v4408 = vld [vmem:[#allocation2 + $0xbb] sm:$0xff]
  %v4409 = vld [vmem:[#allocation2 + $0xc3] sm:$0xff]
  %v4410 = vld [vmem:[#allocation2 + $0xcb] sm:$0xff]
  %v4411 = vld [vmem:[#allocation2 + $0xd3] sm:$0xff]
  %v4412 = vld [vmem:[#allocation2 + $0xdb] sm:$0xff]
  %v4413 = vld [vmem:[#allocation2 + $0xe3] sm:$0xff]
  %v4414 = vld [vmem:[#allocation2 + $0xeb] sm:$0xff]
  %v4415 = vld [vmem:[#allocation2 + $0xf3] sm:$0xff]
  %v4416 = vld [vmem:[#allocation2 + $0xfb] sm:$0xff]
  %v4417 = vld [vmem:[#allocation2 + $0x103] sm:$0xff]
  %v4418 = vld [vmem:[#allocation2 + $0x10b] sm:$0xff]
  %v4419 = vld [vmem:[#allocation2 + $0x113] sm:$0xff]
  %v4420 = vld [vmem:[#allocation2 + $0x11b] sm:$0xff]
  %v4421 = vld [vmem:[#allocation2 + $0x123] sm:$0xff]
  %4422 = vrot.lane.b32.xlu0 %v4406, 28
  %v4423 = vpop.permute.xlu0 %4422
  %4424 = vrot.lane.b32.xlu0 %v4407, 28
  %v4425 = vpop.permute.xlu0 %4424
  %4426 = vrot.lane.b32.xlu0 %v4408, 28
  %v4427 = vpop.permute.xlu0 %4426
  %4428 = vrot.lane.b32.xlu0 %v4409, 28
  %v4429 = vpop.permute.xlu0 %4428
  %4430 = vrot.lane.b32.xlu0 %v4410, 28
  %v4431 = vpop.permute.xlu0 %4430
  %4432 = vrot.lane.b32.xlu0 %v4411, 28
  %v4433 = vpop.permute.xlu0 %4432
  %4434 = vrot.lane.b32.xlu0 %v4412, 28
  %v4435 = vpop.permute.xlu0 %4434
  %4436 = vrot.lane.b32.xlu0 %v4413, 28
  %v4437 = vpop.permute.xlu0 %4436
  %4438 = vrot.lane.b32.xlu0 %v4414, 28
  %v4439 = vpop.permute.xlu0 %4438
  %4440 = vrot.lane.b32.xlu0 %v4415, 28
  %v4441 = vpop.permute.xlu0 %4440
  %4442 = vrot.lane.b32.xlu0 %v4416, 28
  %v4443 = vpop.permute.xlu0 %4442
  %4444 = vrot.lane.b32.xlu0 %v4417, 28
  %v4445 = vpop.permute.xlu0 %4444
  %4446 = vrot.lane.b32.xlu0 %v4418, 28
  %v4447 = vpop.permute.xlu0 %4446
  %4448 = vrot.lane.b32.xlu0 %v4419, 28
  %v4449 = vpop.permute.xlu0 %4448
  %4450 = vrot.lane.b32.xlu0 %v4420, 28
  %v4451 = vpop.permute.xlu0 %4450
  %4452 = vrot.lane.b32.xlu0 %v4421, 28
  %v4453 = vpop.permute.xlu0 %4452
  %v4454 = vadd.f32 %v4390, %v4423
  %v4455 = vadd.f32 %v4391, %v4425
  %v4456 = vadd.f32 %v4392, %v4427
  %v4457 = vadd.f32 %v4393, %v4429
  %v4458 = vadd.f32 %v4394, %v4431
  %v4459 = vadd.f32 %v4395, %v4433
  %v4460 = vadd.f32 %v4396, %v4435
  %v4461 = vadd.f32 %v4397, %v4437
  %v4462 = vadd.f32 %v4398, %v4439
  %v4463 = vadd.f32 %v4399, %v4441
  %v4464 = vadd.f32 %v4400, %v4443
  %v4465 = vadd.f32 %v4401, %v4445
  %v4466 = vadd.f32 %v4402, %v4447
  %v4467 = vadd.f32 %v4403, %v4449
  %v4468 = vadd.f32 %v4404, %v4451
  %v4469 = vadd.f32 %v4405, %v4453
  %v4470 = vld [vmem:[#allocation2 + $0xac] sm:$0xff]
  %v4471 = vld [vmem:[#allocation2 + $0xb4] sm:$0xff]
  %v4472 = vld [vmem:[#allocation2 + $0xbc] sm:$0xff]
  %v4473 = vld [vmem:[#allocation2 + $0xc4] sm:$0xff]
  %v4474 = vld [vmem:[#allocation2 + $0xcc] sm:$0xff]
  %v4475 = vld [vmem:[#allocation2 + $0xd4] sm:$0xff]
  %v4476 = vld [vmem:[#allocation2 + $0xdc] sm:$0xff]
  %v4477 = vld [vmem:[#allocation2 + $0xe4] sm:$0xff]
  %v4478 = vld [vmem:[#allocation2 + $0xec] sm:$0xff]
  %v4479 = vld [vmem:[#allocation2 + $0xf4] sm:$0xff]
  %v4480 = vld [vmem:[#allocation2 + $0xfc] sm:$0xff]
  %v4481 = vld [vmem:[#allocation2 + $0x104] sm:$0xff]
  %v4482 = vld [vmem:[#allocation2 + $0x10c] sm:$0xff]
  %v4483 = vld [vmem:[#allocation2 + $0x114] sm:$0xff]
  %v4484 = vld [vmem:[#allocation2 + $0x11c] sm:$0xff]
  %v4485 = vld [vmem:[#allocation2 + $0x124] sm:$0xff]
  %4486 = vrot.lane.b32.xlu0 %v4470, 32
  %v4487 = vpop.permute.xlu0 %4486
  %4488 = vrot.lane.b32.xlu0 %v4471, 32
  %v4489 = vpop.permute.xlu0 %4488
  %4490 = vrot.lane.b32.xlu0 %v4472, 32
  %v4491 = vpop.permute.xlu0 %4490
  %4492 = vrot.lane.b32.xlu0 %v4473, 32
  %v4493 = vpop.permute.xlu0 %4492
  %4494 = vrot.lane.b32.xlu0 %v4474, 32
  %v4495 = vpop.permute.xlu0 %4494
  %4496 = vrot.lane.b32.xlu0 %v4475, 32
  %v4497 = vpop.permute.xlu0 %4496
  %4498 = vrot.lane.b32.xlu0 %v4476, 32
  %v4499 = vpop.permute.xlu0 %4498
  %4500 = vrot.lane.b32.xlu0 %v4477, 32
  %v4501 = vpop.permute.xlu0 %4500
  %4502 = vrot.lane.b32.xlu0 %v4478, 32
  %v4503 = vpop.permute.xlu0 %4502
  %4504 = vrot.lane.b32.xlu0 %v4479, 32
  %v4505 = vpop.permute.xlu0 %4504
  %4506 = vrot.lane.b32.xlu0 %v4480, 32
  %v4507 = vpop.permute.xlu0 %4506
  %4508 = vrot.lane.b32.xlu0 %v4481, 32
  %v4509 = vpop.permute.xlu0 %4508
  %4510 = vrot.lane.b32.xlu0 %v4482, 32
  %v4511 = vpop.permute.xlu0 %4510
  %4512 = vrot.lane.b32.xlu0 %v4483, 32
  %v4513 = vpop.permute.xlu0 %4512
  %4514 = vrot.lane.b32.xlu0 %v4484, 32
  %v4515 = vpop.permute.xlu0 %4514
  %4516 = vrot.lane.b32.xlu0 %v4485, 32
  %v4517 = vpop.permute.xlu0 %4516
  %v4518 = vadd.f32 %v4454, %v4487
  %v4519 = vadd.f32 %v4455, %v4489
  %v4520 = vadd.f32 %v4456, %v4491
  %v4521 = vadd.f32 %v4457, %v4493
  %v4522 = vadd.f32 %v4458, %v4495
  %v4523 = vadd.f32 %v4459, %v4497
  %v4524 = vadd.f32 %v4460, %v4499
  %v4525 = vadd.f32 %v4461, %v4501
  %v4526 = vadd.f32 %v4462, %v4503
  %v4527 = vadd.f32 %v4463, %v4505
  %v4528 = vadd.f32 %v4464, %v4507
  %v4529 = vadd.f32 %v4465, %v4509
  %v4530 = vadd.f32 %v4466, %v4511
  %v4531 = vadd.f32 %v4467, %v4513
  %v4532 = vadd.f32 %v4468, %v4515
  %v4533 = vadd.f32 %v4469, %v4517
  %4534 = vst [vmem:[#allocation3 + $0x80] sm:$0xff] %v4518
  %4535 = vst [vmem:[#allocation3 + $0x88] sm:$0xff] %v4519
  %4536 = vst [vmem:[#allocation3 + $0x90] sm:$0xff] %v4520
  %4537 = vst [vmem:[#allocation3 + $0x98] sm:$0xff] %v4521
  %4538 = vst [vmem:[#allocation3 + $0xa0] sm:$0xff] %v4522
  %4539 = vst [vmem:[#allocation3 + $0xa8] sm:$0xff] %v4523
  %4540 = vst [vmem:[#allocation3 + $0xb0] sm:$0xff] %v4524
  %4541 = vst [vmem:[#allocation3 + $0xb8] sm:$0xff] %v4525
  %4542 = vst [vmem:[#allocation3 + $0xc0] sm:$0xff] %v4526
  %4543 = vst [vmem:[#allocation3 + $0xc8] sm:$0xff] %v4527
  %4544 = vst [vmem:[#allocation3 + $0xd0] sm:$0xff] %v4528
  %4545 = vst [vmem:[#allocation3 + $0xd8] sm:$0xff] %v4529
  %4546 = vst [vmem:[#allocation3 + $0xe0] sm:$0xff] %v4530
  %4547 = vst [vmem:[#allocation3 + $0xe8] sm:$0xff] %v4531
  %4548 = vst [vmem:[#allocation3 + $0xf0] sm:$0xff] %v4532
  %4549 = vst [vmem:[#allocation3 + $0xf8] sm:$0xff] %v4533
  %v4550 = vld [vmem:[#allocation2 + $0x100] sm:$0xff]
  %v4551 = vld [vmem:[#allocation2 + $0x108] sm:$0xff]
  %v4552 = vld [vmem:[#allocation2 + $0x110] sm:$0xff]
  %v4553 = vld [vmem:[#allocation2 + $0x118] sm:$0xff]
  %v4554 = vld [vmem:[#allocation2 + $0x120] sm:$0xff]
  %v4555 = vld [vmem:[#allocation2 + $0x128] sm:$0xff]
  %v4556 = vld [vmem:[#allocation2 + $0x130] sm:$0xff]
  %v4557 = vld [vmem:[#allocation2 + $0x138] sm:$0xff]
  %v4558 = vld [vmem:[#allocation2 + $0x140] sm:$0xff]
  %v4559 = vld [vmem:[#allocation2 + $0x148] sm:$0xff]
  %v4560 = vld [vmem:[#allocation2 + $0x150] sm:$0xff]
  %v4561 = vld [vmem:[#allocation2 + $0x158] sm:$0xff]
  %v4562 = vld [vmem:[#allocation2 + $0x160] sm:$0xff]
  %v4563 = vld [vmem:[#allocation2 + $0x101] sm:$0xff]
  %v4564 = vld [vmem:[#allocation2 + $0x109] sm:$0xff]
  %v4565 = vld [vmem:[#allocation2 + $0x111] sm:$0xff]
  %v4566 = vld [vmem:[#allocation2 + $0x119] sm:$0xff]
  %v4567 = vld [vmem:[#allocation2 + $0x121] sm:$0xff]
  %v4568 = vld [vmem:[#allocation2 + $0x129] sm:$0xff]
  %v4569 = vld [vmem:[#allocation2 + $0x131] sm:$0xff]
  %v4570 = vld [vmem:[#allocation2 + $0x139] sm:$0xff]
  %v4571 = vld [vmem:[#allocation2 + $0x141] sm:$0xff]
  %v4572 = vld [vmem:[#allocation2 + $0x149] sm:$0xff]
  %v4573 = vld [vmem:[#allocation2 + $0x151] sm:$0xff]
  %v4574 = vld [vmem:[#allocation2 + $0x159] sm:$0xff]
  %v4575 = vld [vmem:[#allocation2 + $0x161] sm:$0xff]
  %4576 = vrot.lane.b32.xlu0 %v4563, 4
  %v4577 = vpop.permute.xlu0 %4576
  %4578 = vrot.lane.b32.xlu0 %v4564, 4
  %v4579 = vpop.permute.xlu0 %4578
  %4580 = vrot.lane.b32.xlu0 %v4565, 4
  %v4581 = vpop.permute.xlu0 %4580
  %4582 = vrot.lane.b32.xlu0 %v4566, 4
  %v4583 = vpop.permute.xlu0 %4582
  %4584 = vrot.lane.b32.xlu0 %v4567, 4
  %v4585 = vpop.permute.xlu0 %4584
  %4586 = vrot.lane.b32.xlu0 %v4568, 4
  %v4587 = vpop.permute.xlu0 %4586
  %4588 = vrot.lane.b32.xlu0 %v4569, 4
  %v4589 = vpop.permute.xlu0 %4588
  %4590 = vrot.lane.b32.xlu0 %v4570, 4
  %v4591 = vpop.permute.xlu0 %4590
  %4592 = vrot.lane.b32.xlu0 %v4571, 4
  %v4593 = vpop.permute.xlu0 %4592
  %4594 = vrot.lane.b32.xlu0 %v4572, 4
  %v4595 = vpop.permute.xlu0 %4594
  %4596 = vrot.lane.b32.xlu0 %v4573, 4
  %v4597 = vpop.permute.xlu0 %4596
  %4598 = vrot.lane.b32.xlu0 %v4574, 4
  %v4599 = vpop.permute.xlu0 %4598
  %4600 = vrot.lane.b32.xlu0 %v4575, 4
  %v4601 = vpop.permute.xlu0 %4600
  %v4602 = vadd.f32 %v4550, %v4577
  %v4603 = vadd.f32 %v4551, %v4579
  %v4604 = vadd.f32 %v4552, %v4581
  %v4605 = vadd.f32 %v4553, %v4583
  %v4606 = vadd.f32 %v4554, %v4585
  %v4607 = vadd.f32 %v4555, %v4587
  %v4608 = vadd.f32 %v4556, %v4589
  %v4609 = vadd.f32 %v4557, %v4591
  %v4610 = vadd.f32 %v4558, %v4593
  %v4611 = vadd.f32 %v4559, %v4595
  %v4612 = vadd.f32 %v4560, %v4597
  %v4613 = vadd.f32 %v4561, %v4599
  %v4614 = vadd.f32 %v4562, %v4601
  %v4615 = vld [vmem:[#allocation2 + $0x102] sm:$0xff]
  %v4616 = vld [vmem:[#allocation2 + $0x10a] sm:$0xff]
  %v4617 = vld [vmem:[#allocation2 + $0x112] sm:$0xff]
  %v4618 = vld [vmem:[#allocation2 + $0x11a] sm:$0xff]
  %v4619 = vld [vmem:[#allocation2 + $0x122] sm:$0xff]
  %v4620 = vld [vmem:[#allocation2 + $0x12a] sm:$0xff]
  %v4621 = vld [vmem:[#allocation2 + $0x132] sm:$0xff]
  %v4622 = vld [vmem:[#allocation2 + $0x13a] sm:$0xff]
  %v4623 = vld [vmem:[#allocation2 + $0x142] sm:$0xff]
  %v4624 = vld [vmem:[#allocation2 + $0x14a] sm:$0xff]
  %v4625 = vld [vmem:[#allocation2 + $0x152] sm:$0xff]
  %v4626 = vld [vmem:[#allocation2 + $0x15a] sm:$0xff]
  %v4627 = vld [vmem:[#allocation2 + $0x162] sm:$0xff]
  %4628 = vrot.lane.b32.xlu0 %v4615, 8
  %v4629 = vpop.permute.xlu0 %4628
  %4630 = vrot.lane.b32.xlu0 %v4616, 8
  %v4631 = vpop.permute.xlu0 %4630
  %4632 = vrot.lane.b32.xlu0 %v4617, 8
  %v4633 = vpop.permute.xlu0 %4632
  %4634 = vrot.lane.b32.xlu0 %v4618, 8
  %v4635 = vpop.permute.xlu0 %4634
  %4636 = vrot.lane.b32.xlu0 %v4619, 8
  %v4637 = vpop.permute.xlu0 %4636
  %4638 = vrot.lane.b32.xlu0 %v4620, 8
  %v4639 = vpop.permute.xlu0 %4638
  %4640 = vrot.lane.b32.xlu0 %v4621, 8
  %v4641 = vpop.permute.xlu0 %4640
  %4642 = vrot.lane.b32.xlu0 %v4622, 8
  %v4643 = vpop.permute.xlu0 %4642
  %4644 = vrot.lane.b32.xlu0 %v4623, 8
  %v4645 = vpop.permute.xlu0 %4644
  %4646 = vrot.lane.b32.xlu0 %v4624, 8
  %v4647 = vpop.permute.xlu0 %4646
  %4648 = vrot.lane.b32.xlu0 %v4625, 8
  %v4649 = vpop.permute.xlu0 %4648
  %4650 = vrot.lane.b32.xlu0 %v4626, 8
  %v4651 = vpop.permute.xlu0 %4650
  %4652 = vrot.lane.b32.xlu0 %v4627, 8
  %v4653 = vpop.permute.xlu0 %4652
  %v4654 = vadd.f32 %v4602, %v4629
  %v4655 = vadd.f32 %v4603, %v4631
  %v4656 = vadd.f32 %v4604, %v4633
  %v4657 = vadd.f32 %v4605, %v4635
  %v4658 = vadd.f32 %v4606, %v4637
  %v4659 = vadd.f32 %v4607, %v4639
  %v4660 = vadd.f32 %v4608, %v4641
  %v4661 = vadd.f32 %v4609, %v4643
  %v4662 = vadd.f32 %v4610, %v4645
  %v4663 = vadd.f32 %v4611, %v4647
  %v4664 = vadd.f32 %v4612, %v4649
  %v4665 = vadd.f32 %v4613, %v4651
  %v4666 = vadd.f32 %v4614, %v4653
  %v4667 = vld [vmem:[#allocation2 + $0x115] sm:$0xff]
  %v4668 = vld [vmem:[#allocation2 + $0x11d] sm:$0xff]
  %v4669 = vld [vmem:[#allocation2 + $0x125] sm:$0xff]
  %v4670 = vld [vmem:[#allocation2 + $0x12d] sm:$0xff]
  %v4671 = vld [vmem:[#allocation2 + $0x135] sm:$0xff]
  %v4672 = vld [vmem:[#allocation2 + $0x13d] sm:$0xff]
  %v4673 = vld [vmem:[#allocation2 + $0x145] sm:$0xff]
  %v4674 = vld [vmem:[#allocation2 + $0x14d] sm:$0xff]
  %v4675 = vld [vmem:[#allocation2 + $0x155] sm:$0xff]
  %v4676 = vld [vmem:[#allocation2 + $0x15d] sm:$0xff]
  %v4677 = vld [vmem:[#allocation2 + $0x165] sm:$0xff]
  %v4678 = vld [vmem:[#allocation2 + $0x16d] sm:$0xff]
  %v4679 = vld [vmem:[#allocation2 + $0x175] sm:$0xff]
  %4680 = vrot.lane.b32.xlu0 %v4667, 12
  %v4681 = vpop.permute.xlu0 %4680
  %4682 = vrot.lane.b32.xlu0 %v4668, 12
  %v4683 = vpop.permute.xlu0 %4682
  %4684 = vrot.lane.b32.xlu0 %v4669, 12
  %v4685 = vpop.permute.xlu0 %4684
  %4686 = vrot.lane.b32.xlu0 %v4670, 12
  %v4687 = vpop.permute.xlu0 %4686
  %4688 = vrot.lane.b32.xlu0 %v4671, 12
  %v4689 = vpop.permute.xlu0 %4688
  %4690 = vrot.lane.b32.xlu0 %v4672, 12
  %v4691 = vpop.permute.xlu0 %4690
  %4692 = vrot.lane.b32.xlu0 %v4673, 12
  %v4693 = vpop.permute.xlu0 %4692
  %4694 = vrot.lane.b32.xlu0 %v4674, 12
  %v4695 = vpop.permute.xlu0 %4694
  %4696 = vrot.lane.b32.xlu0 %v4675, 12
  %v4697 = vpop.permute.xlu0 %4696
  %4698 = vrot.lane.b32.xlu0 %v4676, 12
  %v4699 = vpop.permute.xlu0 %4698
  %4700 = vrot.lane.b32.xlu0 %v4677, 12
  %v4701 = vpop.permute.xlu0 %4700
  %4702 = vrot.lane.b32.xlu0 %v4678, 12
  %v4703 = vpop.permute.xlu0 %4702
  %4704 = vrot.lane.b32.xlu0 %v4679, 12
  %v4705 = vpop.permute.xlu0 %4704
  %v4706 = vadd.f32 %v4654, %v4681
  %v4707 = vadd.f32 %v4655, %v4683
  %v4708 = vadd.f32 %v4656, %v4685
  %v4709 = vadd.f32 %v4657, %v4687
  %v4710 = vadd.f32 %v4658, %v4689
  %v4711 = vadd.f32 %v4659, %v4691
  %v4712 = vadd.f32 %v4660, %v4693
  %v4713 = vadd.f32 %v4661, %v4695
  %v4714 = vadd.f32 %v4662, %v4697
  %v4715 = vadd.f32 %v4663, %v4699
  %v4716 = vadd.f32 %v4664, %v4701
  %v4717 = vadd.f32 %v4665, %v4703
  %v4718 = vadd.f32 %v4666, %v4705
  %v4719 = vld [vmem:[#allocation2 + $0x116] sm:$0xff]
  %v4720 = vld [vmem:[#allocation2 + $0x11e] sm:$0xff]
  %v4721 = vld [vmem:[#allocation2 + $0x126] sm:$0xff]
  %v4722 = vld [vmem:[#allocation2 + $0x12e] sm:$0xff]
  %v4723 = vld [vmem:[#allocation2 + $0x136] sm:$0xff]
  %v4724 = vld [vmem:[#allocation2 + $0x13e] sm:$0xff]
  %v4725 = vld [vmem:[#allocation2 + $0x146] sm:$0xff]
  %v4726 = vld [vmem:[#allocation2 + $0x14e] sm:$0xff]
  %v4727 = vld [vmem:[#allocation2 + $0x156] sm:$0xff]
  %v4728 = vld [vmem:[#allocation2 + $0x15e] sm:$0xff]
  %v4729 = vld [vmem:[#allocation2 + $0x166] sm:$0xff]
  %v4730 = vld [vmem:[#allocation2 + $0x16e] sm:$0xff]
  %v4731 = vld [vmem:[#allocation2 + $0x176] sm:$0xff]
  %4732 = vrot.lane.b32.xlu0 %v4719, 16
  %v4733 = vpop.permute.xlu0 %4732
  %4734 = vrot.lane.b32.xlu0 %v4720, 16
  %v4735 = vpop.permute.xlu0 %4734
  %4736 = vrot.lane.b32.xlu0 %v4721, 16
  %v4737 = vpop.permute.xlu0 %4736
  %4738 = vrot.lane.b32.xlu0 %v4722, 16
  %v4739 = vpop.permute.xlu0 %4738
  %4740 = vrot.lane.b32.xlu0 %v4723, 16
  %v4741 = vpop.permute.xlu0 %4740
  %4742 = vrot.lane.b32.xlu0 %v4724, 16
  %v4743 = vpop.permute.xlu0 %4742
  %4744 = vrot.lane.b32.xlu0 %v4725, 16
  %v4745 = vpop.permute.xlu0 %4744
  %4746 = vrot.lane.b32.xlu0 %v4726, 16
  %v4747 = vpop.permute.xlu0 %4746
  %4748 = vrot.lane.b32.xlu0 %v4727, 16
  %v4749 = vpop.permute.xlu0 %4748
  %4750 = vrot.lane.b32.xlu0 %v4728, 16
  %v4751 = vpop.permute.xlu0 %4750
  %4752 = vrot.lane.b32.xlu0 %v4729, 16
  %v4753 = vpop.permute.xlu0 %4752
  %4754 = vrot.lane.b32.xlu0 %v4730, 16
  %v4755 = vpop.permute.xlu0 %4754
  %4756 = vrot.lane.b32.xlu0 %v4731, 16
  %v4757 = vpop.permute.xlu0 %4756
  %v4758 = vadd.f32 %v4706, %v4733
  %v4759 = vadd.f32 %v4707, %v4735
  %v4760 = vadd.f32 %v4708, %v4737
  %v4761 = vadd.f32 %v4709, %v4739
  %v4762 = vadd.f32 %v4710, %v4741
  %v4763 = vadd.f32 %v4711, %v4743
  %v4764 = vadd.f32 %v4712, %v4745
  %v4765 = vadd.f32 %v4713, %v4747
  %v4766 = vadd.f32 %v4714, %v4749
  %v4767 = vadd.f32 %v4715, %v4751
  %v4768 = vadd.f32 %v4716, %v4753
  %v4769 = vadd.f32 %v4717, %v4755
  %v4770 = vadd.f32 %v4718, %v4757
  %v4771 = vld [vmem:[#allocation2 + $0x117] sm:$0xff]
  %v4772 = vld [vmem:[#allocation2 + $0x11f] sm:$0xff]
  %v4773 = vld [vmem:[#allocation2 + $0x127] sm:$0xff]
  %v4774 = vld [vmem:[#allocation2 + $0x12f] sm:$0xff]
  %v4775 = vld [vmem:[#allocation2 + $0x137] sm:$0xff]
  %v4776 = vld [vmem:[#allocation2 + $0x13f] sm:$0xff]
  %v4777 = vld [vmem:[#allocation2 + $0x147] sm:$0xff]
  %v4778 = vld [vmem:[#allocation2 + $0x14f] sm:$0xff]
  %v4779 = vld [vmem:[#allocation2 + $0x157] sm:$0xff]
  %v4780 = vld [vmem:[#allocation2 + $0x15f] sm:$0xff]
  %v4781 = vld [vmem:[#allocation2 + $0x167] sm:$0xff]
  %v4782 = vld [vmem:[#allocation2 + $0x16f] sm:$0xff]
  %v4783 = vld [vmem:[#allocation2 + $0x177] sm:$0xff]
  %4784 = vrot.lane.b32.xlu0 %v4771, 20
  %v4785 = vpop.permute.xlu0 %4784
  %4786 = vrot.lane.b32.xlu0 %v4772, 20
  %v4787 = vpop.permute.xlu0 %4786
  %4788 = vrot.lane.b32.xlu0 %v4773, 20
  %v4789 = vpop.permute.xlu0 %4788
  %4790 = vrot.lane.b32.xlu0 %v4774, 20
  %v4791 = vpop.permute.xlu0 %4790
  %4792 = vrot.lane.b32.xlu0 %v4775, 20
  %v4793 = vpop.permute.xlu0 %4792
  %4794 = vrot.lane.b32.xlu0 %v4776, 20
  %v4795 = vpop.permute.xlu0 %4794
  %4796 = vrot.lane.b32.xlu0 %v4777, 20
  %v4797 = vpop.permute.xlu0 %4796
  %4798 = vrot.lane.b32.xlu0 %v4778, 20
  %v4799 = vpop.permute.xlu0 %4798
  %4800 = vrot.lane.b32.xlu0 %v4779, 20
  %v4801 = vpop.permute.xlu0 %4800
  %4802 = vrot.lane.b32.xlu0 %v4780, 20
  %v4803 = vpop.permute.xlu0 %4802
  %4804 = vrot.lane.b32.xlu0 %v4781, 20
  %v4805 = vpop.permute.xlu0 %4804
  %4806 = vrot.lane.b32.xlu0 %v4782, 20
  %v4807 = vpop.permute.xlu0 %4806
  %4808 = vrot.lane.b32.xlu0 %v4783, 20
  %v4809 = vpop.permute.xlu0 %4808
  %v4810 = vadd.f32 %v4758, %v4785
  %v4811 = vadd.f32 %v4759, %v4787
  %v4812 = vadd.f32 %v4760, %v4789
  %v4813 = vadd.f32 %v4761, %v4791
  %v4814 = vadd.f32 %v4762, %v4793
  %v4815 = vadd.f32 %v4763, %v4795
  %v4816 = vadd.f32 %v4764, %v4797
  %v4817 = vadd.f32 %v4765, %v4799
  %v4818 = vadd.f32 %v4766, %v4801
  %v4819 = vadd.f32 %v4767, %v4803
  %v4820 = vadd.f32 %v4768, %v4805
  %v4821 = vadd.f32 %v4769, %v4807
  %v4822 = vadd.f32 %v4770, %v4809
  %v4823 = vld [vmem:[#allocation2 + $0x16a] sm:$0xff]
  %v4824 = vld [vmem:[#allocation2 + $0x172] sm:$0xff]
  %v4825 = vld [vmem:[#allocation2 + $0x17a] sm:$0xff]
  %v4826 = vld [vmem:[#allocation2 + $0x182] sm:$0xff]
  %v4827 = vld [vmem:[#allocation2 + $0x18a] sm:$0xff]
  %4828 = vrot.lane.b32.xlu0 %v4620, 24
  %v4829 = vpop.permute.xlu0 %4828
  %4830 = vrot.lane.b32.xlu0 %v4621, 24
  %v4831 = vpop.permute.xlu0 %4830
  %4832 = vrot.lane.b32.xlu0 %v4622, 24
  %v4833 = vpop.permute.xlu0 %4832
  %4834 = vrot.lane.b32.xlu0 %v4623, 24
  %v4835 = vpop.permute.xlu0 %4834
  %4836 = vrot.lane.b32.xlu0 %v4624, 24
  %v4837 = vpop.permute.xlu0 %4836
  %4838 = vrot.lane.b32.xlu0 %v4625, 24
  %v4839 = vpop.permute.xlu0 %4838
  %4840 = vrot.lane.b32.xlu0 %v4626, 24
  %v4841 = vpop.permute.xlu0 %4840
  %4842 = vrot.lane.b32.xlu0 %v4627, 24
  %v4843 = vpop.permute.xlu0 %4842
  %4844 = vrot.lane.b32.xlu0 %v4823, 24
  %v4845 = vpop.permute.xlu0 %4844
  %4846 = vrot.lane.b32.xlu0 %v4824, 24
  %v4847 = vpop.permute.xlu0 %4846
  %4848 = vrot.lane.b32.xlu0 %v4825, 24
  %v4849 = vpop.permute.xlu0 %4848
  %4850 = vrot.lane.b32.xlu0 %v4826, 24
  %v4851 = vpop.permute.xlu0 %4850
  %4852 = vrot.lane.b32.xlu0 %v4827, 24
  %v4853 = vpop.permute.xlu0 %4852
  %v4854 = vadd.f32 %v4810, %v4829
  %v4855 = vadd.f32 %v4811, %v4831
  %v4856 = vadd.f32 %v4812, %v4833
  %v4857 = vadd.f32 %v4813, %v4835
  %v4858 = vadd.f32 %v4814, %v4837
  %v4859 = vadd.f32 %v4815, %v4839
  %v4860 = vadd.f32 %v4816, %v4841
  %v4861 = vadd.f32 %v4817, %v4843
  %v4862 = vadd.f32 %v4818, %v4845
  %v4863 = vadd.f32 %v4819, %v4847
  %v4864 = vadd.f32 %v4820, %v4849
  %v4865 = vadd.f32 %v4821, %v4851
  %v4866 = vadd.f32 %v4822, %v4853
  %v4867 = vld [vmem:[#allocation2 + $0x12b] sm:$0xff]
  %v4868 = vld [vmem:[#allocation2 + $0x133] sm:$0xff]
  %v4869 = vld [vmem:[#allocation2 + $0x13b] sm:$0xff]
  %v4870 = vld [vmem:[#allocation2 + $0x143] sm:$0xff]
  %v4871 = vld [vmem:[#allocation2 + $0x14b] sm:$0xff]
  %v4872 = vld [vmem:[#allocation2 + $0x153] sm:$0xff]
  %v4873 = vld [vmem:[#allocation2 + $0x15b] sm:$0xff]
  %v4874 = vld [vmem:[#allocation2 + $0x163] sm:$0xff]
  %v4875 = vld [vmem:[#allocation2 + $0x16b] sm:$0xff]
  %v4876 = vld [vmem:[#allocation2 + $0x173] sm:$0xff]
  %v4877 = vld [vmem:[#allocation2 + $0x17b] sm:$0xff]
  %v4878 = vld [vmem:[#allocation2 + $0x183] sm:$0xff]
  %v4879 = vld [vmem:[#allocation2 + $0x18b] sm:$0xff]
  %4880 = vrot.lane.b32.xlu0 %v4867, 28
  %v4881 = vpop.permute.xlu0 %4880
  %4882 = vrot.lane.b32.xlu0 %v4868, 28
  %v4883 = vpop.permute.xlu0 %4882
  %4884 = vrot.lane.b32.xlu0 %v4869, 28
  %v4885 = vpop.permute.xlu0 %4884
  %4886 = vrot.lane.b32.xlu0 %v4870, 28
  %v4887 = vpop.permute.xlu0 %4886
  %4888 = vrot.lane.b32.xlu0 %v4871, 28
  %v4889 = vpop.permute.xlu0 %4888
  %4890 = vrot.lane.b32.xlu0 %v4872, 28
  %v4891 = vpop.permute.xlu0 %4890
  %4892 = vrot.lane.b32.xlu0 %v4873, 28
  %v4893 = vpop.permute.xlu0 %4892
  %4894 = vrot.lane.b32.xlu0 %v4874, 28
  %v4895 = vpop.permute.xlu0 %4894
  %4896 = vrot.lane.b32.xlu0 %v4875, 28
  %v4897 = vpop.permute.xlu0 %4896
  %4898 = vrot.lane.b32.xlu0 %v4876, 28
  %v4899 = vpop.permute.xlu0 %4898
  %4900 = vrot.lane.b32.xlu0 %v4877, 28
  %v4901 = vpop.permute.xlu0 %4900
  %4902 = vrot.lane.b32.xlu0 %v4878, 28
  %v4903 = vpop.permute.xlu0 %4902
  %4904 = vrot.lane.b32.xlu0 %v4879, 28
  %v4905 = vpop.permute.xlu0 %4904
  %v4906 = vadd.f32 %v4854, %v4881
  %v4907 = vadd.f32 %v4855, %v4883
  %v4908 = vadd.f32 %v4856, %v4885
  %v4909 = vadd.f32 %v4857, %v4887
  %v4910 = vadd.f32 %v4858, %v4889
  %v4911 = vadd.f32 %v4859, %v4891
  %v4912 = vadd.f32 %v4860, %v4893
  %v4913 = vadd.f32 %v4861, %v4895
  %v4914 = vadd.f32 %v4862, %v4897
  %v4915 = vadd.f32 %v4863, %v4899
  %v4916 = vadd.f32 %v4864, %v4901
  %v4917 = vadd.f32 %v4865, %v4903
  %v4918 = vadd.f32 %v4866, %v4905
  %v4919 = vld [vmem:[#allocation2 + $0x12c] sm:$0xff]
  %v4920 = vld [vmem:[#allocation2 + $0x134] sm:$0xff]
  %v4921 = vld [vmem:[#allocation2 + $0x13c] sm:$0xff]
  %v4922 = vld [vmem:[#allocation2 + $0x144] sm:$0xff]
  %v4923 = vld [vmem:[#allocation2 + $0x14c] sm:$0xff]
  %v4924 = vld [vmem:[#allocation2 + $0x154] sm:$0xff]
  %v4925 = vld [vmem:[#allocation2 + $0x15c] sm:$0xff]
  %v4926 = vld [vmem:[#allocation2 + $0x164] sm:$0xff]
  %v4927 = vld [vmem:[#allocation2 + $0x16c] sm:$0xff]
  %v4928 = vld [vmem:[#allocation2 + $0x174] sm:$0xff]
  %v4929 = vld [vmem:[#allocation2 + $0x17c] sm:$0xff]
  %v4930 = vld [vmem:[#allocation2 + $0x184] sm:$0xff]
  %v4931 = vld [vmem:[#allocation2 + $0x18c] sm:$0xff]
  %4932 = vrot.lane.b32.xlu0 %v4919, 32
  %v4933 = vpop.permute.xlu0 %4932
  %4934 = vrot.lane.b32.xlu0 %v4920, 32
  %v4935 = vpop.permute.xlu0 %4934
  %4936 = vrot.lane.b32.xlu0 %v4921, 32
  %v4937 = vpop.permute.xlu0 %4936
  %4938 = vrot.lane.b32.xlu0 %v4922, 32
  %v4939 = vpop.permute.xlu0 %4938
  %4940 = vrot.lane.b32.xlu0 %v4923, 32
  %v4941 = vpop.permute.xlu0 %4940
  %4942 = vrot.lane.b32.xlu0 %v4924, 32
  %v4943 = vpop.permute.xlu0 %4942
  %4944 = vrot.lane.b32.xlu0 %v4925, 32
  %v4945 = vpop.permute.xlu0 %4944
  %4946 = vrot.lane.b32.xlu0 %v4926, 32
  %v4947 = vpop.permute.xlu0 %4946
  %4948 = vrot.lane.b32.xlu0 %v4927, 32
  %v4949 = vpop.permute.xlu0 %4948
  %4950 = vrot.lane.b32.xlu0 %v4928, 32
  %v4951 = vpop.permute.xlu0 %4950
  %4952 = vrot.lane.b32.xlu0 %v4929, 32
  %v4953 = vpop.permute.xlu0 %4952
  %4954 = vrot.lane.b32.xlu0 %v4930, 32
  %v4955 = vpop.permute.xlu0 %4954
  %4956 = vrot.lane.b32.xlu0 %v4931, 32
  %v4957 = vpop.permute.xlu0 %4956
  %v4958 = vadd.f32 %v4906, %v4933
  %v4959 = vadd.f32 %v4907, %v4935
  %v4960 = vadd.f32 %v4908, %v4937
  %v4961 = vadd.f32 %v4909, %v4939
  %v4962 = vadd.f32 %v4910, %v4941
  %v4963 = vadd.f32 %v4911, %v4943
  %v4964 = vadd.f32 %v4912, %v4945
  %v4965 = vadd.f32 %v4913, %v4947
  %v4966 = vadd.f32 %v4914, %v4949
  %v4967 = vadd.f32 %v4915, %v4951
  %v4968 = vadd.f32 %v4916, %v4953
  %v4969 = vadd.f32 %v4917, %v4955
  %v4970 = vadd.f32 %v4918, %v4957
  %4971 = vst [vmem:[#allocation3 + $0x100] sm:$0xff] %v4958
  %4972 = vst [vmem:[#allocation3 + $0x108] sm:$0xff] %v4959
  %4973 = vst [vmem:[#allocation3 + $0x110] sm:$0xff] %v4960
  %4974 = vst [vmem:[#allocation3 + $0x118] sm:$0xff] %v4961
  %4975 = vst [vmem:[#allocation3 + $0x120] sm:$0xff] %v4962
  %4976 = vst [vmem:[#allocation3 + $0x128] sm:$0xff] %v4963
  %4977 = vst [vmem:[#allocation3 + $0x130] sm:$0xff] %v4964
  %4978 = vst [vmem:[#allocation3 + $0x138] sm:$0xff] %v4965
  %4979 = vst [vmem:[#allocation3 + $0x140] sm:$0xff] %v4966
  %4980 = vst [vmem:[#allocation3 + $0x148] sm:$0xff] %v4967
  %4981 = vst [vmem:[#allocation3 + $0x150] sm:$0xff] %v4968
  %4982 = vst [vmem:[#allocation3 + $0x158] sm:$0xff] %v4969
  %4983 = vst [vmem:[#allocation3 + $0x160] sm:$0xff] %v4970
  %v4984 = vld [vmem:[#allocation6] sm:$0xff]
  %v4985 = vld [vmem:[#allocation6 + $0x8] sm:$0xff]
  %v4986 = vld [vmem:[#allocation6 + $0x10] sm:$0xff]
  %v4987 = vld [vmem:[#allocation6 + $0x18] sm:$0xff]
  %v4988 = vld [vmem:[#allocation6 + $0x20] sm:$0xff]
  %v4989 = vld [vmem:[#allocation6 + $0x28] sm:$0xff]
  %v4990 = vld [vmem:[#allocation6 + $0x30] sm:$0xff]
  %v4991 = vld [vmem:[#allocation6 + $0x38] sm:$0xff]
  %v4992 = vld [vmem:[#allocation6 + $0x40] sm:$0xff]
  %v4993 = vld [vmem:[#allocation6 + $0x48] sm:$0xff]
  %v4994 = vld [vmem:[#allocation6 + $0x50] sm:$0xff]
  %v4995 = vld [vmem:[#allocation6 + $0x58] sm:$0xff]
  %v4996 = vld [vmem:[#allocation6 + $0x60] sm:$0xff]
  %v4997 = vld [vmem:[#allocation6 + $0x68] sm:$0xff]
  %v4998 = vld [vmem:[#allocation6 + $0x70] sm:$0xff]
  %v4999 = vld [vmem:[#allocation6 + $0x78] sm:$0xff]
  %v5000 = vld [vmem:[#allocation6 + $0x80] sm:$0xff]
  %v5001 = vld [vmem:[#allocation6 + $0x88] sm:$0xff]
  %v5002 = vld [vmem:[#allocation6 + $0x90] sm:$0xff]
  %v5003 = vld [vmem:[#allocation6 + $0x98] sm:$0xff]
  %v5004 = vld [vmem:[#allocation6 + $0xa0] sm:$0xff]
  %v5005 = vld [vmem:[#allocation6 + $0xa8] sm:$0xff]
  %v5006 = vld [vmem:[#allocation6 + $0xb0] sm:$0xff]
  %v5007 = vld [vmem:[#allocation6 + $0xb8] sm:$0xff]
  %v5008 = vld [vmem:[#allocation6 + $0xc0] sm:$0xff]
  %v5009 = vld [vmem:[#allocation6 + $0xc8] sm:$0xff]
  %v5010 = vld [vmem:[#allocation6 + $0xd0] sm:$0xff]
  %v5011 = vld [vmem:[#allocation6 + $0xd8] sm:$0xff]
  %v5012 = vld [vmem:[#allocation6 + $0xe0] sm:$0xff]
  %v5013 = vld [vmem:[#allocation6 + $0xe8] sm:$0xff]
  %v5014 = vld [vmem:[#allocation6 + $0xf0] sm:$0xff]
  %v5015 = vld [vmem:[#allocation6 + $0xf8] sm:$0xff]
  %v5016 = vld [vmem:[#allocation6 + $0x100] sm:$0xff]
  %v5017 = vld [vmem:[#allocation3] sm:$0xff]
  %v5018 = vld [vmem:[#allocation3 + $0x8] sm:$0xff]
  %v5019 = vld [vmem:[#allocation3 + $0x10] sm:$0xff]
  %v5020 = vld [vmem:[#allocation3 + $0x18] sm:$0xff]
  %v5021 = vld [vmem:[#allocation3 + $0x20] sm:$0xff]
  %v5022 = vld [vmem:[#allocation3 + $0x28] sm:$0xff]
  %v5023 = vld [vmem:[#allocation3 + $0x30] sm:$0xff]
  %v5024 = vld [vmem:[#allocation3 + $0x38] sm:$0xff]
  %v5025 = vld [vmem:[#allocation3 + $0x40] sm:$0xff]
  %v5026 = vld [vmem:[#allocation3 + $0x48] sm:$0xff]
  %v5027 = vld [vmem:[#allocation3 + $0x50] sm:$0xff]
  %v5028 = vld [vmem:[#allocation3 + $0x58] sm:$0xff]
  %v5029 = vld [vmem:[#allocation3 + $0x60] sm:$0xff]
  %v5030 = vld [vmem:[#allocation3 + $0x68] sm:$0xff]
  %v5031 = vld [vmem:[#allocation3 + $0x70] sm:$0xff]
  %v5032 = vld [vmem:[#allocation3 + $0x78] sm:$0xff]
  %v5033 = vld [vmem:[#allocation3 + $0x80] sm:$0xff]
  %v5034 = vld [vmem:[#allocation3 + $0x88] sm:$0xff]
  %v5035 = vld [vmem:[#allocation3 + $0x90] sm:$0xff]
  %v5036 = vld [vmem:[#allocation3 + $0x98] sm:$0xff]
  %v5037 = vld [vmem:[#allocation3 + $0xa0] sm:$0xff]
  %v5038 = vld [vmem:[#allocation3 + $0xa8] sm:$0xff]
  %v5039 = vld [vmem:[#allocation3 + $0xb0] sm:$0xff]
  %v5040 = vld [vmem:[#allocation3 + $0xb8] sm:$0xff]
  %v5041 = vld [vmem:[#allocation3 + $0xc0] sm:$0xff]
  %v5042 = vld [vmem:[#allocation3 + $0xc8] sm:$0xff]
  %v5043 = vld [vmem:[#allocation3 + $0xd0] sm:$0xff]
  %v5044 = vld [vmem:[#allocation3 + $0xd8] sm:$0xff]
  %v5045 = vld [vmem:[#allocation3 + $0xe0] sm:$0xff]
  %v5046 = vld [vmem:[#allocation3 + $0xe8] sm:$0xff]
  %v5047 = vld [vmem:[#allocation3 + $0xf0] sm:$0xff]
  %v5048 = vld [vmem:[#allocation3 + $0xf8] sm:$0xff]
  %v5049 = vld [vmem:[#allocation3 + $0x100] sm:$0xff]
  %v5050 = vld [vmem:[#allocation3 + $0x108] sm:$0xff]
  %v5051 = vld [vmem:[#allocation3 + $0x110] sm:$0xff]
  %v5052 = vld [vmem:[#allocation3 + $0x118] sm:$0xff]
  %v5053 = vld [vmem:[#allocation3 + $0x120] sm:$0xff]
  %v5054 = vld [vmem:[#allocation3 + $0x128] sm:$0xff]
  %v5055 = vld [vmem:[#allocation3 + $0x130] sm:$0xff]
  %v5056 = vld [vmem:[#allocation3 + $0x138] sm:$0xff]
  %v5057 = vld [vmem:[#allocation3 + $0x140] sm:$0xff]
  %v5058 = vld [vmem:[#allocation3 + $0x148] sm:$0xff]
  %v5059 = vld [vmem:[#allocation3 + $0x150] sm:$0xff]
  %v5060 = vld [vmem:[#allocation3 + $0x158] sm:$0xff]
  %v5061 = vld [vmem:[#allocation3 + $0x160] sm:$0xff]
  %v5063 = vsel %vm314, %v4986, 0
  %v5066 = vsel %vm314, %v4989, 0
  %v5069 = vsel %vm314, %v4992, 0
  %v5072 = vsel %vm314, %v4995, 0
  %v5075 = vsel %vm314, %v4998, 0
  %v5078 = vsel %vm314, %v5001, 0
  %v5081 = vsel %vm314, %v5004, 0
  %v5084 = vsel %vm314, %v5007, 0
  %v5087 = vsel %vm314, %v5010, 0
  %v5090 = vsel %vm314, %v5013, 0
  %v5093 = vsel %vm314, %v5016, 0
  %5095 = vmatprep.subr.mxu0 0.0
  %5096 = vmatpush1.msra.mxu0 %v5017
  %5097 = vmatprep.subr.mxu0 0.0
  %5098 = vmatpush1.msra.mxu0 %v5018
  %5099 = vmatprep.subr.mxu0 0.0
  %5100 = vmatpush1.msra.mxu0 %v5019
  %5101 = vmatprep.subr.mxu0 0.0
  %5102 = vmatpush1.msra.mxu0 %v5020
  %5103 = vmatprep.subr.mxu0 0.0
  %5104 = vmatpush1.msra.mxu0 %v5021
  %5105 = vmatprep.subr.mxu0 0.0
  %5106 = vmatpush1.msra.mxu0 %v5022
  %5107 = vmatprep.subr.mxu0 0.0
  %5108 = vmatpush1.msra.mxu0 %v5023
  %5109 = vmatprep.subr.mxu0 0.0
  %5110 = vmatpush1.msra.mxu0 %v5024
  %5111 = vmatprep.subr.mxu0 0.0
  %5112 = vmatpush1.msra.mxu0 %v5025
  %5113 = vmatprep.subr.mxu0 0.0
  %5114 = vmatpush1.msra.mxu0 %v5026
  %5115 = vmatprep.subr.mxu0 0.0
  %5116 = vmatpush1.msra.mxu0 %v5027
  %5117 = vmatprep.subr.mxu0 0.0
  %5118 = vmatpush1.msra.mxu0 %v5028
  %5119 = vmatprep.subr.mxu0 0.0
  %5120 = vmatpush1.msra.mxu0 %v5029
  %5121 = vmatprep.subr.mxu0 0.0
  %5122 = vmatpush1.msra.mxu0 %v5030
  %5123 = vmatprep.subr.mxu0 0.0
  %5124 = vmatpush1.msra.mxu0 %v5031
  %5125 = vmatprep.subr.mxu0 0.0
  %5126 = vmatpush1.msra.mxu0 %v5032
  %5127 = vmatprep.subr.mxu0 0.0
  %5128 = vmatpush1.msra.mxu0 %v5033
  %5129 = vmatprep.subr.mxu0 0.0
  %5130 = vmatpush1.msra.mxu0 %v5034
  %5131 = vmatprep.subr.mxu0 0.0
  %5132 = vmatpush1.msra.mxu0 %v5035
  %5133 = vmatprep.subr.mxu0 0.0
  %5134 = vmatpush1.msra.mxu0 %v5036
  %5135 = vmatprep.subr.mxu0 0.0
  %5136 = vmatpush1.msra.mxu0 %v5037
  %5137 = vmatprep.subr.mxu0 0.0
  %5138 = vmatpush1.msra.mxu0 %v5038
  %5139 = vmatprep.subr.mxu0 0.0
  %5140 = vmatpush1.msra.mxu0 %v5039
  %5141 = vmatprep.subr.mxu0 0.0
  %5142 = vmatpush1.msra.mxu0 %v5040
  %5143 = vmatprep.subr.mxu0 0.0
  %5144 = vmatpush1.msra.mxu0 %v5041
  %5145 = vmatprep.subr.mxu0 0.0
  %5146 = vmatpush1.msra.mxu0 %v5042
  %5147 = vmatprep.subr.mxu0 0.0
  %5148 = vmatpush1.msra.mxu0 %v5043
  %5149 = vmatprep.subr.mxu0 0.0
  %5150 = vmatpush1.msra.mxu0 %v5044
  %5151 = vmatprep.subr.mxu0 0.0
  %5152 = vmatpush1.msra.mxu0 %v5045
  %5153 = vmatprep.subr.mxu0 0.0
  %5154 = vmatpush1.msra.mxu0 %v5046
  %5155 = vmatprep.subr.mxu0 0.0
  %5156 = vmatpush1.msra.mxu0 %v5047
  %5157 = vmatprep.subr.mxu0 0.0
  %5158 = vmatpush1.msra.mxu0 %v5048
  %5159 = vmatprep.mubr.f32.mxu0 %v4985
  %5160 = vmatmul.mubr.f32.gmra.mrb[0].mxu0 %v4984
  %v5161 = vpop.f32.mrb[0].mxu0
  %v5162 = vadd.f32 0.0, %v5161
  %v5163 = vpop.f32.mrb[0].mxu0
  %5164 = vmatprep.mubr.f32.mxu0 %v4988
  %5165 = vmatmul.mubr.f32.gmra.mrb[0].mxu0 %v4987
  %v5166 = vpop.f32.mrb[0].mxu0
  %v5167 = vadd.f32 0.0, %v5166
  %v5168 = vpop.f32.mrb[0].mxu0
  %5169 = vmatprep.mubr.f32.mxu0 %v4991
  %5170 = vmatmul.mubr.f32.gmra.mrb[0].mxu0 %v4990
  %v5171 = vpop.f32.mrb[0].mxu0
  %v5172 = vadd.f32 0.0, %v5171
  %v5173 = vpop.f32.mrb[0].mxu0
  %5174 = vmatprep.mubr.f32.mxu0 %v4994
  %5175 = vmatmul.mubr.f32.gmra.mrb[0].mxu0 %v4993
  %v5176 = vpop.f32.mrb[0].mxu0
  %v5177 = vadd.f32 0.0, %v5176
  %v5178 = vpop.f32.mrb[0].mxu0
  %5179 = vmatprep.mubr.f32.mxu0 %v4997
  %5180 = vmatmul.mubr.f32.gmra.mrb[0].mxu0 %v4996
  %v5181 = vpop.f32.mrb[0].mxu0
  %v5182 = vadd.f32 0.0, %v5181
  %v5183 = vpop.f32.mrb[0].mxu0
  %5184 = vmatprep.mubr.f32.mxu0 %v5000
  %5185 = vmatmul.mubr.f32.gmra.mrb[0].mxu0 %v4999
  %v5186 = vpop.f32.mrb[0].mxu0
  %v5187 = vadd.f32 0.0, %v5186
  %v5188 = vpop.f32.mrb[0].mxu0
  %5189 = vmatprep.mubr.f32.mxu0 %v5003
  %5190 = vmatmul.mubr.f32.gmra.mrb[0].mxu0 %v5002
  %v5191 = vpop.f32.mrb[0].mxu0
  %v5192 = vadd.f32 0.0, %v5191
  %v5193 = vpop.f32.mrb[0].mxu0
  %5194 = vmatprep.mubr.f32.mxu0 %v5006
  %5195 = vmatmul.mubr.f32.gmra.mrb[0].mxu0 %v5005
  %v5196 = vpop.f32.mrb[0].mxu0
  %v5197 = vadd.f32 0.0, %v5196
  %v5198 = vpop.f32.mrb[0].mxu0
  %5199 = vmatprep.mubr.f32.mxu0 %v5009
  %5200 = vmatmul.mubr.f32.gmra.mrb[0].mxu0 %v5008
  %v5201 = vpop.f32.mrb[0].mxu0
  %v5202 = vadd.f32 0.0, %v5201
  %v5203 = vpop.f32.mrb[0].mxu0
  %5204 = vmatprep.mubr.f32.mxu0 %v5012
  %5205 = vmatmul.mubr.f32.gmra.mrb[0].mxu0 %v5011
  %v5206 = vpop.f32.mrb[0].mxu0
  %v5207 = vadd.f32 0.0, %v5206
  %v5208 = vpop.f32.mrb[0].mxu0
  %5209 = vmatprep.mubr.f32.mxu0 %v5015
  %5210 = vmatmul.mubr.f32.gmra.mrb[0].mxu0 %v5014
  %v5211 = vpop.f32.mrb[0].mxu0
  %v5212 = vadd.f32 0.0, %v5211
  %v5213 = vpop.f32.mrb[0].mxu0
  %5214 = vdwg.mxu0
  %5215 = vmatprep.subr.mxu0 0.0
  %5216 = vmatpush1.msra.mxu0 %v5049
  %5217 = vmatprep.subr.mxu0 0.0
  %5218 = vmatpush1.msra.mxu0 %v5050
  %5219 = vmatprep.subr.mxu0 0.0
  %5220 = vmatpush1.msra.mxu0 %v5051
  %5221 = vmatprep.subr.mxu0 0.0
  %5222 = vmatpush1.msra.mxu0 %v5052
  %5223 = vmatprep.subr.mxu0 0.0
  %5224 = vmatpush1.msra.mxu0 %v5053
  %5225 = vmatprep.subr.mxu0 0.0
  %5226 = vmatpush1.msra.mxu0 %v5054
  %5227 = vmatprep.subr.mxu0 0.0
  %5228 = vmatpush1.msra.mxu0 %v5055
  %5229 = vmatprep.subr.mxu0 0.0
  %5230 = vmatpush1.msra.mxu0 %v5056
  %5231 = vmatprep.subr.mxu0 0.0
  %5232 = vmatpush1.msra.mxu0 %v5057
  %5233 = vmatprep.subr.mxu0 0.0
  %5234 = vmatpush1.msra.mxu0 %v5058
  %5235 = vmatprep.subr.mxu0 0.0
  %5236 = vmatpush1.msra.mxu0 %v5059
  %5237 = vmatprep.subr.mxu0 0.0
  %5238 = vmatpush1.msra.mxu0 %v5060
  %5239 = vmatprep.subr.mxu0 0.0
  %5240 = vmatpush1.msra.mxu0 %v5061
  %5241 = vmatprep.subr.mxu0 0.0
  %5242 = vmatpush1.msra.mxu0 0.0
  %5243 = vmatprep.subr.mxu0 0.0
  %5244 = vmatpush1.msra.mxu0 0.0
  %5245 = vmatprep.subr.mxu0 0.0
  %5246 = vmatpush1.msra.mxu0 0.0
  %5247 = vmatprep.subr.mxu0 0.0
  %5248 = vmatpush1.msra.mxu0 0.0
  %5249 = vmatprep.subr.mxu0 0.0
  %5250 = vmatpush1.msra.mxu0 0.0
  %5251 = vmatprep.subr.mxu0 0.0
  %5252 = vmatpush1.msra.mxu0 0.0
  %5253 = vmatprep.subr.mxu0 0.0
  %5254 = vmatpush1.msra.mxu0 0.0
  %5255 = vmatprep.subr.mxu0 0.0
  %5256 = vmatpush1.msra.mxu0 0.0
  %5257 = vmatprep.subr.mxu0 0.0
  %5258 = vmatpush1.msra.mxu0 0.0
  %5259 = vmatprep.subr.mxu0 0.0
  %5260 = vmatpush1.msra.mxu0 0.0
  %5261 = vmatprep.subr.mxu0 0.0
  %5262 = vmatpush1.msra.mxu0 0.0
  %5263 = vmatprep.subr.mxu0 0.0
  %5264 = vmatpush1.msra.mxu0 0.0
  %5265 = vmatprep.subr.mxu0 0.0
  %5266 = vmatpush1.msra.mxu0 0.0
  %5267 = vmatprep.subr.mxu0 0.0
  %5268 = vmatpush1.msra.mxu0 0.0
  %5269 = vmatprep.subr.mxu0 0.0
  %5270 = vmatpush1.msra.mxu0 0.0
  %5271 = vmatprep.subr.mxu0 0.0
  %5272 = vmatpush1.msra.mxu0 0.0
  %5273 = vmatprep.subr.mxu0 0.0
  %5274 = vmatpush1.msra.mxu0 0.0
  %5275 = vmatprep.subr.mxu0 0.0
  %5276 = vmatpush1.msra.mxu0 0.0
  %5277 = vmatprep.subr.mxu0 0.0
  %5278 = vmatpush1.msra.mxu0 0.0
  %5279 = vmatprep.mubr.f32.mxu0 0.0
  %5280 = vmatmul.mubr.f32.gmra.mrb[0].mxu0 %v5063
  %v5281 = vpop.f32.mrb[0].mxu0
  %v5282 = vadd.f32 %v5162, %v5281
  %v5283 = vpop.f32.mrb[0].mxu0
  %5284 = vmatprep.mubr.f32.mxu0 0.0
  %5285 = vmatmul.mubr.f32.gmra.mrb[0].mxu0 %v5066
  %v5286 = vpop.f32.mrb[0].mxu0
  %v5287 = vadd.f32 %v5167, %v5286
  %v5288 = vpop.f32.mrb[0].mxu0
  %5289 = vmatprep.mubr.f32.mxu0 0.0
  %5290 = vmatmul.mubr.f32.gmra.mrb[0].mxu0 %v5069
  %v5291 = vpop.f32.mrb[0].mxu0
  %v5292 = vadd.f32 %v5172, %v5291
  %v5293 = vpop.f32.mrb[0].mxu0
  %5294 = vmatprep.mubr.f32.mxu0 0.0
  %5295 = vmatmul.mubr.f32.gmra.mrb[0].mxu0 %v5072
  %v5296 = vpop.f32.mrb[0].mxu0
  %v5297 = vadd.f32 %v5177, %v5296
  %v5298 = vpop.f32.mrb[0].mxu0
  %5299 = vmatprep.mubr.f32.mxu0 0.0
  %5300 = vmatmul.mubr.f32.gmra.mrb[0].mxu0 %v5075
  %v5301 = vpop.f32.mrb[0].mxu0
  %v5302 = vadd.f32 %v5182, %v5301
  %v5303 = vpop.f32.mrb[0].mxu0
  %5304 = vmatprep.mubr.f32.mxu0 0.0
  %5305 = vmatmul.mubr.f32.gmra.mrb[0].mxu0 %v5078
  %v5306 = vpop.f32.mrb[0].mxu0
  %v5307 = vadd.f32 %v5187, %v5306
  %v5308 = vpop.f32.mrb[0].mxu0
  %5309 = vmatprep.mubr.f32.mxu0 0.0
  %5310 = vmatmul.mubr.f32.gmra.mrb[0].mxu0 %v5081
  %v5311 = vpop.f32.mrb[0].mxu0
  %v5312 = vadd.f32 %v5192, %v5311
  %v5313 = vpop.f32.mrb[0].mxu0
  %5314 = vmatprep.mubr.f32.mxu0 0.0
  %5315 = vmatmul.mubr.f32.gmra.mrb[0].mxu0 %v5084
  %v5316 = vpop.f32.mrb[0].mxu0
  %v5317 = vadd.f32 %v5197, %v5316
  %v5318 = vpop.f32.mrb[0].mxu0
  %5319 = vmatprep.mubr.f32.mxu0 0.0
  %5320 = vmatmul.mubr.f32.gmra.mrb[0].mxu0 %v5087
  %v5321 = vpop.f32.mrb[0].mxu0
  %v5322 = vadd.f32 %v5202, %v5321
  %v5323 = vpop.f32.mrb[0].mxu0
  %5324 = vmatprep.mubr.f32.mxu0 0.0
  %5325 = vmatmul.mubr.f32.gmra.mrb[0].mxu0 %v5090
  %v5326 = vpop.f32.mrb[0].mxu0
  %v5327 = vadd.f32 %v5207, %v5326
  %v5328 = vpop.f32.mrb[0].mxu0
  %5329 = vmatprep.mubr.f32.mxu0 0.0
  %5330 = vmatmul.mubr.f32.gmra.mrb[0].mxu0 %v5093
  %v5331 = vpop.f32.mrb[0].mxu0
  %v5332 = vadd.f32 %v5212, %v5331
  %v5333 = vpop.f32.mrb[0].mxu0
  %5334 = vdwg.mxu0
  %v5335 = vld [vmem:[%s3] sm:$0xff]
  %v5336 = vld [vmem:[%s3 + $0x8] sm:$0xff]
  %v5337 = vld [vmem:[%s3 + $0x10] sm:$0xff]
  %v5338 = vld [vmem:[%s3 + $0x18] sm:$0xff]
  %v5339 = vld [vmem:[%s3 + $0x20] sm:$0xff]
  %v5340 = vld [vmem:[%s3 + $0x28] sm:$0xff]
  %v5341 = vld [vmem:[%s3 + $0x30] sm:$0xff]
  %v5342 = vld [vmem:[%s3 + $0x38] sm:$0xff]
  %v5343 = vld [vmem:[%s3 + $0x40] sm:$0xff]
  %v5344 = vld [vmem:[%s3 + $0x48] sm:$0xff]
  %v5345 = vld [vmem:[%s3 + $0x50] sm:$0xff]
  %v5346 = vld [vmem:[%s3 + $0x58] sm:$0xff]
  %v5347 = vld [vmem:[%s3 + $0x60] sm:$0xff]
  %v5348 = vld [vmem:[%s3 + $0x68] sm:$0xff]
  %v5349 = vld [vmem:[%s3 + $0x70] sm:$0xff]
  %v5350 = vld [vmem:[%s3 + $0x78] sm:$0xff]
  %5351 = vmatprep.subr.mxu0 0.0
  %5352 = vmatpush1.msra.mxu0 %v5335
  %5353 = vmatprep.subr.mxu0 0.0
  %5354 = vmatpush1.msra.mxu0 %v5336
  %5355 = vmatprep.subr.mxu0 0.0
  %5356 = vmatpush1.msra.mxu0 %v5337
  %5357 = vmatprep.subr.mxu0 0.0
  %5358 = vmatpush1.msra.mxu0 %v5338
  %5359 = vmatprep.subr.mxu0 0.0
  %5360 = vmatpush1.msra.mxu0 %v5339
  %5361 = vmatprep.subr.mxu0 0.0
  %5362 = vmatpush1.msra.mxu0 %v5340
  %5363 = vmatprep.subr.mxu0 0.0
  %5364 = vmatpush1.msra.mxu0 %v5341
  %5365 = vmatprep.subr.mxu0 0.0
  %5366 = vmatpush1.msra.mxu0 %v5342
  %5367 = vmatprep.subr.mxu0 0.0
  %5368 = vmatpush1.msra.mxu0 %v5343
  %5369 = vmatprep.subr.mxu0 0.0
  %5370 = vmatpush1.msra.mxu0 %v5344
  %5371 = vmatprep.subr.mxu0 0.0
  %5372 = vmatpush1.msra.mxu0 %v5345
  %5373 = vmatprep.subr.mxu0 0.0
  %5374 = vmatpush1.msra.mxu0 %v5346
  %5375 = vmatprep.subr.mxu0 0.0
  %5376 = vmatpush1.msra.mxu0 %v5347
  %5377 = vmatprep.subr.mxu0 0.0
  %5378 = vmatpush1.msra.mxu0 %v5348
  %5379 = vmatprep.subr.mxu0 0.0
  %5380 = vmatpush1.msra.mxu0 %v5349
  %5381 = vmatprep.subr.mxu0 0.0
  %5382 = vmatpush1.msra.mxu0 %v5350
  %5383 = vmatprep.subr.mxu0 0.0
  %5384 = vmatpush1.msra.mxu0 0.0
  %5385 = vmatprep.subr.mxu0 0.0
  %5386 = vmatpush1.msra.mxu0 0.0
  %5387 = vmatprep.subr.mxu0 0.0
  %5388 = vmatpush1.msra.mxu0 0.0
  %5389 = vmatprep.subr.mxu0 0.0
  %5390 = vmatpush1.msra.mxu0 0.0
  %5391 = vmatprep.subr.mxu0 0.0
  %5392 = vmatpush1.msra.mxu0 0.0
  %5393 = vmatprep.subr.mxu0 0.0
  %5394 = vmatpush1.msra.mxu0 0.0
  %5395 = vmatprep.subr.mxu0 0.0
  %5396 = vmatpush1.msra.mxu0 0.0
  %5397 = vmatprep.subr.mxu0 0.0
  %5398 = vmatpush1.msra.mxu0 0.0
  %5399 = vmatprep.subr.mxu0 0.0
  %5400 = vmatpush1.msra.mxu0 0.0
  %5401 = vmatprep.subr.mxu0 0.0
  %5402 = vmatpush1.msra.mxu0 0.0
  %5403 = vmatprep.subr.mxu0 0.0
  %5404 = vmatpush1.msra.mxu0 0.0
  %5405 = vmatprep.subr.mxu0 0.0
  %5406 = vmatpush1.msra.mxu0 0.0
  %5407 = vmatprep.subr.mxu0 0.0
  %5408 = vmatpush1.msra.mxu0 0.0
  %5409 = vmatprep.subr.mxu0 0.0
  %5410 = vmatpush1.msra.mxu0 0.0
  %5411 = vmatprep.subr.mxu0 0.0
  %5412 = vmatpush1.msra.mxu0 0.0
  %5413 = vmatprep.subr.mxu0 0.0
  %5414 = vmatpush1.msra.mxu0 0.0
  %5415 = vmatprep.mubr.f32.mxu0 0.0
  %5416 = vmatmul.mubr.f32.gmra.mrb[0].mxu0 %v5282
  %v5417 = vpop.f32.mrb[0].mxu0
  %v5418 = vadd.f32 0.0, %v5417
  %v5419 = vpop.f32.mrb[0].mxu0
  %5420 = vmatprep.mubr.f32.mxu0 0.0
  %5421 = vmatmul.mubr.f32.gmra.mrb[0].mxu0 %v5287
  %v5422 = vpop.f32.mrb[0].mxu0
  %v5423 = vadd.f32 0.0, %v5422
  %v5424 = vpop.f32.mrb[0].mxu0
  %5425 = vmatprep.mubr.f32.mxu0 0.0
  %5426 = vmatmul.mubr.f32.gmra.mrb[0].mxu0 %v5292
  %v5427 = vpop.f32.mrb[0].mxu0
  %v5428 = vadd.f32 0.0, %v5427
  %v5429 = vpop.f32.mrb[0].mxu0
  %5430 = vmatprep.mubr.f32.mxu0 0.0
  %5431 = vmatmul.mubr.f32.gmra.mrb[0].mxu0 %v5297
  %v5432 = vpop.f32.mrb[0].mxu0
  %v5433 = vadd.f32 0.0, %v5432
  %v5434 = vpop.f32.mrb[0].mxu0
  %5435 = vmatprep.mubr.f32.mxu0 0.0
  %5436 = vmatmul.mubr.f32.gmra.mrb[0].mxu0 %v5302
  %v5437 = vpop.f32.mrb[0].mxu0
  %v5438 = vadd.f32 0.0, %v5437
  %v5439 = vpop.f32.mrb[0].mxu0
  %5440 = vmatprep.mubr.f32.mxu0 0.0
  %5441 = vmatmul.mubr.f32.gmra.mrb[0].mxu0 %v5307
  %v5442 = vpop.f32.mrb[0].mxu0
  %v5443 = vadd.f32 0.0, %v5442
  %v5444 = vpop.f32.mrb[0].mxu0
  %5445 = vmatprep.mubr.f32.mxu0 0.0
  %5446 = vmatmul.mubr.f32.gmra.mrb[0].mxu0 %v5312
  %v5447 = vpop.f32.mrb[0].mxu0
  %v5448 = vadd.f32 0.0, %v5447
  %v5449 = vpop.f32.mrb[0].mxu0
  %5450 = vmatprep.mubr.f32.mxu0 0.0
  %5451 = vmatmul.mubr.f32.gmra.mrb[0].mxu0 %v5317
  %v5452 = vpop.f32.mrb[0].mxu0
  %v5453 = vadd.f32 0.0, %v5452
  %v5454 = vpop.f32.mrb[0].mxu0
  %5455 = vmatprep.mubr.f32.mxu0 0.0
  %5456 = vmatmul.mubr.f32.gmra.mrb[0].mxu0 %v5322
  %v5457 = vpop.f32.mrb[0].mxu0
  %v5458 = vadd.f32 0.0, %v5457
  %v5459 = vpop.f32.mrb[0].mxu0
  %5460 = vmatprep.mubr.f32.mxu0 0.0
  %5461 = vmatmul.mubr.f32.gmra.mrb[0].mxu0 %v5327
  %v5462 = vpop.f32.mrb[0].mxu0
  %v5463 = vadd.f32 0.0, %v5462
  %v5464 = vpop.f32.mrb[0].mxu0
  %5465 = vmatprep.mubr.f32.mxu0 0.0
  %5466 = vmatmul.mubr.f32.gmra.mrb[0].mxu0 %v5332
  %v5467 = vpop.f32.mrb[0].mxu0
  %v5468 = vadd.f32 0.0, %v5467
  %v5469 = vpop.f32.mrb[0].mxu0
  %5470 = vdwg.mxu0
  %s5471 = scalar_lea.vmem [#allocation4], 88
  %5472 = vst [vmem:[%s5471] sm:$0xff] %v5418
  %5473 = vst [vmem:[%s5471 + $0x8] sm:$0xff] %v5423
  %5474 = vst [vmem:[%s5471 + $0x10] sm:$0xff] %v5428
  %5475 = vst [vmem:[%s5471 + $0x18] sm:$0xff] %v5433
  %5476 = vst [vmem:[%s5471 + $0x20] sm:$0xff] %v5438
  %5477 = vst [vmem:[%s5471 + $0x28] sm:$0xff] %v5443
  %5478 = vst [vmem:[%s5471 + $0x30] sm:$0xff] %v5448
  %5479 = vst [vmem:[%s5471 + $0x38] sm:$0xff] %v5453
  %5480 = vst [vmem:[%s5471 + $0x40] sm:$0xff] %v5458
  %5481 = vst [vmem:[%s5471 + $0x48] sm:$0xff] %v5463
  %5482 = vst [vmem:[%s5471 + $0x50] sm:$0xff] %v5468
  %v5483 = vadd.f32 %v5418, %v5423
  %v5484 = vadd.f32 %v5483, %v5428
  %v5485 = vadd.f32 %v5484, %v5433
  %v5486 = vadd.f32 %v5485, %v5438
  %v5487 = vadd.f32 %v5486, %v5443
  %v5488 = vadd.f32 %v5487, %v5448
  %v5489 = vadd.f32 %v5488, %v5453
  %v5490 = vadd.f32 %v5489, %v5458
  %v5491 = vadd.f32 %v5490, %v5463
  %v5492 = vadd.f32 %v5491, %v5468
  %v5493 = vrot.slane %v5492, 4
  %v5494 = vadd.f32 %v5492, %v5493
  %v5495 = vrot.slane %v5494, 2
  %v5496 = vadd.f32 %v5494, %v5495
  %v5497 = vrot.slane %v5496, 1
  %v5498 = vadd.f32 %v5496, %v5497
  %v5499 = vadd.f32 %v2907, %v5498
  %v5500 = vmul.f32 %v5418, %v5418
  %v5501 = vmul.f32 %v5423, %v5423
  %v5502 = vmul.f32 %v5428, %v5428
  %v5503 = vmul.f32 %v5433, %v5433
  %v5504 = vmul.f32 %v5438, %v5438
  %v5505 = vmul.f32 %v5443, %v5443
  %v5506 = vmul.f32 %v5448, %v5448
  %v5507 = vmul.f32 %v5453, %v5453
  %v5508 = vmul.f32 %v5458, %v5458
  %v5509 = vmul.f32 %v5463, %v5463
  %v5510 = vmul.f32 %v5468, %v5468
  %v5511 = vadd.f32 %v5500, %v5501
  %v5512 = vadd.f32 %v5511, %v5502
  %v5513 = vadd.f32 %v5512, %v5503
  %v5514 = vadd.f32 %v5513, %v5504
  %v5515 = vadd.f32 %v5514, %v5505
  %v5516 = vadd.f32 %v5515, %v5506
  %v5517 = vadd.f32 %v5516, %v5507
  %v5518 = vadd.f32 %v5517, %v5508
  %v5519 = vadd.f32 %v5518, %v5509
  %v5520 = vadd.f32 %v5519, %v5510
  %v5521 = vrot.slane %v5520, 4
  %v5522 = vadd.f32 %v5520, %v5521
  %v5523 = vrot.slane %v5522, 2
  %v5524 = vadd.f32 %v5522, %v5523
  %v5525 = vrot.slane %v5524, 1
  %v5526 = vadd.f32 %v5524, %v5525
  %v5527 = vadd.f32 %v2935, %v5526
  %v5528 = vmul.f32 %v5499, 0.0061728396
  %v5529 = vmul.f32 %v5527, 0.0061728396
  %v5530 = vmul.f32 %v5528, %v5528
  %v5531 = vsub.f32 %v5529, %v5530
  %v5532 = vld [vmem:[%s4] sm:$0x1]
  %v5533 = vadd.f32 %v5531, 1e-05
  %v5534 = vrsqrt.pop %v5533
  %v5535 = vmul.f32 %v5532, %v5534
  %v5536 = vld [vmem:[%s5] sm:$0x1]
  %v5537 = vmul.f32 %v5528, %v5535
  %v5538 = vsub.f32 %v5536, %v5537
  %5539 = vrot.lane.b32.xlu0 %v5535, 8
  %v5540 = vpop.permute.xlu0 %5539
  %v5541 = vadd.f32 %v5535, %v5540
  %5542 = vrot.lane.b32.xlu0 %v5538, 8
  %v5543 = vpop.permute.xlu0 %5542
  %v5544 = vadd.f32 %v5538, %v5543
  %5545 = vrot.lane.b32.xlu0 %v5535, 16
  %v5546 = vpop.permute.xlu0 %5545
  %v5547 = vadd.f32 %v5541, %v5546
  %5548 = vrot.lane.b32.xlu0 %v5538, 16
  %v5549 = vpop.permute.xlu0 %5548
  %v5550 = vadd.f32 %v5544, %v5549
  %5551 = vrot.lane.b32.xlu0 %v5535, 24
  %v5552 = vpop.permute.xlu0 %5551
  %v5553 = vadd.f32 %v5547, %v5552
  %5554 = vrot.lane.b32.xlu0 %v5538, 24
  %v5555 = vpop.permute.xlu0 %5554
  %v5556 = vadd.f32 %v5550, %v5555
  %5557 = vrot.lane.b32.xlu0 %v5535, 32
  %v5558 = vpop.permute.xlu0 %5557
  %v5559 = vadd.f32 %v5553, %v5558
  %5560 = vrot.lane.b32.xlu0 %v5538, 32
  %v5561 = vpop.permute.xlu0 %5560
  %v5562 = vadd.f32 %v5556, %v5561
  %5563 = vrot.lane.b32.xlu0 %v5535, 40
  %v5564 = vpop.permute.xlu0 %5563
  %v5565 = vadd.f32 %v5559, %v5564
  %5566 = vrot.lane.b32.xlu0 %v5538, 40
  %v5567 = vpop.permute.xlu0 %5566
  %v5568 = vadd.f32 %v5562, %v5567
  %5569 = vrot.lane.b32.xlu0 %v5535, 48
  %v5570 = vpop.permute.xlu0 %5569
  %v5571 = vadd.f32 %v5565, %v5570
  %5572 = vrot.lane.b32.xlu0 %v5538, 48
  %v5573 = vpop.permute.xlu0 %5572
  %v5574 = vadd.f32 %v5568, %v5573
  %5575 = vrot.lane.b32.xlu0 %v5535, 56
  %v5576 = vpop.permute.xlu0 %5575
  %v5577 = vadd.f32 %v5571, %v5576
  %5578 = vrot.lane.b32.xlu0 %v5538, 56
  %v5579 = vpop.permute.xlu0 %5578
  %v5580 = vadd.f32 %v5574, %v5579
  %5581 = vrot.lane.b32.xlu0 %v5535, 64
  %v5582 = vpop.permute.xlu0 %5581
  %v5583 = vadd.f32 %v5577, %v5582
  %5584 = vrot.lane.b32.xlu0 %v5538, 64
  %v5585 = vpop.permute.xlu0 %5584
  %v5586 = vadd.f32 %v5580, %v5585
  %v5587 = vld [vmem:[%s6] sm:$0xff]
  %v5588 = vld [vmem:[%s6 + $0x8] sm:$0xff]
  %v5589 = vld [vmem:[%s6 + $0x10] sm:$0xff]
  %v5590 = vld [vmem:[%s6 + $0x18] sm:$0xff]
  %v5591 = vld [vmem:[%s6 + $0x20] sm:$0xff]
  %v5592 = vld [vmem:[%s6 + $0x28] sm:$0xff]
  %v5593 = vld [vmem:[%s6 + $0x30] sm:$0xff]
  %v5594 = vld [vmem:[%s6 + $0x38] sm:$0xff]
  %v5595 = vld [vmem:[%s6 + $0x40] sm:$0xff]
  %v5596 = vld [vmem:[%s6 + $0x48] sm:$0xff]
  %v5597 = vld [vmem:[%s6 + $0x50] sm:$0xff]
  %v5598 = vld [vmem:[%s6 + $0x58] sm:$0xff]
  %v5599 = vld [vmem:[%s6 + $0x60] sm:$0xff]
  %v5600 = vld [vmem:[%s6 + $0x68] sm:$0xff]
  %v5601 = vld [vmem:[%s6 + $0x70] sm:$0xff]
  %v5602 = vld [vmem:[%s6 + $0x78] sm:$0xff]
  %5603 = vmatprep.subr.mxu0 0.0
  %5604 = vmatpush1.msra.mxu0 %v5587
  %5605 = vmatprep.subr.mxu0 0.0
  %5606 = vmatpush1.msra.mxu0 %v5588
  %5607 = vmatprep.subr.mxu0 0.0
  %5608 = vmatpush1.msra.mxu0 %v5589
  %5609 = vmatprep.subr.mxu0 0.0
  %5610 = vmatpush1.msra.mxu0 %v5590
  %5611 = vmatprep.subr.mxu0 0.0
  %5612 = vmatpush1.msra.mxu0 %v5591
  %5613 = vmatprep.subr.mxu0 0.0
  %5614 = vmatpush1.msra.mxu0 %v5592
  %5615 = vmatprep.subr.mxu0 0.0
  %5616 = vmatpush1.msra.mxu0 %v5593
  %5617 = vmatprep.subr.mxu0 0.0
  %5618 = vmatpush1.msra.mxu0 %v5594
  %5619 = vmatprep.subr.mxu0 0.0
  %5620 = vmatpush1.msra.mxu0 %v5595
  %5621 = vmatprep.subr.mxu0 0.0
  %5622 = vmatpush1.msra.mxu0 %v5596
  %5623 = vmatprep.subr.mxu0 0.0
  %5624 = vmatpush1.msra.mxu0 %v5597
  %5625 = vmatprep.subr.mxu0 0.0
  %5626 = vmatpush1.msra.mxu0 %v5598
  %5627 = vmatprep.subr.mxu0 0.0
  %5628 = vmatpush1.msra.mxu0 %v5599
  %5629 = vmatprep.subr.mxu0 0.0
  %5630 = vmatpush1.msra.mxu0 %v5600
  %5631 = vmatprep.subr.mxu0 0.0
  %5632 = vmatpush1.msra.mxu0 %v5601
  %5633 = vmatprep.subr.mxu0 0.0
  %5634 = vmatpush1.msra.mxu0 %v5602
  %5635 = vmatprep.subr.mxu0 0.0
  %5636 = vmatpush1.msra.mxu0 0.0
  %5637 = vmatprep.subr.mxu0 0.0
  %5638 = vmatpush1.msra.mxu0 0.0
  %5639 = vmatprep.subr.mxu0 0.0
  %5640 = vmatpush1.msra.mxu0 0.0
  %5641 = vmatprep.subr.mxu0 0.0
  %5642 = vmatpush1.msra.mxu0 0.0
  %5643 = vmatprep.subr.mxu0 0.0
  %5644 = vmatpush1.msra.mxu0 0.0
  %5645 = vmatprep.subr.mxu0 0.0
  %5646 = vmatpush1.msra.mxu0 0.0
  %5647 = vmatprep.subr.mxu0 0.0
  %5648 = vmatpush1.msra.mxu0 0.0
  %5649 = vmatprep.subr.mxu0 0.0
  %5650 = vmatpush1.msra.mxu0 0.0
  %5651 = vmatprep.subr.mxu0 0.0
  %5652 = vmatpush1.msra.mxu0 0.0
  %5653 = vmatprep.subr.mxu0 0.0
  %5654 = vmatpush1.msra.mxu0 0.0
  %5655 = vmatprep.subr.mxu0 0.0
  %5656 = vmatpush1.msra.mxu0 0.0
  %5657 = vmatprep.subr.mxu0 0.0
  %5658 = vmatpush1.msra.mxu0 0.0
  %5659 = vmatprep.subr.mxu0 0.0
  %5660 = vmatpush1.msra.mxu0 0.0
  %5661 = vmatprep.subr.mxu0 0.0
  %5662 = vmatpush1.msra.mxu0 0.0
  %5663 = vmatprep.subr.mxu0 0.0
  %5664 = vmatpush1.msra.mxu0 0.0
  %5665 = vmatprep.subr.mxu0 0.0
  %5666 = vmatpush1.msra.mxu0 0.0
  %5667 = vmatprep.mubr.f32.mxu0 0.0
  %5668 = vmatmul.mubr.f32.gmra.mrb[0].mxu0 %v5586
  %v5669 = vpop.f32.mrb[0].mxu0
  %v5670 = vadd.f32 0.0, %v5669
  %v5671 = vpop.f32.mrb[0].mxu0
  %5672 = vdwg.mxu0
  %v5673 = vmul.f32 %v70, 0.25
  %v5674 = vmul.f32 %v71, 0.25
  %v5675 = vfloor.f32 %v5673
  %v5676 = vfloor.f32 %v5674
  %v5677 = vmul.f32 %v5675, 4.0
  %v5678 = vmul.f32 %v5676, 4.0
  %v5679 = vsub.f32 %v52, %v5677
  %v5680 = vsub.f32 %v53, %v5678
  %v5681 = vmul.f32 %v5675, 2.0
  %v5682 = vmul.f32 %v5676, 2.0
  %v5683 = vmul.f32 %v5681, 9.0
  %v5684 = vmul.f32 %v5682, 9.0
  %v5685 = vmul.f32 %v5679, 2.0
  %v5686 = vmul.f32 %v5680, 2.0
  %v5687 = vadd.f32 %v5683, %v5685
  %v5688 = vadd.f32 %v5684, %v5686
  %vm5689 = vcmp.eq.f32.partialorder %v67, %v5687
  %vm5690 = vcmp.eq.f32.partialorder %v67, %v5688
  %vm5691 = vcmp.lt.f32.partialorder %v52, 16.0
  %vm5692 = vcmp.lt.f32.partialorder %v53, 16.0
  %vm5693 = vmand %vm5689, %vm5691
  %vm5694 = vmand %vm5690, %vm5692
  %v5695 = vsel %vm5693, 1, 0
  %v5696 = vsel %vm5694, 1, 0
  %v5697 = vcvt.s32.f32 %v5695
  %v5698 = vcvt.s32.f32 %v5696
  %v5699 = vld [vmem:[#allocation4] sm:$0xff]
  %v5700 = vld [vmem:[#allocation4 + $0x8] sm:$0xff]
  %v5701 = vld [vmem:[#allocation4 + $0x10] sm:$0xff]
  %v5702 = vld [vmem:[#allocation4 + $0x18] sm:$0xff]
  %v5703 = vld [vmem:[#allocation4 + $0x20] sm:$0xff]
  %v5704 = vld [vmem:[#allocation4 + $0x28] sm:$0xff]
  %v5705 = vld [vmem:[#allocation4 + $0x30] sm:$0xff]
  %v5706 = vld [vmem:[#allocation4 + $0x38] sm:$0xff]
  %v5707 = vld [vmem:[#allocation4 + $0x1] sm:$0xff]
  %v5708 = vld [vmem:[#allocation4 + $0x9] sm:$0xff]
  %v5709 = vld [vmem:[#allocation4 + $0x11] sm:$0xff]
  %v5710 = vld [vmem:[#allocation4 + $0x19] sm:$0xff]
  %v5711 = vld [vmem:[#allocation4 + $0x21] sm:$0xff]
  %v5712 = vld [vmem:[#allocation4 + $0x29] sm:$0xff]
  %v5713 = vld [vmem:[#allocation4 + $0x31] sm:$0xff]
  %v5714 = vld [vmem:[#allocation4 + $0x39] sm:$0xff]
  %5715 = vrot.lane.b32.xlu0 %v5707, 8
  %v5716 = vpop.permute.xlu0 %5715
  %5717 = vrot.lane.b32.xlu0 %v5708, 8
  %v5718 = vpop.permute.xlu0 %5717
  %5719 = vrot.lane.b32.xlu0 %v5709, 8
  %v5720 = vpop.permute.xlu0 %5719
  %5721 = vrot.lane.b32.xlu0 %v5710, 8
  %v5722 = vpop.permute.xlu0 %5721
  %5723 = vrot.lane.b32.xlu0 %v5711, 8
  %v5724 = vpop.permute.xlu0 %5723
  %5725 = vrot.lane.b32.xlu0 %v5712, 8
  %v5726 = vpop.permute.xlu0 %5725
  %5727 = vrot.lane.b32.xlu0 %v5713, 8
  %v5728 = vpop.permute.xlu0 %5727
  %5729 = vrot.lane.b32.xlu0 %v5714, 8
  %v5730 = vpop.permute.xlu0 %5729
  %v5731 = vadd.f32 %v5699, %v5716
  %v5732 = vadd.f32 %v5700, %v5718
  %v5733 = vadd.f32 %v5701, %v5720
  %v5734 = vadd.f32 %v5702, %v5722
  %v5735 = vadd.f32 %v5703, %v5724
  %v5736 = vadd.f32 %v5704, %v5726
  %v5737 = vadd.f32 %v5705, %v5728
  %v5738 = vadd.f32 %v5706, %v5730
  %v5739 = vld [vmem:[#allocation4 + $0x2] sm:$0xff]
  %v5740 = vld [vmem:[#allocation4 + $0xa] sm:$0xff]
  %v5741 = vld [vmem:[#allocation4 + $0x12] sm:$0xff]
  %v5742 = vld [vmem:[#allocation4 + $0x1a] sm:$0xff]
  %v5743 = vld [vmem:[#allocation4 + $0x22] sm:$0xff]
  %v5744 = vld [vmem:[#allocation4 + $0x2a] sm:$0xff]
  %v5745 = vld [vmem:[#allocation4 + $0x32] sm:$0xff]
  %v5746 = vld [vmem:[#allocation4 + $0x3a] sm:$0xff]
  %5747 = vrot.lane.b32.xlu0 %v5739, 16
  %v5748 = vpop.permute.xlu0 %5747
  %5749 = vrot.lane.b32.xlu0 %v5740, 16
  %v5750 = vpop.permute.xlu0 %5749
  %5751 = vrot.lane.b32.xlu0 %v5741, 16
  %v5752 = vpop.permute.xlu0 %5751
  %5753 = vrot.lane.b32.xlu0 %v5742, 16
  %v5754 = vpop.permute.xlu0 %5753
  %5755 = vrot.lane.b32.xlu0 %v5743, 16
  %v5756 = vpop.permute.xlu0 %5755
  %5757 = vrot.lane.b32.xlu0 %v5744, 16
  %v5758 = vpop.permute.xlu0 %5757
  %5759 = vrot.lane.b32.xlu0 %v5745, 16
  %v5760 = vpop.permute.xlu0 %5759
  %5761 = vrot.lane.b32.xlu0 %v5746, 16
  %v5762 = vpop.permute.xlu0 %5761
  %v5763 = vadd.f32 %v5731, %v5748
  %v5764 = vadd.f32 %v5732, %v5750
  %v5765 = vadd.f32 %v5733, %v5752
  %v5766 = vadd.f32 %v5734, %v5754
  %v5767 = vadd.f32 %v5735, %v5756
  %v5768 = vadd.f32 %v5736, %v5758
  %v5769 = vadd.f32 %v5737, %v5760
  %v5770 = vadd.f32 %v5738, %v5762
  %v5771 = vld [vmem:[#allocation4 + $0x41] sm:$0xff]
  %5772 = vrot.lane.b32.xlu0 %v5708, 24
  %v5773 = vpop.permute.xlu0 %5772
  %5774 = vrot.lane.b32.xlu0 %v5709, 24
  %v5775 = vpop.permute.xlu0 %5774
  %5776 = vrot.lane.b32.xlu0 %v5710, 24
  %v5777 = vpop.permute.xlu0 %5776
  %5778 = vrot.lane.b32.xlu0 %v5711, 24
  %v5779 = vpop.permute.xlu0 %5778
  %5780 = vrot.lane.b32.xlu0 %v5712, 24
  %v5781 = vpop.permute.xlu0 %5780
  %5782 = vrot.lane.b32.xlu0 %v5713, 24
  %v5783 = vpop.permute.xlu0 %5782
  %5784 = vrot.lane.b32.xlu0 %v5714, 24
  %v5785 = vpop.permute.xlu0 %5784
  %5786 = vrot.lane.b32.xlu0 %v5771, 24
  %v5787 = vpop.permute.xlu0 %5786
  %v5788 = vadd.f32 %v5763, %v5773
  %v5789 = vadd.f32 %v5764, %v5775
  %v5790 = vadd.f32 %v5765, %v5777
  %v5791 = vadd.f32 %v5766, %v5779
  %v5792 = vadd.f32 %v5767, %v5781
  %v5793 = vadd.f32 %v5768, %v5783
  %v5794 = vadd.f32 %v5769, %v5785
  %v5795 = vadd.f32 %v5770, %v5787
  %v5796 = vld [vmem:[#allocation4 + $0x42] sm:$0xff]
  %5797 = vrot.lane.b32.xlu0 %v5740, 32
  %v5798 = vpop.permute.xlu0 %5797
  %5799 = vrot.lane.b32.xlu0 %v5741, 32
  %v5800 = vpop.permute.xlu0 %5799
  %5801 = vrot.lane.b32.xlu0 %v5742, 32
  %v5802 = vpop.permute.xlu0 %5801
  %5803 = vrot.lane.b32.xlu0 %v5743, 32
  %v5804 = vpop.permute.xlu0 %5803
  %5805 = vrot.lane.b32.xlu0 %v5744, 32
  %v5806 = vpop.permute.xlu0 %5805
  %5807 = vrot.lane.b32.xlu0 %v5745, 32
  %v5808 = vpop.permute.xlu0 %5807
  %5809 = vrot.lane.b32.xlu0 %v5746, 32
  %v5810 = vpop.permute.xlu0 %5809
  %5811 = vrot.lane.b32.xlu0 %v5796, 32
  %v5812 = vpop.permute.xlu0 %5811
  %v5813 = vadd.f32 %v5788, %v5798
  %v5814 = vadd.f32 %v5789, %v5800
  %v5815 = vadd.f32 %v5790, %v5802
  %v5816 = vadd.f32 %v5791, %v5804
  %v5817 = vadd.f32 %v5792, %v5806
  %v5818 = vadd.f32 %v5793, %v5808
  %v5819 = vadd.f32 %v5794, %v5810
  %v5820 = vadd.f32 %v5795, %v5812
  %v5821 = vld [vmem:[#allocation4 + $0xb] sm:$0xff]
  %v5822 = vld [vmem:[#allocation4 + $0x13] sm:$0xff]
  %v5823 = vld [vmem:[#allocation4 + $0x1b] sm:$0xff]
  %v5824 = vld [vmem:[#allocation4 + $0x23] sm:$0xff]
  %v5825 = vld [vmem:[#allocation4 + $0x2b] sm:$0xff]
  %v5826 = vld [vmem:[#allocation4 + $0x33] sm:$0xff]
  %v5827 = vld [vmem:[#allocation4 + $0x3b] sm:$0xff]
  %v5828 = vld [vmem:[#allocation4 + $0x43] sm:$0xff]
  %5829 = vrot.lane.b32.xlu0 %v5821, 40
  %v5830 = vpop.permute.xlu0 %5829
  %5831 = vrot.lane.b32.xlu0 %v5822, 40
  %v5832 = vpop.permute.xlu0 %5831
  %5833 = vrot.lane.b32.xlu0 %v5823, 40
  %v5834 = vpop.permute.xlu0 %5833
  %5835 = vrot.lane.b32.xlu0 %v5824, 40
  %v5836 = vpop.permute.xlu0 %5835
  %5837 = vrot.lane.b32.xlu0 %v5825, 40
  %v5838 = vpop.permute.xlu0 %5837
  %5839 = vrot.lane.b32.xlu0 %v5826, 40
  %v5840 = vpop.permute.xlu0 %5839
  %5841 = vrot.lane.b32.xlu0 %v5827, 40
  %v5842 = vpop.permute.xlu0 %5841
  %5843 = vrot.lane.b32.xlu0 %v5828, 40
  %v5844 = vpop.permute.xlu0 %5843
  %v5845 = vadd.f32 %v5813, %v5830
  %v5846 = vadd.f32 %v5814, %v5832
  %v5847 = vadd.f32 %v5815, %v5834
  %v5848 = vadd.f32 %v5816, %v5836
  %v5849 = vadd.f32 %v5817, %v5838
  %v5850 = vadd.f32 %v5818, %v5840
  %v5851 = vadd.f32 %v5819, %v5842
  %v5852 = vadd.f32 %v5820, %v5844
  %v5853 = vld [vmem:[#allocation4 + $0x4a] sm:$0xff]
  %5854 = vrot.lane.b32.xlu0 %v5741, 48
  %v5855 = vpop.permute.xlu0 %5854
  %5856 = vrot.lane.b32.xlu0 %v5742, 48
  %v5857 = vpop.permute.xlu0 %5856
  %5858 = vrot.lane.b32.xlu0 %v5743, 48
  %v5859 = vpop.permute.xlu0 %5858
  %5860 = vrot.lane.b32.xlu0 %v5744, 48
  %v5861 = vpop.permute.xlu0 %5860
  %5862 = vrot.lane.b32.xlu0 %v5745, 48
  %v5863 = vpop.permute.xlu0 %5862
  %5864 = vrot.lane.b32.xlu0 %v5746, 48
  %v5865 = vpop.permute.xlu0 %5864
  %5866 = vrot.lane.b32.xlu0 %v5796, 48
  %v5867 = vpop.permute.xlu0 %5866
  %5868 = vrot.lane.b32.xlu0 %v5853, 48
  %v5869 = vpop.permute.xlu0 %5868
  %v5870 = vadd.f32 %v5845, %v5855
  %v5871 = vadd.f32 %v5846, %v5857
  %v5872 = vadd.f32 %v5847, %v5859
  %v5873 = vadd.f32 %v5848, %v5861
  %v5874 = vadd.f32 %v5849, %v5863
  %v5875 = vadd.f32 %v5850, %v5865
  %v5876 = vadd.f32 %v5851, %v5867
  %v5877 = vadd.f32 %v5852, %v5869
  %v5878 = vld [vmem:[#allocation4 + $0x4b] sm:$0xff]
  %5879 = vrot.lane.b32.xlu0 %v5822, 56
  %v5880 = vpop.permute.xlu0 %5879
  %5881 = vrot.lane.b32.xlu0 %v5823, 56
  %v5882 = vpop.permute.xlu0 %5881
  %5883 = vrot.lane.b32.xlu0 %v5824, 56
  %v5884 = vpop.permute.xlu0 %5883
  %5885 = vrot.lane.b32.xlu0 %v5825, 56
  %v5886 = vpop.permute.xlu0 %5885
  %5887 = vrot.lane.b32.xlu0 %v5826, 56
  %v5888 = vpop.permute.xlu0 %5887
  %5889 = vrot.lane.b32.xlu0 %v5827, 56
  %v5890 = vpop.permute.xlu0 %5889
  %5891 = vrot.lane.b32.xlu0 %v5828, 56
  %v5892 = vpop.permute.xlu0 %5891
  %5893 = vrot.lane.b32.xlu0 %v5878, 56
  %v5894 = vpop.permute.xlu0 %5893
  %v5895 = vadd.f32 %v5870, %v5880
  %v5896 = vadd.f32 %v5871, %v5882
  %v5897 = vadd.f32 %v5872, %v5884
  %v5898 = vadd.f32 %v5873, %v5886
  %v5899 = vadd.f32 %v5874, %v5888
  %v5900 = vadd.f32 %v5875, %v5890
  %v5901 = vadd.f32 %v5876, %v5892
  %v5902 = vadd.f32 %v5877, %v5894
  %v5903 = vld [vmem:[#allocation4 + $0x14] sm:$0xff]
  %v5904 = vld [vmem:[#allocation4 + $0x1c] sm:$0xff]
  %v5905 = vld [vmem:[#allocation4 + $0x24] sm:$0xff]
  %v5906 = vld [vmem:[#allocation4 + $0x2c] sm:$0xff]
  %v5907 = vld [vmem:[#allocation4 + $0x34] sm:$0xff]
  %v5908 = vld [vmem:[#allocation4 + $0x3c] sm:$0xff]
  %v5909 = vld [vmem:[#allocation4 + $0x44] sm:$0xff]
  %v5910 = vld [vmem:[#allocation4 + $0x4c] sm:$0xff]
  %5911 = vrot.lane.b32.xlu0 %v5903, 64
  %v5912 = vpop.permute.xlu0 %5911
  %5913 = vrot.lane.b32.xlu0 %v5904, 64
  %v5914 = vpop.permute.xlu0 %5913
  %5915 = vrot.lane.b32.xlu0 %v5905, 64
  %v5916 = vpop.permute.xlu0 %5915
  %5917 = vrot.lane.b32.xlu0 %v5906, 64
  %v5918 = vpop.permute.xlu0 %5917
  %5919 = vrot.lane.b32.xlu0 %v5907, 64
  %v5920 = vpop.permute.xlu0 %5919
  %5921 = vrot.lane.b32.xlu0 %v5908, 64
  %v5922 = vpop.permute.xlu0 %5921
  %5923 = vrot.lane.b32.xlu0 %v5909, 64
  %v5924 = vpop.permute.xlu0 %5923
  %5925 = vrot.lane.b32.xlu0 %v5910, 64
  %v5926 = vpop.permute.xlu0 %5925
  %v5927 = vadd.f32 %v5895, %v5912
  %v5928 = vadd.f32 %v5896, %v5914
  %v5929 = vadd.f32 %v5897, %v5916
  %v5930 = vadd.f32 %v5898, %v5918
  %v5931 = vadd.f32 %v5899, %v5920
  %v5932 = vadd.f32 %v5900, %v5922
  %v5933 = vadd.f32 %v5901, %v5924
  %v5934 = vadd.f32 %v5902, %v5926
  %vm5935 = vcmask 523264
  %v5937 = vsel %vm5935, %v5697, 0
  %v5940 = vsel %vm5935, %v5698, 0
  %5942 = vmatprep.subr.mxu0 0.0
  %5943 = vmatpush1.msra.mxu0 %v5927
  %5944 = vmatprep.subr.mxu0 0.0
  %5945 = vmatpush1.msra.mxu0 %v5928
  %5946 = vmatprep.subr.mxu0 0.0
  %5947 = vmatpush1.msra.mxu0 %v5929
  %5948 = vmatprep.subr.mxu0 0.0
  %5949 = vmatpush1.msra.mxu0 %v5930
  %5950 = vmatprep.subr.mxu0 0.0
  %5951 = vmatpush1.msra.mxu0 %v5931
  %5952 = vmatprep.subr.mxu0 0.0
  %5953 = vmatpush1.msra.mxu0 %v5932
  %5954 = vmatprep.subr.mxu0 0.0
  %5955 = vmatpush1.msra.mxu0 %v5933
  %5956 = vmatprep.subr.mxu0 0.0
  %5957 = vmatpush1.msra.mxu0 %v5934
  %5958 = vmatprep.subr.mxu0 0.0
  %5959 = vmatpush1.msra.mxu0 0.0
  %5960 = vmatprep.subr.mxu0 0.0
  %5961 = vmatpush1.msra.mxu0 0.0
  %5962 = vmatprep.subr.mxu0 0.0
  %5963 = vmatpush1.msra.mxu0 0.0
  %5964 = vmatprep.subr.mxu0 0.0
  %5965 = vmatpush1.msra.mxu0 0.0
  %5966 = vmatprep.subr.mxu0 0.0
  %5967 = vmatpush1.msra.mxu0 0.0
  %5968 = vmatprep.subr.mxu0 0.0
  %5969 = vmatpush1.msra.mxu0 0.0
  %5970 = vmatprep.subr.mxu0 0.0
  %5971 = vmatpush1.msra.mxu0 0.0
  %5972 = vmatprep.subr.mxu0 0.0
  %5973 = vmatpush1.msra.mxu0 0.0
  %5974 = vmatprep.subr.mxu0 0.0
  %5975 = vmatpush1.msra.mxu0 0.0
  %5976 = vmatprep.subr.mxu0 0.0
  %5977 = vmatpush1.msra.mxu0 0.0
  %5978 = vmatprep.subr.mxu0 0.0
  %5979 = vmatpush1.msra.mxu0 0.0
  %5980 = vmatprep.subr.mxu0 0.0
  %5981 = vmatpush1.msra.mxu0 0.0
  %5982 = vmatprep.subr.mxu0 0.0
  %5983 = vmatpush1.msra.mxu0 0.0
  %5984 = vmatprep.subr.mxu0 0.0
  %5985 = vmatpush1.msra.mxu0 0.0
  %5986 = vmatprep.subr.mxu0 0.0
  %5987 = vmatpush1.msra.mxu0 0.0
  %5988 = vmatprep.subr.mxu0 0.0
  %5989 = vmatpush1.msra.mxu0 0.0
  %5990 = vmatprep.subr.mxu0 0.0
  %5991 = vmatpush1.msra.mxu0 0.0
  %5992 = vmatprep.subr.mxu0 0.0
  %5993 = vmatpush1.msra.mxu0 0.0
  %5994 = vmatprep.subr.mxu0 0.0
  %5995 = vmatpush1.msra.mxu0 0.0
  %5996 = vmatprep.subr.mxu0 0.0
  %5997 = vmatpush1.msra.mxu0 0.0
  %5998 = vmatprep.subr.mxu0 0.0
  %5999 = vmatpush1.msra.mxu0 0.0
  %6000 = vmatprep.subr.mxu0 0.0
  %6001 = vmatpush1.msra.mxu0 0.0
  %6002 = vmatprep.subr.mxu0 0.0
  %6003 = vmatpush1.msra.mxu0 0.0
  %6004 = vmatprep.subr.mxu0 0.0
  %6005 = vmatpush1.msra.mxu0 0.0
  %6006 = vmatprep.mubr.f32.mxu0 0.0
  %6007 = vmatmul.mubr.f32.gmra.mrb[0].mxu0 %v5937
  %v6008 = vpop.f32.mrb[0].mxu0
  %v6009 = vadd.f32 0.0, %v6008
  %v6010 = vpop.f32.mrb[0].mxu0
  %6011 = vmatprep.mubr.f32.mxu0 0.0
  %6012 = vmatmul.mubr.f32.gmra.mrb[0].mxu0 %v5940
  %v6013 = vpop.f32.mrb[0].mxu0
  %v6014 = vadd.f32 0.0, %v6013
  %v6015 = vpop.f32.mrb[0].mxu0
  %6016 = vdwg.mxu0
  %v6018 = vlaneseq
  %v6019 = vshrl.u32 %v6018, 7
  %v6020 = vsub.s32 0, %v6019
  %v6021 = vrot.slane %v5583, %v6020
  %v6023 = vmul.f32 %v6009, %v6021
  %v6024 = vmul.f32 %v6014, %v6021
  %v6025 = vlaneseq
  %v6026 = vshrl.u32 %v6025, 7
  %v6027 = vsub.s32 0, %v6026
  %v6028 = vrot.slane %v5670, %v6027
  %6029 = vmatprep.subr.mxu0 0.0
  %6030 = vmatpush1.msra.mxu0 %v5587
  %6031 = vmatprep.subr.mxu0 0.0
  %6032 = vmatpush1.msra.mxu0 %v5588
  %6033 = vmatprep.subr.mxu0 0.0
  %6034 = vmatpush1.msra.mxu0 %v5589
  %6035 = vmatprep.subr.mxu0 0.0
  %6036 = vmatpush1.msra.mxu0 %v5590
  %6037 = vmatprep.subr.mxu0 0.0
  %6038 = vmatpush1.msra.mxu0 %v5591
  %6039 = vmatprep.subr.mxu0 0.0
  %6040 = vmatpush1.msra.mxu0 %v5592
  %6041 = vmatprep.subr.mxu0 0.0
  %6042 = vmatpush1.msra.mxu0 %v5593
  %6043 = vmatprep.subr.mxu0 0.0
  %6044 = vmatpush1.msra.mxu0 %v5594
  %6045 = vmatprep.subr.mxu0 0.0
  %6046 = vmatpush1.msra.mxu0 %v5595
  %6047 = vmatprep.subr.mxu0 0.0
  %6048 = vmatpush1.msra.mxu0 %v5596
  %6049 = vmatprep.subr.mxu0 0.0
  %6050 = vmatpush1.msra.mxu0 %v5597
  %6051 = vmatprep.subr.mxu0 0.0
  %6052 = vmatpush1.msra.mxu0 %v5598
  %6053 = vmatprep.subr.mxu0 0.0
  %6054 = vmatpush1.msra.mxu0 %v5599
  %6055 = vmatprep.subr.mxu0 0.0
  %6056 = vmatpush1.msra.mxu0 %v5600
  %6057 = vmatprep.subr.mxu0 0.0
  %6058 = vmatpush1.msra.mxu0 %v5601
  %6059 = vmatprep.subr.mxu0 0.0
  %6060 = vmatpush1.msra.mxu0 %v5602
  %6061 = vmatprep.subr.mxu0 0.0
  %6062 = vmatpush1.msra.mxu0 0.0
  %6063 = vmatprep.subr.mxu0 0.0
  %6064 = vmatpush1.msra.mxu0 0.0
  %6065 = vmatprep.subr.mxu0 0.0
  %6066 = vmatpush1.msra.mxu0 0.0
  %6067 = vmatprep.subr.mxu0 0.0
  %6068 = vmatpush1.msra.mxu0 0.0
  %6069 = vmatprep.subr.mxu0 0.0
  %6070 = vmatpush1.msra.mxu0 0.0
  %6071 = vmatprep.subr.mxu0 0.0
  %6072 = vmatpush1.msra.mxu0 0.0
  %6073 = vmatprep.subr.mxu0 0.0
  %6074 = vmatpush1.msra.mxu0 0.0
  %6075 = vmatprep.subr.mxu0 0.0
  %6076 = vmatpush1.msra.mxu0 0.0
  %6077 = vmatprep.subr.mxu0 0.0
  %6078 = vmatpush1.msra.mxu0 0.0
  %6079 = vmatprep.subr.mxu0 0.0
  %6080 = vmatpush1.msra.mxu0 0.0
  %6081 = vmatprep.subr.mxu0 0.0
  %6082 = vmatpush1.msra.mxu0 0.0
  %6083 = vmatprep.subr.mxu0 0.0
  %6084 = vmatpush1.msra.mxu0 0.0
  %6085 = vmatprep.subr.mxu0 0.0
  %6086 = vmatpush1.msra.mxu0 0.0
  %6087 = vmatprep.subr.mxu0 0.0
  %6088 = vmatpush1.msra.mxu0 0.0
  %6089 = vmatprep.subr.mxu0 0.0
  %6090 = vmatpush1.msra.mxu0 0.0
  %6091 = vmatprep.subr.mxu0 0.0
  %6092 = vmatpush1.msra.mxu0 0.0
  %6093 = vmatprep.mubr.f32.mxu0 0.0
  %6094 = vmatmul.mubr.f32.gmra.mrb[0].mxu0 %v6023
  %v6095 = vpop.f32.mrb[0].mxu0
  %v6096 = vadd.f32 %v6028, %v6095
  %v6097 = vpop.f32.mrb[0].mxu0
  %6098 = vmatprep.mubr.f32.mxu0 0.0
  %6099 = vmatmul.mubr.f32.gmra.mrb[0].mxu0 %v6024
  %v6100 = vpop.f32.mrb[0].mxu0
  %v6101 = vadd.f32 %v6028, %v6100
  %v6102 = vpop.f32.mrb[0].mxu0
  %6103 = vdwg.mxu0
  %6104 = vst [vmem:[#allocation5] sm:$0xff] %v6096
  %6105 = vst [vmem:[#allocation5 + $0x8] sm:$0xff] %v6101
  %v6106 = vadd.f32 %v6096, %v6101
  %v6107 = vrot.slane %v6106, 4
  %v6108 = vadd.f32 %v6106, %v6107
  %v6109 = vrot.slane %v6108, 2
  %v6110 = vadd.f32 %v6108, %v6109
  %v6111 = vrot.slane %v6110, 1
  %v6112 = vadd.f32 %v6110, %v6111
  %v6113 = vadd.f32 %v6112, 0.0
  %v6114 = vmul.f32 %v6096, %v6096
  %v6115 = vmul.f32 %v6101, %v6101
  %v6116 = vadd.f32 %v6114, %v6115
  %v6117 = vrot.slane %v6116, 4
  %v6118 = vadd.f32 %v6116, %v6117
  %v6119 = vrot.slane %v6118, 2
  %v6120 = vadd.f32 %v6118, %v6119
  %v6121 = vrot.slane %v6120, 1
  %v6122 = vadd.f32 %v6120, %v6121
  %v6123 = vadd.f32 %v6122, 0.0
  %v6124 = vld [vmem:[%s5471] sm:$0xff]
  %v6125 = vld [vmem:[%s5471 + $0x8] sm:$0xff]
  %v6126 = vld [vmem:[%s5471 + $0x10] sm:$0xff]
  %v6127 = vld [vmem:[%s5471 + $0x18] sm:$0xff]
  %v6128 = vld [vmem:[%s5471 + $0x20] sm:$0xff]
  %v6129 = vld [vmem:[%s5471 + $0x28] sm:$0xff]
  %v6130 = vld [vmem:[%s5471 + $0x30] sm:$0xff]
  %v6131 = vld [vmem:[%s5471 + $0x38] sm:$0xff]
  %v6132 = vld [vmem:[%s5471 + $0x1] sm:$0xff]
  %v6133 = vld [vmem:[%s5471 + $0x9] sm:$0xff]
  %v6134 = vld [vmem:[%s5471 + $0x11] sm:$0xff]
  %v6135 = vld [vmem:[%s5471 + $0x19] sm:$0xff]
  %v6136 = vld [vmem:[%s5471 + $0x21] sm:$0xff]
  %v6137 = vld [vmem:[%s5471 + $0x29] sm:$0xff]
  %v6138 = vld [vmem:[%s5471 + $0x31] sm:$0xff]
  %v6139 = vld [vmem:[%s5471 + $0x39] sm:$0xff]
  %6140 = vrot.lane.b32.xlu0 %v6132, 8
  %v6141 = vpop.permute.xlu0 %6140
  %6142 = vrot.lane.b32.xlu0 %v6133, 8
  %v6143 = vpop.permute.xlu0 %6142
  %6144 = vrot.lane.b32.xlu0 %v6134, 8
  %v6145 = vpop.permute.xlu0 %6144
  %6146 = vrot.lane.b32.xlu0 %v6135, 8
  %v6147 = vpop.permute.xlu0 %6146
  %6148 = vrot.lane.b32.xlu0 %v6136, 8
  %v6149 = vpop.permute.xlu0 %6148
  %6150 = vrot.lane.b32.xlu0 %v6137, 8
  %v6151 = vpop.permute.xlu0 %6150
  %6152 = vrot.lane.b32.xlu0 %v6138, 8
  %v6153 = vpop.permute.xlu0 %6152
  %6154 = vrot.lane.b32.xlu0 %v6139, 8
  %v6155 = vpop.permute.xlu0 %6154
  %v6156 = vadd.f32 %v6124, %v6141
  %v6157 = vadd.f32 %v6125, %v6143
  %v6158 = vadd.f32 %v6126, %v6145
  %v6159 = vadd.f32 %v6127, %v6147
  %v6160 = vadd.f32 %v6128, %v6149
  %v6161 = vadd.f32 %v6129, %v6151
  %v6162 = vadd.f32 %v6130, %v6153
  %v6163 = vadd.f32 %v6131, %v6155
  %v6164 = vld [vmem:[%s5471 + $0x2] sm:$0xff]
  %v6165 = vld [vmem:[%s5471 + $0xa] sm:$0xff]
  %v6166 = vld [vmem:[%s5471 + $0x12] sm:$0xff]
  %v6167 = vld [vmem:[%s5471 + $0x1a] sm:$0xff]
  %v6168 = vld [vmem:[%s5471 + $0x22] sm:$0xff]
  %v6169 = vld [vmem:[%s5471 + $0x2a] sm:$0xff]
  %v6170 = vld [vmem:[%s5471 + $0x32] sm:$0xff]
  %v6171 = vld [vmem:[%s5471 + $0x3a] sm:$0xff]
  %6172 = vrot.lane.b32.xlu0 %v6164, 16
  %v6173 = vpop.permute.xlu0 %6172
  %6174 = vrot.lane.b32.xlu0 %v6165, 16
  %v6175 = vpop.permute.xlu0 %6174
  %6176 = vrot.lane.b32.xlu0 %v6166, 16
  %v6177 = vpop.permute.xlu0 %6176
  %6178 = vrot.lane.b32.xlu0 %v6167, 16
  %v6179 = vpop.permute.xlu0 %6178
  %6180 = vrot.lane.b32.xlu0 %v6168, 16
  %v6181 = vpop.permute.xlu0 %6180
  %6182 = vrot.lane.b32.xlu0 %v6169, 16
  %v6183 = vpop.permute.xlu0 %6182
  %6184 = vrot.lane.b32.xlu0 %v6170, 16
  %v6185 = vpop.permute.xlu0 %6184
  %6186 = vrot.lane.b32.xlu0 %v6171, 16
  %v6187 = vpop.permute.xlu0 %6186
  %v6188 = vadd.f32 %v6156, %v6173
  %v6189 = vadd.f32 %v6157, %v6175
  %v6190 = vadd.f32 %v6158, %v6177
  %v6191 = vadd.f32 %v6159, %v6179
  %v6192 = vadd.f32 %v6160, %v6181
  %v6193 = vadd.f32 %v6161, %v6183
  %v6194 = vadd.f32 %v6162, %v6185
  %v6195 = vadd.f32 %v6163, %v6187
  %v6196 = vld [vmem:[%s5471 + $0x41] sm:$0xff]
  %6197 = vrot.lane.b32.xlu0 %v6133, 24
  %v6198 = vpop.permute.xlu0 %6197
  %6199 = vrot.lane.b32.xlu0 %v6134, 24
  %v6200 = vpop.permute.xlu0 %6199
  %6201 = vrot.lane.b32.xlu0 %v6135, 24
  %v6202 = vpop.permute.xlu0 %6201
  %6203 = vrot.lane.b32.xlu0 %v6136, 24
  %v6204 = vpop.permute.xlu0 %6203
  %6205 = vrot.lane.b32.xlu0 %v6137, 24
  %v6206 = vpop.permute.xlu0 %6205
  %6207 = vrot.lane.b32.xlu0 %v6138, 24
  %v6208 = vpop.permute.xlu0 %6207
  %6209 = vrot.lane.b32.xlu0 %v6139, 24
  %v6210 = vpop.permute.xlu0 %6209
  %6211 = vrot.lane.b32.xlu0 %v6196, 24
  %v6212 = vpop.permute.xlu0 %6211
  %v6213 = vadd.f32 %v6188, %v6198
  %v6214 = vadd.f32 %v6189, %v6200
  %v6215 = vadd.f32 %v6190, %v6202
  %v6216 = vadd.f32 %v6191, %v6204
  %v6217 = vadd.f32 %v6192, %v6206
  %v6218 = vadd.f32 %v6193, %v6208
  %v6219 = vadd.f32 %v6194, %v6210
  %v6220 = vadd.f32 %v6195, %v6212
  %v6221 = vld [vmem:[%s5471 + $0x42] sm:$0xff]
  %6222 = vrot.lane.b32.xlu0 %v6165, 32
  %v6223 = vpop.permute.xlu0 %6222
  %6224 = vrot.lane.b32.xlu0 %v6166, 32
  %v6225 = vpop.permute.xlu0 %6224
  %6226 = vrot.lane.b32.xlu0 %v6167, 32
  %v6227 = vpop.permute.xlu0 %6226
  %6228 = vrot.lane.b32.xlu0 %v6168, 32
  %v6229 = vpop.permute.xlu0 %6228
  %6230 = vrot.lane.b32.xlu0 %v6169, 32
  %v6231 = vpop.permute.xlu0 %6230
  %6232 = vrot.lane.b32.xlu0 %v6170, 32
  %v6233 = vpop.permute.xlu0 %6232
  %6234 = vrot.lane.b32.xlu0 %v6171, 32
  %v6235 = vpop.permute.xlu0 %6234
  %6236 = vrot.lane.b32.xlu0 %v6221, 32
  %v6237 = vpop.permute.xlu0 %6236
  %v6238 = vadd.f32 %v6213, %v6223
  %v6239 = vadd.f32 %v6214, %v6225
  %v6240 = vadd.f32 %v6215, %v6227
  %v6241 = vadd.f32 %v6216, %v6229
  %v6242 = vadd.f32 %v6217, %v6231
  %v6243 = vadd.f32 %v6218, %v6233
  %v6244 = vadd.f32 %v6219, %v6235
  %v6245 = vadd.f32 %v6220, %v6237
  %v6246 = vld [vmem:[%s5471 + $0xb] sm:$0xff]
  %v6247 = vld [vmem:[%s5471 + $0x13] sm:$0xff]
  %v6248 = vld [vmem:[%s5471 + $0x1b] sm:$0xff]
  %v6249 = vld [vmem:[%s5471 + $0x23] sm:$0xff]
  %v6250 = vld [vmem:[%s5471 + $0x2b] sm:$0xff]
  %v6251 = vld [vmem:[%s5471 + $0x33] sm:$0xff]
  %v6252 = vld [vmem:[%s5471 + $0x3b] sm:$0xff]
  %v6253 = vld [vmem:[%s5471 + $0x43] sm:$0xff]
  %6254 = vrot.lane.b32.xlu0 %v6246, 40
  %v6255 = vpop.permute.xlu0 %6254
  %6256 = vrot.lane.b32.xlu0 %v6247, 40
  %v6257 = vpop.permute.xlu0 %6256
  %6258 = vrot.lane.b32.xlu0 %v6248, 40
  %v6259 = vpop.permute.xlu0 %6258
  %6260 = vrot.lane.b32.xlu0 %v6249, 40
  %v6261 = vpop.permute.xlu0 %6260
  %6262 = vrot.lane.b32.xlu0 %v6250, 40
  %v6263 = vpop.permute.xlu0 %6262
  %6264 = vrot.lane.b32.xlu0 %v6251, 40
  %v6265 = vpop.permute.xlu0 %6264
  %6266 = vrot.lane.b32.xlu0 %v6252, 40
  %v6267 = vpop.permute.xlu0 %6266
  %6268 = vrot.lane.b32.xlu0 %v6253, 40
  %v6269 = vpop.permute.xlu0 %6268
  %v6270 = vadd.f32 %v6238, %v6255
  %v6271 = vadd.f32 %v6239, %v6257
  %v6272 = vadd.f32 %v6240, %v6259
  %v6273 = vadd.f32 %v6241, %v6261
  %v6274 = vadd.f32 %v6242, %v6263
  %v6275 = vadd.f32 %v6243, %v6265
  %v6276 = vadd.f32 %v6244, %v6267
  %v6277 = vadd.f32 %v6245, %v6269
  %v6278 = vld [vmem:[%s5471 + $0x4a] sm:$0xff]
  %6279 = vrot.lane.b32.xlu0 %v6166, 48
  %v6280 = vpop.permute.xlu0 %6279
  %6281 = vrot.lane.b32.xlu0 %v6167, 48
  %v6282 = vpop.permute.xlu0 %6281
  %6283 = vrot.lane.b32.xlu0 %v6168, 48
  %v6284 = vpop.permute.xlu0 %6283
  %6285 = vrot.lane.b32.xlu0 %v6169, 48
  %v6286 = vpop.permute.xlu0 %6285
  %6287 = vrot.lane.b32.xlu0 %v6170, 48
  %v6288 = vpop.permute.xlu0 %6287
  %6289 = vrot.lane.b32.xlu0 %v6171, 48
  %v6290 = vpop.permute.xlu0 %6289
  %6291 = vrot.lane.b32.xlu0 %v6221, 48
  %v6292 = vpop.permute.xlu0 %6291
  %6293 = vrot.lane.b32.xlu0 %v6278, 48
  %v6294 = vpop.permute.xlu0 %6293
  %v6295 = vadd.f32 %v6270, %v6280
  %v6296 = vadd.f32 %v6271, %v6282
  %v6297 = vadd.f32 %v6272, %v6284
  %v6298 = vadd.f32 %v6273, %v6286
  %v6299 = vadd.f32 %v6274, %v6288
  %v6300 = vadd.f32 %v6275, %v6290
  %v6301 = vadd.f32 %v6276, %v6292
  %v6302 = vadd.f32 %v6277, %v6294
  %v6303 = vld [vmem:[%s5471 + $0x4b] sm:$0xff]
  %6304 = vrot.lane.b32.xlu0 %v6247, 56
  %v6305 = vpop.permute.xlu0 %6304
  %6306 = vrot.lane.b32.xlu0 %v6248, 56
  %v6307 = vpop.permute.xlu0 %6306
  %6308 = vrot.lane.b32.xlu0 %v6249, 56
  %v6309 = vpop.permute.xlu0 %6308
  %6310 = vrot.lane.b32.xlu0 %v6250, 56
  %v6311 = vpop.permute.xlu0 %6310
  %6312 = vrot.lane.b32.xlu0 %v6251, 56
  %v6313 = vpop.permute.xlu0 %6312
  %6314 = vrot.lane.b32.xlu0 %v6252, 56
  %v6315 = vpop.permute.xlu0 %6314
  %6316 = vrot.lane.b32.xlu0 %v6253, 56
  %v6317 = vpop.permute.xlu0 %6316
  %6318 = vrot.lane.b32.xlu0 %v6303, 56
  %v6319 = vpop.permute.xlu0 %6318
  %v6320 = vadd.f32 %v6295, %v6305
  %v6321 = vadd.f32 %v6296, %v6307
  %v6322 = vadd.f32 %v6297, %v6309
  %v6323 = vadd.f32 %v6298, %v6311
  %v6324 = vadd.f32 %v6299, %v6313
  %v6325 = vadd.f32 %v6300, %v6315
  %v6326 = vadd.f32 %v6301, %v6317
  %v6327 = vadd.f32 %v6302, %v6319
  %v6328 = vld [vmem:[%s5471 + $0x14] sm:$0xff]
  %v6329 = vld [vmem:[%s5471 + $0x1c] sm:$0xff]
  %v6330 = vld [vmem:[%s5471 + $0x24] sm:$0xff]
  %v6331 = vld [vmem:[%s5471 + $0x2c] sm:$0xff]
  %v6332 = vld [vmem:[%s5471 + $0x34] sm:$0xff]
  %v6333 = vld [vmem:[%s5471 + $0x3c] sm:$0xff]
  %v6334 = vld [vmem:[%s5471 + $0x44] sm:$0xff]
  %v6335 = vld [vmem:[%s5471 + $0x4c] sm:$0xff]
  %6336 = vrot.lane.b32.xlu0 %v6328, 64
  %v6337 = vpop.permute.xlu0 %6336
  %6338 = vrot.lane.b32.xlu0 %v6329, 64
  %v6339 = vpop.permute.xlu0 %6338
  %6340 = vrot.lane.b32.xlu0 %v6330, 64
  %v6341 = vpop.permute.xlu0 %6340
  %6342 = vrot.lane.b32.xlu0 %v6331, 64
  %v6343 = vpop.permute.xlu0 %6342
  %6344 = vrot.lane.b32.xlu0 %v6332, 64
  %v6345 = vpop.permute.xlu0 %6344
  %6346 = vrot.lane.b32.xlu0 %v6333, 64
  %v6347 = vpop.permute.xlu0 %6346
  %6348 = vrot.lane.b32.xlu0 %v6334, 64
  %v6349 = vpop.permute.xlu0 %6348
  %6350 = vrot.lane.b32.xlu0 %v6335, 64
  %v6351 = vpop.permute.xlu0 %6350
  %v6352 = vadd.f32 %v6320, %v6337
  %v6353 = vadd.f32 %v6321, %v6339
  %v6354 = vadd.f32 %v6322, %v6341
  %v6355 = vadd.f32 %v6323, %v6343
  %v6356 = vadd.f32 %v6324, %v6345
  %v6357 = vadd.f32 %v6325, %v6347
  %v6358 = vadd.f32 %v6326, %v6349
  %v6359 = vadd.f32 %v6327, %v6351
  %6360 = vmatprep.subr.mxu0 0.0
  %6361 = vmatpush1.msra.mxu0 %v6352
  %6362 = vmatprep.subr.mxu0 0.0
  %6363 = vmatpush1.msra.mxu0 %v6353
  %6364 = vmatprep.subr.mxu0 0.0
  %6365 = vmatpush1.msra.mxu0 %v6354
  %6366 = vmatprep.subr.mxu0 0.0
  %6367 = vmatpush1.msra.mxu0 %v6355
  %6368 = vmatprep.subr.mxu0 0.0
  %6369 = vmatpush1.msra.mxu0 %v6356
  %6370 = vmatprep.subr.mxu0 0.0
  %6371 = vmatpush1.msra.mxu0 %v6357
  %6372 = vmatprep.subr.mxu0 0.0
  %6373 = vmatpush1.msra.mxu0 %v6358
  %6374 = vmatprep.subr.mxu0 0.0
  %6375 = vmatpush1.msra.mxu0 %v6359
  %6376 = vmatprep.subr.mxu0 0.0
  %6377 = vmatpush1.msra.mxu0 0.0
  %6378 = vmatprep.subr.mxu0 0.0
  %6379 = vmatpush1.msra.mxu0 0.0
  %6380 = vmatprep.subr.mxu0 0.0
  %6381 = vmatpush1.msra.mxu0 0.0
  %6382 = vmatprep.subr.mxu0 0.0
  %6383 = vmatpush1.msra.mxu0 0.0
  %6384 = vmatprep.subr.mxu0 0.0
  %6385 = vmatpush1.msra.mxu0 0.0
  %6386 = vmatprep.subr.mxu0 0.0
  %6387 = vmatpush1.msra.mxu0 0.0
  %6388 = vmatprep.subr.mxu0 0.0
  %6389 = vmatpush1.msra.mxu0 0.0
  %6390 = vmatprep.subr.mxu0 0.0
  %6391 = vmatpush1.msra.mxu0 0.0
  %6392 = vmatprep.subr.mxu0 0.0
  %6393 = vmatpush1.msra.mxu0 0.0
  %6394 = vmatprep.subr.mxu0 0.0
  %6395 = vmatpush1.msra.mxu0 0.0
  %6396 = vmatprep.subr.mxu0 0.0
  %6397 = vmatpush1.msra.mxu0 0.0
  %6398 = vmatprep.subr.mxu0 0.0
  %6399 = vmatpush1.msra.mxu0 0.0
  %6400 = vmatprep.subr.mxu0 0.0
  %6401 = vmatpush1.msra.mxu0 0.0
  %6402 = vmatprep.subr.mxu0 0.0
  %6403 = vmatpush1.msra.mxu0 0.0
  %6404 = vmatprep.subr.mxu0 0.0
  %6405 = vmatpush1.msra.mxu0 0.0
  %6406 = vmatprep.subr.mxu0 0.0
  %6407 = vmatpush1.msra.mxu0 0.0
  %6408 = vmatprep.subr.mxu0 0.0
  %6409 = vmatpush1.msra.mxu0 0.0
  %6410 = vmatprep.subr.mxu0 0.0
  %6411 = vmatpush1.msra.mxu0 0.0
  %6412 = vmatprep.subr.mxu0 0.0
  %6413 = vmatpush1.msra.mxu0 0.0
  %6414 = vmatprep.subr.mxu0 0.0
  %6415 = vmatpush1.msra.mxu0 0.0
  %6416 = vmatprep.subr.mxu0 0.0
  %6417 = vmatpush1.msra.mxu0 0.0
  %6418 = vmatprep.subr.mxu0 0.0
  %6419 = vmatpush1.msra.mxu0 0.0
  %6420 = vmatprep.subr.mxu0 0.0
  %6421 = vmatpush1.msra.mxu0 0.0
  %6422 = vmatprep.subr.mxu0 0.0
  %6423 = vmatpush1.msra.mxu0 0.0
  %6424 = vmatprep.mubr.f32.mxu0 0.0
  %6425 = vmatmul.mubr.f32.gmra.mrb[0].mxu0 %v5937
  %v6426 = vpop.f32.mrb[0].mxu0
  %v6427 = vadd.f32 0.0, %v6426
  %v6428 = vpop.f32.mrb[0].mxu0
  %6429 = vmatprep.mubr.f32.mxu0 0.0
  %6430 = vmatmul.mubr.f32.gmra.mrb[0].mxu0 %v5940
  %v6431 = vpop.f32.mrb[0].mxu0
  %v6432 = vadd.f32 0.0, %v6431
  %v6433 = vpop.f32.mrb[0].mxu0
  %6434 = vdwg.mxu0
  %v6435 = vmul.f32 %v6427, %v6021
  %v6436 = vmul.f32 %v6432, %v6021
  %v6437 = vld [vmem:[%s6] sm:$0xff]
  %v6438 = vld [vmem:[%s6 + $0x8] sm:$0xff]
  %v6439 = vld [vmem:[%s6 + $0x10] sm:$0xff]
  %v6440 = vld [vmem:[%s6 + $0x18] sm:$0xff]
  %v6441 = vld [vmem:[%s6 + $0x20] sm:$0xff]
  %v6442 = vld [vmem:[%s6 + $0x28] sm:$0xff]
  %v6443 = vld [vmem:[%s6 + $0x30] sm:$0xff]
  %v6444 = vld [vmem:[%s6 + $0x38] sm:$0xff]
  %v6445 = vld [vmem:[%s6 + $0x40] sm:$0xff]
  %v6446 = vld [vmem:[%s6 + $0x48] sm:$0xff]
  %v6447 = vld [vmem:[%s6 + $0x50] sm:$0xff]
  %v6448 = vld [vmem:[%s6 + $0x58] sm:$0xff]
  %v6449 = vld [vmem:[%s6 + $0x60] sm:$0xff]
  %v6450 = vld [vmem:[%s6 + $0x68] sm:$0xff]
  %v6451 = vld [vmem:[%s6 + $0x70] sm:$0xff]
  %v6452 = vld [vmem:[%s6 + $0x78] sm:$0xff]
  %6453 = vmatprep.subr.mxu0 0.0
  %6454 = vmatpush1.msra.mxu0 %v6437
  %6455 = vmatprep.subr.mxu0 0.0
  %6456 = vmatpush1.msra.mxu0 %v6438
  %6457 = vmatprep.subr.mxu0 0.0
  %6458 = vmatpush1.msra.mxu0 %v6439
  %6459 = vmatprep.subr.mxu0 0.0
  %6460 = vmatpush1.msra.mxu0 %v6440
  %6461 = vmatprep.subr.mxu0 0.0
  %6462 = vmatpush1.msra.mxu0 %v6441
  %6463 = vmatprep.subr.mxu0 0.0
  %6464 = vmatpush1.msra.mxu0 %v6442
  %6465 = vmatprep.subr.mxu0 0.0
  %6466 = vmatpush1.msra.mxu0 %v6443
  %6467 = vmatprep.subr.mxu0 0.0
  %6468 = vmatpush1.msra.mxu0 %v6444
  %6469 = vmatprep.subr.mxu0 0.0
  %6470 = vmatpush1.msra.mxu0 %v6445
  %6471 = vmatprep.subr.mxu0 0.0
  %6472 = vmatpush1.msra.mxu0 %v6446
  %6473 = vmatprep.subr.mxu0 0.0
  %6474 = vmatpush1.msra.mxu0 %v6447
  %6475 = vmatprep.subr.mxu0 0.0
  %6476 = vmatpush1.msra.mxu0 %v6448
  %6477 = vmatprep.subr.mxu0 0.0
  %6478 = vmatpush1.msra.mxu0 %v6449
  %6479 = vmatprep.subr.mxu0 0.0
  %6480 = vmatpush1.msra.mxu0 %v6450
  %6481 = vmatprep.subr.mxu0 0.0
  %6482 = vmatpush1.msra.mxu0 %v6451
  %6483 = vmatprep.subr.mxu0 0.0
  %6484 = vmatpush1.msra.mxu0 %v6452
  %6485 = vmatprep.subr.mxu0 0.0
  %6486 = vmatpush1.msra.mxu0 0.0
  %6487 = vmatprep.subr.mxu0 0.0
  %6488 = vmatpush1.msra.mxu0 0.0
  %6489 = vmatprep.subr.mxu0 0.0
  %6490 = vmatpush1.msra.mxu0 0.0
  %6491 = vmatprep.subr.mxu0 0.0
  %6492 = vmatpush1.msra.mxu0 0.0
  %6493 = vmatprep.subr.mxu0 0.0
  %6494 = vmatpush1.msra.mxu0 0.0
  %6495 = vmatprep.subr.mxu0 0.0
  %6496 = vmatpush1.msra.mxu0 0.0
  %6497 = vmatprep.subr.mxu0 0.0
  %6498 = vmatpush1.msra.mxu0 0.0
  %6499 = vmatprep.subr.mxu0 0.0
  %6500 = vmatpush1.msra.mxu0 0.0
  %6501 = vmatprep.subr.mxu0 0.0
  %6502 = vmatpush1.msra.mxu0 0.0
  %6503 = vmatprep.subr.mxu0 0.0
  %6504 = vmatpush1.msra.mxu0 0.0
  %6505 = vmatprep.subr.mxu0 0.0
  %6506 = vmatpush1.msra.mxu0 0.0
  %6507 = vmatprep.subr.mxu0 0.0
  %6508 = vmatpush1.msra.mxu0 0.0
  %6509 = vmatprep.subr.mxu0 0.0
  %6510 = vmatpush1.msra.mxu0 0.0
  %6511 = vmatprep.subr.mxu0 0.0
  %6512 = vmatpush1.msra.mxu0 0.0
  %6513 = vmatprep.subr.mxu0 0.0
  %6514 = vmatpush1.msra.mxu0 0.0
  %6515 = vmatprep.subr.mxu0 0.0
  %6516 = vmatpush1.msra.mxu0 0.0
  %6517 = vmatprep.mubr.f32.mxu0 0.0
  %6518 = vmatmul.mubr.f32.gmra.mrb[0].mxu0 %v6435
  %v6519 = vpop.f32.mrb[0].mxu0
  %v6520 = vadd.f32 %v6028, %v6519
  %v6521 = vpop.f32.mrb[0].mxu0
  %6522 = vmatprep.mubr.f32.mxu0 0.0
  %6523 = vmatmul.mubr.f32.gmra.mrb[0].mxu0 %v6436
  %v6524 = vpop.f32.mrb[0].mxu0
  %v6525 = vadd.f32 %v6028, %v6524
  %v6526 = vpop.f32.mrb[0].mxu0
  %6527 = vdwg.mxu0
  %s6528 = scalar_lea.vmem [#allocation5], 16
  %6529 = vst [vmem:[%s6528] sm:$0xff] %v6520
  %6530 = vst [vmem:[%s6528 + $0x8] sm:$0xff] %v6525
  %v6531 = vadd.f32 %v6520, %v6525
  %v6532 = vrot.slane %v6531, 4
  %v6533 = vadd.f32 %v6531, %v6532
  %v6534 = vrot.slane %v6533, 2
  %v6535 = vadd.f32 %v6533, %v6534
  %v6536 = vrot.slane %v6535, 1
  %v6537 = vadd.f32 %v6535, %v6536
  %v6538 = vadd.f32 %v6113, %v6537
  %v6539 = vmul.f32 %v6520, %v6520
  %v6540 = vmul.f32 %v6525, %v6525
  %v6541 = vadd.f32 %v6539, %v6540
  %v6542 = vrot.slane %v6541, 4
  %v6543 = vadd.f32 %v6541, %v6542
  %v6544 = vrot.slane %v6543, 2
  %v6545 = vadd.f32 %v6543, %v6544
  %v6546 = vrot.slane %v6545, 1
  %v6547 = vadd.f32 %v6545, %v6546
  %v6548 = vadd.f32 %v6123, %v6547
  %v6549 = vmul.f32 %v6538, 0.03125
  %v6550 = vmul.f32 %v6548, 0.03125
  %v6551 = vmul.f32 %v6549, %v6549
  %v6552 = vsub.f32 %v6550, %v6551
  %v6553 = vld [vmem:[%s7] sm:$0x1]
  %v6554 = vadd.f32 %v6552, 1e-05
  %v6555 = vrsqrt.pop %v6554
  %v6556 = vmul.f32 %v6553, %v6555
  %v6557 = vld [vmem:[%s8] sm:$0x1]
  %v6558 = vmul.f32 %v6549, %v6556
  %v6559 = vsub.f32 %v6557, %v6558
  %6560 = vst [vmem:[#allocation7] sm:$0xff] 0.0
  %6561 = vst [vmem:[#allocation7 + $0x8] sm:$0xff] 0.0
  %6562 = vst [vmem:[#allocation7 + $0x10] sm:$0xff] 0.0
  %6563 = vst [vmem:[#allocation7 + $0x18] sm:$0xff] 0.0
  %6564 = vst [vmem:[#allocation7 + $0x20] sm:$0xff] 0.0
  %6565 = vst [vmem:[#allocation7 + $0x28] sm:$0xff] 0.0
  %6566 = vst [vmem:[#allocation7 + $0x30] sm:$0xff] 0.0
  %6567 = vst [vmem:[#allocation7 + $0x38] sm:$0xff] 0.0
  %6568 = vst [vmem:[#allocation7 + $0x40] sm:$0xff] 0.0
  %6569 = vst [vmem:[#allocation7 + $0x48] sm:$0xff] 0.0
  %6570 = vst [vmem:[#allocation7 + $0x50] sm:$0xff] 0.0
  %6571 = vst [vmem:[#allocation7 + $0x58] sm:$0xff] 0.0
  %6572 = vst [vmem:[#allocation7 + $0x60] sm:$0xff] 0.0
  %6573 = vst [vmem:[#allocation7 + $0x68] sm:$0xff] 0.0
  %6574 = vst [vmem:[#allocation7 + $0x70] sm:$0xff] 0.0
  %6575 = vst [vmem:[#allocation7 + $0x78] sm:$0xff] 0.0
  %v6576 = vld [vmem:[#allocation5] sm:$0xff]
  %v6577 = vld [vmem:[#allocation5 + $0x8] sm:$0xff]
  %v6579 = vlaneseq
  %v6580 = vshrl.u32 %v6579, 7
  %v6581 = vsub.s32 0, %v6580
  %v6582 = vrot.slane %v6556, %v6581
  %v6584 = vmul.f32 %v6576, %v6582
  %v6585 = vmul.f32 %v6577, %v6582
  %v6587 = vlaneseq
  %v6588 = vshrl.u32 %v6587, 7
  %v6589 = vsub.s32 0, %v6588
  %v6590 = vrot.slane %v6559, %v6589
  %v6592 = vadd.f32 %v6584, %v6590
  %v6593 = vadd.f32 %v6585, %v6590
  %v6594 = vmul.f32 %v6592, 0.01
  %v6595 = vmul.f32 %v6593, 0.01
  %v6596 = vmax.f32 %v6592, %v6594
  %v6597 = vmax.f32 %v6593, %v6595
  %6598 = vst [vmem:[%s11] sm:$0xff] %v6596
  %6599 = vst [vmem:[%s11 + $0x8] sm:$0xff] %v6597
  %6600 = vst [vmem:[#allocation7] sm:$0x1] %v6596
  %v6602 = vrot.slane %v6596, 1
  %6604 = vst [vmem:[#allocation7 + $0x8] sm:$0x1] %v6602
  %v6605 = vrot.slane %v6596, 2
  %6607 = vst [vmem:[#allocation7 + $0x10] sm:$0x1] %v6605
  %v6608 = vrot.slane %v6596, 3
  %6610 = vst [vmem:[#allocation7 + $0x18] sm:$0x1] %v6608
  %v6611 = vrot.slane %v6596, 4
  %6613 = vst [vmem:[#allocation7 + $0x20] sm:$0x1] %v6611
  %v6614 = vrot.slane %v6596, 5
  %6616 = vst [vmem:[#allocation7 + $0x28] sm:$0x1] %v6614
  %v6617 = vrot.slane %v6596, 6
  %6619 = vst [vmem:[#allocation7 + $0x30] sm:$0x1] %v6617
  %v6620 = vrot.slane %v6596, 7
  %6622 = vst [vmem:[#allocation7 + $0x38] sm:$0x1] %v6620
  %6623 = vst [vmem:[#allocation7 + $0x40] sm:$0x1] %v6597
  %v6625 = vrot.slane %v6597, 1
  %6627 = vst [vmem:[#allocation7 + $0x48] sm:$0x1] %v6625
  %v6628 = vrot.slane %v6597, 2
  %6630 = vst [vmem:[#allocation7 + $0x50] sm:$0x1] %v6628
  %v6631 = vrot.slane %v6597, 3
  %6633 = vst [vmem:[#allocation7 + $0x58] sm:$0x1] %v6631
  %v6634 = vrot.slane %v6597, 4
  %6636 = vst [vmem:[#allocation7 + $0x60] sm:$0x1] %v6634
  %v6637 = vrot.slane %v6597, 5
  %6639 = vst [vmem:[#allocation7 + $0x68] sm:$0x1] %v6637
  %v6640 = vrot.slane %v6597, 6
  %6642 = vst [vmem:[#allocation7 + $0x70] sm:$0x1] %v6640
  %v6643 = vrot.slane %v6597, 7
  %6645 = vst [vmem:[#allocation7 + $0x78] sm:$0x1] %v6643
  %v6646 = vld [vmem:[%s6528] sm:$0xff]
  %v6647 = vld [vmem:[%s6528 + $0x8] sm:$0xff]
  %v6648 = vmul.f32 %v6646, %v6582
  %v6649 = vmul.f32 %v6647, %v6582
  %v6650 = vadd.f32 %v6648, %v6590
  %v6651 = vadd.f32 %v6649, %v6590
  %v6652 = vmul.f32 %v6650, 0.01
  %v6653 = vmul.f32 %v6651, 0.01
  %v6654 = vmax.f32 %v6650, %v6652
  %v6655 = vmax.f32 %v6651, %v6653
  %s6656 = scalar_lea.vmem %s11, 16
  %6657 = vst [vmem:[%s6656] sm:$0xff] %v6654
  %6658 = vst [vmem:[%s6656 + $0x8] sm:$0xff] %v6655
  %6659 = vst [vmem:[#allocation7 + $0x1] sm:$0x1] %v6654
  %v6661 = vrot.slane %v6654, 1
  %6663 = vst [vmem:[#allocation7 + $0x9] sm:$0x1] %v6661
  %v6664 = vrot.slane %v6654, 2
  %6666 = vst [vmem:[#allocation7 + $0x11] sm:$0x1] %v6664
  %v6667 = vrot.slane %v6654, 3
  %6669 = vst [vmem:[#allocation7 + $0x19] sm:$0x1] %v6667
  %v6670 = vrot.slane %v6654, 4
  %6672 = vst [vmem:[#allocation7 + $0x21] sm:$0x1] %v6670
  %v6673 = vrot.slane %v6654, 5
  %6675 = vst [vmem:[#allocation7 + $0x29] sm:$0x1] %v6673
  %v6676 = vrot.slane %v6654, 6
  %6678 = vst [vmem:[#allocation7 + $0x31] sm:$0x1] %v6676
  %v6679 = vrot.slane %v6654, 7
  %6681 = vst [vmem:[#allocation7 + $0x39] sm:$0x1] %v6679
  %6682 = vst [vmem:[#allocation7 + $0x41] sm:$0x1] %v6655
  %v6684 = vrot.slane %v6655, 1
  %6686 = vst [vmem:[#allocation7 + $0x49] sm:$0x1] %v6684
  %v6687 = vrot.slane %v6655, 2
  %6689 = vst [vmem:[#allocation7 + $0x51] sm:$0x1] %v6687
  %v6690 = vrot.slane %v6655, 3
  %6692 = vst [vmem:[#allocation7 + $0x59] sm:$0x1] %v6690
  %v6693 = vrot.slane %v6655, 4
  %6695 = vst [vmem:[#allocation7 + $0x61] sm:$0x1] %v6693
  %v6696 = vrot.slane %v6655, 5
  %6698 = vst [vmem:[#allocation7 + $0x69] sm:$0x1] %v6696
  %v6699 = vrot.slane %v6655, 6
  %6701 = vst [vmem:[#allocation7 + $0x71] sm:$0x1] %v6699
  %v6702 = vrot.slane %v6655, 7
  %6704 = vst [vmem:[#allocation7 + $0x79] sm:$0x1] %v6702
  %v6705 = vld [vmem:[#allocation7] sm:$0xff]
  %v6706 = vld [vmem:[#allocation7 + $0x8] sm:$0xff]
  %v6707 = vld [vmem:[#allocation7 + $0x10] sm:$0xff]
  %v6708 = vld [vmem:[#allocation7 + $0x18] sm:$0xff]
  %v6709 = vld [vmem:[#allocation7 + $0x20] sm:$0xff]
  %v6710 = vld [vmem:[#allocation7 + $0x28] sm:$0xff]
  %v6711 = vld [vmem:[#allocation7 + $0x30] sm:$0xff]
  %v6712 = vld [vmem:[#allocation7 + $0x38] sm:$0xff]
  %v6713 = vld [vmem:[#allocation7 + $0x40] sm:$0xff]
  %v6714 = vld [vmem:[#allocation7 + $0x48] sm:$0xff]
  %v6715 = vld [vmem:[#allocation7 + $0x50] sm:$0xff]
  %v6716 = vld [vmem:[#allocation7 + $0x58] sm:$0xff]
  %v6717 = vld [vmem:[#allocation7 + $0x60] sm:$0xff]
  %v6718 = vld [vmem:[#allocation7 + $0x68] sm:$0xff]
  %v6719 = vld [vmem:[#allocation7 + $0x70] sm:$0xff]
  %v6720 = vld [vmem:[#allocation7 + $0x78] sm:$0xff]
  %v6721 = vld [vmem:[%s9] sm:$0xff]
  %v6722 = vld [vmem:[%s9 + $0x8] sm:$0xff]
  %v6723 = vld [vmem:[%s9 + $0x10] sm:$0xff]
  %v6724 = vld [vmem:[%s9 + $0x18] sm:$0xff]
  %v6725 = vld [vmem:[%s9 + $0x20] sm:$0xff]
  %v6726 = vld [vmem:[%s9 + $0x28] sm:$0xff]
  %v6727 = vld [vmem:[%s9 + $0x30] sm:$0xff]
  %v6728 = vld [vmem:[%s9 + $0x38] sm:$0xff]
  %v6729 = vld [vmem:[%s9 + $0x40] sm:$0xff]
  %v6730 = vld [vmem:[%s9 + $0x48] sm:$0xff]
  %v6731 = vld [vmem:[%s9 + $0x50] sm:$0xff]
  %v6732 = vld [vmem:[%s9 + $0x58] sm:$0xff]
  %v6733 = vld [vmem:[%s9 + $0x60] sm:$0xff]
  %v6734 = vld [vmem:[%s9 + $0x68] sm:$0xff]
  %v6735 = vld [vmem:[%s9 + $0x70] sm:$0xff]
  %v6736 = vld [vmem:[%s9 + $0x78] sm:$0xff]
  %v6737 = vld [vmem:[%s9 + $0x80] sm:$0xff]
  %v6738 = vld [vmem:[%s9 + $0x88] sm:$0xff]
  %v6739 = vld [vmem:[%s9 + $0x90] sm:$0xff]
  %v6740 = vld [vmem:[%s9 + $0x98] sm:$0xff]
  %v6741 = vld [vmem:[%s9 + $0xa0] sm:$0xff]
  %v6742 = vld [vmem:[%s9 + $0xa8] sm:$0xff]
  %v6743 = vld [vmem:[%s9 + $0xb0] sm:$0xff]
  %v6744 = vld [vmem:[%s9 + $0xb8] sm:$0xff]
  %v6745 = vld [vmem:[%s9 + $0xc0] sm:$0xff]
  %v6746 = vld [vmem:[%s9 + $0xc8] sm:$0xff]
  %v6747 = vld [vmem:[%s9 + $0xd0] sm:$0xff]
  %v6748 = vld [vmem:[%s9 + $0xd8] sm:$0xff]
  %v6749 = vld [vmem:[%s9 + $0xe0] sm:$0xff]
  %v6750 = vld [vmem:[%s9 + $0xe8] sm:$0xff]
  %v6751 = vld [vmem:[%s9 + $0xf0] sm:$0xff]
  %v6752 = vld [vmem:[%s9 + $0xf8] sm:$0xff]
  %v6753 = vld [vmem:[%s9 + $0x100] sm:$0xff]
  %v6754 = vld [vmem:[%s9 + $0x108] sm:$0xff]
  %v6755 = vld [vmem:[%s9 + $0x110] sm:$0xff]
  %v6756 = vld [vmem:[%s9 + $0x118] sm:$0xff]
  %v6757 = vld [vmem:[%s9 + $0x120] sm:$0xff]
  %v6758 = vld [vmem:[%s9 + $0x128] sm:$0xff]
  %v6759 = vld [vmem:[%s9 + $0x130] sm:$0xff]
  %v6760 = vld [vmem:[%s9 + $0x138] sm:$0xff]
  %v6761 = vld [vmem:[%s9 + $0x140] sm:$0xff]
  %v6762 = vld [vmem:[%s9 + $0x148] sm:$0xff]
  %v6763 = vld [vmem:[%s9 + $0x150] sm:$0xff]
  %v6764 = vld [vmem:[%s9 + $0x158] sm:$0xff]
  %v6765 = vld [vmem:[%s9 + $0x160] sm:$0xff]
  %v6766 = vld [vmem:[%s9 + $0x168] sm:$0xff]
  %v6767 = vld [vmem:[%s9 + $0x170] sm:$0xff]
  %v6768 = vld [vmem:[%s9 + $0x178] sm:$0xff]
  %v6769 = vld [vmem:[%s9 + $0x180] sm:$0xff]
  %v6770 = vld [vmem:[%s9 + $0x188] sm:$0xff]
  %v6771 = vld [vmem:[%s9 + $0x190] sm:$0xff]
  %v6772 = vld [vmem:[%s9 + $0x198] sm:$0xff]
  %v6773 = vld [vmem:[%s9 + $0x1a0] sm:$0xff]
  %v6774 = vld [vmem:[%s9 + $0x1a8] sm:$0xff]
  %v6775 = vld [vmem:[%s9 + $0x1b0] sm:$0xff]
  %v6776 = vld [vmem:[%s9 + $0x1b8] sm:$0xff]
  %v6777 = vld [vmem:[%s9 + $0x1c0] sm:$0xff]
  %v6778 = vld [vmem:[%s9 + $0x1c8] sm:$0xff]
  %v6779 = vld [vmem:[%s9 + $0x1d0] sm:$0xff]
  %v6780 = vld [vmem:[%s9 + $0x1d8] sm:$0xff]
  %v6781 = vld [vmem:[%s9 + $0x1e0] sm:$0xff]
  %v6782 = vld [vmem:[%s9 + $0x1e8] sm:$0xff]
  %v6783 = vld [vmem:[%s9 + $0x1f0] sm:$0xff]
  %v6784 = vld [vmem:[%s9 + $0x1f8] sm:$0xff]
  %v6785 = vld [vmem:[%s9 + $0x200] sm:$0xff]
  %v6786 = vld [vmem:[%s9 + $0x208] sm:$0xff]
  %v6787 = vld [vmem:[%s9 + $0x210] sm:$0xff]
  %v6788 = vld [vmem:[%s9 + $0x218] sm:$0xff]
  %v6789 = vld [vmem:[%s9 + $0x220] sm:$0xff]
  %v6790 = vld [vmem:[%s9 + $0x228] sm:$0xff]
  %v6791 = vld [vmem:[%s9 + $0x230] sm:$0xff]
  %v6792 = vld [vmem:[%s9 + $0x238] sm:$0xff]
  %v6793 = vld [vmem:[%s9 + $0x240] sm:$0xff]
  %v6794 = vld [vmem:[%s9 + $0x248] sm:$0xff]
  %v6795 = vld [vmem:[%s9 + $0x250] sm:$0xff]
  %v6796 = vld [vmem:[%s9 + $0x258] sm:$0xff]
  %v6797 = vld [vmem:[%s9 + $0x260] sm:$0xff]
  %v6798 = vld [vmem:[%s9 + $0x268] sm:$0xff]
  %v6799 = vld [vmem:[%s9 + $0x270] sm:$0xff]
  %v6800 = vld [vmem:[%s9 + $0x278] sm:$0xff]
  %v6801 = vld [vmem:[%s9 + $0x280] sm:$0xff]
  %v6802 = vld [vmem:[%s9 + $0x288] sm:$0xff]
  %v6803 = vld [vmem:[%s9 + $0x290] sm:$0xff]
  %v6804 = vld [vmem:[%s9 + $0x298] sm:$0xff]
  %v6805 = vld [vmem:[%s9 + $0x2a0] sm:$0xff]
  %v6806 = vld [vmem:[%s9 + $0x2a8] sm:$0xff]
  %v6807 = vld [vmem:[%s9 + $0x2b0] sm:$0xff]
  %v6808 = vld [vmem:[%s9 + $0x2b8] sm:$0xff]
  %v6809 = vld [vmem:[%s9 + $0x2c0] sm:$0xff]
  %v6810 = vld [vmem:[%s9 + $0x2c8] sm:$0xff]
  %v6811 = vld [vmem:[%s9 + $0x2d0] sm:$0xff]
  %v6812 = vld [vmem:[%s9 + $0x2d8] sm:$0xff]
  %v6813 = vld [vmem:[%s9 + $0x2e0] sm:$0xff]
  %v6814 = vld [vmem:[%s9 + $0x2e8] sm:$0xff]
  %v6815 = vld [vmem:[%s9 + $0x2f0] sm:$0xff]
  %v6816 = vld [vmem:[%s9 + $0x2f8] sm:$0xff]
  %v6817 = vld [vmem:[%s9 + $0x300] sm:$0xff]
  %v6818 = vld [vmem:[%s9 + $0x308] sm:$0xff]
  %v6819 = vld [vmem:[%s9 + $0x310] sm:$0xff]
  %v6820 = vld [vmem:[%s9 + $0x318] sm:$0xff]
  %v6821 = vld [vmem:[%s9 + $0x320] sm:$0xff]
  %v6822 = vld [vmem:[%s9 + $0x328] sm:$0xff]
  %v6823 = vld [vmem:[%s9 + $0x330] sm:$0xff]
  %v6824 = vld [vmem:[%s9 + $0x338] sm:$0xff]
  %v6825 = vld [vmem:[%s9 + $0x340] sm:$0xff]
  %v6826 = vld [vmem:[%s9 + $0x348] sm:$0xff]
  %v6827 = vld [vmem:[%s9 + $0x350] sm:$0xff]
  %v6828 = vld [vmem:[%s9 + $0x358] sm:$0xff]
  %v6829 = vld [vmem:[%s9 + $0x360] sm:$0xff]
  %v6830 = vld [vmem:[%s9 + $0x368] sm:$0xff]
  %v6831 = vld [vmem:[%s9 + $0x370] sm:$0xff]
  %v6832 = vld [vmem:[%s9 + $0x378] sm:$0xff]
  %v6833 = vld [vmem:[%s9 + $0x380] sm:$0xff]
  %v6834 = vld [vmem:[%s9 + $0x388] sm:$0xff]
  %v6835 = vld [vmem:[%s9 + $0x390] sm:$0xff]
  %v6836 = vld [vmem:[%s9 + $0x398] sm:$0xff]
  %v6837 = vld [vmem:[%s9 + $0x3a0] sm:$0xff]
  %v6838 = vld [vmem:[%s9 + $0x3a8] sm:$0xff]
  %v6839 = vld [vmem:[%s9 + $0x3b0] sm:$0xff]
  %v6840 = vld [vmem:[%s9 + $0x3b8] sm:$0xff]
  %v6841 = vld [vmem:[%s9 + $0x3c0] sm:$0xff]
  %v6842 = vld [vmem:[%s9 + $0x3c8] sm:$0xff]
  %v6843 = vld [vmem:[%s9 + $0x3d0] sm:$0xff]
  %v6844 = vld [vmem:[%s9 + $0x3d8] sm:$0xff]
  %v6845 = vld [vmem:[%s9 + $0x3e0] sm:$0xff]
  %v6846 = vld [vmem:[%s9 + $0x3e8] sm:$0xff]
  %v6847 = vld [vmem:[%s9 + $0x3f0] sm:$0xff]
  %v6848 = vld [vmem:[%s9 + $0x3f8] sm:$0xff]
  %v6849 = vld [vmem:[%s9 + $0x400] sm:$0xff]
  %v6850 = vld [vmem:[%s9 + $0x408] sm:$0xff]
  %v6851 = vld [vmem:[%s9 + $0x410] sm:$0xff]
  %v6852 = vld [vmem:[%s9 + $0x418] sm:$0xff]
  %v6853 = vld [vmem:[%s9 + $0x420] sm:$0xff]
  %v6854 = vld [vmem:[%s9 + $0x428] sm:$0xff]
  %v6855 = vld [vmem:[%s9 + $0x430] sm:$0xff]
  %v6856 = vld [vmem:[%s9 + $0x438] sm:$0xff]
  %v6857 = vld [vmem:[%s9 + $0x440] sm:$0xff]
  %v6858 = vld [vmem:[%s9 + $0x448] sm:$0xff]
  %v6859 = vld [vmem:[%s9 + $0x450] sm:$0xff]
  %v6860 = vld [vmem:[%s9 + $0x458] sm:$0xff]
  %v6861 = vld [vmem:[%s9 + $0x460] sm:$0xff]
  %v6862 = vld [vmem:[%s9 + $0x468] sm:$0xff]
  %v6863 = vld [vmem:[%s9 + $0x470] sm:$0xff]
  %v6864 = vld [vmem:[%s9 + $0x478] sm:$0xff]
  %v6865 = vld [vmem:[%s9 + $0x480] sm:$0xff]
  %v6866 = vld [vmem:[%s9 + $0x488] sm:$0xff]
  %v6867 = vld [vmem:[%s9 + $0x490] sm:$0xff]
  %v6868 = vld [vmem:[%s9 + $0x498] sm:$0xff]
  %v6869 = vld [vmem:[%s9 + $0x4a0] sm:$0xff]
  %v6870 = vld [vmem:[%s9 + $0x4a8] sm:$0xff]
  %v6871 = vld [vmem:[%s9 + $0x4b0] sm:$0xff]
  %v6872 = vld [vmem:[%s9 + $0x4b8] sm:$0xff]
  %v6873 = vld [vmem:[%s9 + $0x4c0] sm:$0xff]
  %v6874 = vld [vmem:[%s9 + $0x4c8] sm:$0xff]
  %v6875 = vld [vmem:[%s9 + $0x4d0] sm:$0xff]
  %v6876 = vld [vmem:[%s9 + $0x4d8] sm:$0xff]
  %v6877 = vld [vmem:[%s9 + $0x4e0] sm:$0xff]
  %v6878 = vld [vmem:[%s9 + $0x4e8] sm:$0xff]
  %v6879 = vld [vmem:[%s9 + $0x4f0] sm:$0xff]
  %v6880 = vld [vmem:[%s9 + $0x4f8] sm:$0xff]
  %v6881 = vld [vmem:[%s9 + $0x500] sm:$0xff]
  %v6882 = vld [vmem:[%s9 + $0x508] sm:$0xff]
  %v6883 = vld [vmem:[%s9 + $0x510] sm:$0xff]
  %v6884 = vld [vmem:[%s9 + $0x518] sm:$0xff]
  %v6885 = vld [vmem:[%s9 + $0x520] sm:$0xff]
  %v6886 = vld [vmem:[%s9 + $0x528] sm:$0xff]
  %v6887 = vld [vmem:[%s9 + $0x530] sm:$0xff]
  %v6888 = vld [vmem:[%s9 + $0x538] sm:$0xff]
  %v6889 = vld [vmem:[%s9 + $0x540] sm:$0xff]
  %v6890 = vld [vmem:[%s9 + $0x548] sm:$0xff]
  %v6891 = vld [vmem:[%s9 + $0x550] sm:$0xff]
  %v6892 = vld [vmem:[%s9 + $0x558] sm:$0xff]
  %v6893 = vld [vmem:[%s9 + $0x560] sm:$0xff]
  %v6894 = vld [vmem:[%s9 + $0x568] sm:$0xff]
  %v6895 = vld [vmem:[%s9 + $0x570] sm:$0xff]
  %v6896 = vld [vmem:[%s9 + $0x578] sm:$0xff]
  %v6897 = vld [vmem:[%s9 + $0x580] sm:$0xff]
  %v6898 = vld [vmem:[%s9 + $0x588] sm:$0xff]
  %v6899 = vld [vmem:[%s9 + $0x590] sm:$0xff]
  %v6900 = vld [vmem:[%s9 + $0x598] sm:$0xff]
  %v6901 = vld [vmem:[%s9 + $0x5a0] sm:$0xff]
  %v6902 = vld [vmem:[%s9 + $0x5a8] sm:$0xff]
  %v6903 = vld [vmem:[%s9 + $0x5b0] sm:$0xff]
  %v6904 = vld [vmem:[%s9 + $0x5b8] sm:$0xff]
  %v6905 = vld [vmem:[%s9 + $0x5c0] sm:$0xff]
  %v6906 = vld [vmem:[%s9 + $0x5c8] sm:$0xff]
  %v6907 = vld [vmem:[%s9 + $0x5d0] sm:$0xff]
  %v6908 = vld [vmem:[%s9 + $0x5d8] sm:$0xff]
  %v6909 = vld [vmem:[%s9 + $0x5e0] sm:$0xff]
  %v6910 = vld [vmem:[%s9 + $0x5e8] sm:$0xff]
  %v6911 = vld [vmem:[%s9 + $0x5f0] sm:$0xff]
  %v6912 = vld [vmem:[%s9 + $0x5f8] sm:$0xff]
  %v6913 = vld [vmem:[%s9 + $0x600] sm:$0xff]
  %v6914 = vld [vmem:[%s9 + $0x608] sm:$0xff]
  %v6915 = vld [vmem:[%s9 + $0x610] sm:$0xff]
  %v6916 = vld [vmem:[%s9 + $0x618] sm:$0xff]
  %v6917 = vld [vmem:[%s9 + $0x620] sm:$0xff]
  %v6918 = vld [vmem:[%s9 + $0x628] sm:$0xff]
  %v6919 = vld [vmem:[%s9 + $0x630] sm:$0xff]
  %v6920 = vld [vmem:[%s9 + $0x638] sm:$0xff]
  %v6921 = vld [vmem:[%s9 + $0x640] sm:$0xff]
  %v6922 = vld [vmem:[%s9 + $0x648] sm:$0xff]
  %v6923 = vld [vmem:[%s9 + $0x650] sm:$0xff]
  %v6924 = vld [vmem:[%s9 + $0x658] sm:$0xff]
  %v6925 = vld [vmem:[%s9 + $0x660] sm:$0xff]
  %v6926 = vld [vmem:[%s9 + $0x668] sm:$0xff]
  %v6927 = vld [vmem:[%s9 + $0x670] sm:$0xff]
  %v6928 = vld [vmem:[%s9 + $0x678] sm:$0xff]
  %v6929 = vld [vmem:[%s9 + $0x680] sm:$0xff]
  %v6930 = vld [vmem:[%s9 + $0x688] sm:$0xff]
  %v6931 = vld [vmem:[%s9 + $0x690] sm:$0xff]
  %v6932 = vld [vmem:[%s9 + $0x698] sm:$0xff]
  %v6933 = vld [vmem:[%s9 + $0x6a0] sm:$0xff]
  %v6934 = vld [vmem:[%s9 + $0x6a8] sm:$0xff]
  %v6935 = vld [vmem:[%s9 + $0x6b0] sm:$0xff]
  %v6936 = vld [vmem:[%s9 + $0x6b8] sm:$0xff]
  %v6937 = vld [vmem:[%s9 + $0x6c0] sm:$0xff]
  %v6938 = vld [vmem:[%s9 + $0x6c8] sm:$0xff]
  %v6939 = vld [vmem:[%s9 + $0x6d0] sm:$0xff]
  %v6940 = vld [vmem:[%s9 + $0x6d8] sm:$0xff]
  %v6941 = vld [vmem:[%s9 + $0x6e0] sm:$0xff]
  %v6942 = vld [vmem:[%s9 + $0x6e8] sm:$0xff]
  %v6943 = vld [vmem:[%s9 + $0x6f0] sm:$0xff]
  %v6944 = vld [vmem:[%s9 + $0x6f8] sm:$0xff]
  %v6945 = vld [vmem:[%s9 + $0x700] sm:$0xff]
  %v6946 = vld [vmem:[%s9 + $0x708] sm:$0xff]
  %v6947 = vld [vmem:[%s9 + $0x710] sm:$0xff]
  %v6948 = vld [vmem:[%s9 + $0x718] sm:$0xff]
  %v6949 = vld [vmem:[%s9 + $0x720] sm:$0xff]
  %v6950 = vld [vmem:[%s9 + $0x728] sm:$0xff]
  %v6951 = vld [vmem:[%s9 + $0x730] sm:$0xff]
  %v6952 = vld [vmem:[%s9 + $0x738] sm:$0xff]
  %v6953 = vld [vmem:[%s9 + $0x740] sm:$0xff]
  %v6954 = vld [vmem:[%s9 + $0x748] sm:$0xff]
  %v6955 = vld [vmem:[%s9 + $0x750] sm:$0xff]
  %v6956 = vld [vmem:[%s9 + $0x758] sm:$0xff]
  %v6957 = vld [vmem:[%s9 + $0x760] sm:$0xff]
  %v6958 = vld [vmem:[%s9 + $0x768] sm:$0xff]
  %v6959 = vld [vmem:[%s9 + $0x770] sm:$0xff]
  %v6960 = vld [vmem:[%s9 + $0x778] sm:$0xff]
  %v6961 = vld [vmem:[%s9 + $0x780] sm:$0xff]
  %v6962 = vld [vmem:[%s9 + $0x788] sm:$0xff]
  %v6963 = vld [vmem:[%s9 + $0x790] sm:$0xff]
  %v6964 = vld [vmem:[%s9 + $0x798] sm:$0xff]
  %v6965 = vld [vmem:[%s9 + $0x7a0] sm:$0xff]
  %v6966 = vld [vmem:[%s9 + $0x7a8] sm:$0xff]
  %v6967 = vld [vmem:[%s9 + $0x7b0] sm:$0xff]
  %v6968 = vld [vmem:[%s9 + $0x7b8] sm:$0xff]
  %v6969 = vld [vmem:[%s9 + $0x7c0] sm:$0xff]
  %v6970 = vld [vmem:[%s9 + $0x7c8] sm:$0xff]
  %v6971 = vld [vmem:[%s9 + $0x7d0] sm:$0xff]
  %v6972 = vld [vmem:[%s9 + $0x7d8] sm:$0xff]
  %v6973 = vld [vmem:[%s9 + $0x7e0] sm:$0xff]
  %v6974 = vld [vmem:[%s9 + $0x7e8] sm:$0xff]
  %v6975 = vld [vmem:[%s9 + $0x7f0] sm:$0xff]
  %v6976 = vld [vmem:[%s9 + $0x7f8] sm:$0xff]
  %v6977 = vld [vmem:[%s10] sm:$0x1]
  %v6979 = vlaneseq
  %v6980 = vshrl.u32 %v6979, 7
  %v6981 = vsub.s32 0, %v6980
  %v6982 = vrot.slane %v6977, %v6981
  %6984 = vmatprep.subr.mxu0 0.0
  %6985 = vmatpush1.msra.mxu0 %v6721
  %6986 = vmatprep.subr.mxu0 0.0
  %6987 = vmatpush1.msra.mxu0 %v6722
  %6988 = vmatprep.subr.mxu0 0.0
  %6989 = vmatpush1.msra.mxu0 %v6723
  %6990 = vmatprep.subr.mxu0 0.0
  %6991 = vmatpush1.msra.mxu0 %v6724
  %6992 = vmatprep.subr.mxu0 0.0
  %6993 = vmatpush1.msra.mxu0 %v6725
  %6994 = vmatprep.subr.mxu0 0.0
  %6995 = vmatpush1.msra.mxu0 %v6726
  %6996 = vmatprep.subr.mxu0 0.0
  %6997 = vmatpush1.msra.mxu0 %v6727
  %6998 = vmatprep.subr.mxu0 0.0
  %6999 = vmatpush1.msra.mxu0 %v6728
  %7000 = vmatprep.subr.mxu0 0.0
  %7001 = vmatpush1.msra.mxu0 %v6729
  %7002 = vmatprep.subr.mxu0 0.0
  %7003 = vmatpush1.msra.mxu0 %v6730
  %7004 = vmatprep.subr.mxu0 0.0
  %7005 = vmatpush1.msra.mxu0 %v6731
  %7006 = vmatprep.subr.mxu0 0.0
  %7007 = vmatpush1.msra.mxu0 %v6732
  %7008 = vmatprep.subr.mxu0 0.0
  %7009 = vmatpush1.msra.mxu0 %v6733
  %7010 = vmatprep.subr.mxu0 0.0
  %7011 = vmatpush1.msra.mxu0 %v6734
  %7012 = vmatprep.subr.mxu0 0.0
  %7013 = vmatpush1.msra.mxu0 %v6735
  %7014 = vmatprep.subr.mxu0 0.0
  %7015 = vmatpush1.msra.mxu0 %v6736
  %7016 = vmatprep.subr.mxu0 0.0
  %7017 = vmatpush1.msra.mxu0 %v6737
  %7018 = vmatprep.subr.mxu0 0.0
  %7019 = vmatpush1.msra.mxu0 %v6738
  %7020 = vmatprep.subr.mxu0 0.0
  %7021 = vmatpush1.msra.mxu0 %v6739
  %7022 = vmatprep.subr.mxu0 0.0
  %7023 = vmatpush1.msra.mxu0 %v6740
  %7024 = vmatprep.subr.mxu0 0.0
  %7025 = vmatpush1.msra.mxu0 %v6741
  %7026 = vmatprep.subr.mxu0 0.0
  %7027 = vmatpush1.msra.mxu0 %v6742
  %7028 = vmatprep.subr.mxu0 0.0
  %7029 = vmatpush1.msra.mxu0 %v6743
  %7030 = vmatprep.subr.mxu0 0.0
  %7031 = vmatpush1.msra.mxu0 %v6744
  %7032 = vmatprep.subr.mxu0 0.0
  %7033 = vmatpush1.msra.mxu0 %v6745
  %7034 = vmatprep.subr.mxu0 0.0
  %7035 = vmatpush1.msra.mxu0 %v6746
  %7036 = vmatprep.subr.mxu0 0.0
  %7037 = vmatpush1.msra.mxu0 %v6747
  %7038 = vmatprep.subr.mxu0 0.0
  %7039 = vmatpush1.msra.mxu0 %v6748
  %7040 = vmatprep.subr.mxu0 0.0
  %7041 = vmatpush1.msra.mxu0 %v6749
  %7042 = vmatprep.subr.mxu0 0.0
  %7043 = vmatpush1.msra.mxu0 %v6750
  %7044 = vmatprep.subr.mxu0 0.0
  %7045 = vmatpush1.msra.mxu0 %v6751
  %7046 = vmatprep.subr.mxu0 0.0
  %7047 = vmatpush1.msra.mxu0 %v6752
  %7048 = vmatprep.mubr.f32.mxu0 %v6706
  %7049 = vmatmul.mubr.f32.gmra.mrb[0].mxu0 %v6705
  %v7050 = vpop.f32.mrb[0].mxu0
  %v7051 = vadd.f32 %v6982, %v7050
  %v7052 = vpop.f32.mrb[0].mxu0
  %7053 = vdwg.mxu0
  %7054 = vmatprep.subr.mxu0 0.0
  %7055 = vmatpush1.msra.mxu0 %v6753
  %7056 = vmatprep.subr.mxu0 0.0
  %7057 = vmatpush1.msra.mxu0 %v6754
  %7058 = vmatprep.subr.mxu0 0.0
  %7059 = vmatpush1.msra.mxu0 %v6755
  %7060 = vmatprep.subr.mxu0 0.0
  %7061 = vmatpush1.msra.mxu0 %v6756
  %7062 = vmatprep.subr.mxu0 0.0
  %7063 = vmatpush1.msra.mxu0 %v6757
  %7064 = vmatprep.subr.mxu0 0.0
  %7065 = vmatpush1.msra.mxu0 %v6758
  %7066 = vmatprep.subr.mxu0 0.0
  %7067 = vmatpush1.msra.mxu0 %v6759
  %7068 = vmatprep.subr.mxu0 0.0
  %7069 = vmatpush1.msra.mxu0 %v6760
  %7070 = vmatprep.subr.mxu0 0.0
  %7071 = vmatpush1.msra.mxu0 %v6761
  %7072 = vmatprep.subr.mxu0 0.0
  %7073 = vmatpush1.msra.mxu0 %v6762
  %7074 = vmatprep.subr.mxu0 0.0
  %7075 = vmatpush1.msra.mxu0 %v6763
  %7076 = vmatprep.subr.mxu0 0.0
  %7077 = vmatpush1.msra.mxu0 %v6764
  %7078 = vmatprep.subr.mxu0 0.0
  %7079 = vmatpush1.msra.mxu0 %v6765
  %7080 = vmatprep.subr.mxu0 0.0
  %7081 = vmatpush1.msra.mxu0 %v6766
  %7082 = vmatprep.subr.mxu0 0.0
  %7083 = vmatpush1.msra.mxu0 %v6767
  %7084 = vmatprep.subr.mxu0 0.0
  %7085 = vmatpush1.msra.mxu0 %v6768
  %7086 = vmatprep.subr.mxu0 0.0
  %7087 = vmatpush1.msra.mxu0 %v6769
  %7088 = vmatprep.subr.mxu0 0.0
  %7089 = vmatpush1.msra.mxu0 %v6770
  %7090 = vmatprep.subr.mxu0 0.0
  %7091 = vmatpush1.msra.mxu0 %v6771
  %7092 = vmatprep.subr.mxu0 0.0
  %7093 = vmatpush1.msra.mxu0 %v6772
  %7094 = vmatprep.subr.mxu0 0.0
  %7095 = vmatpush1.msra.mxu0 %v6773
  %7096 = vmatprep.subr.mxu0 0.0
  %7097 = vmatpush1.msra.mxu0 %v6774
  %7098 = vmatprep.subr.mxu0 0.0
  %7099 = vmatpush1.msra.mxu0 %v6775
  %7100 = vmatprep.subr.mxu0 0.0
  %7101 = vmatpush1.msra.mxu0 %v6776
  %7102 = vmatprep.subr.mxu0 0.0
  %7103 = vmatpush1.msra.mxu0 %v6777
  %7104 = vmatprep.subr.mxu0 0.0
  %7105 = vmatpush1.msra.mxu0 %v6778
  %7106 = vmatprep.subr.mxu0 0.0
  %7107 = vmatpush1.msra.mxu0 %v6779
  %7108 = vmatprep.subr.mxu0 0.0
  %7109 = vmatpush1.msra.mxu0 %v6780
  %7110 = vmatprep.subr.mxu0 0.0
  %7111 = vmatpush1.msra.mxu0 %v6781
  %7112 = vmatprep.subr.mxu0 0.0
  %7113 = vmatpush1.msra.mxu0 %v6782
  %7114 = vmatprep.subr.mxu0 0.0
  %7115 = vmatpush1.msra.mxu0 %v6783
  %7116 = vmatprep.subr.mxu0 0.0
  %7117 = vmatpush1.msra.mxu0 %v6784
  %7118 = vmatprep.mubr.f32.mxu0 %v6708
  %7119 = vmatmul.mubr.f32.gmra.mrb[0].mxu0 %v6707
  %v7120 = vpop.f32.mrb[0].mxu0
  %v7121 = vadd.f32 %v7051, %v7120
  %v7122 = vpop.f32.mrb[0].mxu0
  %7123 = vdwg.mxu0
  %7124 = vmatprep.subr.mxu0 0.0
  %7125 = vmatpush1.msra.mxu0 %v6785
  %7126 = vmatprep.subr.mxu0 0.0
  %7127 = vmatpush1.msra.mxu0 %v6786
  %7128 = vmatprep.subr.mxu0 0.0
  %7129 = vmatpush1.msra.mxu0 %v6787
  %7130 = vmatprep.subr.mxu0 0.0
  %7131 = vmatpush1.msra.mxu0 %v6788
  %7132 = vmatprep.subr.mxu0 0.0
  %7133 = vmatpush1.msra.mxu0 %v6789
  %7134 = vmatprep.subr.mxu0 0.0
  %7135 = vmatpush1.msra.mxu0 %v6790
  %7136 = vmatprep.subr.mxu0 0.0
  %7137 = vmatpush1.msra.mxu0 %v6791
  %7138 = vmatprep.subr.mxu0 0.0
  %7139 = vmatpush1.msra.mxu0 %v6792
  %7140 = vmatprep.subr.mxu0 0.0
  %7141 = vmatpush1.msra.mxu0 %v6793
  %7142 = vmatprep.subr.mxu0 0.0
  %7143 = vmatpush1.msra.mxu0 %v6794
  %7144 = vmatprep.subr.mxu0 0.0
  %7145 = vmatpush1.msra.mxu0 %v6795
  %7146 = vmatprep.subr.mxu0 0.0
  %7147 = vmatpush1.msra.mxu0 %v6796
  %7148 = vmatprep.subr.mxu0 0.0
  %7149 = vmatpush1.msra.mxu0 %v6797
  %7150 = vmatprep.subr.mxu0 0.0
  %7151 = vmatpush1.msra.mxu0 %v6798
  %7152 = vmatprep.subr.mxu0 0.0
  %7153 = vmatpush1.msra.mxu0 %v6799
  %7154 = vmatprep.subr.mxu0 0.0
  %7155 = vmatpush1.msra.mxu0 %v6800
  %7156 = vmatprep.subr.mxu0 0.0
  %7157 = vmatpush1.msra.mxu0 %v6801
  %7158 = vmatprep.subr.mxu0 0.0
  %7159 = vmatpush1.msra.mxu0 %v6802
  %7160 = vmatprep.subr.mxu0 0.0
  %7161 = vmatpush1.msra.mxu0 %v6803
  %7162 = vmatprep.subr.mxu0 0.0
  %7163 = vmatpush1.msra.mxu0 %v6804
  %7164 = vmatprep.subr.mxu0 0.0
  %7165 = vmatpush1.msra.mxu0 %v6805
  %7166 = vmatprep.subr.mxu0 0.0
  %7167 = vmatpush1.msra.mxu0 %v6806
  %7168 = vmatprep.subr.mxu0 0.0
  %7169 = vmatpush1.msra.mxu0 %v6807
  %7170 = vmatprep.subr.mxu0 0.0
  %7171 = vmatpush1.msra.mxu0 %v6808
  %7172 = vmatprep.subr.mxu0 0.0
  %7173 = vmatpush1.msra.mxu0 %v6809
  %7174 = vmatprep.subr.mxu0 0.0
  %7175 = vmatpush1.msra.mxu0 %v6810
  %7176 = vmatprep.subr.mxu0 0.0
  %7177 = vmatpush1.msra.mxu0 %v6811
  %7178 = vmatprep.subr.mxu0 0.0
  %7179 = vmatpush1.msra.mxu0 %v6812
  %7180 = vmatprep.subr.mxu0 0.0
  %7181 = vmatpush1.msra.mxu0 %v6813
  %7182 = vmatprep.subr.mxu0 0.0
  %7183 = vmatpush1.msra.mxu0 %v6814
  %7184 = vmatprep.subr.mxu0 0.0
  %7185 = vmatpush1.msra.mxu0 %v6815
  %7186 = vmatprep.subr.mxu0 0.0
  %7187 = vmatpush1.msra.mxu0 %v6816
  %7188 = vmatprep.mubr.f32.mxu0 %v6710
  %7189 = vmatmul.mubr.f32.gmra.mrb[0].mxu0 %v6709
  %v7190 = vpop.f32.mrb[0].mxu0
  %v7191 = vadd.f32 %v7121, %v7190
  %v7192 = vpop.f32.mrb[0].mxu0
  %7193 = vdwg.mxu0
  %7194 = vmatprep.subr.mxu0 0.0
  %7195 = vmatpush1.msra.mxu0 %v6817
  %7196 = vmatprep.subr.mxu0 0.0
  %7197 = vmatpush1.msra.mxu0 %v6818
  %7198 = vmatprep.subr.mxu0 0.0
  %7199 = vmatpush1.msra.mxu0 %v6819
  %7200 = vmatprep.subr.mxu0 0.0
  %7201 = vmatpush1.msra.mxu0 %v6820
  %7202 = vmatprep.subr.mxu0 0.0
  %7203 = vmatpush1.msra.mxu0 %v6821
  %7204 = vmatprep.subr.mxu0 0.0
  %7205 = vmatpush1.msra.mxu0 %v6822
  %7206 = vmatprep.subr.mxu0 0.0
  %7207 = vmatpush1.msra.mxu0 %v6823
  %7208 = vmatprep.subr.mxu0 0.0
  %7209 = vmatpush1.msra.mxu0 %v6824
  %7210 = vmatprep.subr.mxu0 0.0
  %7211 = vmatpush1.msra.mxu0 %v6825
  %7212 = vmatprep.subr.mxu0 0.0
  %7213 = vmatpush1.msra.mxu0 %v6826
  %7214 = vmatprep.subr.mxu0 0.0
  %7215 = vmatpush1.msra.mxu0 %v6827
  %7216 = vmatprep.subr.mxu0 0.0
  %7217 = vmatpush1.msra.mxu0 %v6828
  %7218 = vmatprep.subr.mxu0 0.0
  %7219 = vmatpush1.msra.mxu0 %v6829
  %7220 = vmatprep.subr.mxu0 0.0
  %7221 = vmatpush1.msra.mxu0 %v6830
  %7222 = vmatprep.subr.mxu0 0.0
  %7223 = vmatpush1.msra.mxu0 %v6831
  %7224 = vmatprep.subr.mxu0 0.0
  %7225 = vmatpush1.msra.mxu0 %v6832
  %7226 = vmatprep.subr.mxu0 0.0
  %7227 = vmatpush1.msra.mxu0 %v6833
  %7228 = vmatprep.subr.mxu0 0.0
  %7229 = vmatpush1.msra.mxu0 %v6834
  %7230 = vmatprep.subr.mxu0 0.0
  %7231 = vmatpush1.msra.mxu0 %v6835
  %7232 = vmatprep.subr.mxu0 0.0
  %7233 = vmatpush1.msra.mxu0 %v6836
  %7234 = vmatprep.subr.mxu0 0.0
  %7235 = vmatpush1.msra.mxu0 %v6837
  %7236 = vmatprep.subr.mxu0 0.0
  %7237 = vmatpush1.msra.mxu0 %v6838
  %7238 = vmatprep.subr.mxu0 0.0
  %7239 = vmatpush1.msra.mxu0 %v6839
  %7240 = vmatprep.subr.mxu0 0.0
  %7241 = vmatpush1.msra.mxu0 %v6840
  %7242 = vmatprep.subr.mxu0 0.0
  %7243 = vmatpush1.msra.mxu0 %v6841
  %7244 = vmatprep.subr.mxu0 0.0
  %7245 = vmatpush1.msra.mxu0 %v6842
  %7246 = vmatprep.subr.mxu0 0.0
  %7247 = vmatpush1.msra.mxu0 %v6843
  %7248 = vmatprep.subr.mxu0 0.0
  %7249 = vmatpush1.msra.mxu0 %v6844
  %7250 = vmatprep.subr.mxu0 0.0
  %7251 = vmatpush1.msra.mxu0 %v6845
  %7252 = vmatprep.subr.mxu0 0.0
  %7253 = vmatpush1.msra.mxu0 %v6846
  %7254 = vmatprep.subr.mxu0 0.0
  %7255 = vmatpush1.msra.mxu0 %v6847
  %7256 = vmatprep.subr.mxu0 0.0
  %7257 = vmatpush1.msra.mxu0 %v6848
  %7258 = vmatprep.mubr.f32.mxu0 %v6712
  %7259 = vmatmul.mubr.f32.gmra.mrb[0].mxu0 %v6711
  %v7260 = vpop.f32.mrb[0].mxu0
  %v7261 = vadd.f32 %v7191, %v7260
  %v7262 = vpop.f32.mrb[0].mxu0
  %7263 = vdwg.mxu0
  %7264 = vmatprep.subr.mxu0 0.0
  %7265 = vmatpush1.msra.mxu0 %v6849
  %7266 = vmatprep.subr.mxu0 0.0
  %7267 = vmatpush1.msra.mxu0 %v6850
  %7268 = vmatprep.subr.mxu0 0.0
  %7269 = vmatpush1.msra.mxu0 %v6851
  %7270 = vmatprep.subr.mxu0 0.0
  %7271 = vmatpush1.msra.mxu0 %v6852
  %7272 = vmatprep.subr.mxu0 0.0
  %7273 = vmatpush1.msra.mxu0 %v6853
  %7274 = vmatprep.subr.mxu0 0.0
  %7275 = vmatpush1.msra.mxu0 %v6854
  %7276 = vmatprep.subr.mxu0 0.0
  %7277 = vmatpush1.msra.mxu0 %v6855
  %7278 = vmatprep.subr.mxu0 0.0
  %7279 = vmatpush1.msra.mxu0 %v6856
  %7280 = vmatprep.subr.mxu0 0.0
  %7281 = vmatpush1.msra.mxu0 %v6857
  %7282 = vmatprep.subr.mxu0 0.0
  %7283 = vmatpush1.msra.mxu0 %v6858
  %7284 = vmatprep.subr.mxu0 0.0
  %7285 = vmatpush1.msra.mxu0 %v6859
  %7286 = vmatprep.subr.mxu0 0.0
  %7287 = vmatpush1.msra.mxu0 %v6860
  %7288 = vmatprep.subr.mxu0 0.0
  %7289 = vmatpush1.msra.mxu0 %v6861
  %7290 = vmatprep.subr.mxu0 0.0
  %7291 = vmatpush1.msra.mxu0 %v6862
  %7292 = vmatprep.subr.mxu0 0.0
  %7293 = vmatpush1.msra.mxu0 %v6863
  %7294 = vmatprep.subr.mxu0 0.0
  %7295 = vmatpush1.msra.mxu0 %v6864
  %7296 = vmatprep.subr.mxu0 0.0
  %7297 = vmatpush1.msra.mxu0 %v6865
  %7298 = vmatprep.subr.mxu0 0.0
  %7299 = vmatpush1.msra.mxu0 %v6866
  %7300 = vmatprep.subr.mxu0 0.0
  %7301 = vmatpush1.msra.mxu0 %v6867
  %7302 = vmatprep.subr.mxu0 0.0
  %7303 = vmatpush1.msra.mxu0 %v6868
  %7304 = vmatprep.subr.mxu0 0.0
  %7305 = vmatpush1.msra.mxu0 %v6869
  %7306 = vmatprep.subr.mxu0 0.0
  %7307 = vmatpush1.msra.mxu0 %v6870
  %7308 = vmatprep.subr.mxu0 0.0
  %7309 = vmatpush1.msra.mxu0 %v6871
  %7310 = vmatprep.subr.mxu0 0.0
  %7311 = vmatpush1.msra.mxu0 %v6872
  %7312 = vmatprep.subr.mxu0 0.0
  %7313 = vmatpush1.msra.mxu0 %v6873
  %7314 = vmatprep.subr.mxu0 0.0
  %7315 = vmatpush1.msra.mxu0 %v6874
  %7316 = vmatprep.subr.mxu0 0.0
  %7317 = vmatpush1.msra.mxu0 %v6875
  %7318 = vmatprep.subr.mxu0 0.0
  %7319 = vmatpush1.msra.mxu0 %v6876
  %7320 = vmatprep.subr.mxu0 0.0
  %7321 = vmatpush1.msra.mxu0 %v6877
  %7322 = vmatprep.subr.mxu0 0.0
  %7323 = vmatpush1.msra.mxu0 %v6878
  %7324 = vmatprep.subr.mxu0 0.0
  %7325 = vmatpush1.msra.mxu0 %v6879
  %7326 = vmatprep.subr.mxu0 0.0
  %7327 = vmatpush1.msra.mxu0 %v6880
  %7328 = vmatprep.mubr.f32.mxu0 %v6714
  %7329 = vmatmul.mubr.f32.gmra.mrb[0].mxu0 %v6713
  %v7330 = vpop.f32.mrb[0].mxu0
  %v7331 = vadd.f32 %v7261, %v7330
  %v7332 = vpop.f32.mrb[0].mxu0
  %7333 = vdwg.mxu0
  %7334 = vmatprep.subr.mxu0 0.0
  %7335 = vmatpush1.msra.mxu0 %v6881
  %7336 = vmatprep.subr.mxu0 0.0
  %7337 = vmatpush1.msra.mxu0 %v6882
  %7338 = vmatprep.subr.mxu0 0.0
  %7339 = vmatpush1.msra.mxu0 %v6883
  %7340 = vmatprep.subr.mxu0 0.0
  %7341 = vmatpush1.msra.mxu0 %v6884
  %7342 = vmatprep.subr.mxu0 0.0
  %7343 = vmatpush1.msra.mxu0 %v6885
  %7344 = vmatprep.subr.mxu0 0.0
  %7345 = vmatpush1.msra.mxu0 %v6886
  %7346 = vmatprep.subr.mxu0 0.0
  %7347 = vmatpush1.msra.mxu0 %v6887
  %7348 = vmatprep.subr.mxu0 0.0
  %7349 = vmatpush1.msra.mxu0 %v6888
  %7350 = vmatprep.subr.mxu0 0.0
  %7351 = vmatpush1.msra.mxu0 %v6889
  %7352 = vmatprep.subr.mxu0 0.0
  %7353 = vmatpush1.msra.mxu0 %v6890
  %7354 = vmatprep.subr.mxu0 0.0
  %7355 = vmatpush1.msra.mxu0 %v6891
  %7356 = vmatprep.subr.mxu0 0.0
  %7357 = vmatpush1.msra.mxu0 %v6892
  %7358 = vmatprep.subr.mxu0 0.0
  %7359 = vmatpush1.msra.mxu0 %v6893
  %7360 = vmatprep.subr.mxu0 0.0
  %7361 = vmatpush1.msra.mxu0 %v6894
  %7362 = vmatprep.subr.mxu0 0.0
  %7363 = vmatpush1.msra.mxu0 %v6895
  %7364 = vmatprep.subr.mxu0 0.0
  %7365 = vmatpush1.msra.mxu0 %v6896
  %7366 = vmatprep.subr.mxu0 0.0
  %7367 = vmatpush1.msra.mxu0 %v6897
  %7368 = vmatprep.subr.mxu0 0.0
  %7369 = vmatpush1.msra.mxu0 %v6898
  %7370 = vmatprep.subr.mxu0 0.0
  %7371 = vmatpush1.msra.mxu0 %v6899
  %7372 = vmatprep.subr.mxu0 0.0
  %7373 = vmatpush1.msra.mxu0 %v6900
  %7374 = vmatprep.subr.mxu0 0.0
  %7375 = vmatpush1.msra.mxu0 %v6901
  %7376 = vmatprep.subr.mxu0 0.0
  %7377 = vmatpush1.msra.mxu0 %v6902
  %7378 = vmatprep.subr.mxu0 0.0
  %7379 = vmatpush1.msra.mxu0 %v6903
  %7380 = vmatprep.subr.mxu0 0.0
  %7381 = vmatpush1.msra.mxu0 %v6904
  %7382 = vmatprep.subr.mxu0 0.0
  %7383 = vmatpush1.msra.mxu0 %v6905
  %7384 = vmatprep.subr.mxu0 0.0
  %7385 = vmatpush1.msra.mxu0 %v6906
  %7386 = vmatprep.subr.mxu0 0.0
  %7387 = vmatpush1.msra.mxu0 %v6907
  %7388 = vmatprep.subr.mxu0 0.0
  %7389 = vmatpush1.msra.mxu0 %v6908
  %7390 = vmatprep.subr.mxu0 0.0
  %7391 = vmatpush1.msra.mxu0 %v6909
  %7392 = vmatprep.subr.mxu0 0.0
  %7393 = vmatpush1.msra.mxu0 %v6910
  %7394 = vmatprep.subr.mxu0 0.0
  %7395 = vmatpush1.msra.mxu0 %v6911
  %7396 = vmatprep.subr.mxu0 0.0
  %7397 = vmatpush1.msra.mxu0 %v6912
  %7398 = vmatprep.mubr.f32.mxu0 %v6716
  %7399 = vmatmul.mubr.f32.gmra.mrb[0].mxu0 %v6715
  %v7400 = vpop.f32.mrb[0].mxu0
  %v7401 = vadd.f32 %v7331, %v7400
  %v7402 = vpop.f32.mrb[0].mxu0
  %7403 = vdwg.mxu0
  %7404 = vmatprep.subr.mxu0 0.0
  %7405 = vmatpush1.msra.mxu0 %v6913
  %7406 = vmatprep.subr.mxu0 0.0
  %7407 = vmatpush1.msra.mxu0 %v6914
  %7408 = vmatprep.subr.mxu0 0.0
  %7409 = vmatpush1.msra.mxu0 %v6915
  %7410 = vmatprep.subr.mxu0 0.0
  %7411 = vmatpush1.msra.mxu0 %v6916
  %7412 = vmatprep.subr.mxu0 0.0
  %7413 = vmatpush1.msra.mxu0 %v6917
  %7414 = vmatprep.subr.mxu0 0.0
  %7415 = vmatpush1.msra.mxu0 %v6918
  %7416 = vmatprep.subr.mxu0 0.0
  %7417 = vmatpush1.msra.mxu0 %v6919
  %7418 = vmatprep.subr.mxu0 0.0
  %7419 = vmatpush1.msra.mxu0 %v6920
  %7420 = vmatprep.subr.mxu0 0.0
  %7421 = vmatpush1.msra.mxu0 %v6921
  %7422 = vmatprep.subr.mxu0 0.0
  %7423 = vmatpush1.msra.mxu0 %v6922
  %7424 = vmatprep.subr.mxu0 0.0
  %7425 = vmatpush1.msra.mxu0 %v6923
  %7426 = vmatprep.subr.mxu0 0.0
  %7427 = vmatpush1.msra.mxu0 %v6924
  %7428 = vmatprep.subr.mxu0 0.0
  %7429 = vmatpush1.msra.mxu0 %v6925
  %7430 = vmatprep.subr.mxu0 0.0
  %7431 = vmatpush1.msra.mxu0 %v6926
  %7432 = vmatprep.subr.mxu0 0.0
  %7433 = vmatpush1.msra.mxu0 %v6927
  %7434 = vmatprep.subr.mxu0 0.0
  %7435 = vmatpush1.msra.mxu0 %v6928
  %7436 = vmatprep.subr.mxu0 0.0
  %7437 = vmatpush1.msra.mxu0 %v6929
  %7438 = vmatprep.subr.mxu0 0.0
  %7439 = vmatpush1.msra.mxu0 %v6930
  %7440 = vmatprep.subr.mxu0 0.0
  %7441 = vmatpush1.msra.mxu0 %v6931
  %7442 = vmatprep.subr.mxu0 0.0
  %7443 = vmatpush1.msra.mxu0 %v6932
  %7444 = vmatprep.subr.mxu0 0.0
  %7445 = vmatpush1.msra.mxu0 %v6933
  %7446 = vmatprep.subr.mxu0 0.0
  %7447 = vmatpush1.msra.mxu0 %v6934
  %7448 = vmatprep.subr.mxu0 0.0
  %7449 = vmatpush1.msra.mxu0 %v6935
  %7450 = vmatprep.subr.mxu0 0.0
  %7451 = vmatpush1.msra.mxu0 %v6936
  %7452 = vmatprep.subr.mxu0 0.0
  %7453 = vmatpush1.msra.mxu0 %v6937
  %7454 = vmatprep.subr.mxu0 0.0
  %7455 = vmatpush1.msra.mxu0 %v6938
  %7456 = vmatprep.subr.mxu0 0.0
  %7457 = vmatpush1.msra.mxu0 %v6939
  %7458 = vmatprep.subr.mxu0 0.0
  %7459 = vmatpush1.msra.mxu0 %v6940
  %7460 = vmatprep.subr.mxu0 0.0
  %7461 = vmatpush1.msra.mxu0 %v6941
  %7462 = vmatprep.subr.mxu0 0.0
  %7463 = vmatpush1.msra.mxu0 %v6942
  %7464 = vmatprep.subr.mxu0 0.0
  %7465 = vmatpush1.msra.mxu0 %v6943
  %7466 = vmatprep.subr.mxu0 0.0
  %7467 = vmatpush1.msra.mxu0 %v6944
  %7468 = vmatprep.mubr.f32.mxu0 %v6718
  %7469 = vmatmul.mubr.f32.gmra.mrb[0].mxu0 %v6717
  %v7470 = vpop.f32.mrb[0].mxu0
  %v7471 = vadd.f32 %v7401, %v7470
  %v7472 = vpop.f32.mrb[0].mxu0
  %7473 = vdwg.mxu0
  %7474 = vmatprep.subr.mxu0 0.0
  %7475 = vmatpush1.msra.mxu0 %v6945
  %7476 = vmatprep.subr.mxu0 0.0
  %7477 = vmatpush1.msra.mxu0 %v6946
  %7478 = vmatprep.subr.mxu0 0.0
  %7479 = vmatpush1.msra.mxu0 %v6947
  %7480 = vmatprep.subr.mxu0 0.0
  %7481 = vmatpush1.msra.mxu0 %v6948
  %7482 = vmatprep.subr.mxu0 0.0
  %7483 = vmatpush1.msra.mxu0 %v6949
  %7484 = vmatprep.subr.mxu0 0.0
  %7485 = vmatpush1.msra.mxu0 %v6950
  %7486 = vmatprep.subr.mxu0 0.0
  %7487 = vmatpush1.msra.mxu0 %v6951
  %7488 = vmatprep.subr.mxu0 0.0
  %7489 = vmatpush1.msra.mxu0 %v6952
  %7490 = vmatprep.subr.mxu0 0.0
  %7491 = vmatpush1.msra.mxu0 %v6953
  %7492 = vmatprep.subr.mxu0 0.0
  %7493 = vmatpush1.msra.mxu0 %v6954
  %7494 = vmatprep.subr.mxu0 0.0
  %7495 = vmatpush1.msra.mxu0 %v6955
  %7496 = vmatprep.subr.mxu0 0.0
  %7497 = vmatpush1.msra.mxu0 %v6956
  %7498 = vmatprep.subr.mxu0 0.0
  %7499 = vmatpush1.msra.mxu0 %v6957
  %7500 = vmatprep.subr.mxu0 0.0
  %7501 = vmatpush1.msra.mxu0 %v6958
  %7502 = vmatprep.subr.mxu0 0.0
  %7503 = vmatpush1.msra.mxu0 %v6959
  %7504 = vmatprep.subr.mxu0 0.0
  %7505 = vmatpush1.msra.mxu0 %v6960
  %7506 = vmatprep.subr.mxu0 0.0
  %7507 = vmatpush1.msra.mxu0 %v6961
  %7508 = vmatprep.subr.mxu0 0.0
  %7509 = vmatpush1.msra.mxu0 %v6962
  %7510 = vmatprep.subr.mxu0 0.0
  %7511 = vmatpush1.msra.mxu0 %v6963
  %7512 = vmatprep.subr.mxu0 0.0
  %7513 = vmatpush1.msra.mxu0 %v6964
  %7514 = vmatprep.subr.mxu0 0.0
  %7515 = vmatpush1.msra.mxu0 %v6965
  %7516 = vmatprep.subr.mxu0 0.0
  %7517 = vmatpush1.msra.mxu0 %v6966
  %7518 = vmatprep.subr.mxu0 0.0
  %7519 = vmatpush1.msra.mxu0 %v6967
  %7520 = vmatprep.subr.mxu0 0.0
  %7521 = vmatpush1.msra.mxu0 %v6968
  %7522 = vmatprep.subr.mxu0 0.0
  %7523 = vmatpush1.msra.mxu0 %v6969
  %7524 = vmatprep.subr.mxu0 0.0
  %7525 = vmatpush1.msra.mxu0 %v6970
  %7526 = vmatprep.subr.mxu0 0.0
  %7527 = vmatpush1.msra.mxu0 %v6971
  %7528 = vmatprep.subr.mxu0 0.0
  %7529 = vmatpush1.msra.mxu0 %v6972
  %7530 = vmatprep.subr.mxu0 0.0
  %7531 = vmatpush1.msra.mxu0 %v6973
  %7532 = vmatprep.subr.mxu0 0.0
  %7533 = vmatpush1.msra.mxu0 %v6974
  %7534 = vmatprep.subr.mxu0 0.0
  %7535 = vmatpush1.msra.mxu0 %v6975
  %7536 = vmatprep.subr.mxu0 0.0
  %7537 = vmatpush1.msra.mxu0 %v6976
  %7538 = vmatprep.mubr.f32.mxu0 %v6720
  %7539 = vmatmul.mubr.f32.gmra.mrb[0].mxu0 %v6719
  %v7540 = vpop.f32.mrb[0].mxu0
  %v7541 = vadd.f32 %v7471, %v7540
  %v7542 = vpop.f32.mrb[0].mxu0
  %7543 = vdwg.mxu0
  %7544 = vst [vmem:[%s12] sm:$0xff] %v7541
  // Predicated region
  $region46: #{base_encoder_forward.1} parent=0 // pred_check
    _
  $region47: #{base_encoder_forward.1} parent=0 // pred_check_branch
    %7546 = sbr.rel (0) target = $region49
  $region48: #{base_encoder_forward.1} parent=0 // pred_region
    _
  $region49: #{base_encoder_forward.1} parent=0 // pred_fallthru
    _
  // Predicated region
  $region50: #{base_encoder_forward.1} parent=0 // pred_check
    _
  $region51: #{base_encoder_forward.1} parent=0 // pred_check_branch
    %7548 = sbr.rel (0) target = $region53
  $region52: #{base_encoder_forward.1} parent=0 // pred_region
    _
  $region53: #{base_encoder_forward.1} parent=0 // pred_fallthru
    _
  // Predicated region
  $region54: #{base_encoder_forward.1} parent=0 // pred_check
    _
  $region55: #{base_encoder_forward.1} parent=0 // pred_check_branch
    %7550 = sbr.rel (0) target = $region57
  $region56: #{base_encoder_forward.1} parent=0 // pred_region
    _
  $region57: #{base_encoder_forward.1} parent=0 // pred_fallthru
    _
  // Predicated region
  $region58: #{base_encoder_forward.1} parent=0 // pred_check
    _
  $region59: #{base_encoder_forward.1} parent=0 // pred_check_branch
    %7552 = sbr.rel (0) target = $region61
  $region60: #{base_encoder_forward.1} parent=0 // pred_region
    _
  $region61: #{base_encoder_forward.1} parent=0 // pred_fallthru
    _

</llo_original>
